<compile_context>
chip_gen: v7x
topology: tpu7x:2x2x1
jax: 0.10.0
libtpu: 0.0.40
codegen_flags: <defaults>
</compile_context>

<pallas_src>
import math

import jax
import jax.numpy as jnp
from jax.experimental import pallas as pl
from jax.experimental.pallas import tpu as pltpu


DILATIONS = (1, 2, 1)   # GatedMaskedConv(C), GatedMaskedConv(C, dilation=2), GatedMaskedConv(C)
KSIZE = 3


# ---------------------------------------------------------------------------
# Mask -> active tap enumeration (raw kernel coordinates; matches the PyTorch
# VerticalStackConv / HorizontalStackConv masks exactly)
# ---------------------------------------------------------------------------

def vertical_taps(mask_type, k=KSIZE):
    # mask[:k//2, :] = 1 ; if 'B': also mask[k//2, :] = 1
    n_rows = k // 2 + (1 if mask_type == 'B' else 0)
    return [(r, c) for r in range(n_rows) for c in range(k)]


def horizontal_taps(mask_type, k=KSIZE):
    # kernel (1, k); mask[:, :k//2] = 1 ; if 'B': also mask[:, k//2] = 1
    n_cols = k // 2 + (1 if mask_type == 'B' else 0)
    return [(0, c) for c in range(n_cols)]


# ---------------------------------------------------------------------------
# Fused whole-network Pallas kernel
# ---------------------------------------------------------------------------

def make_pixelcnn_kernel(H, W, Cin, C, Cout, dilations):
    PMAX = max(1, max(dilations))       # largest spatial padding in the net
    CMAX = max(Cin, C)
    Hp, Wp = H + 2 * PMAX, W + 2 * PMAX
    HW = H * W
    f32 = jnp.float32
    bf16 = jnp.bfloat16

    def kernel(x_ref,
               w_vs_ref, b_vs_ref, w_hs_ref, b_hs_ref,
               wv_ref, bv_ref, whc_ref, bhc_ref,
               w1_ref, b1_ref, wo_ref, bo_ref,
               out_ref, pad_ref):

        # Re-zero ONLY the border strips (interior channels [:cin] are always
        # rewritten by load_interior before any read; channels beyond cin are
        # never read).  Done every step because the scratch is per-TensorCore
        # under "parallel" semantics (program_id==0 guard would be unsafe).
        pad_ref[:PMAX, :, :] = jnp.zeros((PMAX, Wp, CMAX), f32)
        pad_ref[PMAX + H:, :, :] = jnp.zeros((PMAX, Wp, CMAX), f32)
        pad_ref[PMAX:PMAX + H, :PMAX, :] = jnp.zeros((H, PMAX, CMAX), f32)
        pad_ref[PMAX:PMAX + H, PMAX + W:, :] = jnp.zeros((H, PMAX, CMAX), f32)

        def load_interior(val_hwc, cin):
            pad_ref[PMAX:PMAX + H, PMAX:PMAX + W, :cin] = val_hwc

        def im2col_slabs(taps, dil, ph, pw, cin):
            """Active taps as a list of (HW, cin) slabs (static slices)."""
            slabs = []
            for (r, c) in taps:
                r0 = PMAX - ph + r * dil
                c0 = PMAX - pw + c * dil
                slabs.append(
                    pad_ref[r0:r0 + H, c0:c0 + W, :cin].reshape(HW, cin))
            return slabs

        def cat(slabs):
            return slabs[0] if len(slabs) == 1 else jnp.concatenate(slabs, axis=1)

        def mm(a, w, b):
            # bf16 operands (same effective precision as default TPU matmul
            # precision on f32 inputs), f32 accumulate, f32 bias epilogue.
            return jnp.dot(a.astype(bf16), w, preferred_element_type=f32) + b

        # ---------------- initial 'A'-masked stacks ----------------
        load_interior(x_ref[0].astype(f32), Cin)
        v = mm(cat(im2col_slabs(vertical_taps('A'), 1, 1, 1, Cin)),
               w_vs_ref[...], b_vs_ref[...])                      # (HW, C)
        h = mm(cat(im2col_slabs(horizontal_taps('A'), 1, 0, 1, Cin)),
               w_hs_ref[...], b_hs_ref[...])                      # (HW, C)

        # ---------------- gated masked-conv layers ----------------
        for li, dil in enumerate(dilations):
            pad = dil * (KSIZE - 1) // 2                          # == dil

            # Vertical stack ('B'): ONE (HW, 6C) @ (6C, 2C) matmul; val|gate
            # are lane-slices of the 2C = 64-lane result.
            load_interior(v.reshape(H, W, C), C)
            cols_v = cat(im2col_slabs(vertical_taps('B'), dil, pad, pad, C))
            v_feat = mm(cols_v, wv_ref[li], bv_ref[li])           # (HW, 2C)
            v_new = jnp.tanh(v_feat[:, :C]) * jax.nn.sigmoid(v_feat[:, C:])

            # Horizontal stack ('B') with the vert->horiz 1x1 folded in via
            # K-concat: [tap0 | tap1 | v_feat] (HW, 4C) @ [[Wh];[Wv2h]].
            load_interior(h.reshape(H, W, C), C)
            h_slabs = im2col_slabs(horizontal_taps('B'), dil, 0, pad, C)
            h_cat = jnp.concatenate(h_slabs + [v_feat], axis=1)   # (HW, 4C)
            h_feat = mm(h_cat, whc_ref[li], bhc_ref[li])          # (HW, 2C)
            h_gated = jnp.tanh(h_feat[:, :C]) * jax.nn.sigmoid(h_feat[:, C:])

            # 1x1 conv + residual
            h = mm(h_gated, w1_ref[li], b1_ref[li]) + h
            v = v_new

        # ---------------- output head: conv_out(ELU(h)) ----------------
        h_elu = jnp.where(h > 0, h, jnp.exp(jnp.minimum(h, 0.0)) - 1.0)
        out = mm(h_elu, wo_ref[...], bo_ref[...])                 # (HW, Cout)
        out_ref[0] = out.astype(out_ref.dtype)

    return kernel, PMAX


def gated_pixelcnn_forward(packed, x_nchw, dilations=DILATIONS):
    """Runs the full GatedPixelCNN forward with a single pallas_call."""
    B, Cin, H, W = x_nchw.shape
    C = packed["w_vs"].shape[1]
    Cout = packed["wo"].shape[1]
    HW = H * W
    assert packed["wv"].shape[0] == len(dilations)

    x = jnp.transpose(x_nchw, (0, 2, 3, 1))            # NCHW -> NHWC

    kernel, PMAX = make_pixelcnn_kernel(H, W, Cin, C, Cout, dilations)
    CMAX = max(Cin, C)

    def whole(shape):
        nd = len(shape)
        return pl.BlockSpec(shape, lambda i, _nd=nd: (0,) * _nd)

    arg_order = ("w_vs", "b_vs", "w_hs", "b_hs", "wv", "bv", "whc", "bhc",
                 "w1", "b1", "wo", "bo")
    weight_args = [packed[k] for k in arg_order]

    in_specs = [pl.BlockSpec((1, H, W, Cin), lambda i: (i, 0, 0, 0))]
    in_specs += [whole(a.shape) for a in weight_args]

    out = pl.pallas_call(
        kernel,
        out_shape=jax.ShapeDtypeStruct((B, HW, Cout), x.dtype),
        grid=(B,),
        in_specs=in_specs,
        out_specs=pl.BlockSpec((1, HW, Cout), lambda i: (i, 0, 0)),
        scratch_shapes=[
            pltpu.VMEM((H + 2 * PMAX, W + 2 * PMAX, CMAX), jnp.float32)],
        compiler_params=pltpu.CompilerParams(
            dimension_semantics=("parallel",)),
    )(x, *weight_args)

    out = out.reshape(B, H, W, Cout)
    return jnp.transpose(out, (0, 3, 1, 2))            # NHWC -> NCHW


# ---------------------------------------------------------------------------
# Deterministic synthetic parameters (mirror the PyTorch module's shapes) and
# repacking into the fused-kernel layout
# ---------------------------------------------------------------------------

def init_conv_params(key, n_taps, cin, cout):
    kw, kb = jax.random.split(key)
    fan_in = n_taps * cin
    w = jax.random.normal(kw, (n_taps, cin, cout), jnp.float32) / math.sqrt(fan_in)
    b = jax.random.normal(kb, (1, cout), jnp.float32) * 0.01
    return w, b


def init_gated_pixelcnn(key, in_channels, channels, out_channels):
    keys = jax.random.split(key, 15)
    params = {}
    params["vstack"] = init_conv_params(keys[0], 3, in_channels, channels)
    params["hstack"] = init_conv_params(keys[1], 1, in_channels, channels)
    params["layers"] = []
    ki = 2
    for _ in range(3):
        layer = {
            "conv_vert": init_conv_params(keys[ki], 6, channels, 2 * channels),
            "conv_horiz": init_conv_params(keys[ki + 1], 2, channels, 2 * channels),
            "conv_v2h": init_conv_params(keys[ki + 2], 1, 2 * channels, 2 * channels),
            "conv_h1x1": init_conv_params(keys[ki + 3], 1, channels, channels),
        }
        params["layers"].append(layer)
        ki += 4
    params["conv_out"] = init_conv_params(keys[ki], 1, channels, out_channels)
    return params


def pack_params(params):
    """Fold taps into K (matmul rows), keep the 2C 'val|gate' outputs fused as
    the matmul N dimension, fold conv_v2h into the horizontal conv weight by
    stacking along K (bias pre-summed), and pre-cast weights to bf16
    (biases stay f32 for the f32 epilogue add)."""
    bf16 = jnp.bfloat16

    def fold_k(w):                      # (T, cin, cout) -> (T*cin, cout)
        T, ci, co = w.shape
        return w.reshape(T * ci, co)

    wv_l, bv_l, whc_l, bhc_l, w1_l, b1_l = ([] for _ in range(6))
    for layer in params["layers"]:
        wv, bv = layer["conv_vert"]
        wv_l.append(fold_k(wv).astype(bf16))
        bv_l.append(bv)
        (wh, bh), (w2, b2) = layer["conv_horiz"], layer["conv_v2h"]
        whc_l.append(jnp.concatenate([fold_k(wh), fold_k(w2)], axis=0).astype(bf16))
        bhc_l.append(bh + b2)
        w1, b1 = layer["conv_h1x1"]
        w1_l.append(fold_k(w1).astype(bf16))
        b1_l.append(b1)

    return {
        "w_vs": fold_k(params["vstack"][0]).astype(bf16), "b_vs": params["vstack"][1],
        "w_hs": fold_k(params["hstack"][0]).astype(bf16), "b_hs": params["hstack"][1],
        "wv": jnp.stack(wv_l), "bv": jnp.stack(bv_l),
        "whc": jnp.stack(whc_l), "bhc": jnp.stack(bhc_l),
        "w1": jnp.stack(w1_l), "b1": jnp.stack(b1_l),
        "wo": fold_k(params["conv_out"][0]).astype(bf16), "bo": params["conv_out"][1],
    }


# ---------------------------------------------------------------------------
# Pure-JAX reference (dilated convs with explicitly masked kernels) for a
# sanity check of the fused kernel
# ---------------------------------------------------------------------------

def _masked_conv_ref(x, w_taps, b, taps, ksize, dilation, pad):
    kh, kw = ksize
    _, cin, cout = w_taps.shape
    wfull = jnp.zeros((kh, kw, cin, cout), jnp.float32)
    for t, (r, c) in enumerate(taps):
        wfull = wfull.at[r, c].set(w_taps[t])
    y = jax.lax.conv_general_dilated(
        x, wfull, window_strides=(1, 1),
        padding=((pad[0], pad[0]), (pad[1], pad[1])),
        rhs_dilation=(dilation, dilation),
        dimension_numbers=("NHWC", "HWIO", "NHWC"))
    return y + b.reshape(1, 1, 1, cout)


def gated_pixelcnn_reference(params, x_nchw, dilations=DILATIONS):
    x = jnp.transpose(x_nchw, (0, 2, 3, 1))
    wv, bv = params["vstack"]
    v = _masked_conv_ref(x, wv, bv, vertical_taps('A'), (3, 3), 1, (1, 1))
    wh, bh = params["hstack"]
    h = _masked_conv_ref(x, wh, bh, horizontal_taps('A'), (1, 3), 1, (0, 1))
    for layer, d in zip(params["layers"], dilations):
        p = d * (KSIZE - 1) // 2
        w, b = layer["conv_vert"]
        v_feat = _masked_conv_ref(v, w, b, vertical_taps('B'), (3, 3), d, (p, p))
        v_val, v_gate = jnp.split(v_feat, 2, axis=-1)
        v_out = jnp.tanh(v_val) * jax.nn.sigmoid(v_gate)
        w, b = layer["conv_v2h"]
        v2h = _masked_conv_ref(v_feat, w, b, [(0, 0)], (1, 1), 1, (0, 0))
        w, b = layer["conv_horiz"]
        h_feat = _masked_conv_ref(h, w, b, horizontal_taps('B'), (1, 3), d, (0, p)) + v2h
        h_val, h_gate = jnp.split(h_feat, 2, axis=-1)
        h_gated = jnp.tanh(h_val) * jax.nn.sigmoid(h_gate)
        w, b = layer["conv_h1x1"]
        h = _masked_conv_ref(h_gated, w, b, [(0, 0)], (1, 1), 1, (0, 0)) + h
        v = v_out
    h_elu = jnp.where(h > 0, h, jnp.exp(jnp.minimum(h, 0.0)) - 1.0)
    wo, bo = params["conv_out"]
    out = _masked_conv_ref(h_elu, wo, bo, [(0, 0)], (1, 1), 1, (0, 0))
    return jnp.transpose(out, (0, 3, 1, 2))


# ---------------------------------------------------------------------------
# Demo
# ---------------------------------------------------------------------------

if __name__ == "__main__":
    key = jax.random.PRNGKey(0)
    kx, kp = jax.random.split(key)

    B, Cin, H, W = 2, 4, 16, 16
    channels, Cout = 32, 16

    x = jax.random.normal(kx, (B, Cin, H, W), jnp.float32)
    params = init_gated_pixelcnn(kp, Cin, channels, Cout)
    packed = pack_params(params)

    fwd = jax.jit(gated_pixelcnn_forward)
    out = fwd(packed, x)
    jax.block_until_ready(out)

    assert out.shape == (B, Cout, H, W), out.shape
    assert out.dtype == jnp.float32
    assert bool(jnp.all(jnp.isfinite(out)))

    # Sanity check vs. plain-JAX dilated convs (loose tolerance: the kernel's
    # explicit bf16 matmul operands match the bf16-truncating default TPU
    # matmul precision used by the reference).
    ref = gated_pixelcnn_reference(params, x)
    err = float(jnp.max(jnp.abs(out - ref)))
    scale = float(jnp.max(jnp.abs(ref)))
    assert err <= 5e-2 * max(scale, 1.0) + 5e-3, f"mismatch: err={err}, scale={scale}"

    print("KERNEL_OK")
</pallas_src>

<mosaic_0001>
module attributes {stable_mosaic.version = 11 : i64} {
  func.func @kernel(%arg0: i32, %arg1: memref<1x16x16x4xf32, #tpu.memory_space<vmem>>, %arg2: memref<12x32xbf16, #tpu.memory_space<vmem>>, %arg3: memref<1x32xf32, #tpu.memory_space<vmem>>, %arg4: memref<4x32xbf16, #tpu.memory_space<vmem>>, %arg5: memref<1x32xf32, #tpu.memory_space<vmem>>, %arg6: memref<3x192x64xbf16, #tpu.memory_space<vmem>>, %arg7: memref<3x1x64xf32, #tpu.memory_space<vmem>>, %arg8: memref<3x128x64xbf16, #tpu.memory_space<vmem>>, %arg9: memref<3x1x64xf32, #tpu.memory_space<vmem>>, %arg10: memref<3x32x32xbf16, #tpu.memory_space<vmem>>, %arg11: memref<3x1x32xf32, #tpu.memory_space<vmem>>, %arg12: memref<32x16xbf16, #tpu.memory_space<vmem>>, %arg13: memref<1x16xf32, #tpu.memory_space<vmem>>, %arg14: memref<1x256x16xf32, #tpu.memory_space<vmem>>, %arg15: memref<20x20x32xf32, #tpu.memory_space<vmem>>) attributes {dimension_semantics = [#tpu.dimension_semantics<parallel>], iteration_bounds = array<i64: 2>, scalar_prefetch = 0 : i64, scratch_operands = 1 : i64, tpu.core_type = #tpu.core_type<tc>, window_params = [{transform_indices = @transform_0, window_bounds = array<i64: 1, 16, 16, 4>}, {pipeline_mode = #tpu.pipeline_mode<synchronous>, transform_indices = @transform_1, window_bounds = array<i64: 12, 32>}, {pipeline_mode = #tpu.pipeline_mode<synchronous>, transform_indices = @transform_2, window_bounds = array<i64: 1, 32>}, {pipeline_mode = #tpu.pipeline_mode<synchronous>, transform_indices = @transform_3, window_bounds = array<i64: 4, 32>}, {pipeline_mode = #tpu.pipeline_mode<synchronous>, transform_indices = @transform_4, window_bounds = array<i64: 1, 32>}, {pipeline_mode = #tpu.pipeline_mode<synchronous>, transform_indices = @transform_5, window_bounds = array<i64: 3, 192, 64>}, {pipeline_mode = #tpu.pipeline_mode<synchronous>, transform_indices = @transform_6, window_bounds = array<i64: 3, 1, 64>}, {pipeline_mode = #tpu.pipeline_mode<synchronous>, transform_indices = @transform_7, window_bounds = array<i64: 3, 128, 64>}, {pipeline_mode = #tpu.pipeline_mode<synchronous>, transform_indices = @transform_8, window_bounds = array<i64: 3, 1, 64>}, {pipeline_mode = #tpu.pipeline_mode<synchronous>, transform_indices = @transform_9, window_bounds = array<i64: 3, 32, 32>}, {pipeline_mode = #tpu.pipeline_mode<synchronous>, transform_indices = @transform_10, window_bounds = array<i64: 3, 1, 32>}, {pipeline_mode = #tpu.pipeline_mode<synchronous>, transform_indices = @transform_11, window_bounds = array<i64: 32, 16>}, {pipeline_mode = #tpu.pipeline_mode<synchronous>, transform_indices = @transform_12, window_bounds = array<i64: 1, 16>}, {transform_indices = @transform_13, window_bounds = array<i64: 1, 256, 16>}]} {
    %cst = arith.constant 0.000000e+00 : f32
    %0 = vector.broadcast %cst : f32 to vector<2x20x32xf32>
    %c0 = arith.constant 0 : index
    %c0_0 = arith.constant 0 : index
    %c0_1 = arith.constant 0 : index
    %1 = vector.load %arg15[%c0, %c0_0, %c0_1] : memref<20x20x32xf32, #tpu.memory_space<vmem>>, vector<2x20x32xf32>
    tpu.vector_store %arg15[%c0, %c0_0, %c0_1], %0 {strides = array<i32>} : memref<20x20x32xf32, #tpu.memory_space<vmem>>, vector<2x20x32xf32>,
    %cst_2 = arith.constant 0.000000e+00 : f32
    %2 = vector.broadcast %cst_2 : f32 to vector<2x20x32xf32>
    %c18 = arith.constant 18 : index
    %c0_3 = arith.constant 0 : index
    %c0_4 = arith.constant 0 : index
    %3 = vector.load %arg15[%c18, %c0_3, %c0_4] : memref<20x20x32xf32, #tpu.memory_space<vmem>>, vector<2x20x32xf32>
    tpu.vector_store %arg15[%c18, %c0_3, %c0_4], %2 {strides = array<i32>} : memref<20x20x32xf32, #tpu.memory_space<vmem>>, vector<2x20x32xf32>,
    %cst_5 = arith.constant 0.000000e+00 : f32
    %4 = vector.broadcast %cst_5 : f32 to vector<16x2x32xf32>
    %c2 = arith.constant 2 : index
    %c0_6 = arith.constant 0 : index
    %c0_7 = arith.constant 0 : index
    %5 = vector.load %arg15[%c2, %c0_6, %c0_7] : memref<20x20x32xf32, #tpu.memory_space<vmem>>, vector<16x2x32xf32>
    tpu.vector_store %arg15[%c2, %c0_6, %c0_7], %4 {strides = array<i32>} : memref<20x20x32xf32, #tpu.memory_space<vmem>>, vector<16x2x32xf32>,
    %cst_8 = arith.constant 0.000000e+00 : f32
    %6 = vector.broadcast %cst_8 : f32 to vector<16x2x32xf32>
    %c2_9 = arith.constant 2 : index
    %c18_10 = arith.constant 18 : index
    %c0_11 = arith.constant 0 : index
    %7 = vector.load %arg15[%c2_9, %c18_10, %c0_11] : memref<20x20x32xf32, #tpu.memory_space<vmem>>, vector<16x2x32xf32>
    tpu.vector_store %arg15[%c2_9, %c18_10, %c0_11], %6 {strides = array<i32>} : memref<20x20x32xf32, #tpu.memory_space<vmem>>, vector<16x2x32xf32>,
    %c0_12 = arith.constant 0 : index
    %c0_13 = arith.constant 0 : index
    %c0_14 = arith.constant 0 : index
    %c0_15 = arith.constant 0 : index
    %8 = vector.load %arg1[%c0_12, %c0_13, %c0_14, %c0_15] : memref<1x16x16x4xf32, #tpu.memory_space<vmem>>, vector<1x16x16x4xf32>
    %9 = vector.shape_cast %8 : vector<1x16x16x4xf32> to vector<16x16x4xf32>
    %c2_16 = arith.constant 2 : index
    %c2_17 = arith.constant 2 : index
    %c0_18 = arith.constant 0 : index
    %10 = vector.load %arg15[%c2_16, %c2_17, %c0_18] : memref<20x20x32xf32, #tpu.memory_space<vmem>>, vector<16x16x4xf32>
    tpu.vector_store %arg15[%c2_16, %c2_17, %c0_18], %9 {strides = array<i32>} : memref<20x20x32xf32, #tpu.memory_space<vmem>>, vector<16x16x4xf32>,
    %c1 = arith.constant 1 : index
    %c1_19 = arith.constant 1 : index
    %c0_20 = arith.constant 0 : index
    %11 = vector.load %arg15[%c1, %c1_19, %c0_20] : memref<20x20x32xf32, #tpu.memory_space<vmem>>, vector<16x16x4xf32>
    %12 = vector.shape_cast %11 : vector<16x16x4xf32> to vector<256x4xf32>
    %c1_21 = arith.constant 1 : index
    %c2_22 = arith.constant 2 : index
    %c0_23 = arith.constant 0 : index
    %13 = vector.load %arg15[%c1_21, %c2_22, %c0_23] : memref<20x20x32xf32, #tpu.memory_space<vmem>>, vector<16x16x4xf32>
    %14 = vector.shape_cast %13 : vector<16x16x4xf32> to vector<256x4xf32>
    %c1_24 = arith.constant 1 : index
    %c3 = arith.constant 3 : index
    %c0_25 = arith.constant 0 : index
    %15 = vector.load %arg15[%c1_24, %c3, %c0_25] : memref<20x20x32xf32, #tpu.memory_space<vmem>>, vector<16x16x4xf32>
    %16 = vector.shape_cast %15 : vector<16x16x4xf32> to vector<256x4xf32>
    %17 = tpu.concatenate %12, %14, %16 in 1 : vector<256x4xf32>, vector<256x4xf32>, vector<256x4xf32> -> vector<256x12xf32>
    %c0_26 = arith.constant 0 : index
    %c0_27 = arith.constant 0 : index
    %18 = vector.load %arg2[%c0_26, %c0_27] : memref<12x32xbf16, #tpu.memory_space<vmem>>, vector<12x32xbf16>
    %c0_28 = arith.constant 0 : index
    %c0_29 = arith.constant 0 : index
    %19 = vector.load %arg3[%c0_28, %c0_29] : memref<1x32xf32, #tpu.memory_space<vmem>>, vector<1x32xf32>
    %20 = arith.truncf %17 : vector<256x12xf32> to vector<256x12xbf16>
    %cst_30 = arith.constant dense<0.000000e+00> : vector<256x32xf32>
    %21 = tpu.matmul %20, %18, %cst_30 {dimension_numbers = #tpu.dot_dimension_numbers<[1], [0], [0], [1], [0, 0, 1, 1], [], []>} : vector<256x12xbf16>, vector<12x32xbf16>, vector<256x32xf32> -> vector<256x32xf32>
    %22 = vector.broadcast %19 : vector<1x32xf32> to vector<256x32xf32>
    %23 = arith.addf %21, %22 : vector<256x32xf32>
    %c2_31 = arith.constant 2 : index
    %c1_32 = arith.constant 1 : index
    %c0_33 = arith.constant 0 : index
    %24 = vector.load %arg15[%c2_31, %c1_32, %c0_33] : memref<20x20x32xf32, #tpu.memory_space<vmem>>, vector<16x16x4xf32>
    %25 = vector.shape_cast %24 : vector<16x16x4xf32> to vector<256x4xf32>
    %c0_34 = arith.constant 0 : index
    %c0_35 = arith.constant 0 : index
    %26 = vector.load %arg4[%c0_34, %c0_35] : memref<4x32xbf16, #tpu.memory_space<vmem>>, vector<4x32xbf16>
    %c0_36 = arith.constant 0 : index
    %c0_37 = arith.constant 0 : index
    %27 = vector.load %arg5[%c0_36, %c0_37] : memref<1x32xf32, #tpu.memory_space<vmem>>, vector<1x32xf32>
    %28 = arith.truncf %25 : vector<256x4xf32> to vector<256x4xbf16>
    %cst_38 = arith.constant dense<0.000000e+00> : vector<256x32xf32>
    %29 = tpu.matmul %28, %26, %cst_38 {dimension_numbers = #tpu.dot_dimension_numbers<[1], [0], [0], [1], [0, 0, 1, 1], [], []>} : vector<256x4xbf16>, vector<4x32xbf16>, vector<256x32xf32> -> vector<256x32xf32>
    %30 = vector.broadcast %27 : vector<1x32xf32> to vector<256x32xf32>
    %31 = arith.addf %29, %30 : vector<256x32xf32>
    %32 = vector.shape_cast %23 : vector<256x32xf32> to vector<16x16x32xf32>
    %c2_39 = arith.constant 2 : index
    %c2_40 = arith.constant 2 : index
    %c0_41 = arith.constant 0 : index
    %33 = vector.load %arg15[%c2_39, %c2_40, %c0_41] : memref<20x20x32xf32, #tpu.memory_space<vmem>>, vector<16x16x32xf32>
    tpu.vector_store %arg15[%c2_39, %c2_40, %c0_41], %32 {strides = array<i32>} : memref<20x20x32xf32, #tpu.memory_space<vmem>>, vector<16x16x32xf32>,
    %c1_42 = arith.constant 1 : index
    %c1_43 = arith.constant 1 : index
    %c0_44 = arith.constant 0 : index
    %34 = vector.load %arg15[%c1_42, %c1_43, %c0_44] : memref<20x20x32xf32, #tpu.memory_space<vmem>>, vector<16x16x32xf32>
    %35 = vector.shape_cast %34 : vector<16x16x32xf32> to vector<256x32xf32>
    %c1_45 = arith.constant 1 : index
    %c2_46 = arith.constant 2 : index
    %c0_47 = arith.constant 0 : index
    %36 = vector.load %arg15[%c1_45, %c2_46, %c0_47] : memref<20x20x32xf32, #tpu.memory_space<vmem>>, vector<16x16x32xf32>
    %37 = vector.shape_cast %36 : vector<16x16x32xf32> to vector<256x32xf32>
    %c1_48 = arith.constant 1 : index
    %c3_49 = arith.constant 3 : index
    %c0_50 = arith.constant 0 : index
    %38 = vector.load %arg15[%c1_48, %c3_49, %c0_50] : memref<20x20x32xf32, #tpu.memory_space<vmem>>, vector<16x16x32xf32>
    %39 = vector.shape_cast %38 : vector<16x16x32xf32> to vector<256x32xf32>
    %c2_51 = arith.constant 2 : index
    %c1_52 = arith.constant 1 : index
    %c0_53 = arith.constant 0 : index
    %40 = vector.load %arg15[%c2_51, %c1_52, %c0_53] : memref<20x20x32xf32, #tpu.memory_space<vmem>>, vector<16x16x32xf32>
    %41 = vector.shape_cast %40 : vector<16x16x32xf32> to vector<256x32xf32>
    %c2_54 = arith.constant 2 : index
    %c2_55 = arith.constant 2 : index
    %c0_56 = arith.constant 0 : index
    %42 = vector.load %arg15[%c2_54, %c2_55, %c0_56] : memref<20x20x32xf32, #tpu.memory_space<vmem>>, vector<16x16x32xf32>
    %43 = vector.shape_cast %42 : vector<16x16x32xf32> to vector<256x32xf32>
    %c2_57 = arith.constant 2 : index
    %c3_58 = arith.constant 3 : index
    %c0_59 = arith.constant 0 : index
    %44 = vector.load %arg15[%c2_57, %c3_58, %c0_59] : memref<20x20x32xf32, #tpu.memory_space<vmem>>, vector<16x16x32xf32>
    %45 = vector.shape_cast %44 : vector<16x16x32xf32> to vector<256x32xf32>
    %46 = tpu.concatenate %35, %37, %39, %41, %43, %45 in 1 : vector<256x32xf32>, vector<256x32xf32>, vector<256x32xf32>, vector<256x32xf32>, vector<256x32xf32>, vector<256x32xf32> -> vector<256x192xf32>
    %c0_60 = arith.constant 0 : index
    %c0_61 = arith.constant 0 : index
    %c0_62 = arith.constant 0 : index
    %47 = vector.load %arg6[%c0_60, %c0_61, %c0_62] : memref<3x192x64xbf16, #tpu.memory_space<vmem>>, vector<1x192x64xbf16>
    %48 = vector.shape_cast %47 : vector<1x192x64xbf16> to vector<192x64xbf16>
    %c0_63 = arith.constant 0 : index
    %c0_64 = arith.constant 0 : index
    %c0_65 = arith.constant 0 : index
    %49 = vector.load %arg7[%c0_63, %c0_64, %c0_65] : memref<3x1x64xf32, #tpu.memory_space<vmem>>, vector<1x1x64xf32>
    %50 = vector.shape_cast %49 : vector<1x1x64xf32> to vector<1x64xf32>
    %51 = arith.truncf %46 : vector<256x192xf32> to vector<256x192xbf16>
    %cst_66 = arith.constant dense<0.000000e+00> : vector<256x64xf32>
    %52 = tpu.matmul %51, %48, %cst_66 {dimension_numbers = #tpu.dot_dimension_numbers<[1], [0], [0], [1], [0, 0, 1, 1], [], []>} : vector<256x192xbf16>, vector<192x64xbf16>, vector<256x64xf32> -> vector<256x64xf32>
    %53 = vector.broadcast %50 : vector<1x64xf32> to vector<256x64xf32>
    %54 = arith.addf %52, %53 : vector<256x64xf32>
    %55 = vector.extract_strided_slice %54 {offsets = [0, 0], sizes = [256, 32], strides = [1, 1]} : vector<256x64xf32> to vector<256x32xf32>
    %56 = math.tanh %55 : vector<256x32xf32>
    %57 = vector.extract_strided_slice %54 {offsets = [0, 32], sizes = [256, 32], strides = [1, 1]} : vector<256x64xf32> to vector<256x32xf32>
    %58 = arith.negf %57 : vector<256x32xf32>
    %59 = math.exp %58 : vector<256x32xf32>
    %cst_67 = arith.constant 1.000000e+00 : f32
    %60 = vector.broadcast %cst_67 : f32 to vector<256x32xf32>
    %61 = arith.addf %60, %59 : vector<256x32xf32>
    %62 = arith.divf %60, %61 : vector<256x32xf32>
    %63 = arith.mulf %56, %62 : vector<256x32xf32>
    %64 = vector.shape_cast %31 : vector<256x32xf32> to vector<16x16x32xf32>
    %c2_68 = arith.constant 2 : index
    %c2_69 = arith.constant 2 : index
    %c0_70 = arith.constant 0 : index
    %65 = vector.load %arg15[%c2_68, %c2_69, %c0_70] : memref<20x20x32xf32, #tpu.memory_space<vmem>>, vector<16x16x32xf32>
    tpu.vector_store %arg15[%c2_68, %c2_69, %c0_70], %64 {strides = array<i32>} : memref<20x20x32xf32, #tpu.memory_space<vmem>>, vector<16x16x32xf32>,
    %c2_71 = arith.constant 2 : index
    %c1_72 = arith.constant 1 : index
    %c0_73 = arith.constant 0 : index
    %66 = vector.load %arg15[%c2_71, %c1_72, %c0_73] : memref<20x20x32xf32, #tpu.memory_space<vmem>>, vector<16x16x32xf32>
    %67 = vector.shape_cast %66 : vector<16x16x32xf32> to vector<256x32xf32>
    %c2_74 = arith.constant 2 : index
    %c2_75 = arith.constant 2 : index
    %c0_76 = arith.constant 0 : index
    %68 = vector.load %arg15[%c2_74, %c2_75, %c0_76] : memref<20x20x32xf32, #tpu.memory_space<vmem>>, vector<16x16x32xf32>
    %69 = vector.shape_cast %68 : vector<16x16x32xf32> to vector<256x32xf32>
    %70 = tpu.concatenate %67, %69, %54 in 1 : vector<256x32xf32>, vector<256x32xf32>, vector<256x64xf32> -> vector<256x128xf32>
    %c0_77 = arith.constant 0 : index
    %c0_78 = arith.constant 0 : index
    %c0_79 = arith.constant 0 : index
    %71 = vector.load %arg8[%c0_77, %c0_78, %c0_79] : memref<3x128x64xbf16, #tpu.memory_space<vmem>>, vector<1x128x64xbf16>
    %72 = vector.shape_cast %71 : vector<1x128x64xbf16> to vector<128x64xbf16>
    %c0_80 = arith.constant 0 : index
    %c0_81 = arith.constant 0 : index
    %c0_82 = arith.constant 0 : index
    %73 = vector.load %arg9[%c0_80, %c0_81, %c0_82] : memref<3x1x64xf32, #tpu.memory_space<vmem>>, vector<1x1x64xf32>
    %74 = vector.shape_cast %73 : vector<1x1x64xf32> to vector<1x64xf32>
    %75 = arith.truncf %70 : vector<256x128xf32> to vector<256x128xbf16>
    %cst_83 = arith.constant dense<0.000000e+00> : vector<256x64xf32>
    %76 = tpu.matmul %75, %72, %cst_83 {dimension_numbers = #tpu.dot_dimension_numbers<[1], [0], [0], [1], [0, 0, 1, 1], [], []>} : vector<256x128xbf16>, vector<128x64xbf16>, vector<256x64xf32> -> vector<256x64xf32>
    %77 = vector.broadcast %74 : vector<1x64xf32> to vector<256x64xf32>
    %78 = arith.addf %76, %77 : vector<256x64xf32>
    %79 = vector.extract_strided_slice %78 {offsets = [0, 0], sizes = [256, 32], strides = [1, 1]} : vector<256x64xf32> to vector<256x32xf32>
    %80 = math.tanh %79 : vector<256x32xf32>
    %81 = vector.extract_strided_slice %78 {offsets = [0, 32], sizes = [256, 32], strides = [1, 1]} : vector<256x64xf32> to vector<256x32xf32>
    %82 = arith.negf %81 : vector<256x32xf32>
    %83 = math.exp %82 : vector<256x32xf32>
    %cst_84 = arith.constant 1.000000e+00 : f32
    %84 = vector.broadcast %cst_84 : f32 to vector<256x32xf32>
    %85 = arith.addf %84, %83 : vector<256x32xf32>
    %86 = arith.divf %84, %85 : vector<256x32xf32>
    %87 = arith.mulf %80, %86 : vector<256x32xf32>
    %c0_85 = arith.constant 0 : index
    %c0_86 = arith.constant 0 : index
    %c0_87 = arith.constant 0 : index
    %88 = vector.load %arg10[%c0_85, %c0_86, %c0_87] : memref<3x32x32xbf16, #tpu.memory_space<vmem>>, vector<1x32x32xbf16>
    %89 = vector.shape_cast %88 : vector<1x32x32xbf16> to vector<32x32xbf16>
    %c0_88 = arith.constant 0 : index
    %c0_89 = arith.constant 0 : index
    %c0_90 = arith.constant 0 : index
    %90 = vector.load %arg11[%c0_88, %c0_89, %c0_90] : memref<3x1x32xf32, #tpu.memory_space<vmem>>, vector<1x1x32xf32>
    %91 = vector.shape_cast %90 : vector<1x1x32xf32> to vector<1x32xf32>
    %92 = arith.truncf %87 : vector<256x32xf32> to vector<256x32xbf16>
    %cst_91 = arith.constant dense<0.000000e+00> : vector<256x32xf32>
    %93 = tpu.matmul %92, %89, %cst_91 {dimension_numbers = #tpu.dot_dimension_numbers<[1], [0], [0], [1], [0, 0, 1, 1], [], []>} : vector<256x32xbf16>, vector<32x32xbf16>, vector<256x32xf32> -> vector<256x32xf32>
    %94 = vector.broadcast %91 : vector<1x32xf32> to vector<256x32xf32>
    %95 = arith.addf %93, %94 : vector<256x32xf32>
    %96 = arith.addf %95, %31 : vector<256x32xf32>
    %97 = vector.shape_cast %63 : vector<256x32xf32> to vector<16x16x32xf32>
    %c2_92 = arith.constant 2 : index
    %c2_93 = arith.constant 2 : index
    %c0_94 = arith.constant 0 : index
    %98 = vector.load %arg15[%c2_92, %c2_93, %c0_94] : memref<20x20x32xf32, #tpu.memory_space<vmem>>, vector<16x16x32xf32>
    tpu.vector_store %arg15[%c2_92, %c2_93, %c0_94], %97 {strides = array<i32>} : memref<20x20x32xf32, #tpu.memory_space<vmem>>, vector<16x16x32xf32>,
    %c0_95 = arith.constant 0 : index
    %c0_96 = arith.constant 0 : index
    %c0_97 = arith.constant 0 : index
    %99 = vector.load %arg15[%c0_95, %c0_96, %c0_97] : memref<20x20x32xf32, #tpu.memory_space<vmem>>, vector<16x16x32xf32>
    %100 = vector.shape_cast %99 : vector<16x16x32xf32> to vector<256x32xf32>
    %c0_98 = arith.constant 0 : index
    %c2_99 = arith.constant 2 : index
    %c0_100 = arith.constant 0 : index
    %101 = vector.load %arg15[%c0_98, %c2_99, %c0_100] : memref<20x20x32xf32, #tpu.memory_space<vmem>>, vector<16x16x32xf32>
    %102 = vector.shape_cast %101 : vector<16x16x32xf32> to vector<256x32xf32>
    %c0_101 = arith.constant 0 : index
    %c4 = arith.constant 4 : index
    %c0_102 = arith.constant 0 : index
    %103 = vector.load %arg15[%c0_101, %c4, %c0_102] : memref<20x20x32xf32, #tpu.memory_space<vmem>>, vector<16x16x32xf32>
    %104 = vector.shape_cast %103 : vector<16x16x32xf32> to vector<256x32xf32>
    %c2_103 = arith.constant 2 : index
    %c0_104 = arith.constant 0 : index
    %c0_105 = arith.constant 0 : index
    %105 = vector.load %arg15[%c2_103, %c0_104, %c0_105] : memref<20x20x32xf32, #tpu.memory_space<vmem>>, vector<16x16x32xf32>
    %106 = vector.shape_cast %105 : vector<16x16x32xf32> to vector<256x32xf32>
    %c2_106 = arith.constant 2 : index
    %c2_107 = arith.constant 2 : index
    %c0_108 = arith.constant 0 : index
    %107 = vector.load %arg15[%c2_106, %c2_107, %c0_108] : memref<20x20x32xf32, #tpu.memory_space<vmem>>, vector<16x16x32xf32>
    %108 = vector.shape_cast %107 : vector<16x16x32xf32> to vector<256x32xf32>
    %c2_109 = arith.constant 2 : index
    %c4_110 = arith.constant 4 : index
    %c0_111 = arith.constant 0 : index
    %109 = vector.load %arg15[%c2_109, %c4_110, %c0_111] : memref<20x20x32xf32, #tpu.memory_space<vmem>>, vector<16x16x32xf32>
    %110 = vector.shape_cast %109 : vector<16x16x32xf32> to vector<256x32xf32>
    %111 = tpu.concatenate %100, %102, %104, %106, %108, %110 in 1 : vector<256x32xf32>, vector<256x32xf32>, vector<256x32xf32>, vector<256x32xf32>, vector<256x32xf32>, vector<256x32xf32> -> vector<256x192xf32>
    %c1_112 = arith.constant 1 : index
    %c0_113 = arith.constant 0 : index
    %c0_114 = arith.constant 0 : index
    %112 = vector.load %arg6[%c1_112, %c0_113, %c0_114] : memref<3x192x64xbf16, #tpu.memory_space<vmem>>, vector<1x192x64xbf16>
    %113 = vector.shape_cast %112 : vector<1x192x64xbf16> to vector<192x64xbf16>
    %c1_115 = arith.constant 1 : index
    %c0_116 = arith.constant 0 : index
    %c0_117 = arith.constant 0 : index
    %114 = vector.load %arg7[%c1_115, %c0_116, %c0_117] : memref<3x1x64xf32, #tpu.memory_space<vmem>>, vector<1x1x64xf32>
    %115 = vector.shape_cast %114 : vector<1x1x64xf32> to vector<1x64xf32>
    %116 = arith.truncf %111 : vector<256x192xf32> to vector<256x192xbf16>
    %cst_118 = arith.constant dense<0.000000e+00> : vector<256x64xf32>
    %117 = tpu.matmul %116, %113, %cst_118 {dimension_numbers = #tpu.dot_dimension_numbers<[1], [0], [0], [1], [0, 0, 1, 1], [], []>} : vector<256x192xbf16>, vector<192x64xbf16>, vector<256x64xf32> -> vector<256x64xf32>
    %118 = vector.broadcast %115 : vector<1x64xf32> to vector<256x64xf32>
    %119 = arith.addf %117, %118 : vector<256x64xf32>
    %120 = vector.extract_strided_slice %119 {offsets = [0, 0], sizes = [256, 32], strides = [1, 1]} : vector<256x64xf32> to vector<256x32xf32>
    %121 = math.tanh %120 : vector<256x32xf32>
    %122 = vector.extract_strided_slice %119 {offsets = [0, 32], sizes = [256, 32], strides = [1, 1]} : vector<256x64xf32> to vector<256x32xf32>
    %123 = arith.negf %122 : vector<256x32xf32>
    %124 = math.exp %123 : vector<256x32xf32>
    %cst_119 = arith.constant 1.000000e+00 : f32
    %125 = vector.broadcast %cst_119 : f32 to vector<256x32xf32>
    %126 = arith.addf %125, %124 : vector<256x32xf32>
    %127 = arith.divf %125, %126 : vector<256x32xf32>
    %128 = arith.mulf %121, %127 : vector<256x32xf32>
    %129 = vector.shape_cast %96 : vector<256x32xf32> to vector<16x16x32xf32>
    %c2_120 = arith.constant 2 : index
    %c2_121 = arith.constant 2 : index
    %c0_122 = arith.constant 0 : index
    %130 = vector.load %arg15[%c2_120, %c2_121, %c0_122] : memref<20x20x32xf32, #tpu.memory_space<vmem>>, vector<16x16x32xf32>
    tpu.vector_store %arg15[%c2_120, %c2_121, %c0_122], %129 {strides = array<i32>} : memref<20x20x32xf32, #tpu.memory_space<vmem>>, vector<16x16x32xf32>,
    %c2_123 = arith.constant 2 : index
    %c0_124 = arith.constant 0 : index
    %c0_125 = arith.constant 0 : index
    %131 = vector.load %arg15[%c2_123, %c0_124, %c0_125] : memref<20x20x32xf32, #tpu.memory_space<vmem>>, vector<16x16x32xf32>
    %132 = vector.shape_cast %131 : vector<16x16x32xf32> to vector<256x32xf32>
    %c2_126 = arith.constant 2 : index
    %c2_127 = arith.constant 2 : index
    %c0_128 = arith.constant 0 : index
    %133 = vector.load %arg15[%c2_126, %c2_127, %c0_128] : memref<20x20x32xf32, #tpu.memory_space<vmem>>, vector<16x16x32xf32>
    %134 = vector.shape_cast %133 : vector<16x16x32xf32> to vector<256x32xf32>
    %135 = tpu.concatenate %132, %134, %119 in 1 : vector<256x32xf32>, vector<256x32xf32>, vector<256x64xf32> -> vector<256x128xf32>
    %c1_129 = arith.constant 1 : index
    %c0_130 = arith.constant 0 : index
    %c0_131 = arith.constant 0 : index
    %136 = vector.load %arg8[%c1_129, %c0_130, %c0_131] : memref<3x128x64xbf16, #tpu.memory_space<vmem>>, vector<1x128x64xbf16>
    %137 = vector.shape_cast %136 : vector<1x128x64xbf16> to vector<128x64xbf16>
    %c1_132 = arith.constant 1 : index
    %c0_133 = arith.constant 0 : index
    %c0_134 = arith.constant 0 : index
    %138 = vector.load %arg9[%c1_132, %c0_133, %c0_134] : memref<3x1x64xf32, #tpu.memory_space<vmem>>, vector<1x1x64xf32>
    %139 = vector.shape_cast %138 : vector<1x1x64xf32> to vector<1x64xf32>
    %140 = arith.truncf %135 : vector<256x128xf32> to vector<256x128xbf16>
    %cst_135 = arith.constant dense<0.000000e+00> : vector<256x64xf32>
    %141 = tpu.matmul %140, %137, %cst_135 {dimension_numbers = #tpu.dot_dimension_numbers<[1], [0], [0], [1], [0, 0, 1, 1], [], []>} : vector<256x128xbf16>, vector<128x64xbf16>, vector<256x64xf32> -> vector<256x64xf32>
    %142 = vector.broadcast %139 : vector<1x64xf32> to vector<256x64xf32>
    %143 = arith.addf %141, %142 : vector<256x64xf32>
    %144 = vector.extract_strided_slice %143 {offsets = [0, 0], sizes = [256, 32], strides = [1, 1]} : vector<256x64xf32> to vector<256x32xf32>
    %145 = math.tanh %144 : vector<256x32xf32>
    %146 = vector.extract_strided_slice %143 {offsets = [0, 32], sizes = [256, 32], strides = [1, 1]} : vector<256x64xf32> to vector<256x32xf32>
    %147 = arith.negf %146 : vector<256x32xf32>
    %148 = math.exp %147 : vector<256x32xf32>
    %cst_136 = arith.constant 1.000000e+00 : f32
    %149 = vector.broadcast %cst_136 : f32 to vector<256x32xf32>
    %150 = arith.addf %149, %148 : vector<256x32xf32>
    %151 = arith.divf %149, %150 : vector<256x32xf32>
    %152 = arith.mulf %145, %151 : vector<256x32xf32>
    %c1_137 = arith.constant 1 : index
    %c0_138 = arith.constant 0 : index
    %c0_139 = arith.constant 0 : index
    %153 = vector.load %arg10[%c1_137, %c0_138, %c0_139] : memref<3x32x32xbf16, #tpu.memory_space<vmem>>, vector<1x32x32xbf16>
    %154 = vector.shape_cast %153 : vector<1x32x32xbf16> to vector<32x32xbf16>
    %c1_140 = arith.constant 1 : index
    %c0_141 = arith.constant 0 : index
    %c0_142 = arith.constant 0 : index
    %155 = vector.load %arg11[%c1_140, %c0_141, %c0_142] : memref<3x1x32xf32, #tpu.memory_space<vmem>>, vector<1x1x32xf32>
    %156 = vector.shape_cast %155 : vector<1x1x32xf32> to vector<1x32xf32>
    %157 = arith.truncf %152 : vector<256x32xf32> to vector<256x32xbf16>
    %cst_143 = arith.constant dense<0.000000e+00> : vector<256x32xf32>
    %158 = tpu.matmul %157, %154, %cst_143 {dimension_numbers = #tpu.dot_dimension_numbers<[1], [0], [0], [1], [0, 0, 1, 1], [], []>} : vector<256x32xbf16>, vector<32x32xbf16>, vector<256x32xf32> -> vector<256x32xf32>
    %159 = vector.broadcast %156 : vector<1x32xf32> to vector<256x32xf32>
    %160 = arith.addf %158, %159 : vector<256x32xf32>
    %161 = arith.addf %160, %96 : vector<256x32xf32>
    %162 = vector.shape_cast %128 : vector<256x32xf32> to vector<16x16x32xf32>
    %c2_144 = arith.constant 2 : index
    %c2_145 = arith.constant 2 : index
    %c0_146 = arith.constant 0 : index
    %163 = vector.load %arg15[%c2_144, %c2_145, %c0_146] : memref<20x20x32xf32, #tpu.memory_space<vmem>>, vector<16x16x32xf32>
    tpu.vector_store %arg15[%c2_144, %c2_145, %c0_146], %162 {strides = array<i32>} : memref<20x20x32xf32, #tpu.memory_space<vmem>>, vector<16x16x32xf32>,
    %c1_147 = arith.constant 1 : index
    %c1_148 = arith.constant 1 : index
    %c0_149 = arith.constant 0 : index
    %164 = vector.load %arg15[%c1_147, %c1_148, %c0_149] : memref<20x20x32xf32, #tpu.memory_space<vmem>>, vector<16x16x32xf32>
    %165 = vector.shape_cast %164 : vector<16x16x32xf32> to vector<256x32xf32>
    %c1_150 = arith.constant 1 : index
    %c2_151 = arith.constant 2 : index
    %c0_152 = arith.constant 0 : index
    %166 = vector.load %arg15[%c1_150, %c2_151, %c0_152] : memref<20x20x32xf32, #tpu.memory_space<vmem>>, vector<16x16x32xf32>
    %167 = vector.shape_cast %166 : vector<16x16x32xf32> to vector<256x32xf32>
    %c1_153 = arith.constant 1 : index
    %c3_154 = arith.constant 3 : index
    %c0_155 = arith.constant 0 : index
    %168 = vector.load %arg15[%c1_153, %c3_154, %c0_155] : memref<20x20x32xf32, #tpu.memory_space<vmem>>, vector<16x16x32xf32>
    %169 = vector.shape_cast %168 : vector<16x16x32xf32> to vector<256x32xf32>
    %c2_156 = arith.constant 2 : index
    %c1_157 = arith.constant 1 : index
    %c0_158 = arith.constant 0 : index
    %170 = vector.load %arg15[%c2_156, %c1_157, %c0_158] : memref<20x20x32xf32, #tpu.memory_space<vmem>>, vector<16x16x32xf32>
    %171 = vector.shape_cast %170 : vector<16x16x32xf32> to vector<256x32xf32>
    %c2_159 = arith.constant 2 : index
    %c2_160 = arith.constant 2 : index
    %c0_161 = arith.constant 0 : index
    %172 = vector.load %arg15[%c2_159, %c2_160, %c0_161] : memref<20x20x32xf32, #tpu.memory_space<vmem>>, vector<16x16x32xf32>
    %173 = vector.shape_cast %172 : vector<16x16x32xf32> to vector<256x32xf32>
    %c2_162 = arith.constant 2 : index
    %c3_163 = arith.constant 3 : index
    %c0_164 = arith.constant 0 : index
    %174 = vector.load %arg15[%c2_162, %c3_163, %c0_164] : memref<20x20x32xf32, #tpu.memory_space<vmem>>, vector<16x16x32xf32>
    %175 = vector.shape_cast %174 : vector<16x16x32xf32> to vector<256x32xf32>
    %176 = tpu.concatenate %165, %167, %169, %171, %173, %175 in 1 : vector<256x32xf32>, vector<256x32xf32>, vector<256x32xf32>, vector<256x32xf32>, vector<256x32xf32>, vector<256x32xf32> -> vector<256x192xf32>
    %c2_165 = arith.constant 2 : index
    %c0_166 = arith.constant 0 : index
    %c0_167 = arith.constant 0 : index
    %177 = vector.load %arg6[%c2_165, %c0_166, %c0_167] : memref<3x192x64xbf16, #tpu.memory_space<vmem>>, vector<1x192x64xbf16>
    %178 = vector.shape_cast %177 : vector<1x192x64xbf16> to vector<192x64xbf16>
    %c2_168 = arith.constant 2 : index
    %c0_169 = arith.constant 0 : index
    %c0_170 = arith.constant 0 : index
    %179 = vector.load %arg7[%c2_168, %c0_169, %c0_170] : memref<3x1x64xf32, #tpu.memory_space<vmem>>, vector<1x1x64xf32>
    %180 = vector.shape_cast %179 : vector<1x1x64xf32> to vector<1x64xf32>
    %181 = arith.truncf %176 : vector<256x192xf32> to vector<256x192xbf16>
    %cst_171 = arith.constant dense<0.000000e+00> : vector<256x64xf32>
    %182 = tpu.matmul %181, %178, %cst_171 {dimension_numbers = #tpu.dot_dimension_numbers<[1], [0], [0], [1], [0, 0, 1, 1], [], []>} : vector<256x192xbf16>, vector<192x64xbf16>, vector<256x64xf32> -> vector<256x64xf32>
    %183 = vector.broadcast %180 : vector<1x64xf32> to vector<256x64xf32>
    %184 = arith.addf %182, %183 : vector<256x64xf32>
    %185 = vector.shape_cast %161 : vector<256x32xf32> to vector<16x16x32xf32>
    %c2_172 = arith.constant 2 : index
    %c2_173 = arith.constant 2 : index
    %c0_174 = arith.constant 0 : index
    %186 = vector.load %arg15[%c2_172, %c2_173, %c0_174] : memref<20x20x32xf32, #tpu.memory_space<vmem>>, vector<16x16x32xf32>
    tpu.vector_store %arg15[%c2_172, %c2_173, %c0_174], %185 {strides = array<i32>} : memref<20x20x32xf32, #tpu.memory_space<vmem>>, vector<16x16x32xf32>,
    %c2_175 = arith.constant 2 : index
    %c1_176 = arith.constant 1 : index
    %c0_177 = arith.constant 0 : index
    %187 = vector.load %arg15[%c2_175, %c1_176, %c0_177] : memref<20x20x32xf32, #tpu.memory_space<vmem>>, vector<16x16x32xf32>
    %188 = vector.shape_cast %187 : vector<16x16x32xf32> to vector<256x32xf32>
    %c2_178 = arith.constant 2 : index
    %c2_179 = arith.constant 2 : index
    %c0_180 = arith.constant 0 : index
    %189 = vector.load %arg15[%c2_178, %c2_179, %c0_180] : memref<20x20x32xf32, #tpu.memory_space<vmem>>, vector<16x16x32xf32>
    %190 = vector.shape_cast %189 : vector<16x16x32xf32> to vector<256x32xf32>
    %191 = tpu.concatenate %188, %190, %184 in 1 : vector<256x32xf32>, vector<256x32xf32>, vector<256x64xf32> -> vector<256x128xf32>
    %c2_181 = arith.constant 2 : index
    %c0_182 = arith.constant 0 : index
    %c0_183 = arith.constant 0 : index
    %192 = vector.load %arg8[%c2_181, %c0_182, %c0_183] : memref<3x128x64xbf16, #tpu.memory_space<vmem>>, vector<1x128x64xbf16>
    %193 = vector.shape_cast %192 : vector<1x128x64xbf16> to vector<128x64xbf16>
    %c2_184 = arith.constant 2 : index
    %c0_185 = arith.constant 0 : index
    %c0_186 = arith.constant 0 : index
    %194 = vector.load %arg9[%c2_184, %c0_185, %c0_186] : memref<3x1x64xf32, #tpu.memory_space<vmem>>, vector<1x1x64xf32>
    %195 = vector.shape_cast %194 : vector<1x1x64xf32> to vector<1x64xf32>
    %196 = arith.truncf %191 : vector<256x128xf32> to vector<256x128xbf16>
    %cst_187 = arith.constant dense<0.000000e+00> : vector<256x64xf32>
    %197 = tpu.matmul %196, %193, %cst_187 {dimension_numbers = #tpu.dot_dimension_numbers<[1], [0], [0], [1], [0, 0, 1, 1], [], []>} : vector<256x128xbf16>, vector<128x64xbf16>, vector<256x64xf32> -> vector<256x64xf32>
    %198 = vector.broadcast %195 : vector<1x64xf32> to vector<256x64xf32>
    %199 = arith.addf %197, %198 : vector<256x64xf32>
    %200 = vector.extract_strided_slice %199 {offsets = [0, 0], sizes = [256, 32], strides = [1, 1]} : vector<256x64xf32> to vector<256x32xf32>
    %201 = math.tanh %200 : vector<256x32xf32>
    %202 = vector.extract_strided_slice %199 {offsets = [0, 32], sizes = [256, 32], strides = [1, 1]} : vector<256x64xf32> to vector<256x32xf32>
    %203 = arith.negf %202 : vector<256x32xf32>
    %204 = math.exp %203 : vector<256x32xf32>
    %cst_188 = arith.constant 1.000000e+00 : f32
    %205 = vector.broadcast %cst_188 : f32 to vector<256x32xf32>
    %206 = arith.addf %205, %204 : vector<256x32xf32>
    %207 = arith.divf %205, %206 : vector<256x32xf32>
    %208 = arith.mulf %201, %207 : vector<256x32xf32>
    %c2_189 = arith.constant 2 : index
    %c0_190 = arith.constant 0 : index
    %c0_191 = arith.constant 0 : index
    %209 = vector.load %arg10[%c2_189, %c0_190, %c0_191] : memref<3x32x32xbf16, #tpu.memory_space<vmem>>, vector<1x32x32xbf16>
    %210 = vector.shape_cast %209 : vector<1x32x32xbf16> to vector<32x32xbf16>
    %c2_192 = arith.constant 2 : index
    %c0_193 = arith.constant 0 : index
    %c0_194 = arith.constant 0 : index
    %211 = vector.load %arg11[%c2_192, %c0_193, %c0_194] : memref<3x1x32xf32, #tpu.memory_space<vmem>>, vector<1x1x32xf32>
    %212 = vector.shape_cast %211 : vector<1x1x32xf32> to vector<1x32xf32>
    %213 = arith.truncf %208 : vector<256x32xf32> to vector<256x32xbf16>
    %cst_195 = arith.constant dense<0.000000e+00> : vector<256x32xf32>
    %214 = tpu.matmul %213, %210, %cst_195 {dimension_numbers = #tpu.dot_dimension_numbers<[1], [0], [0], [1], [0, 0, 1, 1], [], []>} : vector<256x32xbf16>, vector<32x32xbf16>, vector<256x32xf32> -> vector<256x32xf32>
    %215 = vector.broadcast %212 : vector<1x32xf32> to vector<256x32xf32>
    %216 = arith.addf %214, %215 : vector<256x32xf32>
    %217 = arith.addf %216, %161 : vector<256x32xf32>
    %cst_196 = arith.constant 0.000000e+00 : f32
    %218 = vector.broadcast %cst_196 : f32 to vector<256x32xf32>
    %219 = arith.cmpf ogt, %217, %218 : vector<256x32xf32>
    %cst_197 = arith.constant 0.000000e+00 : f32
    %220 = vector.broadcast %cst_197 : f32 to vector<256x32xf32>
    %221 = arith.minimumf %217, %220 : vector<256x32xf32>
    %222 = math.exp %221 : vector<256x32xf32>
    %cst_198 = arith.constant 1.000000e+00 : f32
    %223 = vector.broadcast %cst_198 : f32 to vector<256x32xf32>
    %224 = arith.subf %222, %223 : vector<256x32xf32>
    %225 = arith.select %219, %217, %224 : vector<256x32xi1>, vector<256x32xf32>
    %c0_199 = arith.constant 0 : index
    %c0_200 = arith.constant 0 : index
    %226 = vector.load %arg12[%c0_199, %c0_200] : memref<32x16xbf16, #tpu.memory_space<vmem>>, vector<32x16xbf16>
    %c0_201 = arith.constant 0 : index
    %c0_202 = arith.constant 0 : index
    %227 = vector.load %arg13[%c0_201, %c0_202] : memref<1x16xf32, #tpu.memory_space<vmem>>, vector<1x16xf32>
    %228 = arith.truncf %225 : vector<256x32xf32> to vector<256x32xbf16>
    %cst_203 = arith.constant dense<0.000000e+00> : vector<256x16xf32>
    %229 = tpu.matmul %228, %226, %cst_203 {dimension_numbers = #tpu.dot_dimension_numbers<[1], [0], [0], [1], [0, 0, 1, 1], [], []>} : vector<256x32xbf16>, vector<32x16xbf16>, vector<256x16xf32> -> vector<256x16xf32>
    %230 = vector.broadcast %227 : vector<1x16xf32> to vector<256x16xf32>
    %231 = arith.addf %229, %230 : vector<256x16xf32>
    %c0_204 = arith.constant 0 : index
    %c0_205 = arith.constant 0 : index
    %c0_206 = arith.constant 0 : index
    %232 = vector.load %arg14[%c0_204, %c0_205, %c0_206] : memref<1x256x16xf32, #tpu.memory_space<vmem>>, vector<1x256x16xf32>
    %233 = vector.shape_cast %232 : vector<1x256x16xf32> to vector<256x16xf32>
    %234 = vector.shape_cast %231 : vector<256x16xf32> to vector<1x256x16xf32>
    tpu.vector_store %arg14[%c0_204, %c0_205, %c0_206], %234 {strides = array<i32>} : memref<1x256x16xf32, #tpu.memory_space<vmem>>, vector<1x256x16xf32>,
    return
  }
  func.func @transform_0(%arg0: i32) -> (i32, i32, i32, i32) {
    %c0_i32 = arith.constant 0 : i32
    %c0_i32_0 = arith.constant 0 : i32
    %c0_i32_1 = arith.constant 0 : i32
    %c0_i32_2 = arith.constant 0 : i32
    return %arg0, %c0_i32, %c0_i32_0, %c0_i32_1 : i32, i32, i32, i32
  }
  func.func @transform_1(%arg0: i32) -> (i32, i32) {
    %c0_i32 = arith.constant 0 : i32
    %c0_i32_0 = arith.constant 0 : i32
    %c0_i32_1 = arith.constant 0 : i32
    return %c0_i32, %c0_i32_0 : i32, i32
  }
  func.func @transform_2(%arg0: i32) -> (i32, i32) {
    %c0_i32 = arith.constant 0 : i32
    %c0_i32_0 = arith.constant 0 : i32
    %c0_i32_1 = arith.constant 0 : i32
    return %c0_i32, %c0_i32_0 : i32, i32
  }
  func.func @transform_3(%arg0: i32) -> (i32, i32) {
    %c0_i32 = arith.constant 0 : i32
    %c0_i32_0 = arith.constant 0 : i32
    %c0_i32_1 = arith.constant 0 : i32
    return %c0_i32, %c0_i32_0 : i32, i32
  }
  func.func @transform_4(%arg0: i32) -> (i32, i32) {
    %c0_i32 = arith.constant 0 : i32
    %c0_i32_0 = arith.constant 0 : i32
    %c0_i32_1 = arith.constant 0 : i32
    return %c0_i32, %c0_i32_0 : i32, i32
  }
  func.func @transform_5(%arg0: i32) -> (i32, i32, i32) {
    %c0_i32 = arith.constant 0 : i32
    %c0_i32_0 = arith.constant 0 : i32
    %c0_i32_1 = arith.constant 0 : i32
    %c0_i32_2 = arith.constant 0 : i32
    return %c0_i32, %c0_i32_0, %c0_i32_1 : i32, i32, i32
  }
  func.func @transform_6(%arg0: i32) -> (i32, i32, i32) {
    %c0_i32 = arith.constant 0 : i32
    %c0_i32_0 = arith.constant 0 : i32
    %c0_i32_1 = arith.constant 0 : i32
    %c0_i32_2 = arith.constant 0 : i32
    return %c0_i32, %c0_i32_0, %c0_i32_1 : i32, i32, i32
  }
  func.func @transform_7(%arg0: i32) -> (i32, i32, i32) {
    %c0_i32 = arith.constant 0 : i32
    %c0_i32_0 = arith.constant 0 : i32
    %c0_i32_1 = arith.constant 0 : i32
    %c0_i32_2 = arith.constant 0 : i32
    return %c0_i32, %c0_i32_0, %c0_i32_1 : i32, i32, i32
  }
  func.func @transform_8(%arg0: i32) -> (i32, i32, i32) {
    %c0_i32 = arith.constant 0 : i32
    %c0_i32_0 = arith.constant 0 : i32
    %c0_i32_1 = arith.constant 0 : i32
    %c0_i32_2 = arith.constant 0 : i32
    return %c0_i32, %c0_i32_0, %c0_i32_1 : i32, i32, i32
  }
  func.func @transform_9(%arg0: i32) -> (i32, i32, i32) {
    %c0_i32 = arith.constant 0 : i32
    %c0_i32_0 = arith.constant 0 : i32
    %c0_i32_1 = arith.constant 0 : i32
    %c0_i32_2 = arith.constant 0 : i32
    return %c0_i32, %c0_i32_0, %c0_i32_1 : i32, i32, i32
  }
  func.func @transform_10(%arg0: i32) -> (i32, i32, i32) {
    %c0_i32 = arith.constant 0 : i32
    %c0_i32_0 = arith.constant 0 : i32
    %c0_i32_1 = arith.constant 0 : i32
    %c0_i32_2 = arith.constant 0 : i32
    return %c0_i32, %c0_i32_0, %c0_i32_1 : i32, i32, i32
  }
  func.func @transform_11(%arg0: i32) -> (i32, i32) {
    %c0_i32 = arith.constant 0 : i32
    %c0_i32_0 = arith.constant 0 : i32
    %c0_i32_1 = arith.constant 0 : i32
    return %c0_i32, %c0_i32_0 : i32, i32
  }
  func.func @transform_12(%arg0: i32) -> (i32, i32) {
    %c0_i32 = arith.constant 0 : i32
    %c0_i32_0 = arith.constant 0 : i32
    %c0_i32_1 = arith.constant 0 : i32
    return %c0_i32, %c0_i32_0 : i32, i32
  }
  func.func @transform_13(%arg0: i32) -> (i32, i32, i32) {
    %c0_i32 = arith.constant 0 : i32
    %c0_i32_0 = arith.constant 0 : i32
    %c0_i32_1 = arith.constant 0 : i32
    return %arg0, %c0_i32, %c0_i32_0 : i32, i32, i32
  }
}

</mosaic_0001>

<llo_original>
// kernel: gated_pixelcnn_forward.1
$region0: #{gated_pixelcnn_forward.1}
  #allocation0 [shape = 'u32[]', space=smem, size = 0x4, offset = 0x4, fixed_abs, tag = 'smem constant byte address 0x4 - core index']
  #allocation1 [shape = 'u32[144,128]{1,0:T(1,128)}', space=vmem, size = 0x12000, scoped, tag = 'internal scratch']
  #allocation2 [shape = 'f32[20,20,32]{2,1,0:T(8,128)}', space=vmem, size = 0x3c000, scoped, tag = 'scratch operand']
  %s0 = inlined_call_operand.vmem [shape: f32[2,16,16,4], index: 0, kind: input, shape index: {}]
  %s1 = inlined_call_operand.vmem [shape: bf16[12,32], index: 1, kind: input, shape index: {}]
  %s2 = inlined_call_operand.vmem [shape: f32[1,32], index: 2, kind: input, shape index: {}]
  %s3 = inlined_call_operand.vmem [shape: bf16[4,32], index: 3, kind: input, shape index: {}]
  %s4 = inlined_call_operand.vmem [shape: f32[1,32], index: 4, kind: input, shape index: {}]
  %s5 = inlined_call_operand.vmem [shape: bf16[3,192,64], index: 5, kind: input, shape index: {}]
  %s6 = inlined_call_operand.vmem [shape: f32[3,1,64], index: 6, kind: input, shape index: {}]
  %s7 = inlined_call_operand.vmem [shape: bf16[3,128,64], index: 7, kind: input, shape index: {}]
  %s8 = inlined_call_operand.vmem [shape: f32[3,1,64], index: 8, kind: input, shape index: {}]
  %s9 = inlined_call_operand.vmem [shape: bf16[3,32,32], index: 9, kind: input, shape index: {}]
  %s10 = inlined_call_operand.vmem [shape: f32[3,1,32], index: 10, kind: input, shape index: {}]
  %s11 = inlined_call_operand.vmem [shape: bf16[32,16], index: 11, kind: input, shape index: {}]
  %s12 = inlined_call_operand.vmem [shape: f32[1,16], index: 12, kind: input, shape index: {}]
  %s13 = inlined_call_operand.vmem [shape: f32[2,256,16], index: 13, kind: output, shape index: {}]
  %s14 = sld [smem:[#allocation0]]
  $region85: #{gated_pixelcnn_forward.1} parent=0
    _
  %s16 = ssub.s32 1, %s14
  %s17 = scalar_select 0, %s16, %s14
  loop: start=0, step=1, limit=4
  $region2: #{gated_pixelcnn_forward.1} parent=0 // loop_pre_header
    _
  $region3: #{gated_pixelcnn_forward.1} parent=0 // loop_header
    %s19 = sphi 0, %s23
    %p20 = scmp.ge.s32.totalorder %s19, 4
    %s29 = sphi 0, %s31
    %s32 = sphi 0, %s29
    %s33 = sphi 0, %s32
    %s49 = sphi 0, %s33
    %s53 = sphi 0, %s53
    %s55 = sphi 0, %s53
    %s56 = sphi 0, %s55
    %s70 = sphi 0, %s56
    %s74 = sphi 0, %s74
    %s76 = sphi 0, %s74
    %s77 = sphi 0, %s76
    %s91 = sphi 0, %s77
    %s95 = sphi 0, %s95
    %s97 = sphi 0, %s95
    %s98 = sphi 0, %s97
    %s112 = sphi 0, %s98
    %s116 = sphi 0, %s116
    %s118 = sphi 0, %s116
    %s119 = sphi 0, %s118
    %s133 = sphi 0, %s119
    %s137 = sphi 0, %s137
    %s139 = sphi 0, %s137
    %s140 = sphi 0, %s139
    %s154 = sphi 0, %s140
    %s158 = sphi 0, %s158
    %s160 = sphi 0, %s158
    %s161 = sphi 0, %s160
    %s175 = sphi 0, %s161
    %s179 = sphi 0, %s179
    %s181 = sphi 0, %s179
    %s182 = sphi 0, %s181
    %s196 = sphi 0, %s182
    %s200 = sphi 0, %s200
    %s202 = sphi 0, %s200
    %s203 = sphi 0, %s202
    %s217 = sphi 0, %s203
    %s221 = sphi 0, %s221
    %s223 = sphi 0, %s221
    %s224 = sphi 0, %s223
    %s238 = sphi 0, %s224
    %s242 = sphi 0, %s242
    %s244 = sphi 0, %s242
    %s245 = sphi 0, %s244
    %s259 = sphi 0, %s245
    %s263 = sphi 0, %s263
    %s265 = sphi 0, %s263
    %s266 = sphi 0, %s265
    %s280 = sphi 0, %s266
    %s284 = sphi 0, %s284
    %s286 = sphi 0, %s284
    %s287 = sphi 0, %s286
    %s301 = sphi 0, %s287
    %s307 = sphi 0, %s309
    %s310 = sphi 0, %s307
    %s311 = sphi 0, %s310
    %s327 = sphi 0, %s311
  $region4: #{gated_pixelcnn_forward.1} parent=0 // loop_header_branch
    %22 = sbr.rel (%p20) target = $region8
  $region5: #{gated_pixelcnn_forward.1} parent=0 // loop_body
    %s24 = ssub.s32 %s19, 1
    %s25 = ssub.s32 %s19, 2
    %s26 = sadd.s32 %s19, 1
    %s27 = ssub.s32 %s19, %s26
    %p28 = scmp.eq.s32.totalorder %s27, 0
    %s30 = sadd.s32 %s29, 1
    %s31 = scalar_select %p28, %s29, %s30
    %p34 = pneg %p28
    %p35 = scmp.eq.s32.totalorder %s19, 1
    %p36 = por %p34, %p35
    %p37 = scmp.ne.s32.totalorder %s29, %s32
    %p38 = scmp.eq.s32.totalorder %s19, 0
    %p39 = por %p37, %p38
    %p40 = scmp.ne.s32.totalorder %s29, %s32
    %p41 = scmp.eq.s32.totalorder %s24, 1
    %p42 = por %p40, %p41
    %p43 = scmp.ne.s32.totalorder %s32, %s33
    %p44 = scmp.eq.s32.totalorder %s24, 0
    %p45 = por %p43, %p44
    %p46 = scmp.ne.s32.totalorder %s32, %s33
    %p47 = scmp.eq.s32.totalorder %s25, 1
    %p48 = por %p46, %p47
    %p50 = scmp.ne.s32.totalorder %s33, %s49
    %p51 = scmp.eq.s32.totalorder %s25, 0
    %p52 = por %p50, %p51
    %s54 = sadd.s32 %s53, 1
    %p57 = scmp.eq.s32.totalorder %s19, 1
    %p58 = scmp.ne.s32.totalorder %s53, %s55
    %p59 = scmp.eq.s32.totalorder %s19, 0
    %p60 = por %p58, %p59
    %p61 = scmp.ne.s32.totalorder %s53, %s55
    %p62 = scmp.eq.s32.totalorder %s24, 1
    %p63 = por %p61, %p62
    %p64 = scmp.ne.s32.totalorder %s55, %s56
    %p65 = scmp.eq.s32.totalorder %s24, 0
    %p66 = por %p64, %p65
    %p67 = scmp.ne.s32.totalorder %s55, %s56
    %p68 = scmp.eq.s32.totalorder %s25, 1
    %p69 = por %p67, %p68
    %p71 = scmp.ne.s32.totalorder %s56, %s70
    %p72 = scmp.eq.s32.totalorder %s25, 0
    %p73 = por %p71, %p72
    %s75 = sadd.s32 %s74, 1
    %p78 = scmp.eq.s32.totalorder %s19, 1
    %p79 = scmp.ne.s32.totalorder %s74, %s76
    %p80 = scmp.eq.s32.totalorder %s19, 0
    %p81 = por %p79, %p80
    %p82 = scmp.ne.s32.totalorder %s74, %s76
    %p83 = scmp.eq.s32.totalorder %s24, 1
    %p84 = por %p82, %p83
    %p85 = scmp.ne.s32.totalorder %s76, %s77
    %p86 = scmp.eq.s32.totalorder %s24, 0
    %p87 = por %p85, %p86
    %p88 = scmp.ne.s32.totalorder %s76, %s77
    %p89 = scmp.eq.s32.totalorder %s25, 1
    %p90 = por %p88, %p89
    %p92 = scmp.ne.s32.totalorder %s77, %s91
    %p93 = scmp.eq.s32.totalorder %s25, 0
    %p94 = por %p92, %p93
    %s96 = sadd.s32 %s95, 1
    %p99 = scmp.eq.s32.totalorder %s19, 1
    %p100 = scmp.ne.s32.totalorder %s95, %s97
    %p101 = scmp.eq.s32.totalorder %s19, 0
    %p102 = por %p100, %p101
    %p103 = scmp.ne.s32.totalorder %s95, %s97
    %p104 = scmp.eq.s32.totalorder %s24, 1
    %p105 = por %p103, %p104
    %p106 = scmp.ne.s32.totalorder %s97, %s98
    %p107 = scmp.eq.s32.totalorder %s24, 0
    %p108 = por %p106, %p107
    %p109 = scmp.ne.s32.totalorder %s97, %s98
    %p110 = scmp.eq.s32.totalorder %s25, 1
    %p111 = por %p109, %p110
    %p113 = scmp.ne.s32.totalorder %s98, %s112
    %p114 = scmp.eq.s32.totalorder %s25, 0
    %p115 = por %p113, %p114
    %s117 = sadd.s32 %s116, 1
    %p120 = scmp.eq.s32.totalorder %s19, 1
    %p121 = scmp.ne.s32.totalorder %s116, %s118
    %p122 = scmp.eq.s32.totalorder %s19, 0
    %p123 = por %p121, %p122
    %p124 = scmp.ne.s32.totalorder %s116, %s118
    %p125 = scmp.eq.s32.totalorder %s24, 1
    %p126 = por %p124, %p125
    %p127 = scmp.ne.s32.totalorder %s118, %s119
    %p128 = scmp.eq.s32.totalorder %s24, 0
    %p129 = por %p127, %p128
    %p130 = scmp.ne.s32.totalorder %s118, %s119
    %p131 = scmp.eq.s32.totalorder %s25, 1
    %p132 = por %p130, %p131
    %p134 = scmp.ne.s32.totalorder %s119, %s133
    %p135 = scmp.eq.s32.totalorder %s25, 0
    %p136 = por %p134, %p135
    %s138 = sadd.s32 %s137, 1
    %p141 = scmp.eq.s32.totalorder %s19, 1
    %p142 = scmp.ne.s32.totalorder %s137, %s139
    %p143 = scmp.eq.s32.totalorder %s19, 0
    %p144 = por %p142, %p143
    %p145 = scmp.ne.s32.totalorder %s137, %s139
    %p146 = scmp.eq.s32.totalorder %s24, 1
    %p147 = por %p145, %p146
    %p148 = scmp.ne.s32.totalorder %s139, %s140
    %p149 = scmp.eq.s32.totalorder %s24, 0
    %p150 = por %p148, %p149
    %p151 = scmp.ne.s32.totalorder %s139, %s140
    %p152 = scmp.eq.s32.totalorder %s25, 1
    %p153 = por %p151, %p152
    %p155 = scmp.ne.s32.totalorder %s140, %s154
    %p156 = scmp.eq.s32.totalorder %s25, 0
    %p157 = por %p155, %p156
    %s159 = sadd.s32 %s158, 1
    %p162 = scmp.eq.s32.totalorder %s19, 1
    %p163 = scmp.ne.s32.totalorder %s158, %s160
    %p164 = scmp.eq.s32.totalorder %s19, 0
    %p165 = por %p163, %p164
    %p166 = scmp.ne.s32.totalorder %s158, %s160
    %p167 = scmp.eq.s32.totalorder %s24, 1
    %p168 = por %p166, %p167
    %p169 = scmp.ne.s32.totalorder %s160, %s161
    %p170 = scmp.eq.s32.totalorder %s24, 0
    %p171 = por %p169, %p170
    %p172 = scmp.ne.s32.totalorder %s160, %s161
    %p173 = scmp.eq.s32.totalorder %s25, 1
    %p174 = por %p172, %p173
    %p176 = scmp.ne.s32.totalorder %s161, %s175
    %p177 = scmp.eq.s32.totalorder %s25, 0
    %p178 = por %p176, %p177
    %s180 = sadd.s32 %s179, 1
    %p183 = scmp.eq.s32.totalorder %s19, 1
    %p184 = scmp.ne.s32.totalorder %s179, %s181
    %p185 = scmp.eq.s32.totalorder %s19, 0
    %p186 = por %p184, %p185
    %p187 = scmp.ne.s32.totalorder %s179, %s181
    %p188 = scmp.eq.s32.totalorder %s24, 1
    %p189 = por %p187, %p188
    %p190 = scmp.ne.s32.totalorder %s181, %s182
    %p191 = scmp.eq.s32.totalorder %s24, 0
    %p192 = por %p190, %p191
    %p193 = scmp.ne.s32.totalorder %s181, %s182
    %p194 = scmp.eq.s32.totalorder %s25, 1
    %p195 = por %p193, %p194
    %p197 = scmp.ne.s32.totalorder %s182, %s196
    %p198 = scmp.eq.s32.totalorder %s25, 0
    %p199 = por %p197, %p198
    %s201 = sadd.s32 %s200, 1
    %p204 = scmp.eq.s32.totalorder %s19, 1
    %p205 = scmp.ne.s32.totalorder %s200, %s202
    %p206 = scmp.eq.s32.totalorder %s19, 0
    %p207 = por %p205, %p206
    %p208 = scmp.ne.s32.totalorder %s200, %s202
    %p209 = scmp.eq.s32.totalorder %s24, 1
    %p210 = por %p208, %p209
    %p211 = scmp.ne.s32.totalorder %s202, %s203
    %p212 = scmp.eq.s32.totalorder %s24, 0
    %p213 = por %p211, %p212
    %p214 = scmp.ne.s32.totalorder %s202, %s203
    %p215 = scmp.eq.s32.totalorder %s25, 1
    %p216 = por %p214, %p215
    %p218 = scmp.ne.s32.totalorder %s203, %s217
    %p219 = scmp.eq.s32.totalorder %s25, 0
    %p220 = por %p218, %p219
    %s222 = sadd.s32 %s221, 1
    %p225 = scmp.eq.s32.totalorder %s19, 1
    %p226 = scmp.ne.s32.totalorder %s221, %s223
    %p227 = scmp.eq.s32.totalorder %s19, 0
    %p228 = por %p226, %p227
    %p229 = scmp.ne.s32.totalorder %s221, %s223
    %p230 = scmp.eq.s32.totalorder %s24, 1
    %p231 = por %p229, %p230
    %p232 = scmp.ne.s32.totalorder %s223, %s224
    %p233 = scmp.eq.s32.totalorder %s24, 0
    %p234 = por %p232, %p233
    %p235 = scmp.ne.s32.totalorder %s223, %s224
    %p236 = scmp.eq.s32.totalorder %s25, 1
    %p237 = por %p235, %p236
    %p239 = scmp.ne.s32.totalorder %s224, %s238
    %p240 = scmp.eq.s32.totalorder %s25, 0
    %p241 = por %p239, %p240
    %s243 = sadd.s32 %s242, 1
    %p246 = scmp.eq.s32.totalorder %s19, 1
    %p247 = scmp.ne.s32.totalorder %s242, %s244
    %p248 = scmp.eq.s32.totalorder %s19, 0
    %p249 = por %p247, %p248
    %p250 = scmp.ne.s32.totalorder %s242, %s244
    %p251 = scmp.eq.s32.totalorder %s24, 1
    %p252 = por %p250, %p251
    %p253 = scmp.ne.s32.totalorder %s244, %s245
    %p254 = scmp.eq.s32.totalorder %s24, 0
    %p255 = por %p253, %p254
    %p256 = scmp.ne.s32.totalorder %s244, %s245
    %p257 = scmp.eq.s32.totalorder %s25, 1
    %p258 = por %p256, %p257
    %p260 = scmp.ne.s32.totalorder %s245, %s259
    %p261 = scmp.eq.s32.totalorder %s25, 0
    %p262 = por %p260, %p261
    %s264 = sadd.s32 %s263, 1
    %p267 = scmp.eq.s32.totalorder %s19, 1
    %p268 = scmp.ne.s32.totalorder %s263, %s265
    %p269 = scmp.eq.s32.totalorder %s19, 0
    %p270 = por %p268, %p269
    %p271 = scmp.ne.s32.totalorder %s263, %s265
    %p272 = scmp.eq.s32.totalorder %s24, 1
    %p273 = por %p271, %p272
    %p274 = scmp.ne.s32.totalorder %s265, %s266
    %p275 = scmp.eq.s32.totalorder %s24, 0
    %p276 = por %p274, %p275
    %p277 = scmp.ne.s32.totalorder %s265, %s266
    %p278 = scmp.eq.s32.totalorder %s25, 1
    %p279 = por %p277, %p278
    %p281 = scmp.ne.s32.totalorder %s266, %s280
    %p282 = scmp.eq.s32.totalorder %s25, 0
    %p283 = por %p281, %p282
    %s285 = sadd.s32 %s284, 1
    %p288 = scmp.eq.s32.totalorder %s19, 1
    %p289 = scmp.ne.s32.totalorder %s284, %s286
    %p290 = scmp.eq.s32.totalorder %s19, 0
    %p291 = por %p289, %p290
    %p292 = scmp.ne.s32.totalorder %s284, %s286
    %p293 = scmp.eq.s32.totalorder %s24, 1
    %p294 = por %p292, %p293
    %p295 = scmp.ne.s32.totalorder %s286, %s287
    %p296 = scmp.eq.s32.totalorder %s24, 0
    %p297 = por %p295, %p296
    %p298 = scmp.ne.s32.totalorder %s286, %s287
    %p299 = scmp.eq.s32.totalorder %s25, 1
    %p300 = por %p298, %p299
    %p302 = scmp.ne.s32.totalorder %s287, %s301
    %p303 = scmp.eq.s32.totalorder %s25, 0
    %p304 = por %p302, %p303
    %s305 = ssub.s32 %s19, %s26
    %p306 = scmp.eq.s32.totalorder %s305, 0
    %s308 = sadd.s32 %s307, 1
    %s309 = scalar_select %p306, %s307, %s308
    %p312 = pneg %p306
    %p313 = scmp.eq.s32.totalorder %s19, 1
    %p314 = por %p312, %p313
    %p315 = scmp.ne.s32.totalorder %s307, %s310
    %p316 = scmp.eq.s32.totalorder %s19, 0
    %p317 = por %p315, %p316
    %p318 = scmp.ne.s32.totalorder %s307, %s310
    %p319 = scmp.eq.s32.totalorder %s24, 1
    %p320 = por %p318, %p319
    %p321 = scmp.ne.s32.totalorder %s310, %s311
    %p322 = scmp.eq.s32.totalorder %s24, 0
    %p323 = por %p321, %p322
    %p324 = scmp.ne.s32.totalorder %s310, %s311
    %p325 = scmp.eq.s32.totalorder %s25, 1
    %p326 = por %p324, %p325
    %p328 = scmp.ne.s32.totalorder %s311, %s327
    %p329 = scmp.eq.s32.totalorder %s25, 0
    %p330 = por %p328, %p329
    %p331 = scmp.le.s32.totalorder 1, %s19
    %p332 = scmp.lt.s32.totalorder %s19, 3
    %p333 = pnand %p331, %p332
    %p334 = pneg %p333
    // Predicated region
    $region9: #{gated_pixelcnn_forward.1} parent=5 // pred_check
      _
    $region10: #{gated_pixelcnn_forward.1} parent=5 // pred_check_branch
      %336 = sbr.rel (%p333) target = $region12
    $region11: #{gated_pixelcnn_forward.1} parent=5 // pred_region
      %s337 = ssub.s32 %s19, 1
      // Predicated region
      $region13: #{gated_pixelcnn_forward.1} parent=11 // pred_check
        %p338 = pneg %p66
      $region14: #{gated_pixelcnn_forward.1} parent=11 // pred_check_branch
        %340 = sbr.rel (%p338) target = $region16
      $region15: #{gated_pixelcnn_forward.1} parent=11 // pred_region
        _
      $region16: #{gated_pixelcnn_forward.1} parent=11 // pred_fallthru
        _
      // Predicated region
      $region17: #{gated_pixelcnn_forward.1} parent=11 // pred_check
        %p341 = pneg %p87
      $region18: #{gated_pixelcnn_forward.1} parent=11 // pred_check_branch
        %343 = sbr.rel (%p341) target = $region20
      $region19: #{gated_pixelcnn_forward.1} parent=11 // pred_region
        _
      $region20: #{gated_pixelcnn_forward.1} parent=11 // pred_fallthru
        _
      // Predicated region
      $region21: #{gated_pixelcnn_forward.1} parent=11 // pred_check
        %p344 = pneg %p108
      $region22: #{gated_pixelcnn_forward.1} parent=11 // pred_check_branch
        %346 = sbr.rel (%p344) target = $region24
      $region23: #{gated_pixelcnn_forward.1} parent=11 // pred_region
        _
      $region24: #{gated_pixelcnn_forward.1} parent=11 // pred_fallthru
        _
      // Predicated region
      $region25: #{gated_pixelcnn_forward.1} parent=11 // pred_check
        %p347 = pneg %p129
      $region26: #{gated_pixelcnn_forward.1} parent=11 // pred_check_branch
        %349 = sbr.rel (%p347) target = $region28
      $region27: #{gated_pixelcnn_forward.1} parent=11 // pred_region
        _
      $region28: #{gated_pixelcnn_forward.1} parent=11 // pred_fallthru
        _
      // Predicated region
      $region29: #{gated_pixelcnn_forward.1} parent=11 // pred_check
        %p350 = pneg %p150
      $region30: #{gated_pixelcnn_forward.1} parent=11 // pred_check_branch
        %352 = sbr.rel (%p350) target = $region32
      $region31: #{gated_pixelcnn_forward.1} parent=11 // pred_region
        _
      $region32: #{gated_pixelcnn_forward.1} parent=11 // pred_fallthru
        _
      // Predicated region
      $region33: #{gated_pixelcnn_forward.1} parent=11 // pred_check
        %p353 = pneg %p171
      $region34: #{gated_pixelcnn_forward.1} parent=11 // pred_check_branch
        %355 = sbr.rel (%p353) target = $region36
      $region35: #{gated_pixelcnn_forward.1} parent=11 // pred_region
        _
      $region36: #{gated_pixelcnn_forward.1} parent=11 // pred_fallthru
        _
      // Predicated region
      $region37: #{gated_pixelcnn_forward.1} parent=11 // pred_check
        %p356 = pneg %p192
      $region38: #{gated_pixelcnn_forward.1} parent=11 // pred_check_branch
        %358 = sbr.rel (%p356) target = $region40
      $region39: #{gated_pixelcnn_forward.1} parent=11 // pred_region
        _
      $region40: #{gated_pixelcnn_forward.1} parent=11 // pred_fallthru
        _
      // Predicated region
      $region41: #{gated_pixelcnn_forward.1} parent=11 // pred_check
        %p359 = pneg %p213
      $region42: #{gated_pixelcnn_forward.1} parent=11 // pred_check_branch
        %361 = sbr.rel (%p359) target = $region44
      $region43: #{gated_pixelcnn_forward.1} parent=11 // pred_region
        _
      $region44: #{gated_pixelcnn_forward.1} parent=11 // pred_fallthru
        _
      // Predicated region
      $region45: #{gated_pixelcnn_forward.1} parent=11 // pred_check
        %p362 = pneg %p234
      $region46: #{gated_pixelcnn_forward.1} parent=11 // pred_check_branch
        %364 = sbr.rel (%p362) target = $region48
      $region47: #{gated_pixelcnn_forward.1} parent=11 // pred_region
        _
      $region48: #{gated_pixelcnn_forward.1} parent=11 // pred_fallthru
        _
      // Predicated region
      $region49: #{gated_pixelcnn_forward.1} parent=11 // pred_check
        %p365 = pneg %p255
      $region50: #{gated_pixelcnn_forward.1} parent=11 // pred_check_branch
        %367 = sbr.rel (%p365) target = $region52
      $region51: #{gated_pixelcnn_forward.1} parent=11 // pred_region
        _
      $region52: #{gated_pixelcnn_forward.1} parent=11 // pred_fallthru
        _
      // Predicated region
      $region53: #{gated_pixelcnn_forward.1} parent=11 // pred_check
        %p368 = pneg %p276
      $region54: #{gated_pixelcnn_forward.1} parent=11 // pred_check_branch
        %370 = sbr.rel (%p368) target = $region56
      $region55: #{gated_pixelcnn_forward.1} parent=11 // pred_region
        _
      $region56: #{gated_pixelcnn_forward.1} parent=11 // pred_fallthru
        _
      // Predicated region
      $region57: #{gated_pixelcnn_forward.1} parent=11 // pred_check
        %p371 = pneg %p297
      $region58: #{gated_pixelcnn_forward.1} parent=11 // pred_check_branch
        %373 = sbr.rel (%p371) target = $region60
      $region59: #{gated_pixelcnn_forward.1} parent=11 // pred_region
        _
      $region60: #{gated_pixelcnn_forward.1} parent=11 // pred_fallthru
        _
    $region12: #{gated_pixelcnn_forward.1} parent=5 // pred_fallthru
      _
    %p374 = scmp.lt.s32.totalorder %s19, 2
    // Predicated region
    $region61: #{gated_pixelcnn_forward.1} parent=5 // pred_check
      %p375 = pneg %p374
    $region62: #{gated_pixelcnn_forward.1} parent=5 // pred_check_branch
      %377 = sbr.rel (%p375) target = $region64
    $region63: #{gated_pixelcnn_forward.1} parent=5 // pred_region
      // Predicated region
      $region65: #{gated_pixelcnn_forward.1} parent=63 // pred_check
        %p378 = pneg %p39
      $region66: #{gated_pixelcnn_forward.1} parent=63 // pred_check_branch
        %380 = sbr.rel (%p378) target = $region68
      $region67: #{gated_pixelcnn_forward.1} parent=63 // pred_region
        %p381 = scmp.lt.s32.totalorder %s19, 1
        %s382 = scalar_select %p381, %s19, 1
        %s383 = smul.addr %s382, 32
        %s384 = smul.addr %s383, 8
        %s385 = scalar_lea.vmem %s0, %s384
      $region68: #{gated_pixelcnn_forward.1} parent=63 // pred_fallthru
        _
    $region64: #{gated_pixelcnn_forward.1} parent=5 // pred_fallthru
      _
    %p386 = scmp.le.s32.totalorder 1, %s19
    %p387 = scmp.lt.s32.totalorder %s19, 3
    %p388 = pnand %p386, %p387
    %p389 = pneg %p388
    // Predicated region
    $region69: #{gated_pixelcnn_forward.1} parent=5 // pred_check
      _
    $region70: #{gated_pixelcnn_forward.1} parent=5 // pred_check_branch
      %391 = sbr.rel (%p388) target = $region72
    $region71: #{gated_pixelcnn_forward.1} parent=5 // pred_region
      %s392 = ssub.s32 %s19, 1
      %p393 = scmp.lt.s32.totalorder %s24, 1
      %s394 = scalar_select %p393, %s24, 1
      %s395 = smul.addr %s394, 32
      %s396 = smul.addr %s395, 8
      %s397 = scalar_lea.vmem %s0, %s396
      %p398 = pneg %p45
      %p399 = pneg %p42
      %p400 = pneg %p66
      %p401 = pneg %p63
      %p402 = pneg %p87
      %p403 = pneg %p84
      %p404 = pneg %p108
      %p405 = pneg %p105
      %p406 = pneg %p129
      %p407 = pneg %p126
      %p408 = pneg %p150
      %p409 = pneg %p147
      %p410 = pneg %p171
      %p411 = pneg %p168
      %p412 = pneg %p192
      %p413 = pneg %p189
      %p414 = pneg %p213
      %p415 = pneg %p210
      %p416 = pneg %p234
      %p417 = pneg %p231
      %p418 = pneg %p255
      %p419 = pneg %p252
      %p420 = pneg %p276
      %p421 = pneg %p273
      %p422 = pneg %p297
      %p423 = pneg %p294
      %p424 = pneg %p323
      %p425 = pneg %p320
      %p426 = scmp.lt.s32.totalorder %s24, 1
      %s427 = scalar_select %p426, %s24, 1
      %s428 = smul.addr %s427, 32
      %s429 = smul.addr %s428, 8
      %s430 = scalar_lea.vmem %s13, %s429
      %p431 = scmp.lt.s32.totalorder %s24, 1
      %s432 = scalar_select %p431, %s24, 1
      %s433 = smul.addr %s432, 32
      %s434 = smul.addr %s433, 8
      %s435 = scalar_lea.vmem %s0, %s434
      %p436 = scmp.lt.s32.totalorder %s24, 1
      %s437 = scalar_select %p436, %s24, 1
      %s438 = smul.addr %s437, 32
      %s439 = smul.addr %s438, 8
      %s440 = scalar_lea.vmem %s13, %s439
      %vm442 = vcmask 261120
      %443 = vst.msk [vmem:[#allocation2] sm:$0xff] %vm442, 0.0
      %444 = vst.msk [vmem:[#allocation2 + $0x8] sm:$0xff] %vm442, 0.0
      %vm445 = vcmask 257024
      %446 = vst.msk [vmem:[#allocation2 + $0x10] sm:$0xf] %vm445, 0.0
      %447 = vst.msk [vmem:[#allocation2 + $0x18] sm:$0xff] %vm442, 0.0
      %448 = vst.msk [vmem:[#allocation2 + $0x20] sm:$0xff] %vm442, 0.0
      %449 = vst.msk [vmem:[#allocation2 + $0x28] sm:$0xf] %vm445, 0.0
      %s450 = scalar_lea.vmem [#allocation2], 432
      %451 = vst.msk [vmem:[%s450] sm:$0xff] %vm442, 0.0
      %452 = vst.msk [vmem:[%s450 + $0x8] sm:$0xff] %vm442, 0.0
      %453 = vst.msk [vmem:[%s450 + $0x10] sm:$0xf] %vm445, 0.0
      %454 = vst.msk [vmem:[%s450 + $0x18] sm:$0xff] %vm442, 0.0
      %455 = vst.msk [vmem:[%s450 + $0x20] sm:$0xff] %vm442, 0.0
      %456 = vst.msk [vmem:[%s450 + $0x28] sm:$0xf] %vm445, 0.0
      %s457 = scalar_lea.vmem [#allocation2], 48
      %vm458 = vcmask 254976
      %459 = vst.msk [vmem:[%s457] sm:$0x3] %vm458, 0.0
      %460 = vst.msk [vmem:[%s457 + $0x18] sm:$0x3] %vm458, 0.0
      %461 = vst.msk [vmem:[%s457 + $0x30] sm:$0x3] %vm458, 0.0
      %462 = vst.msk [vmem:[%s457 + $0x48] sm:$0x3] %vm458, 0.0
      %463 = vst.msk [vmem:[%s457 + $0x60] sm:$0x3] %vm458, 0.0
      %464 = vst.msk [vmem:[%s457 + $0x78] sm:$0x3] %vm458, 0.0
      %465 = vst.msk [vmem:[%s457 + $0x90] sm:$0x3] %vm458, 0.0
      %466 = vst.msk [vmem:[%s457 + $0xa8] sm:$0x3] %vm458, 0.0
      %467 = vst.msk [vmem:[%s457 + $0xc0] sm:$0x3] %vm458, 0.0
      %468 = vst.msk [vmem:[%s457 + $0xd8] sm:$0x3] %vm458, 0.0
      %469 = vst.msk [vmem:[%s457 + $0xf0] sm:$0x3] %vm458, 0.0
      %470 = vst.msk [vmem:[%s457 + $0x108] sm:$0x3] %vm458, 0.0
      %471 = vst.msk [vmem:[%s457 + $0x120] sm:$0x3] %vm458, 0.0
      %472 = vst.msk [vmem:[%s457 + $0x138] sm:$0x3] %vm458, 0.0
      %473 = vst.msk [vmem:[%s457 + $0x150] sm:$0x3] %vm458, 0.0
      %474 = vst.msk [vmem:[%s457 + $0x168] sm:$0x3] %vm458, 0.0
      %475 = vst.msk [vmem:[%s457 + $0x12] sm:$0x3] %vm458, 0.0
      %476 = vst.msk [vmem:[%s457 + $0x2a] sm:$0x3] %vm458, 0.0
      %477 = vst.msk [vmem:[%s457 + $0x42] sm:$0x3] %vm458, 0.0
      %478 = vst.msk [vmem:[%s457 + $0x5a] sm:$0x3] %vm458, 0.0
      %479 = vst.msk [vmem:[%s457 + $0x72] sm:$0x3] %vm458, 0.0
      %480 = vst.msk [vmem:[%s457 + $0x8a] sm:$0x3] %vm458, 0.0
      %481 = vst.msk [vmem:[%s457 + $0xa2] sm:$0x3] %vm458, 0.0
      %482 = vst.msk [vmem:[%s457 + $0xba] sm:$0x3] %vm458, 0.0
      %483 = vst.msk [vmem:[%s457 + $0xd2] sm:$0x3] %vm458, 0.0
      %484 = vst.msk [vmem:[%s457 + $0xea] sm:$0x3] %vm458, 0.0
      %485 = vst.msk [vmem:[%s457 + $0x102] sm:$0x3] %vm458, 0.0
      %486 = vst.msk [vmem:[%s457 + $0x11a] sm:$0x3] %vm458, 0.0
      %487 = vst.msk [vmem:[%s457 + $0x132] sm:$0x3] %vm458, 0.0
      %488 = vst.msk [vmem:[%s457 + $0x14a] sm:$0x3] %vm458, 0.0
      %489 = vst.msk [vmem:[%s457 + $0x162] sm:$0x3] %vm458, 0.0
      %490 = vst.msk [vmem:[%s457 + $0x17a] sm:$0x3] %vm458, 0.0
      %v491 = vld [vmem:[%s435] sm:$0xff]
      %v492 = vld [vmem:[%s435 + $0x8] sm:$0xff]
      %v493 = vld [vmem:[%s435 + $0x10] sm:$0xff]
      %v494 = vld [vmem:[%s435 + $0x18] sm:$0xff]
      %v495 = vld [vmem:[%s435 + $0x20] sm:$0xff]
      %v496 = vld [vmem:[%s435 + $0x28] sm:$0xff]
      %v497 = vld [vmem:[%s435 + $0x30] sm:$0xff]
      %v498 = vld [vmem:[%s435 + $0x38] sm:$0xff]
      %v499 = vld [vmem:[%s435 + $0x40] sm:$0xff]
      %v500 = vld [vmem:[%s435 + $0x48] sm:$0xff]
      %v501 = vld [vmem:[%s435 + $0x50] sm:$0xff]
      %v502 = vld [vmem:[%s435 + $0x58] sm:$0xff]
      %v503 = vld [vmem:[%s435 + $0x60] sm:$0xff]
      %v504 = vld [vmem:[%s435 + $0x68] sm:$0xff]
      %v505 = vld [vmem:[%s435 + $0x70] sm:$0xff]
      %v506 = vld [vmem:[%s435 + $0x78] sm:$0xff]
      %v507 = vld [vmem:[%s435 + $0x80] sm:$0xff]
      %v508 = vld [vmem:[%s435 + $0x88] sm:$0xff]
      %v509 = vld [vmem:[%s435 + $0x90] sm:$0xff]
      %v510 = vld [vmem:[%s435 + $0x98] sm:$0xff]
      %v511 = vld [vmem:[%s435 + $0xa0] sm:$0xff]
      %v512 = vld [vmem:[%s435 + $0xa8] sm:$0xff]
      %v513 = vld [vmem:[%s435 + $0xb0] sm:$0xff]
      %v514 = vld [vmem:[%s435 + $0xb8] sm:$0xff]
      %v515 = vld [vmem:[%s435 + $0xc0] sm:$0xff]
      %v516 = vld [vmem:[%s435 + $0xc8] sm:$0xff]
      %v517 = vld [vmem:[%s435 + $0xd0] sm:$0xff]
      %v518 = vld [vmem:[%s435 + $0xd8] sm:$0xff]
      %v519 = vld [vmem:[%s435 + $0xe0] sm:$0xff]
      %v520 = vld [vmem:[%s435 + $0xe8] sm:$0xff]
      %v521 = vld [vmem:[%s435 + $0xf0] sm:$0xff]
      %v522 = vld [vmem:[%s435 + $0xf8] sm:$0xff]
      %vm523 = vcmask 31744
      %524 = vst.msk [vmem:[%s457 + $0x2] sm:$0xff] %vm523, %v491
      %525 = vst.msk [vmem:[%s457 + $0xa] sm:$0xff] %vm523, %v492
      %526 = vst.msk [vmem:[%s457 + $0x1a] sm:$0xff] %vm523, %v493
      %527 = vst.msk [vmem:[%s457 + $0x22] sm:$0xff] %vm523, %v494
      %528 = vst.msk [vmem:[%s457 + $0x32] sm:$0xff] %vm523, %v495
      %529 = vst.msk [vmem:[%s457 + $0x3a] sm:$0xff] %vm523, %v496
      %530 = vst.msk [vmem:[%s457 + $0x4a] sm:$0xff] %vm523, %v497
      %531 = vst.msk [vmem:[%s457 + $0x52] sm:$0xff] %vm523, %v498
      %532 = vst.msk [vmem:[%s457 + $0x62] sm:$0xff] %vm523, %v499
      %533 = vst.msk [vmem:[%s457 + $0x6a] sm:$0xff] %vm523, %v500
      %534 = vst.msk [vmem:[%s457 + $0x7a] sm:$0xff] %vm523, %v501
      %535 = vst.msk [vmem:[%s457 + $0x82] sm:$0xff] %vm523, %v502
      %536 = vst.msk [vmem:[%s457 + $0x92] sm:$0xff] %vm523, %v503
      %537 = vst.msk [vmem:[%s457 + $0x9a] sm:$0xff] %vm523, %v504
      %538 = vst.msk [vmem:[%s457 + $0xaa] sm:$0xff] %vm523, %v505
      %539 = vst.msk [vmem:[%s457 + $0xb2] sm:$0xff] %vm523, %v506
      %540 = vst.msk [vmem:[%s457 + $0xc2] sm:$0xff] %vm523, %v507
      %541 = vst.msk [vmem:[%s457 + $0xca] sm:$0xff] %vm523, %v508
      %542 = vst.msk [vmem:[%s457 + $0xda] sm:$0xff] %vm523, %v509
      %543 = vst.msk [vmem:[%s457 + $0xe2] sm:$0xff] %vm523, %v510
      %544 = vst.msk [vmem:[%s457 + $0xf2] sm:$0xff] %vm523, %v511
      %545 = vst.msk [vmem:[%s457 + $0xfa] sm:$0xff] %vm523, %v512
      %546 = vst.msk [vmem:[%s457 + $0x10a] sm:$0xff] %vm523, %v513
      %547 = vst.msk [vmem:[%s457 + $0x112] sm:$0xff] %vm523, %v514
      %548 = vst.msk [vmem:[%s457 + $0x122] sm:$0xff] %vm523, %v515
      %549 = vst.msk [vmem:[%s457 + $0x12a] sm:$0xff] %vm523, %v516
      %550 = vst.msk [vmem:[%s457 + $0x13a] sm:$0xff] %vm523, %v517
      %551 = vst.msk [vmem:[%s457 + $0x142] sm:$0xff] %vm523, %v518
      %552 = vst.msk [vmem:[%s457 + $0x152] sm:$0xff] %vm523, %v519
      %553 = vst.msk [vmem:[%s457 + $0x15a] sm:$0xff] %vm523, %v520
      %554 = vst.msk [vmem:[%s457 + $0x16a] sm:$0xff] %vm523, %v521
      %555 = vst.msk [vmem:[%s457 + $0x172] sm:$0xff] %vm523, %v522
      %s556 = scalar_lea.vmem [#allocation2], 24
      %v557 = vld [vmem:[%s556 + $0x1] sm:$0xff]
      %v558 = vld [vmem:[%s556 + $0x9] sm:$0xff]
      %v559 = vld [vmem:[%s556 + $0x19] sm:$0xff]
      %v560 = vld [vmem:[%s556 + $0x21] sm:$0xff]
      %v561 = vld [vmem:[%s556 + $0x31] sm:$0xff]
      %v562 = vld [vmem:[%s556 + $0x39] sm:$0xff]
      %v563 = vld [vmem:[%s556 + $0x49] sm:$0xff]
      %v564 = vld [vmem:[%s556 + $0x51] sm:$0xff]
      %v565 = vld [vmem:[%s556 + $0x61] sm:$0xff]
      %v566 = vld [vmem:[%s556 + $0x69] sm:$0xff]
      %v567 = vld [vmem:[%s556 + $0x79] sm:$0xff]
      %v568 = vld [vmem:[%s556 + $0x81] sm:$0xff]
      %v569 = vld [vmem:[%s556 + $0x91] sm:$0xff]
      %v570 = vld [vmem:[%s556 + $0x99] sm:$0xff]
      %v571 = vld [vmem:[%s556 + $0xa9] sm:$0xff]
      %v572 = vld [vmem:[%s556 + $0xb1] sm:$0xff]
      %v573 = vld [vmem:[%s556 + $0xc1] sm:$0xff]
      %v574 = vld [vmem:[%s556 + $0xc9] sm:$0xff]
      %v575 = vld [vmem:[%s556 + $0xd9] sm:$0xff]
      %v576 = vld [vmem:[%s556 + $0xe1] sm:$0xff]
      %v577 = vld [vmem:[%s556 + $0xf1] sm:$0xff]
      %v578 = vld [vmem:[%s556 + $0xf9] sm:$0xff]
      %v579 = vld [vmem:[%s556 + $0x109] sm:$0xff]
      %v580 = vld [vmem:[%s556 + $0x111] sm:$0xff]
      %v581 = vld [vmem:[%s556 + $0x121] sm:$0xff]
      %v582 = vld [vmem:[%s556 + $0x129] sm:$0xff]
      %v583 = vld [vmem:[%s556 + $0x139] sm:$0xff]
      %v584 = vld [vmem:[%s556 + $0x141] sm:$0xff]
      %v585 = vld [vmem:[%s556 + $0x151] sm:$0xff]
      %v586 = vld [vmem:[%s556 + $0x159] sm:$0xff]
      %v587 = vld [vmem:[%s556 + $0x169] sm:$0xff]
      %v588 = vld [vmem:[%s556 + $0x171] sm:$0xff]
      %v589 = vld [vmem:[%s556 + $0x2] sm:$0xff]
      %v590 = vld [vmem:[%s556 + $0xa] sm:$0xff]
      %v591 = vld [vmem:[%s556 + $0x1a] sm:$0xff]
      %v592 = vld [vmem:[%s556 + $0x22] sm:$0xff]
      %v593 = vld [vmem:[%s556 + $0x32] sm:$0xff]
      %v594 = vld [vmem:[%s556 + $0x3a] sm:$0xff]
      %v595 = vld [vmem:[%s556 + $0x4a] sm:$0xff]
      %v596 = vld [vmem:[%s556 + $0x52] sm:$0xff]
      %v597 = vld [vmem:[%s556 + $0x62] sm:$0xff]
      %v598 = vld [vmem:[%s556 + $0x6a] sm:$0xff]
      %v599 = vld [vmem:[%s556 + $0x7a] sm:$0xff]
      %v600 = vld [vmem:[%s556 + $0x82] sm:$0xff]
      %v601 = vld [vmem:[%s556 + $0x92] sm:$0xff]
      %v602 = vld [vmem:[%s556 + $0x9a] sm:$0xff]
      %v603 = vld [vmem:[%s556 + $0xaa] sm:$0xff]
      %v604 = vld [vmem:[%s556 + $0xb2] sm:$0xff]
      %v605 = vld [vmem:[%s556 + $0xc2] sm:$0xff]
      %v606 = vld [vmem:[%s556 + $0xca] sm:$0xff]
      %v607 = vld [vmem:[%s556 + $0xda] sm:$0xff]
      %v608 = vld [vmem:[%s556 + $0xe2] sm:$0xff]
      %v609 = vld [vmem:[%s556 + $0xf2] sm:$0xff]
      %v610 = vld [vmem:[%s556 + $0xfa] sm:$0xff]
      %v611 = vld [vmem:[%s556 + $0x10a] sm:$0xff]
      %v612 = vld [vmem:[%s556 + $0x112] sm:$0xff]
      %v613 = vld [vmem:[%s556 + $0x122] sm:$0xff]
      %v614 = vld [vmem:[%s556 + $0x12a] sm:$0xff]
      %v615 = vld [vmem:[%s556 + $0x13a] sm:$0xff]
      %v616 = vld [vmem:[%s556 + $0x142] sm:$0xff]
      %v617 = vld [vmem:[%s556 + $0x152] sm:$0xff]
      %v618 = vld [vmem:[%s556 + $0x15a] sm:$0xff]
      %v619 = vld [vmem:[%s556 + $0x16a] sm:$0xff]
      %v620 = vld [vmem:[%s556 + $0x172] sm:$0xff]
      %v621 = vld [vmem:[%s556 + $0x3] sm:$0xff]
      %v622 = vld [vmem:[%s556 + $0xb] sm:$0xff]
      %v623 = vld [vmem:[%s556 + $0x1b] sm:$0xff]
      %v624 = vld [vmem:[%s556 + $0x23] sm:$0xff]
      %v625 = vld [vmem:[%s556 + $0x33] sm:$0xff]
      %v626 = vld [vmem:[%s556 + $0x3b] sm:$0xff]
      %v627 = vld [vmem:[%s556 + $0x4b] sm:$0xff]
      %v628 = vld [vmem:[%s556 + $0x53] sm:$0xff]
      %v629 = vld [vmem:[%s556 + $0x63] sm:$0xff]
      %v630 = vld [vmem:[%s556 + $0x6b] sm:$0xff]
      %v631 = vld [vmem:[%s556 + $0x7b] sm:$0xff]
      %v632 = vld [vmem:[%s556 + $0x83] sm:$0xff]
      %v633 = vld [vmem:[%s556 + $0x93] sm:$0xff]
      %v634 = vld [vmem:[%s556 + $0x9b] sm:$0xff]
      %v635 = vld [vmem:[%s556 + $0xab] sm:$0xff]
      %v636 = vld [vmem:[%s556 + $0xb3] sm:$0xff]
      %v637 = vld [vmem:[%s556 + $0xc3] sm:$0xff]
      %v638 = vld [vmem:[%s556 + $0xcb] sm:$0xff]
      %v639 = vld [vmem:[%s556 + $0xdb] sm:$0xff]
      %v640 = vld [vmem:[%s556 + $0xe3] sm:$0xff]
      %v641 = vld [vmem:[%s556 + $0xf3] sm:$0xff]
      %v642 = vld [vmem:[%s556 + $0xfb] sm:$0xff]
      %v643 = vld [vmem:[%s556 + $0x10b] sm:$0xff]
      %v644 = vld [vmem:[%s556 + $0x113] sm:$0xff]
      %v645 = vld [vmem:[%s556 + $0x123] sm:$0xff]
      %v646 = vld [vmem:[%s556 + $0x12b] sm:$0xff]
      %v647 = vld [vmem:[%s556 + $0x13b] sm:$0xff]
      %v648 = vld [vmem:[%s556 + $0x143] sm:$0xff]
      %v649 = vld [vmem:[%s556 + $0x153] sm:$0xff]
      %v650 = vld [vmem:[%s556 + $0x15b] sm:$0xff]
      %v651 = vld [vmem:[%s556 + $0x16b] sm:$0xff]
      %v652 = vld [vmem:[%s556 + $0x173] sm:$0xff]
      %685 = vrot.lane.b32.xlu0 %v589, 4
      %v686 = vpop.permute.xlu0 %685
      %687 = vrot.lane.b32.xlu0 %v590, 4
      %v688 = vpop.permute.xlu0 %687
      %689 = vrot.lane.b32.xlu0 %v591, 4
      %v690 = vpop.permute.xlu0 %689
      %691 = vrot.lane.b32.xlu0 %v592, 4
      %v692 = vpop.permute.xlu0 %691
      %693 = vrot.lane.b32.xlu0 %v593, 4
      %v694 = vpop.permute.xlu0 %693
      %695 = vrot.lane.b32.xlu0 %v594, 4
      %v696 = vpop.permute.xlu0 %695
      %697 = vrot.lane.b32.xlu0 %v595, 4
      %v698 = vpop.permute.xlu0 %697
      %699 = vrot.lane.b32.xlu0 %v596, 4
      %v700 = vpop.permute.xlu0 %699
      %701 = vrot.lane.b32.xlu0 %v597, 4
      %v702 = vpop.permute.xlu0 %701
      %703 = vrot.lane.b32.xlu0 %v598, 4
      %v704 = vpop.permute.xlu0 %703
      %705 = vrot.lane.b32.xlu0 %v599, 4
      %v706 = vpop.permute.xlu0 %705
      %707 = vrot.lane.b32.xlu0 %v600, 4
      %v708 = vpop.permute.xlu0 %707
      %709 = vrot.lane.b32.xlu0 %v601, 4
      %v710 = vpop.permute.xlu0 %709
      %711 = vrot.lane.b32.xlu0 %v602, 4
      %v712 = vpop.permute.xlu0 %711
      %713 = vrot.lane.b32.xlu0 %v603, 4
      %v714 = vpop.permute.xlu0 %713
      %715 = vrot.lane.b32.xlu0 %v604, 4
      %v716 = vpop.permute.xlu0 %715
      %717 = vrot.lane.b32.xlu0 %v605, 4
      %v718 = vpop.permute.xlu0 %717
      %719 = vrot.lane.b32.xlu0 %v606, 4
      %v720 = vpop.permute.xlu0 %719
      %721 = vrot.lane.b32.xlu0 %v607, 4
      %v722 = vpop.permute.xlu0 %721
      %723 = vrot.lane.b32.xlu0 %v608, 4
      %v724 = vpop.permute.xlu0 %723
      %725 = vrot.lane.b32.xlu0 %v609, 4
      %v726 = vpop.permute.xlu0 %725
      %727 = vrot.lane.b32.xlu0 %v610, 4
      %v728 = vpop.permute.xlu0 %727
      %729 = vrot.lane.b32.xlu0 %v611, 4
      %v730 = vpop.permute.xlu0 %729
      %731 = vrot.lane.b32.xlu0 %v612, 4
      %v732 = vpop.permute.xlu0 %731
      %733 = vrot.lane.b32.xlu0 %v613, 4
      %v734 = vpop.permute.xlu0 %733
      %735 = vrot.lane.b32.xlu0 %v614, 4
      %v736 = vpop.permute.xlu0 %735
      %737 = vrot.lane.b32.xlu0 %v615, 4
      %v738 = vpop.permute.xlu0 %737
      %739 = vrot.lane.b32.xlu0 %v616, 4
      %v740 = vpop.permute.xlu0 %739
      %741 = vrot.lane.b32.xlu0 %v617, 4
      %v742 = vpop.permute.xlu0 %741
      %743 = vrot.lane.b32.xlu0 %v618, 4
      %v744 = vpop.permute.xlu0 %743
      %745 = vrot.lane.b32.xlu0 %v619, 4
      %v746 = vpop.permute.xlu0 %745
      %747 = vrot.lane.b32.xlu0 %v620, 4
      %v748 = vpop.permute.xlu0 %747
      %813 = vrot.lane.b32.xlu0 %v621, 8
      %v814 = vpop.permute.xlu0 %813
      %815 = vrot.lane.b32.xlu0 %v622, 8
      %v816 = vpop.permute.xlu0 %815
      %817 = vrot.lane.b32.xlu0 %v623, 8
      %v818 = vpop.permute.xlu0 %817
      %819 = vrot.lane.b32.xlu0 %v624, 8
      %v820 = vpop.permute.xlu0 %819
      %821 = vrot.lane.b32.xlu0 %v625, 8
      %v822 = vpop.permute.xlu0 %821
      %823 = vrot.lane.b32.xlu0 %v626, 8
      %v824 = vpop.permute.xlu0 %823
      %825 = vrot.lane.b32.xlu0 %v627, 8
      %v826 = vpop.permute.xlu0 %825
      %827 = vrot.lane.b32.xlu0 %v628, 8
      %v828 = vpop.permute.xlu0 %827
      %829 = vrot.lane.b32.xlu0 %v629, 8
      %v830 = vpop.permute.xlu0 %829
      %831 = vrot.lane.b32.xlu0 %v630, 8
      %v832 = vpop.permute.xlu0 %831
      %833 = vrot.lane.b32.xlu0 %v631, 8
      %v834 = vpop.permute.xlu0 %833
      %835 = vrot.lane.b32.xlu0 %v632, 8
      %v836 = vpop.permute.xlu0 %835
      %837 = vrot.lane.b32.xlu0 %v633, 8
      %v838 = vpop.permute.xlu0 %837
      %839 = vrot.lane.b32.xlu0 %v634, 8
      %v840 = vpop.permute.xlu0 %839
      %841 = vrot.lane.b32.xlu0 %v635, 8
      %v842 = vpop.permute.xlu0 %841
      %843 = vrot.lane.b32.xlu0 %v636, 8
      %v844 = vpop.permute.xlu0 %843
      %845 = vrot.lane.b32.xlu0 %v637, 8
      %v846 = vpop.permute.xlu0 %845
      %847 = vrot.lane.b32.xlu0 %v638, 8
      %v848 = vpop.permute.xlu0 %847
      %849 = vrot.lane.b32.xlu0 %v639, 8
      %v850 = vpop.permute.xlu0 %849
      %851 = vrot.lane.b32.xlu0 %v640, 8
      %v852 = vpop.permute.xlu0 %851
      %853 = vrot.lane.b32.xlu0 %v641, 8
      %v854 = vpop.permute.xlu0 %853
      %855 = vrot.lane.b32.xlu0 %v642, 8
      %v856 = vpop.permute.xlu0 %855
      %857 = vrot.lane.b32.xlu0 %v643, 8
      %v858 = vpop.permute.xlu0 %857
      %859 = vrot.lane.b32.xlu0 %v644, 8
      %v860 = vpop.permute.xlu0 %859
      %861 = vrot.lane.b32.xlu0 %v645, 8
      %v862 = vpop.permute.xlu0 %861
      %863 = vrot.lane.b32.xlu0 %v646, 8
      %v864 = vpop.permute.xlu0 %863
      %865 = vrot.lane.b32.xlu0 %v647, 8
      %v866 = vpop.permute.xlu0 %865
      %867 = vrot.lane.b32.xlu0 %v648, 8
      %v868 = vpop.permute.xlu0 %867
      %869 = vrot.lane.b32.xlu0 %v649, 8
      %v870 = vpop.permute.xlu0 %869
      %871 = vrot.lane.b32.xlu0 %v650, 8
      %v872 = vpop.permute.xlu0 %871
      %873 = vrot.lane.b32.xlu0 %v651, 8
      %v874 = vpop.permute.xlu0 %873
      %875 = vrot.lane.b32.xlu0 %v652, 8
      %v876 = vpop.permute.xlu0 %875
      %v909 = vsel %vm523, %v557, %v686
      %v910 = vsel %vm523, %v558, %v688
      %v911 = vsel %vm523, %v559, %v690
      %v912 = vsel %vm523, %v560, %v692
      %v913 = vsel %vm523, %v561, %v694
      %v914 = vsel %vm523, %v562, %v696
      %v915 = vsel %vm523, %v563, %v698
      %v916 = vsel %vm523, %v564, %v700
      %v917 = vsel %vm523, %v565, %v702
      %v918 = vsel %vm523, %v566, %v704
      %v919 = vsel %vm523, %v567, %v706
      %v920 = vsel %vm523, %v568, %v708
      %v921 = vsel %vm523, %v569, %v710
      %v922 = vsel %vm523, %v570, %v712
      %v923 = vsel %vm523, %v571, %v714
      %v924 = vsel %vm523, %v572, %v716
      %v925 = vsel %vm523, %v573, %v718
      %v926 = vsel %vm523, %v574, %v720
      %v927 = vsel %vm523, %v575, %v722
      %v928 = vsel %vm523, %v576, %v724
      %v929 = vsel %vm523, %v577, %v726
      %v930 = vsel %vm523, %v578, %v728
      %v931 = vsel %vm523, %v579, %v730
      %v932 = vsel %vm523, %v580, %v732
      %v933 = vsel %vm523, %v581, %v734
      %v934 = vsel %vm523, %v582, %v736
      %v935 = vsel %vm523, %v583, %v738
      %v936 = vsel %vm523, %v584, %v740
      %v937 = vsel %vm523, %v585, %v742
      %v938 = vsel %vm523, %v586, %v744
      %v939 = vsel %vm523, %v587, %v746
      %v940 = vsel %vm523, %v588, %v748
      %vm941 = vcmask 64512
      %v942 = vsel %vm941, %v909, %v814
      %v943 = vsel %vm941, %v910, %v816
      %v944 = vsel %vm941, %v911, %v818
      %v945 = vsel %vm941, %v912, %v820
      %v946 = vsel %vm941, %v913, %v822
      %v947 = vsel %vm941, %v914, %v824
      %v948 = vsel %vm941, %v915, %v826
      %v949 = vsel %vm941, %v916, %v828
      %v950 = vsel %vm941, %v917, %v830
      %v951 = vsel %vm941, %v918, %v832
      %v952 = vsel %vm941, %v919, %v834
      %v953 = vsel %vm941, %v920, %v836
      %v954 = vsel %vm941, %v921, %v838
      %v955 = vsel %vm941, %v922, %v840
      %v956 = vsel %vm941, %v923, %v842
      %v957 = vsel %vm941, %v924, %v844
      %v958 = vsel %vm941, %v925, %v846
      %v959 = vsel %vm941, %v926, %v848
      %v960 = vsel %vm941, %v927, %v850
      %v961 = vsel %vm941, %v928, %v852
      %v962 = vsel %vm941, %v929, %v854
      %v963 = vsel %vm941, %v930, %v856
      %v964 = vsel %vm941, %v931, %v858
      %v965 = vsel %vm941, %v932, %v860
      %v966 = vsel %vm941, %v933, %v862
      %v967 = vsel %vm941, %v934, %v864
      %v968 = vsel %vm941, %v935, %v866
      %v969 = vsel %vm941, %v936, %v868
      %v970 = vsel %vm941, %v937, %v870
      %v971 = vsel %vm941, %v938, %v872
      %v972 = vsel %vm941, %v939, %v874
      %v973 = vsel %vm941, %v940, %v876
      %v974 = vld [vmem:[%s1] sm:$0xf]
      %v975 = vld [vmem:[%s1 + $0x4] sm:$0x3]
      %v976 = vld [vmem:[%s2] sm:$0x1]
      %v977 = vpack.c.bf16 %v943, %v942
      %v978 = vpack.c.bf16 %v945, %v944
      %v979 = vpack.c.bf16 %v947, %v946
      %v980 = vpack.c.bf16 %v949, %v948
      %v981 = vpack.c.bf16 %v951, %v950
      %v982 = vpack.c.bf16 %v953, %v952
      %v983 = vpack.c.bf16 %v955, %v954
      %v984 = vpack.c.bf16 %v957, %v956
      %v985 = vpack.c.bf16 %v959, %v958
      %v986 = vpack.c.bf16 %v961, %v960
      %v987 = vpack.c.bf16 %v963, %v962
      %v988 = vpack.c.bf16 %v965, %v964
      %v989 = vpack.c.bf16 %v967, %v966
      %v990 = vpack.c.bf16 %v969, %v968
      %v991 = vpack.c.bf16 %v971, %v970
      %v992 = vpack.c.bf16 %v973, %v972
      %v994 = vlaneseq
      %v995 = vshrl.u32 %v994, 7
      %v996 = vsub.s32 0, %v995
      %v997 = vrot.slane %v976, %v996
      %v1001 = vunpack.c.l.b16 %v974
      %v1002 = vunpack.c.l.b16 %v975
      %v1003 = vpack.c.b16 %v1002, %v1001
      %vm1004 = vcmask 97280
      %v1006 = vsel %vm1004, %v977, 0
      %v1009 = vsel %vm1004, %v978, 0
      %v1012 = vsel %vm1004, %v979, 0
      %v1015 = vsel %vm1004, %v980, 0
      %v1018 = vsel %vm1004, %v981, 0
      %v1021 = vsel %vm1004, %v982, 0
      %v1024 = vsel %vm1004, %v983, 0
      %v1027 = vsel %vm1004, %v984, 0
      %v1030 = vsel %vm1004, %v985, 0
      %v1033 = vsel %vm1004, %v986, 0
      %v1036 = vsel %vm1004, %v987, 0
      %v1039 = vsel %vm1004, %v988, 0
      %v1042 = vsel %vm1004, %v989, 0
      %v1045 = vsel %vm1004, %v990, 0
      %v1048 = vsel %vm1004, %v991, 0
      %v1051 = vsel %vm1004, %v992, 0
      %vm1053 = vcmask 1045504
      %v1055 = vsel %vm1053, %v1003, 0
      %1057 = vmatprep.subr.bf16.mxu0 0
      %1058 = vmatpush1.bf16.msra.mxu0 %v1055
      %1059 = vmatprep.subr.bf16.mxu0 0
      %1060 = vmatpush1.bf16.msra.mxu0 0
      %1061 = vmatprep.subr.bf16.mxu0 0
      %1062 = vmatpush1.bf16.msra.mxu0 0
      %1063 = vmatprep.subr.bf16.mxu0 0
      %1064 = vmatpush1.bf16.msra.mxu0 0
      %1065 = vmatprep.subr.bf16.mxu0 0
      %1066 = vmatpush1.bf16.msra.mxu0 0
      %1067 = vmatprep.subr.bf16.mxu0 0
      %1068 = vmatpush1.bf16.msra.mxu0 0
      %1069 = vmatprep.subr.bf16.mxu0 0
      %1070 = vmatpush1.bf16.msra.mxu0 0
      %1071 = vmatprep.subr.bf16.mxu0 0
      %1072 = vmatpush1.bf16.msra.mxu0 0
      %1073 = vmatprep.subr.bf16.mxu0 0
      %1074 = vmatpush1.bf16.msra.mxu0 0
      %1075 = vmatprep.subr.bf16.mxu0 0
      %1076 = vmatpush1.bf16.msra.mxu0 0
      %1077 = vmatprep.subr.bf16.mxu0 0
      %1078 = vmatpush1.bf16.msra.mxu0 0
      %1079 = vmatprep.subr.bf16.mxu0 0
      %1080 = vmatpush1.bf16.msra.mxu0 0
      %1081 = vmatprep.subr.bf16.mxu0 0
      %1082 = vmatpush1.bf16.msra.mxu0 0
      %1083 = vmatprep.subr.bf16.mxu0 0
      %1084 = vmatpush1.bf16.msra.mxu0 0
      %1085 = vmatprep.subr.bf16.mxu0 0
      %1086 = vmatpush1.bf16.msra.mxu0 0
      %1087 = vmatprep.subr.bf16.mxu0 0
      %1088 = vmatpush1.bf16.msra.mxu0 0
      %1089 = vmatprep.mubr.bf16.mxu0 0
      %1090 = vmatmul.mubr.bf16.gmra.mrb[0].mxu0 %v1006
      %v1091 = vpop.f32.mrb[0].mxu0
      %v1092 = vadd.f32 %v997, %v1091
      %v1093 = vpop.f32.mrb[0].mxu0
      %v1094 = vpop.f32.mrb[0].mxu0
      %v1095 = vadd.f32 %v997, %v1094
      %v1096 = vpop.f32.mrb[0].mxu0
      %1097 = vmatprep.mubr.bf16.mxu0 0
      %1098 = vmatmul.mubr.bf16.gmra.mrb[0].mxu0 %v1009
      %v1099 = vpop.f32.mrb[0].mxu0
      %v1100 = vadd.f32 %v997, %v1099
      %v1101 = vpop.f32.mrb[0].mxu0
      %v1102 = vpop.f32.mrb[0].mxu0
      %v1103 = vadd.f32 %v997, %v1102
      %v1104 = vpop.f32.mrb[0].mxu0
      %1105 = vmatprep.mubr.bf16.mxu0 0
      %1106 = vmatmul.mubr.bf16.gmra.mrb[0].mxu0 %v1012
      %v1107 = vpop.f32.mrb[0].mxu0
      %v1108 = vadd.f32 %v997, %v1107
      %v1109 = vpop.f32.mrb[0].mxu0
      %v1110 = vpop.f32.mrb[0].mxu0
      %v1111 = vadd.f32 %v997, %v1110
      %v1112 = vpop.f32.mrb[0].mxu0
      %1113 = vmatprep.mubr.bf16.mxu0 0
      %1114 = vmatmul.mubr.bf16.gmra.mrb[0].mxu0 %v1015
      %v1115 = vpop.f32.mrb[0].mxu0
      %v1116 = vadd.f32 %v997, %v1115
      %v1117 = vpop.f32.mrb[0].mxu0
      %v1118 = vpop.f32.mrb[0].mxu0
      %v1119 = vadd.f32 %v997, %v1118
      %v1120 = vpop.f32.mrb[0].mxu0
      %1121 = vmatprep.mubr.bf16.mxu0 0
      %1122 = vmatmul.mubr.bf16.gmra.mrb[0].mxu0 %v1018
      %v1123 = vpop.f32.mrb[0].mxu0
      %v1124 = vadd.f32 %v997, %v1123
      %v1125 = vpop.f32.mrb[0].mxu0
      %v1126 = vpop.f32.mrb[0].mxu0
      %v1127 = vadd.f32 %v997, %v1126
      %v1128 = vpop.f32.mrb[0].mxu0
      %1129 = vmatprep.mubr.bf16.mxu0 0
      %1130 = vmatmul.mubr.bf16.gmra.mrb[0].mxu0 %v1021
      %v1131 = vpop.f32.mrb[0].mxu0
      %v1132 = vadd.f32 %v997, %v1131
      %v1133 = vpop.f32.mrb[0].mxu0
      %v1134 = vpop.f32.mrb[0].mxu0
      %v1135 = vadd.f32 %v997, %v1134
      %v1136 = vpop.f32.mrb[0].mxu0
      %1137 = vmatprep.mubr.bf16.mxu0 0
      %1138 = vmatmul.mubr.bf16.gmra.mrb[0].mxu0 %v1024
      %v1139 = vpop.f32.mrb[0].mxu0
      %v1140 = vadd.f32 %v997, %v1139
      %v1141 = vpop.f32.mrb[0].mxu0
      %v1142 = vpop.f32.mrb[0].mxu0
      %v1143 = vadd.f32 %v997, %v1142
      %v1144 = vpop.f32.mrb[0].mxu0
      %1145 = vmatprep.mubr.bf16.mxu0 0
      %1146 = vmatmul.mubr.bf16.gmra.mrb[0].mxu0 %v1027
      %v1147 = vpop.f32.mrb[0].mxu0
      %v1148 = vadd.f32 %v997, %v1147
      %v1149 = vpop.f32.mrb[0].mxu0
      %v1150 = vpop.f32.mrb[0].mxu0
      %v1151 = vadd.f32 %v997, %v1150
      %v1152 = vpop.f32.mrb[0].mxu0
      %1153 = vmatprep.mubr.bf16.mxu0 0
      %1154 = vmatmul.mubr.bf16.gmra.mrb[0].mxu0 %v1030
      %v1155 = vpop.f32.mrb[0].mxu0
      %v1156 = vadd.f32 %v997, %v1155
      %v1157 = vpop.f32.mrb[0].mxu0
      %v1158 = vpop.f32.mrb[0].mxu0
      %v1159 = vadd.f32 %v997, %v1158
      %v1160 = vpop.f32.mrb[0].mxu0
      %1161 = vmatprep.mubr.bf16.mxu0 0
      %1162 = vmatmul.mubr.bf16.gmra.mrb[0].mxu0 %v1033
      %v1163 = vpop.f32.mrb[0].mxu0
      %v1164 = vadd.f32 %v997, %v1163
      %v1165 = vpop.f32.mrb[0].mxu0
      %v1166 = vpop.f32.mrb[0].mxu0
      %v1167 = vadd.f32 %v997, %v1166
      %v1168 = vpop.f32.mrb[0].mxu0
      %1169 = vmatprep.mubr.bf16.mxu0 0
      %1170 = vmatmul.mubr.bf16.gmra.mrb[0].mxu0 %v1036
      %v1171 = vpop.f32.mrb[0].mxu0
      %v1172 = vadd.f32 %v997, %v1171
      %v1173 = vpop.f32.mrb[0].mxu0
      %v1174 = vpop.f32.mrb[0].mxu0
      %v1175 = vadd.f32 %v997, %v1174
      %v1176 = vpop.f32.mrb[0].mxu0
      %1177 = vmatprep.mubr.bf16.mxu0 0
      %1178 = vmatmul.mubr.bf16.gmra.mrb[0].mxu0 %v1039
      %v1179 = vpop.f32.mrb[0].mxu0
      %v1180 = vadd.f32 %v997, %v1179
      %v1181 = vpop.f32.mrb[0].mxu0
      %v1182 = vpop.f32.mrb[0].mxu0
      %v1183 = vadd.f32 %v997, %v1182
      %v1184 = vpop.f32.mrb[0].mxu0
      %1185 = vmatprep.mubr.bf16.mxu0 0
      %1186 = vmatmul.mubr.bf16.gmra.mrb[0].mxu0 %v1042
      %v1187 = vpop.f32.mrb[0].mxu0
      %v1188 = vadd.f32 %v997, %v1187
      %v1189 = vpop.f32.mrb[0].mxu0
      %v1190 = vpop.f32.mrb[0].mxu0
      %v1191 = vadd.f32 %v997, %v1190
      %v1192 = vpop.f32.mrb[0].mxu0
      %1193 = vmatprep.mubr.bf16.mxu0 0
      %1194 = vmatmul.mubr.bf16.gmra.mrb[0].mxu0 %v1045
      %v1195 = vpop.f32.mrb[0].mxu0
      %v1196 = vadd.f32 %v997, %v1195
      %v1197 = vpop.f32.mrb[0].mxu0
      %v1198 = vpop.f32.mrb[0].mxu0
      %v1199 = vadd.f32 %v997, %v1198
      %v1200 = vpop.f32.mrb[0].mxu0
      %1201 = vmatprep.mubr.bf16.mxu0 0
      %1202 = vmatmul.mubr.bf16.gmra.mrb[0].mxu0 %v1048
      %v1203 = vpop.f32.mrb[0].mxu0
      %v1204 = vadd.f32 %v997, %v1203
      %v1205 = vpop.f32.mrb[0].mxu0
      %v1206 = vpop.f32.mrb[0].mxu0
      %v1207 = vadd.f32 %v997, %v1206
      %v1208 = vpop.f32.mrb[0].mxu0
      %1209 = vmatprep.mubr.bf16.mxu0 0
      %1210 = vmatmul.mubr.bf16.gmra.mrb[0].mxu0 %v1051
      %v1211 = vpop.f32.mrb[0].mxu0
      %v1212 = vadd.f32 %v997, %v1211
      %v1213 = vpop.f32.mrb[0].mxu0
      %v1214 = vpop.f32.mrb[0].mxu0
      %v1215 = vadd.f32 %v997, %v1214
      %v1216 = vpop.f32.mrb[0].mxu0
      %1217 = vdwg.mxu0
      %v1218 = vld [vmem:[%s457 + $0x1] sm:$0xff]
      %v1219 = vld [vmem:[%s457 + $0x9] sm:$0xff]
      %v1220 = vld [vmem:[%s457 + $0x19] sm:$0xff]
      %v1221 = vld [vmem:[%s457 + $0x21] sm:$0xff]
      %v1222 = vld [vmem:[%s457 + $0x31] sm:$0xff]
      %v1223 = vld [vmem:[%s457 + $0x39] sm:$0xff]
      %v1224 = vld [vmem:[%s457 + $0x49] sm:$0xff]
      %v1225 = vld [vmem:[%s457 + $0x51] sm:$0xff]
      %v1226 = vld [vmem:[%s457 + $0x61] sm:$0xff]
      %v1227 = vld [vmem:[%s457 + $0x69] sm:$0xff]
      %v1228 = vld [vmem:[%s457 + $0x79] sm:$0xff]
      %v1229 = vld [vmem:[%s457 + $0x81] sm:$0xff]
      %v1230 = vld [vmem:[%s457 + $0x91] sm:$0xff]
      %v1231 = vld [vmem:[%s457 + $0x99] sm:$0xff]
      %v1232 = vld [vmem:[%s457 + $0xa9] sm:$0xff]
      %v1233 = vld [vmem:[%s457 + $0xb1] sm:$0xff]
      %v1234 = vld [vmem:[%s457 + $0xc1] sm:$0xff]
      %v1235 = vld [vmem:[%s457 + $0xc9] sm:$0xff]
      %v1236 = vld [vmem:[%s457 + $0xd9] sm:$0xff]
      %v1237 = vld [vmem:[%s457 + $0xe1] sm:$0xff]
      %v1238 = vld [vmem:[%s457 + $0xf1] sm:$0xff]
      %v1239 = vld [vmem:[%s457 + $0xf9] sm:$0xff]
      %v1240 = vld [vmem:[%s457 + $0x109] sm:$0xff]
      %v1241 = vld [vmem:[%s457 + $0x111] sm:$0xff]
      %v1242 = vld [vmem:[%s457 + $0x121] sm:$0xff]
      %v1243 = vld [vmem:[%s457 + $0x129] sm:$0xff]
      %v1244 = vld [vmem:[%s457 + $0x139] sm:$0xff]
      %v1245 = vld [vmem:[%s457 + $0x141] sm:$0xff]
      %v1246 = vld [vmem:[%s457 + $0x151] sm:$0xff]
      %v1247 = vld [vmem:[%s457 + $0x159] sm:$0xff]
      %v1248 = vld [vmem:[%s457 + $0x169] sm:$0xff]
      %v1249 = vld [vmem:[%s457 + $0x171] sm:$0xff]
      %v1250 = vld [vmem:[%s3] sm:$0x3]
      %v1251 = vld [vmem:[%s4] sm:$0x1]
      %v1252 = vpack.c.bf16 %v1219, %v1218
      %v1253 = vpack.c.bf16 %v1221, %v1220
      %v1254 = vpack.c.bf16 %v1223, %v1222
      %v1255 = vpack.c.bf16 %v1225, %v1224
      %v1256 = vpack.c.bf16 %v1227, %v1226
      %v1257 = vpack.c.bf16 %v1229, %v1228
      %v1258 = vpack.c.bf16 %v1231, %v1230
      %v1259 = vpack.c.bf16 %v1233, %v1232
      %v1260 = vpack.c.bf16 %v1235, %v1234
      %v1261 = vpack.c.bf16 %v1237, %v1236
      %v1262 = vpack.c.bf16 %v1239, %v1238
      %v1263 = vpack.c.bf16 %v1241, %v1240
      %v1264 = vpack.c.bf16 %v1243, %v1242
      %v1265 = vpack.c.bf16 %v1245, %v1244
      %v1266 = vpack.c.bf16 %v1247, %v1246
      %v1267 = vpack.c.bf16 %v1249, %v1248
      %v1269 = vlaneseq
      %v1270 = vshrl.u32 %v1269, 7
      %v1271 = vsub.s32 0, %v1270
      %v1272 = vrot.slane %v1251, %v1271
      %v1275 = vsel %vm523, %v1252, 0
      %v1278 = vsel %vm523, %v1253, 0
      %v1281 = vsel %vm523, %v1254, 0
      %v1284 = vsel %vm523, %v1255, 0
      %v1287 = vsel %vm523, %v1256, 0
      %v1290 = vsel %vm523, %v1257, 0
      %v1293 = vsel %vm523, %v1258, 0
      %v1296 = vsel %vm523, %v1259, 0
      %v1299 = vsel %vm523, %v1260, 0
      %v1302 = vsel %vm523, %v1261, 0
      %v1305 = vsel %vm523, %v1262, 0
      %v1308 = vsel %vm523, %v1263, 0
      %v1311 = vsel %vm523, %v1264, 0
      %v1314 = vsel %vm523, %v1265, 0
      %v1317 = vsel %vm523, %v1266, 0
      %v1320 = vsel %vm523, %v1267, 0
      %vm1322 = vcmask 1041408
      %v1324 = vsel %vm1322, %v1250, 0
      %1326 = vmatprep.subr.bf16.mxu0 0
      %1327 = vmatpush1.bf16.msra.mxu0 %v1324
      %1328 = vmatprep.subr.bf16.mxu0 0
      %1329 = vmatpush1.bf16.msra.mxu0 0
      %1330 = vmatprep.subr.bf16.mxu0 0
      %1331 = vmatpush1.bf16.msra.mxu0 0
      %1332 = vmatprep.subr.bf16.mxu0 0
      %1333 = vmatpush1.bf16.msra.mxu0 0
      %1334 = vmatprep.subr.bf16.mxu0 0
      %1335 = vmatpush1.bf16.msra.mxu0 0
      %1336 = vmatprep.subr.bf16.mxu0 0
      %1337 = vmatpush1.bf16.msra.mxu0 0
      %1338 = vmatprep.subr.bf16.mxu0 0
      %1339 = vmatpush1.bf16.msra.mxu0 0
      %1340 = vmatprep.subr.bf16.mxu0 0
      %1341 = vmatpush1.bf16.msra.mxu0 0
      %1342 = vmatprep.subr.bf16.mxu0 0
      %1343 = vmatpush1.bf16.msra.mxu0 0
      %1344 = vmatprep.subr.bf16.mxu0 0
      %1345 = vmatpush1.bf16.msra.mxu0 0
      %1346 = vmatprep.subr.bf16.mxu0 0
      %1347 = vmatpush1.bf16.msra.mxu0 0
      %1348 = vmatprep.subr.bf16.mxu0 0
      %1349 = vmatpush1.bf16.msra.mxu0 0
      %1350 = vmatprep.subr.bf16.mxu0 0
      %1351 = vmatpush1.bf16.msra.mxu0 0
      %1352 = vmatprep.subr.bf16.mxu0 0
      %1353 = vmatpush1.bf16.msra.mxu0 0
      %1354 = vmatprep.subr.bf16.mxu0 0
      %1355 = vmatpush1.bf16.msra.mxu0 0
      %1356 = vmatprep.subr.bf16.mxu0 0
      %1357 = vmatpush1.bf16.msra.mxu0 0
      %1358 = vmatprep.mubr.bf16.mxu0 0
      %1359 = vmatmul.mubr.bf16.gmra.mrb[0].mxu0 %v1275
      %v1360 = vpop.f32.mrb[0].mxu0
      %v1361 = vadd.f32 %v1272, %v1360
      %v1362 = vpop.f32.mrb[0].mxu0
      %v1363 = vpop.f32.mrb[0].mxu0
      %v1364 = vadd.f32 %v1272, %v1363
      %v1365 = vpop.f32.mrb[0].mxu0
      %1366 = vmatprep.mubr.bf16.mxu0 0
      %1367 = vmatmul.mubr.bf16.gmra.mrb[0].mxu0 %v1278
      %v1368 = vpop.f32.mrb[0].mxu0
      %v1369 = vadd.f32 %v1272, %v1368
      %v1370 = vpop.f32.mrb[0].mxu0
      %v1371 = vpop.f32.mrb[0].mxu0
      %v1372 = vadd.f32 %v1272, %v1371
      %v1373 = vpop.f32.mrb[0].mxu0
      %1374 = vmatprep.mubr.bf16.mxu0 0
      %1375 = vmatmul.mubr.bf16.gmra.mrb[0].mxu0 %v1281
      %v1376 = vpop.f32.mrb[0].mxu0
      %v1377 = vadd.f32 %v1272, %v1376
      %v1378 = vpop.f32.mrb[0].mxu0
      %v1379 = vpop.f32.mrb[0].mxu0
      %v1380 = vadd.f32 %v1272, %v1379
      %v1381 = vpop.f32.mrb[0].mxu0
      %1382 = vmatprep.mubr.bf16.mxu0 0
      %1383 = vmatmul.mubr.bf16.gmra.mrb[0].mxu0 %v1284
      %v1384 = vpop.f32.mrb[0].mxu0
      %v1385 = vadd.f32 %v1272, %v1384
      %v1386 = vpop.f32.mrb[0].mxu0
      %v1387 = vpop.f32.mrb[0].mxu0
      %v1388 = vadd.f32 %v1272, %v1387
      %v1389 = vpop.f32.mrb[0].mxu0
      %1390 = vmatprep.mubr.bf16.mxu0 0
      %1391 = vmatmul.mubr.bf16.gmra.mrb[0].mxu0 %v1287
      %v1392 = vpop.f32.mrb[0].mxu0
      %v1393 = vadd.f32 %v1272, %v1392
      %v1394 = vpop.f32.mrb[0].mxu0
      %v1395 = vpop.f32.mrb[0].mxu0
      %v1396 = vadd.f32 %v1272, %v1395
      %v1397 = vpop.f32.mrb[0].mxu0
      %1398 = vmatprep.mubr.bf16.mxu0 0
      %1399 = vmatmul.mubr.bf16.gmra.mrb[0].mxu0 %v1290
      %v1400 = vpop.f32.mrb[0].mxu0
      %v1401 = vadd.f32 %v1272, %v1400
      %v1402 = vpop.f32.mrb[0].mxu0
      %v1403 = vpop.f32.mrb[0].mxu0
      %v1404 = vadd.f32 %v1272, %v1403
      %v1405 = vpop.f32.mrb[0].mxu0
      %1406 = vmatprep.mubr.bf16.mxu0 0
      %1407 = vmatmul.mubr.bf16.gmra.mrb[0].mxu0 %v1293
      %v1408 = vpop.f32.mrb[0].mxu0
      %v1409 = vadd.f32 %v1272, %v1408
      %v1410 = vpop.f32.mrb[0].mxu0
      %v1411 = vpop.f32.mrb[0].mxu0
      %v1412 = vadd.f32 %v1272, %v1411
      %v1413 = vpop.f32.mrb[0].mxu0
      %1414 = vmatprep.mubr.bf16.mxu0 0
      %1415 = vmatmul.mubr.bf16.gmra.mrb[0].mxu0 %v1296
      %v1416 = vpop.f32.mrb[0].mxu0
      %v1417 = vadd.f32 %v1272, %v1416
      %v1418 = vpop.f32.mrb[0].mxu0
      %v1419 = vpop.f32.mrb[0].mxu0
      %v1420 = vadd.f32 %v1272, %v1419
      %v1421 = vpop.f32.mrb[0].mxu0
      %1422 = vmatprep.mubr.bf16.mxu0 0
      %1423 = vmatmul.mubr.bf16.gmra.mrb[0].mxu0 %v1299
      %v1424 = vpop.f32.mrb[0].mxu0
      %v1425 = vadd.f32 %v1272, %v1424
      %v1426 = vpop.f32.mrb[0].mxu0
      %v1427 = vpop.f32.mrb[0].mxu0
      %v1428 = vadd.f32 %v1272, %v1427
      %v1429 = vpop.f32.mrb[0].mxu0
      %1430 = vmatprep.mubr.bf16.mxu0 0
      %1431 = vmatmul.mubr.bf16.gmra.mrb[0].mxu0 %v1302
      %v1432 = vpop.f32.mrb[0].mxu0
      %v1433 = vadd.f32 %v1272, %v1432
      %v1434 = vpop.f32.mrb[0].mxu0
      %v1435 = vpop.f32.mrb[0].mxu0
      %v1436 = vadd.f32 %v1272, %v1435
      %v1437 = vpop.f32.mrb[0].mxu0
      %1438 = vmatprep.mubr.bf16.mxu0 0
      %1439 = vmatmul.mubr.bf16.gmra.mrb[0].mxu0 %v1305
      %v1440 = vpop.f32.mrb[0].mxu0
      %v1441 = vadd.f32 %v1272, %v1440
      %v1442 = vpop.f32.mrb[0].mxu0
      %v1443 = vpop.f32.mrb[0].mxu0
      %v1444 = vadd.f32 %v1272, %v1443
      %v1445 = vpop.f32.mrb[0].mxu0
      %1446 = vmatprep.mubr.bf16.mxu0 0
      %1447 = vmatmul.mubr.bf16.gmra.mrb[0].mxu0 %v1308
      %v1448 = vpop.f32.mrb[0].mxu0
      %v1449 = vadd.f32 %v1272, %v1448
      %v1450 = vpop.f32.mrb[0].mxu0
      %v1451 = vpop.f32.mrb[0].mxu0
      %v1452 = vadd.f32 %v1272, %v1451
      %v1453 = vpop.f32.mrb[0].mxu0
      %1454 = vmatprep.mubr.bf16.mxu0 0
      %1455 = vmatmul.mubr.bf16.gmra.mrb[0].mxu0 %v1311
      %v1456 = vpop.f32.mrb[0].mxu0
      %v1457 = vadd.f32 %v1272, %v1456
      %v1458 = vpop.f32.mrb[0].mxu0
      %v1459 = vpop.f32.mrb[0].mxu0
      %v1460 = vadd.f32 %v1272, %v1459
      %v1461 = vpop.f32.mrb[0].mxu0
      %1462 = vmatprep.mubr.bf16.mxu0 0
      %1463 = vmatmul.mubr.bf16.gmra.mrb[0].mxu0 %v1314
      %v1464 = vpop.f32.mrb[0].mxu0
      %v1465 = vadd.f32 %v1272, %v1464
      %v1466 = vpop.f32.mrb[0].mxu0
      %v1467 = vpop.f32.mrb[0].mxu0
      %v1468 = vadd.f32 %v1272, %v1467
      %v1469 = vpop.f32.mrb[0].mxu0
      %1470 = vmatprep.mubr.bf16.mxu0 0
      %1471 = vmatmul.mubr.bf16.gmra.mrb[0].mxu0 %v1317
      %v1472 = vpop.f32.mrb[0].mxu0
      %v1473 = vadd.f32 %v1272, %v1472
      %v1474 = vpop.f32.mrb[0].mxu0
      %v1475 = vpop.f32.mrb[0].mxu0
      %v1476 = vadd.f32 %v1272, %v1475
      %v1477 = vpop.f32.mrb[0].mxu0
      %1478 = vmatprep.mubr.bf16.mxu0 0
      %1479 = vmatmul.mubr.bf16.gmra.mrb[0].mxu0 %v1320
      %v1480 = vpop.f32.mrb[0].mxu0
      %v1481 = vadd.f32 %v1272, %v1480
      %v1482 = vpop.f32.mrb[0].mxu0
      %v1483 = vpop.f32.mrb[0].mxu0
      %v1484 = vadd.f32 %v1272, %v1483
      %v1485 = vpop.f32.mrb[0].mxu0
      %1486 = vdwg.mxu0
      %1487 = vst.msk [vmem:[%s457 + $0x2] sm:$0xff] %vm442, %v1092
      %1488 = vst.msk [vmem:[%s457 + $0xa] sm:$0xff] %vm442, %v1095
      %1489 = vst.msk [vmem:[%s457 + $0x1a] sm:$0xff] %vm442, %v1100
      %1490 = vst.msk [vmem:[%s457 + $0x22] sm:$0xff] %vm442, %v1103
      %1491 = vst.msk [vmem:[%s457 + $0x32] sm:$0xff] %vm442, %v1108
      %1492 = vst.msk [vmem:[%s457 + $0x3a] sm:$0xff] %vm442, %v1111
      %1493 = vst.msk [vmem:[%s457 + $0x4a] sm:$0xff] %vm442, %v1116
      %1494 = vst.msk [vmem:[%s457 + $0x52] sm:$0xff] %vm442, %v1119
      %1495 = vst.msk [vmem:[%s457 + $0x62] sm:$0xff] %vm442, %v1124
      %1496 = vst.msk [vmem:[%s457 + $0x6a] sm:$0xff] %vm442, %v1127
      %1497 = vst.msk [vmem:[%s457 + $0x7a] sm:$0xff] %vm442, %v1132
      %1498 = vst.msk [vmem:[%s457 + $0x82] sm:$0xff] %vm442, %v1135
      %1499 = vst.msk [vmem:[%s457 + $0x92] sm:$0xff] %vm442, %v1140
      %1500 = vst.msk [vmem:[%s457 + $0x9a] sm:$0xff] %vm442, %v1143
      %1501 = vst.msk [vmem:[%s457 + $0xaa] sm:$0xff] %vm442, %v1148
      %1502 = vst.msk [vmem:[%s457 + $0xb2] sm:$0xff] %vm442, %v1151
      %1503 = vst.msk [vmem:[%s457 + $0xc2] sm:$0xff] %vm442, %v1156
      %1504 = vst.msk [vmem:[%s457 + $0xca] sm:$0xff] %vm442, %v1159
      %1505 = vst.msk [vmem:[%s457 + $0xda] sm:$0xff] %vm442, %v1164
      %1506 = vst.msk [vmem:[%s457 + $0xe2] sm:$0xff] %vm442, %v1167
      %1507 = vst.msk [vmem:[%s457 + $0xf2] sm:$0xff] %vm442, %v1172
      %1508 = vst.msk [vmem:[%s457 + $0xfa] sm:$0xff] %vm442, %v1175
      %1509 = vst.msk [vmem:[%s457 + $0x10a] sm:$0xff] %vm442, %v1180
      %1510 = vst.msk [vmem:[%s457 + $0x112] sm:$0xff] %vm442, %v1183
      %1511 = vst.msk [vmem:[%s457 + $0x122] sm:$0xff] %vm442, %v1188
      %1512 = vst.msk [vmem:[%s457 + $0x12a] sm:$0xff] %vm442, %v1191
      %1513 = vst.msk [vmem:[%s457 + $0x13a] sm:$0xff] %vm442, %v1196
      %1514 = vst.msk [vmem:[%s457 + $0x142] sm:$0xff] %vm442, %v1199
      %1515 = vst.msk [vmem:[%s457 + $0x152] sm:$0xff] %vm442, %v1204
      %1516 = vst.msk [vmem:[%s457 + $0x15a] sm:$0xff] %vm442, %v1207
      %1517 = vst.msk [vmem:[%s457 + $0x16a] sm:$0xff] %vm442, %v1212
      %1518 = vst.msk [vmem:[%s457 + $0x172] sm:$0xff] %vm442, %v1215
      %v1519 = vld [vmem:[%s556 + $0x1] sm:$0xff]
      %v1520 = vld [vmem:[%s556 + $0x9] sm:$0xff]
      %v1521 = vld [vmem:[%s556 + $0x19] sm:$0xff]
      %v1522 = vld [vmem:[%s556 + $0x21] sm:$0xff]
      %v1523 = vld [vmem:[%s556 + $0x31] sm:$0xff]
      %v1524 = vld [vmem:[%s556 + $0x39] sm:$0xff]
      %v1525 = vld [vmem:[%s556 + $0x49] sm:$0xff]
      %v1526 = vld [vmem:[%s556 + $0x51] sm:$0xff]
      %v1527 = vld [vmem:[%s556 + $0x61] sm:$0xff]
      %v1528 = vld [vmem:[%s556 + $0x69] sm:$0xff]
      %v1529 = vld [vmem:[%s556 + $0x79] sm:$0xff]
      %v1530 = vld [vmem:[%s556 + $0x81] sm:$0xff]
      %v1531 = vld [vmem:[%s556 + $0x91] sm:$0xff]
      %v1532 = vld [vmem:[%s556 + $0x99] sm:$0xff]
      %v1533 = vld [vmem:[%s556 + $0xa9] sm:$0xff]
      %v1534 = vld [vmem:[%s556 + $0xb1] sm:$0xff]
      %v1535 = vld [vmem:[%s556 + $0xc1] sm:$0xff]
      %v1536 = vld [vmem:[%s556 + $0xc9] sm:$0xff]
      %v1537 = vld [vmem:[%s556 + $0xd9] sm:$0xff]
      %v1538 = vld [vmem:[%s556 + $0xe1] sm:$0xff]
      %v1539 = vld [vmem:[%s556 + $0xf1] sm:$0xff]
      %v1540 = vld [vmem:[%s556 + $0xf9] sm:$0xff]
      %v1541 = vld [vmem:[%s556 + $0x109] sm:$0xff]
      %v1542 = vld [vmem:[%s556 + $0x111] sm:$0xff]
      %v1543 = vld [vmem:[%s556 + $0x121] sm:$0xff]
      %v1544 = vld [vmem:[%s556 + $0x129] sm:$0xff]
      %v1545 = vld [vmem:[%s556 + $0x139] sm:$0xff]
      %v1546 = vld [vmem:[%s556 + $0x141] sm:$0xff]
      %v1547 = vld [vmem:[%s556 + $0x151] sm:$0xff]
      %v1548 = vld [vmem:[%s556 + $0x159] sm:$0xff]
      %v1549 = vld [vmem:[%s556 + $0x169] sm:$0xff]
      %v1550 = vld [vmem:[%s556 + $0x171] sm:$0xff]
      %v1551 = vld [vmem:[%s556 + $0x2] sm:$0xff]
      %v1552 = vld [vmem:[%s556 + $0xa] sm:$0xff]
      %v1553 = vld [vmem:[%s556 + $0x1a] sm:$0xff]
      %v1554 = vld [vmem:[%s556 + $0x22] sm:$0xff]
      %v1555 = vld [vmem:[%s556 + $0x32] sm:$0xff]
      %v1556 = vld [vmem:[%s556 + $0x3a] sm:$0xff]
      %v1557 = vld [vmem:[%s556 + $0x4a] sm:$0xff]
      %v1558 = vld [vmem:[%s556 + $0x52] sm:$0xff]
      %v1559 = vld [vmem:[%s556 + $0x62] sm:$0xff]
      %v1560 = vld [vmem:[%s556 + $0x6a] sm:$0xff]
      %v1561 = vld [vmem:[%s556 + $0x7a] sm:$0xff]
      %v1562 = vld [vmem:[%s556 + $0x82] sm:$0xff]
      %v1563 = vld [vmem:[%s556 + $0x92] sm:$0xff]
      %v1564 = vld [vmem:[%s556 + $0x9a] sm:$0xff]
      %v1565 = vld [vmem:[%s556 + $0xaa] sm:$0xff]
      %v1566 = vld [vmem:[%s556 + $0xb2] sm:$0xff]
      %v1567 = vld [vmem:[%s556 + $0xc2] sm:$0xff]
      %v1568 = vld [vmem:[%s556 + $0xca] sm:$0xff]
      %v1569 = vld [vmem:[%s556 + $0xda] sm:$0xff]
      %v1570 = vld [vmem:[%s556 + $0xe2] sm:$0xff]
      %v1571 = vld [vmem:[%s556 + $0xf2] sm:$0xff]
      %v1572 = vld [vmem:[%s556 + $0xfa] sm:$0xff]
      %v1573 = vld [vmem:[%s556 + $0x10a] sm:$0xff]
      %v1574 = vld [vmem:[%s556 + $0x112] sm:$0xff]
      %v1575 = vld [vmem:[%s556 + $0x122] sm:$0xff]
      %v1576 = vld [vmem:[%s556 + $0x12a] sm:$0xff]
      %v1577 = vld [vmem:[%s556 + $0x13a] sm:$0xff]
      %v1578 = vld [vmem:[%s556 + $0x142] sm:$0xff]
      %v1579 = vld [vmem:[%s556 + $0x152] sm:$0xff]
      %v1580 = vld [vmem:[%s556 + $0x15a] sm:$0xff]
      %v1581 = vld [vmem:[%s556 + $0x16a] sm:$0xff]
      %v1582 = vld [vmem:[%s556 + $0x172] sm:$0xff]
      %v1583 = vld [vmem:[%s556 + $0x3] sm:$0xff]
      %v1584 = vld [vmem:[%s556 + $0xb] sm:$0xff]
      %v1585 = vld [vmem:[%s556 + $0x1b] sm:$0xff]
      %v1586 = vld [vmem:[%s556 + $0x23] sm:$0xff]
      %v1587 = vld [vmem:[%s556 + $0x33] sm:$0xff]
      %v1588 = vld [vmem:[%s556 + $0x3b] sm:$0xff]
      %v1589 = vld [vmem:[%s556 + $0x4b] sm:$0xff]
      %v1590 = vld [vmem:[%s556 + $0x53] sm:$0xff]
      %v1591 = vld [vmem:[%s556 + $0x63] sm:$0xff]
      %v1592 = vld [vmem:[%s556 + $0x6b] sm:$0xff]
      %v1593 = vld [vmem:[%s556 + $0x7b] sm:$0xff]
      %v1594 = vld [vmem:[%s556 + $0x83] sm:$0xff]
      %v1595 = vld [vmem:[%s556 + $0x93] sm:$0xff]
      %v1596 = vld [vmem:[%s556 + $0x9b] sm:$0xff]
      %v1597 = vld [vmem:[%s556 + $0xab] sm:$0xff]
      %v1598 = vld [vmem:[%s556 + $0xb3] sm:$0xff]
      %v1599 = vld [vmem:[%s556 + $0xc3] sm:$0xff]
      %v1600 = vld [vmem:[%s556 + $0xcb] sm:$0xff]
      %v1601 = vld [vmem:[%s556 + $0xdb] sm:$0xff]
      %v1602 = vld [vmem:[%s556 + $0xe3] sm:$0xff]
      %v1603 = vld [vmem:[%s556 + $0xf3] sm:$0xff]
      %v1604 = vld [vmem:[%s556 + $0xfb] sm:$0xff]
      %v1605 = vld [vmem:[%s556 + $0x10b] sm:$0xff]
      %v1606 = vld [vmem:[%s556 + $0x113] sm:$0xff]
      %v1607 = vld [vmem:[%s556 + $0x123] sm:$0xff]
      %v1608 = vld [vmem:[%s556 + $0x12b] sm:$0xff]
      %v1609 = vld [vmem:[%s556 + $0x13b] sm:$0xff]
      %v1610 = vld [vmem:[%s556 + $0x143] sm:$0xff]
      %v1611 = vld [vmem:[%s556 + $0x153] sm:$0xff]
      %v1612 = vld [vmem:[%s556 + $0x15b] sm:$0xff]
      %v1613 = vld [vmem:[%s556 + $0x16b] sm:$0xff]
      %v1614 = vld [vmem:[%s556 + $0x173] sm:$0xff]
      %v1615 = vld [vmem:[%s457 + $0x1] sm:$0xff]
      %v1616 = vld [vmem:[%s457 + $0x9] sm:$0xff]
      %v1617 = vld [vmem:[%s457 + $0x19] sm:$0xff]
      %v1618 = vld [vmem:[%s457 + $0x21] sm:$0xff]
      %v1619 = vld [vmem:[%s457 + $0x31] sm:$0xff]
      %v1620 = vld [vmem:[%s457 + $0x39] sm:$0xff]
      %v1621 = vld [vmem:[%s457 + $0x49] sm:$0xff]
      %v1622 = vld [vmem:[%s457 + $0x51] sm:$0xff]
      %v1623 = vld [vmem:[%s457 + $0x61] sm:$0xff]
      %v1624 = vld [vmem:[%s457 + $0x69] sm:$0xff]
      %v1625 = vld [vmem:[%s457 + $0x79] sm:$0xff]
      %v1626 = vld [vmem:[%s457 + $0x81] sm:$0xff]
      %v1627 = vld [vmem:[%s457 + $0x91] sm:$0xff]
      %v1628 = vld [vmem:[%s457 + $0x99] sm:$0xff]
      %v1629 = vld [vmem:[%s457 + $0xa9] sm:$0xff]
      %v1630 = vld [vmem:[%s457 + $0xb1] sm:$0xff]
      %v1631 = vld [vmem:[%s457 + $0xc1] sm:$0xff]
      %v1632 = vld [vmem:[%s457 + $0xc9] sm:$0xff]
      %v1633 = vld [vmem:[%s457 + $0xd9] sm:$0xff]
      %v1634 = vld [vmem:[%s457 + $0xe1] sm:$0xff]
      %v1635 = vld [vmem:[%s457 + $0xf1] sm:$0xff]
      %v1636 = vld [vmem:[%s457 + $0xf9] sm:$0xff]
      %v1637 = vld [vmem:[%s457 + $0x109] sm:$0xff]
      %v1638 = vld [vmem:[%s457 + $0x111] sm:$0xff]
      %v1639 = vld [vmem:[%s457 + $0x121] sm:$0xff]
      %v1640 = vld [vmem:[%s457 + $0x129] sm:$0xff]
      %v1641 = vld [vmem:[%s457 + $0x139] sm:$0xff]
      %v1642 = vld [vmem:[%s457 + $0x141] sm:$0xff]
      %v1643 = vld [vmem:[%s457 + $0x151] sm:$0xff]
      %v1644 = vld [vmem:[%s457 + $0x159] sm:$0xff]
      %v1645 = vld [vmem:[%s457 + $0x169] sm:$0xff]
      %v1646 = vld [vmem:[%s457 + $0x171] sm:$0xff]
      %v1647 = vld [vmem:[%s457 + $0x2] sm:$0xff]
      %v1648 = vld [vmem:[%s457 + $0xa] sm:$0xff]
      %v1649 = vld [vmem:[%s457 + $0x1a] sm:$0xff]
      %v1650 = vld [vmem:[%s457 + $0x22] sm:$0xff]
      %v1651 = vld [vmem:[%s457 + $0x32] sm:$0xff]
      %v1652 = vld [vmem:[%s457 + $0x3a] sm:$0xff]
      %v1653 = vld [vmem:[%s457 + $0x4a] sm:$0xff]
      %v1654 = vld [vmem:[%s457 + $0x52] sm:$0xff]
      %v1655 = vld [vmem:[%s457 + $0x62] sm:$0xff]
      %v1656 = vld [vmem:[%s457 + $0x6a] sm:$0xff]
      %v1657 = vld [vmem:[%s457 + $0x7a] sm:$0xff]
      %v1658 = vld [vmem:[%s457 + $0x82] sm:$0xff]
      %v1659 = vld [vmem:[%s457 + $0x92] sm:$0xff]
      %v1660 = vld [vmem:[%s457 + $0x9a] sm:$0xff]
      %v1661 = vld [vmem:[%s457 + $0xaa] sm:$0xff]
      %v1662 = vld [vmem:[%s457 + $0xb2] sm:$0xff]
      %v1663 = vld [vmem:[%s457 + $0xc2] sm:$0xff]
      %v1664 = vld [vmem:[%s457 + $0xca] sm:$0xff]
      %v1665 = vld [vmem:[%s457 + $0xda] sm:$0xff]
      %v1666 = vld [vmem:[%s457 + $0xe2] sm:$0xff]
      %v1667 = vld [vmem:[%s457 + $0xf2] sm:$0xff]
      %v1668 = vld [vmem:[%s457 + $0xfa] sm:$0xff]
      %v1669 = vld [vmem:[%s457 + $0x10a] sm:$0xff]
      %v1670 = vld [vmem:[%s457 + $0x112] sm:$0xff]
      %v1671 = vld [vmem:[%s457 + $0x122] sm:$0xff]
      %v1672 = vld [vmem:[%s457 + $0x12a] sm:$0xff]
      %v1673 = vld [vmem:[%s457 + $0x13a] sm:$0xff]
      %v1674 = vld [vmem:[%s457 + $0x142] sm:$0xff]
      %v1675 = vld [vmem:[%s457 + $0x152] sm:$0xff]
      %v1676 = vld [vmem:[%s457 + $0x15a] sm:$0xff]
      %v1677 = vld [vmem:[%s457 + $0x16a] sm:$0xff]
      %v1678 = vld [vmem:[%s457 + $0x172] sm:$0xff]
      %v1679 = vld [vmem:[%s457 + $0x3] sm:$0xff]
      %v1680 = vld [vmem:[%s457 + $0xb] sm:$0xff]
      %v1681 = vld [vmem:[%s457 + $0x1b] sm:$0xff]
      %v1682 = vld [vmem:[%s457 + $0x23] sm:$0xff]
      %v1683 = vld [vmem:[%s457 + $0x33] sm:$0xff]
      %v1684 = vld [vmem:[%s457 + $0x3b] sm:$0xff]
      %v1685 = vld [vmem:[%s457 + $0x4b] sm:$0xff]
      %v1686 = vld [vmem:[%s457 + $0x53] sm:$0xff]
      %v1687 = vld [vmem:[%s457 + $0x63] sm:$0xff]
      %v1688 = vld [vmem:[%s457 + $0x6b] sm:$0xff]
      %v1689 = vld [vmem:[%s457 + $0x7b] sm:$0xff]
      %v1690 = vld [vmem:[%s457 + $0x83] sm:$0xff]
      %v1691 = vld [vmem:[%s457 + $0x93] sm:$0xff]
      %v1692 = vld [vmem:[%s457 + $0x9b] sm:$0xff]
      %v1693 = vld [vmem:[%s457 + $0xab] sm:$0xff]
      %v1694 = vld [vmem:[%s457 + $0xb3] sm:$0xff]
      %v1695 = vld [vmem:[%s457 + $0xc3] sm:$0xff]
      %v1696 = vld [vmem:[%s457 + $0xcb] sm:$0xff]
      %v1697 = vld [vmem:[%s457 + $0xdb] sm:$0xff]
      %v1698 = vld [vmem:[%s457 + $0xe3] sm:$0xff]
      %v1699 = vld [vmem:[%s457 + $0xf3] sm:$0xff]
      %v1700 = vld [vmem:[%s457 + $0xfb] sm:$0xff]
      %v1701 = vld [vmem:[%s457 + $0x10b] sm:$0xff]
      %v1702 = vld [vmem:[%s457 + $0x113] sm:$0xff]
      %v1703 = vld [vmem:[%s457 + $0x123] sm:$0xff]
      %v1704 = vld [vmem:[%s457 + $0x12b] sm:$0xff]
      %v1705 = vld [vmem:[%s457 + $0x13b] sm:$0xff]
      %v1706 = vld [vmem:[%s457 + $0x143] sm:$0xff]
      %v1707 = vld [vmem:[%s457 + $0x153] sm:$0xff]
      %v1708 = vld [vmem:[%s457 + $0x15b] sm:$0xff]
      %v1709 = vld [vmem:[%s457 + $0x16b] sm:$0xff]
      %v1710 = vld [vmem:[%s457 + $0x173] sm:$0xff]
      %1743 = vrot.lane.b32.xlu0 %v1551, 32
      %v1744 = vpop.permute.xlu0 %1743
      %1745 = vrot.lane.b32.xlu0 %v1552, 32
      %v1746 = vpop.permute.xlu0 %1745
      %1747 = vrot.lane.b32.xlu0 %v1553, 32
      %v1748 = vpop.permute.xlu0 %1747
      %1749 = vrot.lane.b32.xlu0 %v1554, 32
      %v1750 = vpop.permute.xlu0 %1749
      %1751 = vrot.lane.b32.xlu0 %v1555, 32
      %v1752 = vpop.permute.xlu0 %1751
      %1753 = vrot.lane.b32.xlu0 %v1556, 32
      %v1754 = vpop.permute.xlu0 %1753
      %1755 = vrot.lane.b32.xlu0 %v1557, 32
      %v1756 = vpop.permute.xlu0 %1755
      %1757 = vrot.lane.b32.xlu0 %v1558, 32
      %v1758 = vpop.permute.xlu0 %1757
      %1759 = vrot.lane.b32.xlu0 %v1559, 32
      %v1760 = vpop.permute.xlu0 %1759
      %1761 = vrot.lane.b32.xlu0 %v1560, 32
      %v1762 = vpop.permute.xlu0 %1761
      %1763 = vrot.lane.b32.xlu0 %v1561, 32
      %v1764 = vpop.permute.xlu0 %1763
      %1765 = vrot.lane.b32.xlu0 %v1562, 32
      %v1766 = vpop.permute.xlu0 %1765
      %1767 = vrot.lane.b32.xlu0 %v1563, 32
      %v1768 = vpop.permute.xlu0 %1767
      %1769 = vrot.lane.b32.xlu0 %v1564, 32
      %v1770 = vpop.permute.xlu0 %1769
      %1771 = vrot.lane.b32.xlu0 %v1565, 32
      %v1772 = vpop.permute.xlu0 %1771
      %1773 = vrot.lane.b32.xlu0 %v1566, 32
      %v1774 = vpop.permute.xlu0 %1773
      %1775 = vrot.lane.b32.xlu0 %v1567, 32
      %v1776 = vpop.permute.xlu0 %1775
      %1777 = vrot.lane.b32.xlu0 %v1568, 32
      %v1778 = vpop.permute.xlu0 %1777
      %1779 = vrot.lane.b32.xlu0 %v1569, 32
      %v1780 = vpop.permute.xlu0 %1779
      %1781 = vrot.lane.b32.xlu0 %v1570, 32
      %v1782 = vpop.permute.xlu0 %1781
      %1783 = vrot.lane.b32.xlu0 %v1571, 32
      %v1784 = vpop.permute.xlu0 %1783
      %1785 = vrot.lane.b32.xlu0 %v1572, 32
      %v1786 = vpop.permute.xlu0 %1785
      %1787 = vrot.lane.b32.xlu0 %v1573, 32
      %v1788 = vpop.permute.xlu0 %1787
      %1789 = vrot.lane.b32.xlu0 %v1574, 32
      %v1790 = vpop.permute.xlu0 %1789
      %1791 = vrot.lane.b32.xlu0 %v1575, 32
      %v1792 = vpop.permute.xlu0 %1791
      %1793 = vrot.lane.b32.xlu0 %v1576, 32
      %v1794 = vpop.permute.xlu0 %1793
      %1795 = vrot.lane.b32.xlu0 %v1577, 32
      %v1796 = vpop.permute.xlu0 %1795
      %1797 = vrot.lane.b32.xlu0 %v1578, 32
      %v1798 = vpop.permute.xlu0 %1797
      %1799 = vrot.lane.b32.xlu0 %v1579, 32
      %v1800 = vpop.permute.xlu0 %1799
      %1801 = vrot.lane.b32.xlu0 %v1580, 32
      %v1802 = vpop.permute.xlu0 %1801
      %1803 = vrot.lane.b32.xlu0 %v1581, 32
      %v1804 = vpop.permute.xlu0 %1803
      %1805 = vrot.lane.b32.xlu0 %v1582, 32
      %v1806 = vpop.permute.xlu0 %1805
      %1871 = vrot.lane.b32.xlu0 %v1583, 64
      %v1872 = vpop.permute.xlu0 %1871
      %1873 = vrot.lane.b32.xlu0 %v1584, 64
      %v1874 = vpop.permute.xlu0 %1873
      %1875 = vrot.lane.b32.xlu0 %v1585, 64
      %v1876 = vpop.permute.xlu0 %1875
      %1877 = vrot.lane.b32.xlu0 %v1586, 64
      %v1878 = vpop.permute.xlu0 %1877
      %1879 = vrot.lane.b32.xlu0 %v1587, 64
      %v1880 = vpop.permute.xlu0 %1879
      %1881 = vrot.lane.b32.xlu0 %v1588, 64
      %v1882 = vpop.permute.xlu0 %1881
      %1883 = vrot.lane.b32.xlu0 %v1589, 64
      %v1884 = vpop.permute.xlu0 %1883
      %1885 = vrot.lane.b32.xlu0 %v1590, 64
      %v1886 = vpop.permute.xlu0 %1885
      %1887 = vrot.lane.b32.xlu0 %v1591, 64
      %v1888 = vpop.permute.xlu0 %1887
      %1889 = vrot.lane.b32.xlu0 %v1592, 64
      %v1890 = vpop.permute.xlu0 %1889
      %1891 = vrot.lane.b32.xlu0 %v1593, 64
      %v1892 = vpop.permute.xlu0 %1891
      %1893 = vrot.lane.b32.xlu0 %v1594, 64
      %v1894 = vpop.permute.xlu0 %1893
      %1895 = vrot.lane.b32.xlu0 %v1595, 64
      %v1896 = vpop.permute.xlu0 %1895
      %1897 = vrot.lane.b32.xlu0 %v1596, 64
      %v1898 = vpop.permute.xlu0 %1897
      %1899 = vrot.lane.b32.xlu0 %v1597, 64
      %v1900 = vpop.permute.xlu0 %1899
      %1901 = vrot.lane.b32.xlu0 %v1598, 64
      %v1902 = vpop.permute.xlu0 %1901
      %1903 = vrot.lane.b32.xlu0 %v1599, 64
      %v1904 = vpop.permute.xlu0 %1903
      %1905 = vrot.lane.b32.xlu0 %v1600, 64
      %v1906 = vpop.permute.xlu0 %1905
      %1907 = vrot.lane.b32.xlu0 %v1601, 64
      %v1908 = vpop.permute.xlu0 %1907
      %1909 = vrot.lane.b32.xlu0 %v1602, 64
      %v1910 = vpop.permute.xlu0 %1909
      %1911 = vrot.lane.b32.xlu0 %v1603, 64
      %v1912 = vpop.permute.xlu0 %1911
      %1913 = vrot.lane.b32.xlu0 %v1604, 64
      %v1914 = vpop.permute.xlu0 %1913
      %1915 = vrot.lane.b32.xlu0 %v1605, 64
      %v1916 = vpop.permute.xlu0 %1915
      %1917 = vrot.lane.b32.xlu0 %v1606, 64
      %v1918 = vpop.permute.xlu0 %1917
      %1919 = vrot.lane.b32.xlu0 %v1607, 64
      %v1920 = vpop.permute.xlu0 %1919
      %1921 = vrot.lane.b32.xlu0 %v1608, 64
      %v1922 = vpop.permute.xlu0 %1921
      %1923 = vrot.lane.b32.xlu0 %v1609, 64
      %v1924 = vpop.permute.xlu0 %1923
      %1925 = vrot.lane.b32.xlu0 %v1610, 64
      %v1926 = vpop.permute.xlu0 %1925
      %1927 = vrot.lane.b32.xlu0 %v1611, 64
      %v1928 = vpop.permute.xlu0 %1927
      %1929 = vrot.lane.b32.xlu0 %v1612, 64
      %v1930 = vpop.permute.xlu0 %1929
      %1931 = vrot.lane.b32.xlu0 %v1613, 64
      %v1932 = vpop.permute.xlu0 %1931
      %1933 = vrot.lane.b32.xlu0 %v1614, 64
      %v1934 = vpop.permute.xlu0 %1933
      %1999 = vrot.lane.b32.xlu0 %v1615, 96
      %v2000 = vpop.permute.xlu0 %1999
      %2001 = vrot.lane.b32.xlu0 %v1616, 96
      %v2002 = vpop.permute.xlu0 %2001
      %2003 = vrot.lane.b32.xlu0 %v1617, 96
      %v2004 = vpop.permute.xlu0 %2003
      %2005 = vrot.lane.b32.xlu0 %v1618, 96
      %v2006 = vpop.permute.xlu0 %2005
      %2007 = vrot.lane.b32.xlu0 %v1619, 96
      %v2008 = vpop.permute.xlu0 %2007
      %2009 = vrot.lane.b32.xlu0 %v1620, 96
      %v2010 = vpop.permute.xlu0 %2009
      %2011 = vrot.lane.b32.xlu0 %v1621, 96
      %v2012 = vpop.permute.xlu0 %2011
      %2013 = vrot.lane.b32.xlu0 %v1622, 96
      %v2014 = vpop.permute.xlu0 %2013
      %2015 = vrot.lane.b32.xlu0 %v1623, 96
      %v2016 = vpop.permute.xlu0 %2015
      %2017 = vrot.lane.b32.xlu0 %v1624, 96
      %v2018 = vpop.permute.xlu0 %2017
      %2019 = vrot.lane.b32.xlu0 %v1625, 96
      %v2020 = vpop.permute.xlu0 %2019
      %2021 = vrot.lane.b32.xlu0 %v1626, 96
      %v2022 = vpop.permute.xlu0 %2021
      %2023 = vrot.lane.b32.xlu0 %v1627, 96
      %v2024 = vpop.permute.xlu0 %2023
      %2025 = vrot.lane.b32.xlu0 %v1628, 96
      %v2026 = vpop.permute.xlu0 %2025
      %2027 = vrot.lane.b32.xlu0 %v1629, 96
      %v2028 = vpop.permute.xlu0 %2027
      %2029 = vrot.lane.b32.xlu0 %v1630, 96
      %v2030 = vpop.permute.xlu0 %2029
      %2031 = vrot.lane.b32.xlu0 %v1631, 96
      %v2032 = vpop.permute.xlu0 %2031
      %2033 = vrot.lane.b32.xlu0 %v1632, 96
      %v2034 = vpop.permute.xlu0 %2033
      %2035 = vrot.lane.b32.xlu0 %v1633, 96
      %v2036 = vpop.permute.xlu0 %2035
      %2037 = vrot.lane.b32.xlu0 %v1634, 96
      %v2038 = vpop.permute.xlu0 %2037
      %2039 = vrot.lane.b32.xlu0 %v1635, 96
      %v2040 = vpop.permute.xlu0 %2039
      %2041 = vrot.lane.b32.xlu0 %v1636, 96
      %v2042 = vpop.permute.xlu0 %2041
      %2043 = vrot.lane.b32.xlu0 %v1637, 96
      %v2044 = vpop.permute.xlu0 %2043
      %2045 = vrot.lane.b32.xlu0 %v1638, 96
      %v2046 = vpop.permute.xlu0 %2045
      %2047 = vrot.lane.b32.xlu0 %v1639, 96
      %v2048 = vpop.permute.xlu0 %2047
      %2049 = vrot.lane.b32.xlu0 %v1640, 96
      %v2050 = vpop.permute.xlu0 %2049
      %2051 = vrot.lane.b32.xlu0 %v1641, 96
      %v2052 = vpop.permute.xlu0 %2051
      %2053 = vrot.lane.b32.xlu0 %v1642, 96
      %v2054 = vpop.permute.xlu0 %2053
      %2055 = vrot.lane.b32.xlu0 %v1643, 96
      %v2056 = vpop.permute.xlu0 %2055
      %2057 = vrot.lane.b32.xlu0 %v1644, 96
      %v2058 = vpop.permute.xlu0 %2057
      %2059 = vrot.lane.b32.xlu0 %v1645, 96
      %v2060 = vpop.permute.xlu0 %2059
      %2061 = vrot.lane.b32.xlu0 %v1646, 96
      %v2062 = vpop.permute.xlu0 %2061
      %2127 = vrot.lane.b32.xlu0 %v1679, 32
      %v2128 = vpop.permute.xlu0 %2127
      %2129 = vrot.lane.b32.xlu0 %v1680, 32
      %v2130 = vpop.permute.xlu0 %2129
      %2131 = vrot.lane.b32.xlu0 %v1681, 32
      %v2132 = vpop.permute.xlu0 %2131
      %2133 = vrot.lane.b32.xlu0 %v1682, 32
      %v2134 = vpop.permute.xlu0 %2133
      %2135 = vrot.lane.b32.xlu0 %v1683, 32
      %v2136 = vpop.permute.xlu0 %2135
      %2137 = vrot.lane.b32.xlu0 %v1684, 32
      %v2138 = vpop.permute.xlu0 %2137
      %2139 = vrot.lane.b32.xlu0 %v1685, 32
      %v2140 = vpop.permute.xlu0 %2139
      %2141 = vrot.lane.b32.xlu0 %v1686, 32
      %v2142 = vpop.permute.xlu0 %2141
      %2143 = vrot.lane.b32.xlu0 %v1687, 32
      %v2144 = vpop.permute.xlu0 %2143
      %2145 = vrot.lane.b32.xlu0 %v1688, 32
      %v2146 = vpop.permute.xlu0 %2145
      %2147 = vrot.lane.b32.xlu0 %v1689, 32
      %v2148 = vpop.permute.xlu0 %2147
      %2149 = vrot.lane.b32.xlu0 %v1690, 32
      %v2150 = vpop.permute.xlu0 %2149
      %2151 = vrot.lane.b32.xlu0 %v1691, 32
      %v2152 = vpop.permute.xlu0 %2151
      %2153 = vrot.lane.b32.xlu0 %v1692, 32
      %v2154 = vpop.permute.xlu0 %2153
      %2155 = vrot.lane.b32.xlu0 %v1693, 32
      %v2156 = vpop.permute.xlu0 %2155
      %2157 = vrot.lane.b32.xlu0 %v1694, 32
      %v2158 = vpop.permute.xlu0 %2157
      %2159 = vrot.lane.b32.xlu0 %v1695, 32
      %v2160 = vpop.permute.xlu0 %2159
      %2161 = vrot.lane.b32.xlu0 %v1696, 32
      %v2162 = vpop.permute.xlu0 %2161
      %2163 = vrot.lane.b32.xlu0 %v1697, 32
      %v2164 = vpop.permute.xlu0 %2163
      %2165 = vrot.lane.b32.xlu0 %v1698, 32
      %v2166 = vpop.permute.xlu0 %2165
      %2167 = vrot.lane.b32.xlu0 %v1699, 32
      %v2168 = vpop.permute.xlu0 %2167
      %2169 = vrot.lane.b32.xlu0 %v1700, 32
      %v2170 = vpop.permute.xlu0 %2169
      %2171 = vrot.lane.b32.xlu0 %v1701, 32
      %v2172 = vpop.permute.xlu0 %2171
      %2173 = vrot.lane.b32.xlu0 %v1702, 32
      %v2174 = vpop.permute.xlu0 %2173
      %2175 = vrot.lane.b32.xlu0 %v1703, 32
      %v2176 = vpop.permute.xlu0 %2175
      %2177 = vrot.lane.b32.xlu0 %v1704, 32
      %v2178 = vpop.permute.xlu0 %2177
      %2179 = vrot.lane.b32.xlu0 %v1705, 32
      %v2180 = vpop.permute.xlu0 %2179
      %2181 = vrot.lane.b32.xlu0 %v1706, 32
      %v2182 = vpop.permute.xlu0 %2181
      %2183 = vrot.lane.b32.xlu0 %v1707, 32
      %v2184 = vpop.permute.xlu0 %2183
      %2185 = vrot.lane.b32.xlu0 %v1708, 32
      %v2186 = vpop.permute.xlu0 %2185
      %2187 = vrot.lane.b32.xlu0 %v1709, 32
      %v2188 = vpop.permute.xlu0 %2187
      %2189 = vrot.lane.b32.xlu0 %v1710, 32
      %v2190 = vpop.permute.xlu0 %2189
      %v2223 = vsel %vm442, %v1519, %v1744
      %v2224 = vsel %vm442, %v1520, %v1746
      %v2225 = vsel %vm442, %v1521, %v1748
      %v2226 = vsel %vm442, %v1522, %v1750
      %v2227 = vsel %vm442, %v1523, %v1752
      %v2228 = vsel %vm442, %v1524, %v1754
      %v2229 = vsel %vm442, %v1525, %v1756
      %v2230 = vsel %vm442, %v1526, %v1758
      %v2231 = vsel %vm442, %v1527, %v1760
      %v2232 = vsel %vm442, %v1528, %v1762
      %v2233 = vsel %vm442, %v1529, %v1764
      %v2234 = vsel %vm442, %v1530, %v1766
      %v2235 = vsel %vm442, %v1531, %v1768
      %v2236 = vsel %vm442, %v1532, %v1770
      %v2237 = vsel %vm442, %v1533, %v1772
      %v2238 = vsel %vm442, %v1534, %v1774
      %v2239 = vsel %vm442, %v1535, %v1776
      %v2240 = vsel %vm442, %v1536, %v1778
      %v2241 = vsel %vm442, %v1537, %v1780
      %v2242 = vsel %vm442, %v1538, %v1782
      %v2243 = vsel %vm442, %v1539, %v1784
      %v2244 = vsel %vm442, %v1540, %v1786
      %v2245 = vsel %vm442, %v1541, %v1788
      %v2246 = vsel %vm442, %v1542, %v1790
      %v2247 = vsel %vm442, %v1543, %v1792
      %v2248 = vsel %vm442, %v1544, %v1794
      %v2249 = vsel %vm442, %v1545, %v1796
      %v2250 = vsel %vm442, %v1546, %v1798
      %v2251 = vsel %vm442, %v1547, %v1800
      %v2252 = vsel %vm442, %v1548, %v1802
      %v2253 = vsel %vm442, %v1549, %v1804
      %v2254 = vsel %vm442, %v1550, %v1806
      %vm2255 = vcmask 523264
      %v2256 = vsel %vm2255, %v2223, %v1872
      %v2257 = vsel %vm2255, %v2224, %v1874
      %v2258 = vsel %vm2255, %v2225, %v1876
      %v2259 = vsel %vm2255, %v2226, %v1878
      %v2260 = vsel %vm2255, %v2227, %v1880
      %v2261 = vsel %vm2255, %v2228, %v1882
      %v2262 = vsel %vm2255, %v2229, %v1884
      %v2263 = vsel %vm2255, %v2230, %v1886
      %v2264 = vsel %vm2255, %v2231, %v1888
      %v2265 = vsel %vm2255, %v2232, %v1890
      %v2266 = vsel %vm2255, %v2233, %v1892
      %v2267 = vsel %vm2255, %v2234, %v1894
      %v2268 = vsel %vm2255, %v2235, %v1896
      %v2269 = vsel %vm2255, %v2236, %v1898
      %v2270 = vsel %vm2255, %v2237, %v1900
      %v2271 = vsel %vm2255, %v2238, %v1902
      %v2272 = vsel %vm2255, %v2239, %v1904
      %v2273 = vsel %vm2255, %v2240, %v1906
      %v2274 = vsel %vm2255, %v2241, %v1908
      %v2275 = vsel %vm2255, %v2242, %v1910
      %v2276 = vsel %vm2255, %v2243, %v1912
      %v2277 = vsel %vm2255, %v2244, %v1914
      %v2278 = vsel %vm2255, %v2245, %v1916
      %v2279 = vsel %vm2255, %v2246, %v1918
      %v2280 = vsel %vm2255, %v2247, %v1920
      %v2281 = vsel %vm2255, %v2248, %v1922
      %v2282 = vsel %vm2255, %v2249, %v1924
      %v2283 = vsel %vm2255, %v2250, %v1926
      %v2284 = vsel %vm2255, %v2251, %v1928
      %v2285 = vsel %vm2255, %v2252, %v1930
      %v2286 = vsel %vm2255, %v2253, %v1932
      %v2287 = vsel %vm2255, %v2254, %v1934
      %vm2288 = vcmask 785408
      %v2289 = vsel %vm2288, %v2256, %v2000
      %v2290 = vsel %vm2288, %v2257, %v2002
      %v2291 = vsel %vm2288, %v2258, %v2004
      %v2292 = vsel %vm2288, %v2259, %v2006
      %v2293 = vsel %vm2288, %v2260, %v2008
      %v2294 = vsel %vm2288, %v2261, %v2010
      %v2295 = vsel %vm2288, %v2262, %v2012
      %v2296 = vsel %vm2288, %v2263, %v2014
      %v2297 = vsel %vm2288, %v2264, %v2016
      %v2298 = vsel %vm2288, %v2265, %v2018
      %v2299 = vsel %vm2288, %v2266, %v2020
      %v2300 = vsel %vm2288, %v2267, %v2022
      %v2301 = vsel %vm2288, %v2268, %v2024
      %v2302 = vsel %vm2288, %v2269, %v2026
      %v2303 = vsel %vm2288, %v2270, %v2028
      %v2304 = vsel %vm2288, %v2271, %v2030
      %v2305 = vsel %vm2288, %v2272, %v2032
      %v2306 = vsel %vm2288, %v2273, %v2034
      %v2307 = vsel %vm2288, %v2274, %v2036
      %v2308 = vsel %vm2288, %v2275, %v2038
      %v2309 = vsel %vm2288, %v2276, %v2040
      %v2310 = vsel %vm2288, %v2277, %v2042
      %v2311 = vsel %vm2288, %v2278, %v2044
      %v2312 = vsel %vm2288, %v2279, %v2046
      %v2313 = vsel %vm2288, %v2280, %v2048
      %v2314 = vsel %vm2288, %v2281, %v2050
      %v2315 = vsel %vm2288, %v2282, %v2052
      %v2316 = vsel %vm2288, %v2283, %v2054
      %v2317 = vsel %vm2288, %v2284, %v2056
      %v2318 = vsel %vm2288, %v2285, %v2058
      %v2319 = vsel %vm2288, %v2286, %v2060
      %v2320 = vsel %vm2288, %v2287, %v2062
      %v2321 = vsel %vm442, %v1647, %v2128
      %v2322 = vsel %vm442, %v1648, %v2130
      %v2323 = vsel %vm442, %v1649, %v2132
      %v2324 = vsel %vm442, %v1650, %v2134
      %v2325 = vsel %vm442, %v1651, %v2136
      %v2326 = vsel %vm442, %v1652, %v2138
      %v2327 = vsel %vm442, %v1653, %v2140
      %v2328 = vsel %vm442, %v1654, %v2142
      %v2329 = vsel %vm442, %v1655, %v2144
      %v2330 = vsel %vm442, %v1656, %v2146
      %v2331 = vsel %vm442, %v1657, %v2148
      %v2332 = vsel %vm442, %v1658, %v2150
      %v2333 = vsel %vm442, %v1659, %v2152
      %v2334 = vsel %vm442, %v1660, %v2154
      %v2335 = vsel %vm442, %v1661, %v2156
      %v2336 = vsel %vm442, %v1662, %v2158
      %v2337 = vsel %vm442, %v1663, %v2160
      %v2338 = vsel %vm442, %v1664, %v2162
      %v2339 = vsel %vm442, %v1665, %v2164
      %v2340 = vsel %vm442, %v1666, %v2166
      %v2341 = vsel %vm442, %v1667, %v2168
      %v2342 = vsel %vm442, %v1668, %v2170
      %v2343 = vsel %vm442, %v1669, %v2172
      %v2344 = vsel %vm442, %v1670, %v2174
      %v2345 = vsel %vm442, %v1671, %v2176
      %v2346 = vsel %vm442, %v1672, %v2178
      %v2347 = vsel %vm442, %v1673, %v2180
      %v2348 = vsel %vm442, %v1674, %v2182
      %v2349 = vsel %vm442, %v1675, %v2184
      %v2350 = vsel %vm442, %v1676, %v2186
      %v2351 = vsel %vm442, %v1677, %v2188
      %v2352 = vsel %vm442, %v1678, %v2190
      %v2353 = vld [vmem:[%s5] sm:$0xf]
      %v2354 = vld [vmem:[%s5 + $0x4] sm:$0xf]
      %v2355 = vld [vmem:[%s5 + $0x8] sm:$0xf]
      %v2356 = vld [vmem:[%s5 + $0xc] sm:$0xf]
      %v2357 = vld [vmem:[%s5 + $0x10] sm:$0xf]
      %v2358 = vld [vmem:[%s5 + $0x14] sm:$0xf]
      %v2359 = vld [vmem:[%s5 + $0x18] sm:$0xf]
      %v2360 = vld [vmem:[%s5 + $0x1c] sm:$0xf]
      %v2361 = vld [vmem:[%s5 + $0x20] sm:$0xf]
      %v2362 = vld [vmem:[%s5 + $0x24] sm:$0xf]
      %v2363 = vld [vmem:[%s5 + $0x28] sm:$0xf]
      %v2364 = vld [vmem:[%s5 + $0x2c] sm:$0xf]
      %v2365 = vld [vmem:[%s5 + $0x30] sm:$0xf]
      %v2366 = vld [vmem:[%s5 + $0x34] sm:$0xf]
      %v2367 = vld [vmem:[%s5 + $0x38] sm:$0xf]
      %v2368 = vld [vmem:[%s5 + $0x3c] sm:$0xf]
      %v2369 = vld [vmem:[%s5 + $0x40] sm:$0xf]
      %v2370 = vld [vmem:[%s5 + $0x44] sm:$0xf]
      %v2371 = vld [vmem:[%s5 + $0x48] sm:$0xf]
      %v2372 = vld [vmem:[%s5 + $0x4c] sm:$0xf]
      %v2373 = vld [vmem:[%s5 + $0x50] sm:$0xf]
      %v2374 = vld [vmem:[%s5 + $0x54] sm:$0xf]
      %v2375 = vld [vmem:[%s5 + $0x58] sm:$0xf]
      %v2376 = vld [vmem:[%s5 + $0x5c] sm:$0xf]
      %v2377 = vld [vmem:[%s6] sm:$0x1]
      %v2378 = vpack.c.bf16 %v2290, %v2289
      %v2379 = vpack.c.bf16 %v2322, %v2321
      %v2380 = vpack.c.bf16 %v2292, %v2291
      %v2381 = vpack.c.bf16 %v2324, %v2323
      %v2382 = vpack.c.bf16 %v2294, %v2293
      %v2383 = vpack.c.bf16 %v2326, %v2325
      %v2384 = vpack.c.bf16 %v2296, %v2295
      %v2385 = vpack.c.bf16 %v2328, %v2327
      %v2386 = vpack.c.bf16 %v2298, %v2297
      %v2387 = vpack.c.bf16 %v2330, %v2329
      %v2388 = vpack.c.bf16 %v2300, %v2299
      %v2389 = vpack.c.bf16 %v2332, %v2331
      %v2390 = vpack.c.bf16 %v2302, %v2301
      %v2391 = vpack.c.bf16 %v2334, %v2333
      %v2392 = vpack.c.bf16 %v2304, %v2303
      %v2393 = vpack.c.bf16 %v2336, %v2335
      %v2394 = vpack.c.bf16 %v2306, %v2305
      %v2395 = vpack.c.bf16 %v2338, %v2337
      %v2396 = vpack.c.bf16 %v2308, %v2307
      %v2397 = vpack.c.bf16 %v2340, %v2339
      %v2398 = vpack.c.bf16 %v2310, %v2309
      %v2399 = vpack.c.bf16 %v2342, %v2341
      %v2400 = vpack.c.bf16 %v2312, %v2311
      %v2401 = vpack.c.bf16 %v2344, %v2343
      %v2402 = vpack.c.bf16 %v2314, %v2313
      %v2403 = vpack.c.bf16 %v2346, %v2345
      %v2404 = vpack.c.bf16 %v2316, %v2315
      %v2405 = vpack.c.bf16 %v2348, %v2347
      %v2406 = vpack.c.bf16 %v2318, %v2317
      %v2407 = vpack.c.bf16 %v2350, %v2349
      %v2408 = vpack.c.bf16 %v2320, %v2319
      %v2409 = vpack.c.bf16 %v2352, %v2351
      %v2411 = vlaneseq
      %v2412 = vshrl.u32 %v2411, 7
      %v2413 = vsub.s32 0, %v2412
      %v2414 = vrot.slane %v2377, %v2413
      %v2440 = vunpack.c.l.b16 %v2353
      %v2441 = vunpack.c.l.b16 %v2354
      %v2442 = vunpack.c.l.b16 %v2355
      %v2443 = vunpack.c.l.b16 %v2356
      %v2444 = vunpack.c.l.b16 %v2357
      %v2445 = vunpack.c.l.b16 %v2358
      %v2446 = vunpack.c.l.b16 %v2359
      %v2447 = vunpack.c.l.b16 %v2360
      %v2448 = vunpack.c.l.b16 %v2361
      %v2449 = vunpack.c.l.b16 %v2362
      %v2450 = vunpack.c.l.b16 %v2363
      %v2451 = vunpack.c.l.b16 %v2364
      %v2452 = vunpack.c.l.b16 %v2365
      %v2453 = vunpack.c.l.b16 %v2366
      %v2454 = vunpack.c.l.b16 %v2367
      %v2455 = vunpack.c.l.b16 %v2368
      %v2456 = vunpack.c.l.b16 %v2369
      %v2457 = vunpack.c.l.b16 %v2370
      %v2458 = vunpack.c.l.b16 %v2371
      %v2459 = vunpack.c.l.b16 %v2372
      %v2460 = vunpack.c.l.b16 %v2373
      %v2461 = vunpack.c.l.b16 %v2374
      %v2462 = vunpack.c.l.b16 %v2375
      %v2463 = vunpack.c.l.b16 %v2376
      %v2464 = vpack.c.b16 %v2441, %v2440
      %v2465 = vpack.c.b16 %v2443, %v2442
      %v2466 = vpack.c.b16 %v2445, %v2444
      %v2467 = vpack.c.b16 %v2447, %v2446
      %v2468 = vpack.c.b16 %v2449, %v2448
      %v2469 = vpack.c.b16 %v2451, %v2450
      %v2470 = vpack.c.b16 %v2453, %v2452
      %v2471 = vpack.c.b16 %v2455, %v2454
      %v2472 = vpack.c.b16 %v2457, %v2456
      %v2473 = vpack.c.b16 %v2459, %v2458
      %v2474 = vpack.c.b16 %v2461, %v2460
      %v2475 = vpack.c.b16 %v2463, %v2462
      %v2489 = vsel %vm2255, %v2379, 0
      %v2492 = vsel %vm2255, %v2381, 0
      %v2495 = vsel %vm2255, %v2383, 0
      %v2498 = vsel %vm2255, %v2385, 0
      %v2501 = vsel %vm2255, %v2387, 0
      %v2504 = vsel %vm2255, %v2389, 0
      %v2507 = vsel %vm2255, %v2391, 0
      %v2510 = vsel %vm2255, %v2393, 0
      %v2513 = vsel %vm2255, %v2395, 0
      %v2516 = vsel %vm2255, %v2397, 0
      %v2519 = vsel %vm2255, %v2399, 0
      %v2522 = vsel %vm2255, %v2401, 0
      %v2525 = vsel %vm2255, %v2403, 0
      %v2528 = vsel %vm2255, %v2405, 0
      %v2531 = vsel %vm2255, %v2407, 0
      %v2534 = vsel %vm2255, %v2409, 0
      %2536 = vmatprep.subr.bf16.mxu0 0
      %2537 = vmatpush1.bf16.msra.mxu0 %v2464
      %2538 = vmatprep.subr.bf16.mxu0 0
      %2539 = vmatpush1.bf16.msra.mxu0 %v2465
      %2540 = vmatprep.subr.bf16.mxu0 0
      %2541 = vmatpush1.bf16.msra.mxu0 %v2466
      %2542 = vmatprep.subr.bf16.mxu0 0
      %2543 = vmatpush1.bf16.msra.mxu0 %v2467
      %2544 = vmatprep.subr.bf16.mxu0 0
      %2545 = vmatpush1.bf16.msra.mxu0 %v2468
      %2546 = vmatprep.subr.bf16.mxu0 0
      %2547 = vmatpush1.bf16.msra.mxu0 %v2469
      %2548 = vmatprep.subr.bf16.mxu0 0
      %2549 = vmatpush1.bf16.msra.mxu0 %v2470
      %2550 = vmatprep.subr.bf16.mxu0 0
      %2551 = vmatpush1.bf16.msra.mxu0 %v2471
      %2552 = vmatprep.subr.bf16.mxu0 0
      %2553 = vmatpush1.bf16.msra.mxu0 %v2472
      %2554 = vmatprep.subr.bf16.mxu0 0
      %2555 = vmatpush1.bf16.msra.mxu0 %v2473
      %2556 = vmatprep.subr.bf16.mxu0 0
      %2557 = vmatpush1.bf16.msra.mxu0 %v2474
      %2558 = vmatprep.subr.bf16.mxu0 0
      %2559 = vmatpush1.bf16.msra.mxu0 %v2475
      %2560 = vmatprep.subr.bf16.mxu0 0
      %2561 = vmatpush1.bf16.msra.mxu0 0
      %2562 = vmatprep.subr.bf16.mxu0 0
      %2563 = vmatpush1.bf16.msra.mxu0 0
      %2564 = vmatprep.subr.bf16.mxu0 0
      %2565 = vmatpush1.bf16.msra.mxu0 0
      %2566 = vmatprep.subr.bf16.mxu0 0
      %2567 = vmatpush1.bf16.msra.mxu0 0
      %2568 = vmatprep.mubr.bf16.mxu0 %v2489
      %2569 = vmatmul.mubr.bf16.gmra.mrb[0].mxu0 %v2378
      %v2570 = vpop.f32.mrb[0].mxu0
      %v2571 = vadd.f32 %v2414, %v2570
      %v2572 = vpop.f32.mrb[0].mxu0
      %v2573 = vpop.f32.mrb[0].mxu0
      %v2574 = vadd.f32 %v2414, %v2573
      %v2575 = vpop.f32.mrb[0].mxu0
      %2576 = vmatprep.mubr.bf16.mxu0 %v2492
      %2577 = vmatmul.mubr.bf16.gmra.mrb[0].mxu0 %v2380
      %v2578 = vpop.f32.mrb[0].mxu0
      %v2579 = vadd.f32 %v2414, %v2578
      %v2580 = vpop.f32.mrb[0].mxu0
      %v2581 = vpop.f32.mrb[0].mxu0
      %v2582 = vadd.f32 %v2414, %v2581
      %v2583 = vpop.f32.mrb[0].mxu0
      %2584 = vmatprep.mubr.bf16.mxu0 %v2495
      %2585 = vmatmul.mubr.bf16.gmra.mrb[0].mxu0 %v2382
      %v2586 = vpop.f32.mrb[0].mxu0
      %v2587 = vadd.f32 %v2414, %v2586
      %v2588 = vpop.f32.mrb[0].mxu0
      %v2589 = vpop.f32.mrb[0].mxu0
      %v2590 = vadd.f32 %v2414, %v2589
      %v2591 = vpop.f32.mrb[0].mxu0
      %2592 = vmatprep.mubr.bf16.mxu0 %v2498
      %2593 = vmatmul.mubr.bf16.gmra.mrb[0].mxu0 %v2384
      %v2594 = vpop.f32.mrb[0].mxu0
      %v2595 = vadd.f32 %v2414, %v2594
      %v2596 = vpop.f32.mrb[0].mxu0
      %v2597 = vpop.f32.mrb[0].mxu0
      %v2598 = vadd.f32 %v2414, %v2597
      %v2599 = vpop.f32.mrb[0].mxu0
      %2600 = vmatprep.mubr.bf16.mxu0 %v2501
      %2601 = vmatmul.mubr.bf16.gmra.mrb[0].mxu0 %v2386
      %v2602 = vpop.f32.mrb[0].mxu0
      %v2603 = vadd.f32 %v2414, %v2602
      %v2604 = vpop.f32.mrb[0].mxu0
      %v2605 = vpop.f32.mrb[0].mxu0
      %v2606 = vadd.f32 %v2414, %v2605
      %v2607 = vpop.f32.mrb[0].mxu0
      %2608 = vmatprep.mubr.bf16.mxu0 %v2504
      %2609 = vmatmul.mubr.bf16.gmra.mrb[0].mxu0 %v2388
      %v2610 = vpop.f32.mrb[0].mxu0
      %v2611 = vadd.f32 %v2414, %v2610
      %v2612 = vpop.f32.mrb[0].mxu0
      %v2613 = vpop.f32.mrb[0].mxu0
      %v2614 = vadd.f32 %v2414, %v2613
      %v2615 = vpop.f32.mrb[0].mxu0
      %2616 = vmatprep.mubr.bf16.mxu0 %v2507
      %2617 = vmatmul.mubr.bf16.gmra.mrb[0].mxu0 %v2390
      %v2618 = vpop.f32.mrb[0].mxu0
      %v2619 = vadd.f32 %v2414, %v2618
      %v2620 = vpop.f32.mrb[0].mxu0
      %v2621 = vpop.f32.mrb[0].mxu0
      %v2622 = vadd.f32 %v2414, %v2621
      %v2623 = vpop.f32.mrb[0].mxu0
      %2624 = vmatprep.mubr.bf16.mxu0 %v2510
      %2625 = vmatmul.mubr.bf16.gmra.mrb[0].mxu0 %v2392
      %v2626 = vpop.f32.mrb[0].mxu0
      %v2627 = vadd.f32 %v2414, %v2626
      %v2628 = vpop.f32.mrb[0].mxu0
      %v2629 = vpop.f32.mrb[0].mxu0
      %v2630 = vadd.f32 %v2414, %v2629
      %v2631 = vpop.f32.mrb[0].mxu0
      %2632 = vmatprep.mubr.bf16.mxu0 %v2513
      %2633 = vmatmul.mubr.bf16.gmra.mrb[0].mxu0 %v2394
      %v2634 = vpop.f32.mrb[0].mxu0
      %v2635 = vadd.f32 %v2414, %v2634
      %v2636 = vpop.f32.mrb[0].mxu0
      %v2637 = vpop.f32.mrb[0].mxu0
      %v2638 = vadd.f32 %v2414, %v2637
      %v2639 = vpop.f32.mrb[0].mxu0
      %2640 = vmatprep.mubr.bf16.mxu0 %v2516
      %2641 = vmatmul.mubr.bf16.gmra.mrb[0].mxu0 %v2396
      %v2642 = vpop.f32.mrb[0].mxu0
      %v2643 = vadd.f32 %v2414, %v2642
      %v2644 = vpop.f32.mrb[0].mxu0
      %v2645 = vpop.f32.mrb[0].mxu0
      %v2646 = vadd.f32 %v2414, %v2645
      %v2647 = vpop.f32.mrb[0].mxu0
      %2648 = vmatprep.mubr.bf16.mxu0 %v2519
      %2649 = vmatmul.mubr.bf16.gmra.mrb[0].mxu0 %v2398
      %v2650 = vpop.f32.mrb[0].mxu0
      %v2651 = vadd.f32 %v2414, %v2650
      %v2652 = vpop.f32.mrb[0].mxu0
      %v2653 = vpop.f32.mrb[0].mxu0
      %v2654 = vadd.f32 %v2414, %v2653
      %v2655 = vpop.f32.mrb[0].mxu0
      %2656 = vmatprep.mubr.bf16.mxu0 %v2522
      %2657 = vmatmul.mubr.bf16.gmra.mrb[0].mxu0 %v2400
      %v2658 = vpop.f32.mrb[0].mxu0
      %v2659 = vadd.f32 %v2414, %v2658
      %v2660 = vpop.f32.mrb[0].mxu0
      %v2661 = vpop.f32.mrb[0].mxu0
      %v2662 = vadd.f32 %v2414, %v2661
      %v2663 = vpop.f32.mrb[0].mxu0
      %2664 = vmatprep.mubr.bf16.mxu0 %v2525
      %2665 = vmatmul.mubr.bf16.gmra.mrb[0].mxu0 %v2402
      %v2666 = vpop.f32.mrb[0].mxu0
      %v2667 = vadd.f32 %v2414, %v2666
      %v2668 = vpop.f32.mrb[0].mxu0
      %v2669 = vpop.f32.mrb[0].mxu0
      %v2670 = vadd.f32 %v2414, %v2669
      %v2671 = vpop.f32.mrb[0].mxu0
      %2672 = vmatprep.mubr.bf16.mxu0 %v2528
      %2673 = vmatmul.mubr.bf16.gmra.mrb[0].mxu0 %v2404
      %v2674 = vpop.f32.mrb[0].mxu0
      %v2675 = vadd.f32 %v2414, %v2674
      %v2676 = vpop.f32.mrb[0].mxu0
      %v2677 = vpop.f32.mrb[0].mxu0
      %v2678 = vadd.f32 %v2414, %v2677
      %v2679 = vpop.f32.mrb[0].mxu0
      %2680 = vmatprep.mubr.bf16.mxu0 %v2531
      %2681 = vmatmul.mubr.bf16.gmra.mrb[0].mxu0 %v2406
      %v2682 = vpop.f32.mrb[0].mxu0
      %v2683 = vadd.f32 %v2414, %v2682
      %v2684 = vpop.f32.mrb[0].mxu0
      %v2685 = vpop.f32.mrb[0].mxu0
      %v2686 = vadd.f32 %v2414, %v2685
      %v2687 = vpop.f32.mrb[0].mxu0
      %2688 = vmatprep.mubr.bf16.mxu0 %v2534
      %2689 = vmatmul.mubr.bf16.gmra.mrb[0].mxu0 %v2408
      %v2690 = vpop.f32.mrb[0].mxu0
      %v2691 = vadd.f32 %v2414, %v2690
      %v2692 = vpop.f32.mrb[0].mxu0
      %v2693 = vpop.f32.mrb[0].mxu0
      %v2694 = vadd.f32 %v2414, %v2693
      %v2695 = vpop.f32.mrb[0].mxu0
      %2696 = vdwg.mxu0
      %v2697 = vtanh.pop %v2571
      %v2698 = vtanh.pop %v2574
      %v2699 = vtanh.pop %v2579
      %v2700 = vtanh.pop %v2582
      %v2701 = vtanh.pop %v2587
      %v2702 = vtanh.pop %v2590
      %v2703 = vtanh.pop %v2595
      %v2704 = vtanh.pop %v2598
      %v2705 = vtanh.pop %v2603
      %v2706 = vtanh.pop %v2606
      %v2707 = vtanh.pop %v2611
      %v2708 = vtanh.pop %v2614
      %v2709 = vtanh.pop %v2619
      %v2710 = vtanh.pop %v2622
      %v2711 = vtanh.pop %v2627
      %v2712 = vtanh.pop %v2630
      %v2713 = vtanh.pop %v2635
      %v2714 = vtanh.pop %v2638
      %v2715 = vtanh.pop %v2643
      %v2716 = vtanh.pop %v2646
      %v2717 = vtanh.pop %v2651
      %v2718 = vtanh.pop %v2654
      %v2719 = vtanh.pop %v2659
      %v2720 = vtanh.pop %v2662
      %v2721 = vtanh.pop %v2667
      %v2722 = vtanh.pop %v2670
      %v2723 = vtanh.pop %v2675
      %v2724 = vtanh.pop %v2678
      %v2725 = vtanh.pop %v2683
      %v2726 = vtanh.pop %v2686
      %v2727 = vtanh.pop %v2691
      %v2728 = vtanh.pop %v2694
      %v2729 = vxor.u32 %v2571, 2147483648
      %v2730 = vxor.u32 %v2574, 2147483648
      %v2731 = vxor.u32 %v2579, 2147483648
      %v2732 = vxor.u32 %v2582, 2147483648
      %v2733 = vxor.u32 %v2587, 2147483648
      %v2734 = vxor.u32 %v2590, 2147483648
      %v2735 = vxor.u32 %v2595, 2147483648
      %v2736 = vxor.u32 %v2598, 2147483648
      %v2737 = vxor.u32 %v2603, 2147483648
      %v2738 = vxor.u32 %v2606, 2147483648
      %v2739 = vxor.u32 %v2611, 2147483648
      %v2740 = vxor.u32 %v2614, 2147483648
      %v2741 = vxor.u32 %v2619, 2147483648
      %v2742 = vxor.u32 %v2622, 2147483648
      %v2743 = vxor.u32 %v2627, 2147483648
      %v2744 = vxor.u32 %v2630, 2147483648
      %v2745 = vxor.u32 %v2635, 2147483648
      %v2746 = vxor.u32 %v2638, 2147483648
      %v2747 = vxor.u32 %v2643, 2147483648
      %v2748 = vxor.u32 %v2646, 2147483648
      %v2749 = vxor.u32 %v2651, 2147483648
      %v2750 = vxor.u32 %v2654, 2147483648
      %v2751 = vxor.u32 %v2659, 2147483648
      %v2752 = vxor.u32 %v2662, 2147483648
      %v2753 = vxor.u32 %v2667, 2147483648
      %v2754 = vxor.u32 %v2670, 2147483648
      %v2755 = vxor.u32 %v2675, 2147483648
      %v2756 = vxor.u32 %v2678, 2147483648
      %v2757 = vxor.u32 %v2683, 2147483648
      %v2758 = vxor.u32 %v2686, 2147483648
      %v2759 = vxor.u32 %v2691, 2147483648
      %v2760 = vxor.u32 %v2694, 2147483648
      %v2761 = vmul.f32 %v2729, 1.442695
      %v2762 = vpow.pop %v2761
      %v2763 = vmul.f32 %v2730, 1.442695
      %v2764 = vpow.pop %v2763
      %v2765 = vmul.f32 %v2731, 1.442695
      %v2766 = vpow.pop %v2765
      %v2767 = vmul.f32 %v2732, 1.442695
      %v2768 = vpow.pop %v2767
      %v2769 = vmul.f32 %v2733, 1.442695
      %v2770 = vpow.pop %v2769
      %v2771 = vmul.f32 %v2734, 1.442695
      %v2772 = vpow.pop %v2771
      %v2773 = vmul.f32 %v2735, 1.442695
      %v2774 = vpow.pop %v2773
      %v2775 = vmul.f32 %v2736, 1.442695
      %v2776 = vpow.pop %v2775
      %v2777 = vmul.f32 %v2737, 1.442695
      %v2778 = vpow.pop %v2777
      %v2779 = vmul.f32 %v2738, 1.442695
      %v2780 = vpow.pop %v2779
      %v2781 = vmul.f32 %v2739, 1.442695
      %v2782 = vpow.pop %v2781
      %v2783 = vmul.f32 %v2740, 1.442695
      %v2784 = vpow.pop %v2783
      %v2785 = vmul.f32 %v2741, 1.442695
      %v2786 = vpow.pop %v2785
      %v2787 = vmul.f32 %v2742, 1.442695
      %v2788 = vpow.pop %v2787
      %v2789 = vmul.f32 %v2743, 1.442695
      %v2790 = vpow.pop %v2789
      %v2791 = vmul.f32 %v2744, 1.442695
      %v2792 = vpow.pop %v2791
      %v2793 = vmul.f32 %v2745, 1.442695
      %v2794 = vpow.pop %v2793
      %v2795 = vmul.f32 %v2746, 1.442695
      %v2796 = vpow.pop %v2795
      %v2797 = vmul.f32 %v2747, 1.442695
      %v2798 = vpow.pop %v2797
      %v2799 = vmul.f32 %v2748, 1.442695
      %v2800 = vpow.pop %v2799
      %v2801 = vmul.f32 %v2749, 1.442695
      %v2802 = vpow.pop %v2801
      %v2803 = vmul.f32 %v2750, 1.442695
      %v2804 = vpow.pop %v2803
      %v2805 = vmul.f32 %v2751, 1.442695
      %v2806 = vpow.pop %v2805
      %v2807 = vmul.f32 %v2752, 1.442695
      %v2808 = vpow.pop %v2807
      %v2809 = vmul.f32 %v2753, 1.442695
      %v2810 = vpow.pop %v2809
      %v2811 = vmul.f32 %v2754, 1.442695
      %v2812 = vpow.pop %v2811
      %v2813 = vmul.f32 %v2755, 1.442695
      %v2814 = vpow.pop %v2813
      %v2815 = vmul.f32 %v2756, 1.442695
      %v2816 = vpow.pop %v2815
      %v2817 = vmul.f32 %v2757, 1.442695
      %v2818 = vpow.pop %v2817
      %v2819 = vmul.f32 %v2758, 1.442695
      %v2820 = vpow.pop %v2819
      %v2821 = vmul.f32 %v2759, 1.442695
      %v2822 = vpow.pop %v2821
      %v2823 = vmul.f32 %v2760, 1.442695
      %v2824 = vpow.pop %v2823
      %v2825 = vadd.f32 %v2762, 1.0
      %v2826 = vadd.f32 %v2764, 1.0
      %v2827 = vadd.f32 %v2766, 1.0
      %v2828 = vadd.f32 %v2768, 1.0
      %v2829 = vadd.f32 %v2770, 1.0
      %v2830 = vadd.f32 %v2772, 1.0
      %v2831 = vadd.f32 %v2774, 1.0
      %v2832 = vadd.f32 %v2776, 1.0
      %v2833 = vadd.f32 %v2778, 1.0
      %v2834 = vadd.f32 %v2780, 1.0
      %v2835 = vadd.f32 %v2782, 1.0
      %v2836 = vadd.f32 %v2784, 1.0
      %v2837 = vadd.f32 %v2786, 1.0
      %v2838 = vadd.f32 %v2788, 1.0
      %v2839 = vadd.f32 %v2790, 1.0
      %v2840 = vadd.f32 %v2792, 1.0
      %v2841 = vadd.f32 %v2794, 1.0
      %v2842 = vadd.f32 %v2796, 1.0
      %v2843 = vadd.f32 %v2798, 1.0
      %v2844 = vadd.f32 %v2800, 1.0
      %v2845 = vadd.f32 %v2802, 1.0
      %v2846 = vadd.f32 %v2804, 1.0
      %v2847 = vadd.f32 %v2806, 1.0
      %v2848 = vadd.f32 %v2808, 1.0
      %v2849 = vadd.f32 %v2810, 1.0
      %v2850 = vadd.f32 %v2812, 1.0
      %v2851 = vadd.f32 %v2814, 1.0
      %v2852 = vadd.f32 %v2816, 1.0
      %v2853 = vadd.f32 %v2818, 1.0
      %v2854 = vadd.f32 %v2820, 1.0
      %v2855 = vadd.f32 %v2822, 1.0
      %v2856 = vadd.f32 %v2824, 1.0
      %v2857 = vrcp.pop %v2825
      %v2858 = vmul.f32 1.0, %v2857
      %v2859 = vrcp.pop %v2826
      %v2860 = vmul.f32 1.0, %v2859
      %v2861 = vrcp.pop %v2827
      %v2862 = vmul.f32 1.0, %v2861
      %v2863 = vrcp.pop %v2828
      %v2864 = vmul.f32 1.0, %v2863
      %v2865 = vrcp.pop %v2829
      %v2866 = vmul.f32 1.0, %v2865
      %v2867 = vrcp.pop %v2830
      %v2868 = vmul.f32 1.0, %v2867
      %v2869 = vrcp.pop %v2831
      %v2870 = vmul.f32 1.0, %v2869
      %v2871 = vrcp.pop %v2832
      %v2872 = vmul.f32 1.0, %v2871
      %v2873 = vrcp.pop %v2833
      %v2874 = vmul.f32 1.0, %v2873
      %v2875 = vrcp.pop %v2834
      %v2876 = vmul.f32 1.0, %v2875
      %v2877 = vrcp.pop %v2835
      %v2878 = vmul.f32 1.0, %v2877
      %v2879 = vrcp.pop %v2836
      %v2880 = vmul.f32 1.0, %v2879
      %v2881 = vrcp.pop %v2837
      %v2882 = vmul.f32 1.0, %v2881
      %v2883 = vrcp.pop %v2838
      %v2884 = vmul.f32 1.0, %v2883
      %v2885 = vrcp.pop %v2839
      %v2886 = vmul.f32 1.0, %v2885
      %v2887 = vrcp.pop %v2840
      %v2888 = vmul.f32 1.0, %v2887
      %v2889 = vrcp.pop %v2841
      %v2890 = vmul.f32 1.0, %v2889
      %v2891 = vrcp.pop %v2842
      %v2892 = vmul.f32 1.0, %v2891
      %v2893 = vrcp.pop %v2843
      %v2894 = vmul.f32 1.0, %v2893
      %v2895 = vrcp.pop %v2844
      %v2896 = vmul.f32 1.0, %v2895
      %v2897 = vrcp.pop %v2845
      %v2898 = vmul.f32 1.0, %v2897
      %v2899 = vrcp.pop %v2846
      %v2900 = vmul.f32 1.0, %v2899
      %v2901 = vrcp.pop %v2847
      %v2902 = vmul.f32 1.0, %v2901
      %v2903 = vrcp.pop %v2848
      %v2904 = vmul.f32 1.0, %v2903
      %v2905 = vrcp.pop %v2849
      %v2906 = vmul.f32 1.0, %v2905
      %v2907 = vrcp.pop %v2850
      %v2908 = vmul.f32 1.0, %v2907
      %v2909 = vrcp.pop %v2851
      %v2910 = vmul.f32 1.0, %v2909
      %v2911 = vrcp.pop %v2852
      %v2912 = vmul.f32 1.0, %v2911
      %v2913 = vrcp.pop %v2853
      %v2914 = vmul.f32 1.0, %v2913
      %v2915 = vrcp.pop %v2854
      %v2916 = vmul.f32 1.0, %v2915
      %v2917 = vrcp.pop %v2855
      %v2918 = vmul.f32 1.0, %v2917
      %v2919 = vrcp.pop %v2856
      %v2920 = vmul.f32 1.0, %v2919
      %2953 = vrot.lane.b32.xlu0 %v2858, 96
      %v2954 = vpop.permute.xlu0 %2953
      %2955 = vrot.lane.b32.xlu0 %v2860, 96
      %v2956 = vpop.permute.xlu0 %2955
      %2957 = vrot.lane.b32.xlu0 %v2862, 96
      %v2958 = vpop.permute.xlu0 %2957
      %2959 = vrot.lane.b32.xlu0 %v2864, 96
      %v2960 = vpop.permute.xlu0 %2959
      %2961 = vrot.lane.b32.xlu0 %v2866, 96
      %v2962 = vpop.permute.xlu0 %2961
      %2963 = vrot.lane.b32.xlu0 %v2868, 96
      %v2964 = vpop.permute.xlu0 %2963
      %2965 = vrot.lane.b32.xlu0 %v2870, 96
      %v2966 = vpop.permute.xlu0 %2965
      %2967 = vrot.lane.b32.xlu0 %v2872, 96
      %v2968 = vpop.permute.xlu0 %2967
      %2969 = vrot.lane.b32.xlu0 %v2874, 96
      %v2970 = vpop.permute.xlu0 %2969
      %2971 = vrot.lane.b32.xlu0 %v2876, 96
      %v2972 = vpop.permute.xlu0 %2971
      %2973 = vrot.lane.b32.xlu0 %v2878, 96
      %v2974 = vpop.permute.xlu0 %2973
      %2975 = vrot.lane.b32.xlu0 %v2880, 96
      %v2976 = vpop.permute.xlu0 %2975
      %2977 = vrot.lane.b32.xlu0 %v2882, 96
      %v2978 = vpop.permute.xlu0 %2977
      %2979 = vrot.lane.b32.xlu0 %v2884, 96
      %v2980 = vpop.permute.xlu0 %2979
      %2981 = vrot.lane.b32.xlu0 %v2886, 96
      %v2982 = vpop.permute.xlu0 %2981
      %2983 = vrot.lane.b32.xlu0 %v2888, 96
      %v2984 = vpop.permute.xlu0 %2983
      %2985 = vrot.lane.b32.xlu0 %v2890, 96
      %v2986 = vpop.permute.xlu0 %2985
      %2987 = vrot.lane.b32.xlu0 %v2892, 96
      %v2988 = vpop.permute.xlu0 %2987
      %2989 = vrot.lane.b32.xlu0 %v2894, 96
      %v2990 = vpop.permute.xlu0 %2989
      %2991 = vrot.lane.b32.xlu0 %v2896, 96
      %v2992 = vpop.permute.xlu0 %2991
      %2993 = vrot.lane.b32.xlu0 %v2898, 96
      %v2994 = vpop.permute.xlu0 %2993
      %2995 = vrot.lane.b32.xlu0 %v2900, 96
      %v2996 = vpop.permute.xlu0 %2995
      %2997 = vrot.lane.b32.xlu0 %v2902, 96
      %v2998 = vpop.permute.xlu0 %2997
      %2999 = vrot.lane.b32.xlu0 %v2904, 96
      %v3000 = vpop.permute.xlu0 %2999
      %3001 = vrot.lane.b32.xlu0 %v2906, 96
      %v3002 = vpop.permute.xlu0 %3001
      %3003 = vrot.lane.b32.xlu0 %v2908, 96
      %v3004 = vpop.permute.xlu0 %3003
      %3005 = vrot.lane.b32.xlu0 %v2910, 96
      %v3006 = vpop.permute.xlu0 %3005
      %3007 = vrot.lane.b32.xlu0 %v2912, 96
      %v3008 = vpop.permute.xlu0 %3007
      %3009 = vrot.lane.b32.xlu0 %v2914, 96
      %v3010 = vpop.permute.xlu0 %3009
      %3011 = vrot.lane.b32.xlu0 %v2916, 96
      %v3012 = vpop.permute.xlu0 %3011
      %3013 = vrot.lane.b32.xlu0 %v2918, 96
      %v3014 = vpop.permute.xlu0 %3013
      %3015 = vrot.lane.b32.xlu0 %v2920, 96
      %v3016 = vpop.permute.xlu0 %3015
      %v3049 = vmul.f32 %v2697, %v2954
      %v3050 = vmul.f32 %v2698, %v2956
      %v3051 = vmul.f32 %v2699, %v2958
      %v3052 = vmul.f32 %v2700, %v2960
      %v3053 = vmul.f32 %v2701, %v2962
      %v3054 = vmul.f32 %v2702, %v2964
      %v3055 = vmul.f32 %v2703, %v2966
      %v3056 = vmul.f32 %v2704, %v2968
      %v3057 = vmul.f32 %v2705, %v2970
      %v3058 = vmul.f32 %v2706, %v2972
      %v3059 = vmul.f32 %v2707, %v2974
      %v3060 = vmul.f32 %v2708, %v2976
      %v3061 = vmul.f32 %v2709, %v2978
      %v3062 = vmul.f32 %v2710, %v2980
      %v3063 = vmul.f32 %v2711, %v2982
      %v3064 = vmul.f32 %v2712, %v2984
      %v3065 = vmul.f32 %v2713, %v2986
      %v3066 = vmul.f32 %v2714, %v2988
      %v3067 = vmul.f32 %v2715, %v2990
      %v3068 = vmul.f32 %v2716, %v2992
      %v3069 = vmul.f32 %v2717, %v2994
      %v3070 = vmul.f32 %v2718, %v2996
      %v3071 = vmul.f32 %v2719, %v2998
      %v3072 = vmul.f32 %v2720, %v3000
      %v3073 = vmul.f32 %v2721, %v3002
      %v3074 = vmul.f32 %v2722, %v3004
      %v3075 = vmul.f32 %v2723, %v3006
      %v3076 = vmul.f32 %v2724, %v3008
      %v3077 = vmul.f32 %v2725, %v3010
      %v3078 = vmul.f32 %v2726, %v3012
      %v3079 = vmul.f32 %v2727, %v3014
      %v3080 = vmul.f32 %v2728, %v3016
      %3081 = vst.msk [vmem:[%s457 + $0x2] sm:$0xff] %vm442, %v1361
      %3082 = vst.msk [vmem:[%s457 + $0xa] sm:$0xff] %vm442, %v1364
      %3083 = vst.msk [vmem:[%s457 + $0x1a] sm:$0xff] %vm442, %v1369
      %3084 = vst.msk [vmem:[%s457 + $0x22] sm:$0xff] %vm442, %v1372
      %3085 = vst.msk [vmem:[%s457 + $0x32] sm:$0xff] %vm442, %v1377
      %3086 = vst.msk [vmem:[%s457 + $0x3a] sm:$0xff] %vm442, %v1380
      %3087 = vst.msk [vmem:[%s457 + $0x4a] sm:$0xff] %vm442, %v1385
      %3088 = vst.msk [vmem:[%s457 + $0x52] sm:$0xff] %vm442, %v1388
      %3089 = vst.msk [vmem:[%s457 + $0x62] sm:$0xff] %vm442, %v1393
      %3090 = vst.msk [vmem:[%s457 + $0x6a] sm:$0xff] %vm442, %v1396
      %3091 = vst.msk [vmem:[%s457 + $0x7a] sm:$0xff] %vm442, %v1401
      %3092 = vst.msk [vmem:[%s457 + $0x82] sm:$0xff] %vm442, %v1404
      %3093 = vst.msk [vmem:[%s457 + $0x92] sm:$0xff] %vm442, %v1409
      %3094 = vst.msk [vmem:[%s457 + $0x9a] sm:$0xff] %vm442, %v1412
      %3095 = vst.msk [vmem:[%s457 + $0xaa] sm:$0xff] %vm442, %v1417
      %3096 = vst.msk [vmem:[%s457 + $0xb2] sm:$0xff] %vm442, %v1420
      %3097 = vst.msk [vmem:[%s457 + $0xc2] sm:$0xff] %vm442, %v1425
      %3098 = vst.msk [vmem:[%s457 + $0xca] sm:$0xff] %vm442, %v1428
      %3099 = vst.msk [vmem:[%s457 + $0xda] sm:$0xff] %vm442, %v1433
      %3100 = vst.msk [vmem:[%s457 + $0xe2] sm:$0xff] %vm442, %v1436
      %3101 = vst.msk [vmem:[%s457 + $0xf2] sm:$0xff] %vm442, %v1441
      %3102 = vst.msk [vmem:[%s457 + $0xfa] sm:$0xff] %vm442, %v1444
      %3103 = vst.msk [vmem:[%s457 + $0x10a] sm:$0xff] %vm442, %v1449
      %3104 = vst.msk [vmem:[%s457 + $0x112] sm:$0xff] %vm442, %v1452
      %3105 = vst.msk [vmem:[%s457 + $0x122] sm:$0xff] %vm442, %v1457
      %3106 = vst.msk [vmem:[%s457 + $0x12a] sm:$0xff] %vm442, %v1460
      %3107 = vst.msk [vmem:[%s457 + $0x13a] sm:$0xff] %vm442, %v1465
      %3108 = vst.msk [vmem:[%s457 + $0x142] sm:$0xff] %vm442, %v1468
      %3109 = vst.msk [vmem:[%s457 + $0x152] sm:$0xff] %vm442, %v1473
      %3110 = vst.msk [vmem:[%s457 + $0x15a] sm:$0xff] %vm442, %v1476
      %3111 = vst.msk [vmem:[%s457 + $0x16a] sm:$0xff] %vm442, %v1481
      %3112 = vst.msk [vmem:[%s457 + $0x172] sm:$0xff] %vm442, %v1484
      %v3113 = vld [vmem:[%s457 + $0x1] sm:$0xff]
      %v3114 = vld [vmem:[%s457 + $0x9] sm:$0xff]
      %v3115 = vld [vmem:[%s457 + $0x19] sm:$0xff]
      %v3116 = vld [vmem:[%s457 + $0x21] sm:$0xff]
      %v3117 = vld [vmem:[%s457 + $0x31] sm:$0xff]
      %v3118 = vld [vmem:[%s457 + $0x39] sm:$0xff]
      %v3119 = vld [vmem:[%s457 + $0x49] sm:$0xff]
      %v3120 = vld [vmem:[%s457 + $0x51] sm:$0xff]
      %v3121 = vld [vmem:[%s457 + $0x61] sm:$0xff]
      %v3122 = vld [vmem:[%s457 + $0x69] sm:$0xff]
      %v3123 = vld [vmem:[%s457 + $0x79] sm:$0xff]
      %v3124 = vld [vmem:[%s457 + $0x81] sm:$0xff]
      %v3125 = vld [vmem:[%s457 + $0x91] sm:$0xff]
      %v3126 = vld [vmem:[%s457 + $0x99] sm:$0xff]
      %v3127 = vld [vmem:[%s457 + $0xa9] sm:$0xff]
      %v3128 = vld [vmem:[%s457 + $0xb1] sm:$0xff]
      %v3129 = vld [vmem:[%s457 + $0xc1] sm:$0xff]
      %v3130 = vld [vmem:[%s457 + $0xc9] sm:$0xff]
      %v3131 = vld [vmem:[%s457 + $0xd9] sm:$0xff]
      %v3132 = vld [vmem:[%s457 + $0xe1] sm:$0xff]
      %v3133 = vld [vmem:[%s457 + $0xf1] sm:$0xff]
      %v3134 = vld [vmem:[%s457 + $0xf9] sm:$0xff]
      %v3135 = vld [vmem:[%s457 + $0x109] sm:$0xff]
      %v3136 = vld [vmem:[%s457 + $0x111] sm:$0xff]
      %v3137 = vld [vmem:[%s457 + $0x121] sm:$0xff]
      %v3138 = vld [vmem:[%s457 + $0x129] sm:$0xff]
      %v3139 = vld [vmem:[%s457 + $0x139] sm:$0xff]
      %v3140 = vld [vmem:[%s457 + $0x141] sm:$0xff]
      %v3141 = vld [vmem:[%s457 + $0x151] sm:$0xff]
      %v3142 = vld [vmem:[%s457 + $0x159] sm:$0xff]
      %v3143 = vld [vmem:[%s457 + $0x169] sm:$0xff]
      %v3144 = vld [vmem:[%s457 + $0x171] sm:$0xff]
      %v3145 = vld [vmem:[%s457 + $0x2] sm:$0xff]
      %v3146 = vld [vmem:[%s457 + $0xa] sm:$0xff]
      %v3147 = vld [vmem:[%s457 + $0x1a] sm:$0xff]
      %v3148 = vld [vmem:[%s457 + $0x22] sm:$0xff]
      %v3149 = vld [vmem:[%s457 + $0x32] sm:$0xff]
      %v3150 = vld [vmem:[%s457 + $0x3a] sm:$0xff]
      %v3151 = vld [vmem:[%s457 + $0x4a] sm:$0xff]
      %v3152 = vld [vmem:[%s457 + $0x52] sm:$0xff]
      %v3153 = vld [vmem:[%s457 + $0x62] sm:$0xff]
      %v3154 = vld [vmem:[%s457 + $0x6a] sm:$0xff]
      %v3155 = vld [vmem:[%s457 + $0x7a] sm:$0xff]
      %v3156 = vld [vmem:[%s457 + $0x82] sm:$0xff]
      %v3157 = vld [vmem:[%s457 + $0x92] sm:$0xff]
      %v3158 = vld [vmem:[%s457 + $0x9a] sm:$0xff]
      %v3159 = vld [vmem:[%s457 + $0xaa] sm:$0xff]
      %v3160 = vld [vmem:[%s457 + $0xb2] sm:$0xff]
      %v3161 = vld [vmem:[%s457 + $0xc2] sm:$0xff]
      %v3162 = vld [vmem:[%s457 + $0xca] sm:$0xff]
      %v3163 = vld [vmem:[%s457 + $0xda] sm:$0xff]
      %v3164 = vld [vmem:[%s457 + $0xe2] sm:$0xff]
      %v3165 = vld [vmem:[%s457 + $0xf2] sm:$0xff]
      %v3166 = vld [vmem:[%s457 + $0xfa] sm:$0xff]
      %v3167 = vld [vmem:[%s457 + $0x10a] sm:$0xff]
      %v3168 = vld [vmem:[%s457 + $0x112] sm:$0xff]
      %v3169 = vld [vmem:[%s457 + $0x122] sm:$0xff]
      %v3170 = vld [vmem:[%s457 + $0x12a] sm:$0xff]
      %v3171 = vld [vmem:[%s457 + $0x13a] sm:$0xff]
      %v3172 = vld [vmem:[%s457 + $0x142] sm:$0xff]
      %v3173 = vld [vmem:[%s457 + $0x152] sm:$0xff]
      %v3174 = vld [vmem:[%s457 + $0x15a] sm:$0xff]
      %v3175 = vld [vmem:[%s457 + $0x16a] sm:$0xff]
      %v3176 = vld [vmem:[%s457 + $0x172] sm:$0xff]
      %3209 = vrot.lane.b32.xlu0 %v3145, 32
      %v3210 = vpop.permute.xlu0 %3209
      %3211 = vrot.lane.b32.xlu0 %v3146, 32
      %v3212 = vpop.permute.xlu0 %3211
      %3213 = vrot.lane.b32.xlu0 %v3147, 32
      %v3214 = vpop.permute.xlu0 %3213
      %3215 = vrot.lane.b32.xlu0 %v3148, 32
      %v3216 = vpop.permute.xlu0 %3215
      %3217 = vrot.lane.b32.xlu0 %v3149, 32
      %v3218 = vpop.permute.xlu0 %3217
      %3219 = vrot.lane.b32.xlu0 %v3150, 32
      %v3220 = vpop.permute.xlu0 %3219
      %3221 = vrot.lane.b32.xlu0 %v3151, 32
      %v3222 = vpop.permute.xlu0 %3221
      %3223 = vrot.lane.b32.xlu0 %v3152, 32
      %v3224 = vpop.permute.xlu0 %3223
      %3225 = vrot.lane.b32.xlu0 %v3153, 32
      %v3226 = vpop.permute.xlu0 %3225
      %3227 = vrot.lane.b32.xlu0 %v3154, 32
      %v3228 = vpop.permute.xlu0 %3227
      %3229 = vrot.lane.b32.xlu0 %v3155, 32
      %v3230 = vpop.permute.xlu0 %3229
      %3231 = vrot.lane.b32.xlu0 %v3156, 32
      %v3232 = vpop.permute.xlu0 %3231
      %3233 = vrot.lane.b32.xlu0 %v3157, 32
      %v3234 = vpop.permute.xlu0 %3233
      %3235 = vrot.lane.b32.xlu0 %v3158, 32
      %v3236 = vpop.permute.xlu0 %3235
      %3237 = vrot.lane.b32.xlu0 %v3159, 32
      %v3238 = vpop.permute.xlu0 %3237
      %3239 = vrot.lane.b32.xlu0 %v3160, 32
      %v3240 = vpop.permute.xlu0 %3239
      %3241 = vrot.lane.b32.xlu0 %v3161, 32
      %v3242 = vpop.permute.xlu0 %3241
      %3243 = vrot.lane.b32.xlu0 %v3162, 32
      %v3244 = vpop.permute.xlu0 %3243
      %3245 = vrot.lane.b32.xlu0 %v3163, 32
      %v3246 = vpop.permute.xlu0 %3245
      %3247 = vrot.lane.b32.xlu0 %v3164, 32
      %v3248 = vpop.permute.xlu0 %3247
      %3249 = vrot.lane.b32.xlu0 %v3165, 32
      %v3250 = vpop.permute.xlu0 %3249
      %3251 = vrot.lane.b32.xlu0 %v3166, 32
      %v3252 = vpop.permute.xlu0 %3251
      %3253 = vrot.lane.b32.xlu0 %v3167, 32
      %v3254 = vpop.permute.xlu0 %3253
      %3255 = vrot.lane.b32.xlu0 %v3168, 32
      %v3256 = vpop.permute.xlu0 %3255
      %3257 = vrot.lane.b32.xlu0 %v3169, 32
      %v3258 = vpop.permute.xlu0 %3257
      %3259 = vrot.lane.b32.xlu0 %v3170, 32
      %v3260 = vpop.permute.xlu0 %3259
      %3261 = vrot.lane.b32.xlu0 %v3171, 32
      %v3262 = vpop.permute.xlu0 %3261
      %3263 = vrot.lane.b32.xlu0 %v3172, 32
      %v3264 = vpop.permute.xlu0 %3263
      %3265 = vrot.lane.b32.xlu0 %v3173, 32
      %v3266 = vpop.permute.xlu0 %3265
      %3267 = vrot.lane.b32.xlu0 %v3174, 32
      %v3268 = vpop.permute.xlu0 %3267
      %3269 = vrot.lane.b32.xlu0 %v3175, 32
      %v3270 = vpop.permute.xlu0 %3269
      %3271 = vrot.lane.b32.xlu0 %v3176, 32
      %v3272 = vpop.permute.xlu0 %3271
      %3337 = vrot.lane.b32.xlu0 %v2571, 64
      %v3338 = vpop.permute.xlu0 %3337
      %3339 = vrot.lane.b32.xlu0 %v2574, 64
      %v3340 = vpop.permute.xlu0 %3339
      %3341 = vrot.lane.b32.xlu0 %v2579, 64
      %v3342 = vpop.permute.xlu0 %3341
      %3343 = vrot.lane.b32.xlu0 %v2582, 64
      %v3344 = vpop.permute.xlu0 %3343
      %3345 = vrot.lane.b32.xlu0 %v2587, 64
      %v3346 = vpop.permute.xlu0 %3345
      %3347 = vrot.lane.b32.xlu0 %v2590, 64
      %v3348 = vpop.permute.xlu0 %3347
      %3349 = vrot.lane.b32.xlu0 %v2595, 64
      %v3350 = vpop.permute.xlu0 %3349
      %3351 = vrot.lane.b32.xlu0 %v2598, 64
      %v3352 = vpop.permute.xlu0 %3351
      %3353 = vrot.lane.b32.xlu0 %v2603, 64
      %v3354 = vpop.permute.xlu0 %3353
      %3355 = vrot.lane.b32.xlu0 %v2606, 64
      %v3356 = vpop.permute.xlu0 %3355
      %3357 = vrot.lane.b32.xlu0 %v2611, 64
      %v3358 = vpop.permute.xlu0 %3357
      %3359 = vrot.lane.b32.xlu0 %v2614, 64
      %v3360 = vpop.permute.xlu0 %3359
      %3361 = vrot.lane.b32.xlu0 %v2619, 64
      %v3362 = vpop.permute.xlu0 %3361
      %3363 = vrot.lane.b32.xlu0 %v2622, 64
      %v3364 = vpop.permute.xlu0 %3363
      %3365 = vrot.lane.b32.xlu0 %v2627, 64
      %v3366 = vpop.permute.xlu0 %3365
      %3367 = vrot.lane.b32.xlu0 %v2630, 64
      %v3368 = vpop.permute.xlu0 %3367
      %3369 = vrot.lane.b32.xlu0 %v2635, 64
      %v3370 = vpop.permute.xlu0 %3369
      %3371 = vrot.lane.b32.xlu0 %v2638, 64
      %v3372 = vpop.permute.xlu0 %3371
      %3373 = vrot.lane.b32.xlu0 %v2643, 64
      %v3374 = vpop.permute.xlu0 %3373
      %3375 = vrot.lane.b32.xlu0 %v2646, 64
      %v3376 = vpop.permute.xlu0 %3375
      %3377 = vrot.lane.b32.xlu0 %v2651, 64
      %v3378 = vpop.permute.xlu0 %3377
      %3379 = vrot.lane.b32.xlu0 %v2654, 64
      %v3380 = vpop.permute.xlu0 %3379
      %3381 = vrot.lane.b32.xlu0 %v2659, 64
      %v3382 = vpop.permute.xlu0 %3381
      %3383 = vrot.lane.b32.xlu0 %v2662, 64
      %v3384 = vpop.permute.xlu0 %3383
      %3385 = vrot.lane.b32.xlu0 %v2667, 64
      %v3386 = vpop.permute.xlu0 %3385
      %3387 = vrot.lane.b32.xlu0 %v2670, 64
      %v3388 = vpop.permute.xlu0 %3387
      %3389 = vrot.lane.b32.xlu0 %v2675, 64
      %v3390 = vpop.permute.xlu0 %3389
      %3391 = vrot.lane.b32.xlu0 %v2678, 64
      %v3392 = vpop.permute.xlu0 %3391
      %3393 = vrot.lane.b32.xlu0 %v2683, 64
      %v3394 = vpop.permute.xlu0 %3393
      %3395 = vrot.lane.b32.xlu0 %v2686, 64
      %v3396 = vpop.permute.xlu0 %3395
      %3397 = vrot.lane.b32.xlu0 %v2691, 64
      %v3398 = vpop.permute.xlu0 %3397
      %3399 = vrot.lane.b32.xlu0 %v2694, 64
      %v3400 = vpop.permute.xlu0 %3399
      %v3433 = vsel %vm442, %v3113, %v3210
      %v3434 = vsel %vm442, %v3114, %v3212
      %v3435 = vsel %vm442, %v3115, %v3214
      %v3436 = vsel %vm442, %v3116, %v3216
      %v3437 = vsel %vm442, %v3117, %v3218
      %v3438 = vsel %vm442, %v3118, %v3220
      %v3439 = vsel %vm442, %v3119, %v3222
      %v3440 = vsel %vm442, %v3120, %v3224
      %v3441 = vsel %vm442, %v3121, %v3226
      %v3442 = vsel %vm442, %v3122, %v3228
      %v3443 = vsel %vm442, %v3123, %v3230
      %v3444 = vsel %vm442, %v3124, %v3232
      %v3445 = vsel %vm442, %v3125, %v3234
      %v3446 = vsel %vm442, %v3126, %v3236
      %v3447 = vsel %vm442, %v3127, %v3238
      %v3448 = vsel %vm442, %v3128, %v3240
      %v3449 = vsel %vm442, %v3129, %v3242
      %v3450 = vsel %vm442, %v3130, %v3244
      %v3451 = vsel %vm442, %v3131, %v3246
      %v3452 = vsel %vm442, %v3132, %v3248
      %v3453 = vsel %vm442, %v3133, %v3250
      %v3454 = vsel %vm442, %v3134, %v3252
      %v3455 = vsel %vm442, %v3135, %v3254
      %v3456 = vsel %vm442, %v3136, %v3256
      %v3457 = vsel %vm442, %v3137, %v3258
      %v3458 = vsel %vm442, %v3138, %v3260
      %v3459 = vsel %vm442, %v3139, %v3262
      %v3460 = vsel %vm442, %v3140, %v3264
      %v3461 = vsel %vm442, %v3141, %v3266
      %v3462 = vsel %vm442, %v3142, %v3268
      %v3463 = vsel %vm442, %v3143, %v3270
      %v3464 = vsel %vm442, %v3144, %v3272
      %v3465 = vsel %vm2255, %v3433, %v3338
      %v3466 = vsel %vm2255, %v3434, %v3340
      %v3467 = vsel %vm2255, %v3435, %v3342
      %v3468 = vsel %vm2255, %v3436, %v3344
      %v3469 = vsel %vm2255, %v3437, %v3346
      %v3470 = vsel %vm2255, %v3438, %v3348
      %v3471 = vsel %vm2255, %v3439, %v3350
      %v3472 = vsel %vm2255, %v3440, %v3352
      %v3473 = vsel %vm2255, %v3441, %v3354
      %v3474 = vsel %vm2255, %v3442, %v3356
      %v3475 = vsel %vm2255, %v3443, %v3358
      %v3476 = vsel %vm2255, %v3444, %v3360
      %v3477 = vsel %vm2255, %v3445, %v3362
      %v3478 = vsel %vm2255, %v3446, %v3364
      %v3479 = vsel %vm2255, %v3447, %v3366
      %v3480 = vsel %vm2255, %v3448, %v3368
      %v3481 = vsel %vm2255, %v3449, %v3370
      %v3482 = vsel %vm2255, %v3450, %v3372
      %v3483 = vsel %vm2255, %v3451, %v3374
      %v3484 = vsel %vm2255, %v3452, %v3376
      %v3485 = vsel %vm2255, %v3453, %v3378
      %v3486 = vsel %vm2255, %v3454, %v3380
      %v3487 = vsel %vm2255, %v3455, %v3382
      %v3488 = vsel %vm2255, %v3456, %v3384
      %v3489 = vsel %vm2255, %v3457, %v3386
      %v3490 = vsel %vm2255, %v3458, %v3388
      %v3491 = vsel %vm2255, %v3459, %v3390
      %v3492 = vsel %vm2255, %v3460, %v3392
      %v3493 = vsel %vm2255, %v3461, %v3394
      %v3494 = vsel %vm2255, %v3462, %v3396
      %v3495 = vsel %vm2255, %v3463, %v3398
      %v3496 = vsel %vm2255, %v3464, %v3400
      %v3497 = vld [vmem:[%s7] sm:$0xf]
      %v3498 = vld [vmem:[%s7 + $0x4] sm:$0xf]
      %v3499 = vld [vmem:[%s7 + $0x8] sm:$0xf]
      %v3500 = vld [vmem:[%s7 + $0xc] sm:$0xf]
      %v3501 = vld [vmem:[%s7 + $0x10] sm:$0xf]
      %v3502 = vld [vmem:[%s7 + $0x14] sm:$0xf]
      %v3503 = vld [vmem:[%s7 + $0x18] sm:$0xf]
      %v3504 = vld [vmem:[%s7 + $0x1c] sm:$0xf]
      %v3505 = vld [vmem:[%s7 + $0x20] sm:$0xf]
      %v3506 = vld [vmem:[%s7 + $0x24] sm:$0xf]
      %v3507 = vld [vmem:[%s7 + $0x28] sm:$0xf]
      %v3508 = vld [vmem:[%s7 + $0x2c] sm:$0xf]
      %v3509 = vld [vmem:[%s7 + $0x30] sm:$0xf]
      %v3510 = vld [vmem:[%s7 + $0x34] sm:$0xf]
      %v3511 = vld [vmem:[%s7 + $0x38] sm:$0xf]
      %v3512 = vld [vmem:[%s7 + $0x3c] sm:$0xf]
      %v3513 = vld [vmem:[%s8] sm:$0x1]
      %v3514 = vpack.c.bf16 %v3466, %v3465
      %v3515 = vpack.c.bf16 %v3468, %v3467
      %v3516 = vpack.c.bf16 %v3470, %v3469
      %v3517 = vpack.c.bf16 %v3472, %v3471
      %v3518 = vpack.c.bf16 %v3474, %v3473
      %v3519 = vpack.c.bf16 %v3476, %v3475
      %v3520 = vpack.c.bf16 %v3478, %v3477
      %v3521 = vpack.c.bf16 %v3480, %v3479
      %v3522 = vpack.c.bf16 %v3482, %v3481
      %v3523 = vpack.c.bf16 %v3484, %v3483
      %v3524 = vpack.c.bf16 %v3486, %v3485
      %v3525 = vpack.c.bf16 %v3488, %v3487
      %v3526 = vpack.c.bf16 %v3490, %v3489
      %v3527 = vpack.c.bf16 %v3492, %v3491
      %v3528 = vpack.c.bf16 %v3494, %v3493
      %v3529 = vpack.c.bf16 %v3496, %v3495
      %v3531 = vlaneseq
      %v3532 = vshrl.u32 %v3531, 7
      %v3533 = vsub.s32 0, %v3532
      %v3534 = vrot.slane %v3513, %v3533
      %v3552 = vunpack.c.l.b16 %v3497
      %v3553 = vunpack.c.l.b16 %v3498
      %v3554 = vunpack.c.l.b16 %v3499
      %v3555 = vunpack.c.l.b16 %v3500
      %v3556 = vunpack.c.l.b16 %v3501
      %v3557 = vunpack.c.l.b16 %v3502
      %v3558 = vunpack.c.l.b16 %v3503
      %v3559 = vunpack.c.l.b16 %v3504
      %v3560 = vunpack.c.l.b16 %v3505
      %v3561 = vunpack.c.l.b16 %v3506
      %v3562 = vunpack.c.l.b16 %v3507
      %v3563 = vunpack.c.l.b16 %v3508
      %v3564 = vunpack.c.l.b16 %v3509
      %v3565 = vunpack.c.l.b16 %v3510
      %v3566 = vunpack.c.l.b16 %v3511
      %v3567 = vunpack.c.l.b16 %v3512
      %v3568 = vpack.c.b16 %v3553, %v3552
      %v3569 = vpack.c.b16 %v3555, %v3554
      %v3570 = vpack.c.b16 %v3557, %v3556
      %v3571 = vpack.c.b16 %v3559, %v3558
      %v3572 = vpack.c.b16 %v3561, %v3560
      %v3573 = vpack.c.b16 %v3563, %v3562
      %v3574 = vpack.c.b16 %v3565, %v3564
      %v3575 = vpack.c.b16 %v3567, %v3566
      %3584 = vmatprep.subr.bf16.mxu0 0
      %3585 = vmatpush1.bf16.msra.mxu0 %v3568
      %3586 = vmatprep.subr.bf16.mxu0 0
      %3587 = vmatpush1.bf16.msra.mxu0 %v3569
      %3588 = vmatprep.subr.bf16.mxu0 0
      %3589 = vmatpush1.bf16.msra.mxu0 %v3570
      %3590 = vmatprep.subr.bf16.mxu0 0
      %3591 = vmatpush1.bf16.msra.mxu0 %v3571
      %3592 = vmatprep.subr.bf16.mxu0 0
      %3593 = vmatpush1.bf16.msra.mxu0 %v3572
      %3594 = vmatprep.subr.bf16.mxu0 0
      %3595 = vmatpush1.bf16.msra.mxu0 %v3573
      %3596 = vmatprep.subr.bf16.mxu0 0
      %3597 = vmatpush1.bf16.msra.mxu0 %v3574
      %3598 = vmatprep.subr.bf16.mxu0 0
      %3599 = vmatpush1.bf16.msra.mxu0 %v3575
      %3600 = vmatprep.subr.bf16.mxu0 0
      %3601 = vmatpush1.bf16.msra.mxu0 0
      %3602 = vmatprep.subr.bf16.mxu0 0
      %3603 = vmatpush1.bf16.msra.mxu0 0
      %3604 = vmatprep.subr.bf16.mxu0 0
      %3605 = vmatpush1.bf16.msra.mxu0 0
      %3606 = vmatprep.subr.bf16.mxu0 0
      %3607 = vmatpush1.bf16.msra.mxu0 0
      %3608 = vmatprep.subr.bf16.mxu0 0
      %3609 = vmatpush1.bf16.msra.mxu0 0
      %3610 = vmatprep.subr.bf16.mxu0 0
      %3611 = vmatpush1.bf16.msra.mxu0 0
      %3612 = vmatprep.subr.bf16.mxu0 0
      %3613 = vmatpush1.bf16.msra.mxu0 0
      %3614 = vmatprep.subr.bf16.mxu0 0
      %3615 = vmatpush1.bf16.msra.mxu0 0
      %3616 = vmatprep.mubr.bf16.mxu0 0
      %3617 = vmatmul.mubr.bf16.gmra.mrb[0].mxu0 %v3514
      %v3618 = vpop.f32.mrb[0].mxu0
      %v3619 = vadd.f32 %v3534, %v3618
      %v3620 = vpop.f32.mrb[0].mxu0
      %v3621 = vpop.f32.mrb[0].mxu0
      %v3622 = vadd.f32 %v3534, %v3621
      %v3623 = vpop.f32.mrb[0].mxu0
      %3624 = vmatprep.mubr.bf16.mxu0 0
      %3625 = vmatmul.mubr.bf16.gmra.mrb[0].mxu0 %v3515
      %v3626 = vpop.f32.mrb[0].mxu0
      %v3627 = vadd.f32 %v3534, %v3626
      %v3628 = vpop.f32.mrb[0].mxu0
      %v3629 = vpop.f32.mrb[0].mxu0
      %v3630 = vadd.f32 %v3534, %v3629
      %v3631 = vpop.f32.mrb[0].mxu0
      %3632 = vmatprep.mubr.bf16.mxu0 0
      %3633 = vmatmul.mubr.bf16.gmra.mrb[0].mxu0 %v3516
      %v3634 = vpop.f32.mrb[0].mxu0
      %v3635 = vadd.f32 %v3534, %v3634
      %v3636 = vpop.f32.mrb[0].mxu0
      %v3637 = vpop.f32.mrb[0].mxu0
      %v3638 = vadd.f32 %v3534, %v3637
      %v3639 = vpop.f32.mrb[0].mxu0
      %3640 = vmatprep.mubr.bf16.mxu0 0
      %3641 = vmatmul.mubr.bf16.gmra.mrb[0].mxu0 %v3517
      %v3642 = vpop.f32.mrb[0].mxu0
      %v3643 = vadd.f32 %v3534, %v3642
      %v3644 = vpop.f32.mrb[0].mxu0
      %v3645 = vpop.f32.mrb[0].mxu0
      %v3646 = vadd.f32 %v3534, %v3645
      %v3647 = vpop.f32.mrb[0].mxu0
      %3648 = vmatprep.mubr.bf16.mxu0 0
      %3649 = vmatmul.mubr.bf16.gmra.mrb[0].mxu0 %v3518
      %v3650 = vpop.f32.mrb[0].mxu0
      %v3651 = vadd.f32 %v3534, %v3650
      %v3652 = vpop.f32.mrb[0].mxu0
      %v3653 = vpop.f32.mrb[0].mxu0
      %v3654 = vadd.f32 %v3534, %v3653
      %v3655 = vpop.f32.mrb[0].mxu0
      %3656 = vmatprep.mubr.bf16.mxu0 0
      %3657 = vmatmul.mubr.bf16.gmra.mrb[0].mxu0 %v3519
      %v3658 = vpop.f32.mrb[0].mxu0
      %v3659 = vadd.f32 %v3534, %v3658
      %v3660 = vpop.f32.mrb[0].mxu0
      %v3661 = vpop.f32.mrb[0].mxu0
      %v3662 = vadd.f32 %v3534, %v3661
      %v3663 = vpop.f32.mrb[0].mxu0
      %3664 = vmatprep.mubr.bf16.mxu0 0
      %3665 = vmatmul.mubr.bf16.gmra.mrb[0].mxu0 %v3520
      %v3666 = vpop.f32.mrb[0].mxu0
      %v3667 = vadd.f32 %v3534, %v3666
      %v3668 = vpop.f32.mrb[0].mxu0
      %v3669 = vpop.f32.mrb[0].mxu0
      %v3670 = vadd.f32 %v3534, %v3669
      %v3671 = vpop.f32.mrb[0].mxu0
      %3672 = vmatprep.mubr.bf16.mxu0 0
      %3673 = vmatmul.mubr.bf16.gmra.mrb[0].mxu0 %v3521
      %v3674 = vpop.f32.mrb[0].mxu0
      %v3675 = vadd.f32 %v3534, %v3674
      %v3676 = vpop.f32.mrb[0].mxu0
      %v3677 = vpop.f32.mrb[0].mxu0
      %v3678 = vadd.f32 %v3534, %v3677
      %v3679 = vpop.f32.mrb[0].mxu0
      %3680 = vmatprep.mubr.bf16.mxu0 0
      %3681 = vmatmul.mubr.bf16.gmra.mrb[0].mxu0 %v3522
      %v3682 = vpop.f32.mrb[0].mxu0
      %v3683 = vadd.f32 %v3534, %v3682
      %v3684 = vpop.f32.mrb[0].mxu0
      %v3685 = vpop.f32.mrb[0].mxu0
      %v3686 = vadd.f32 %v3534, %v3685
      %v3687 = vpop.f32.mrb[0].mxu0
      %3688 = vmatprep.mubr.bf16.mxu0 0
      %3689 = vmatmul.mubr.bf16.gmra.mrb[0].mxu0 %v3523
      %v3690 = vpop.f32.mrb[0].mxu0
      %v3691 = vadd.f32 %v3534, %v3690
      %v3692 = vpop.f32.mrb[0].mxu0
      %v3693 = vpop.f32.mrb[0].mxu0
      %v3694 = vadd.f32 %v3534, %v3693
      %v3695 = vpop.f32.mrb[0].mxu0
      %3696 = vmatprep.mubr.bf16.mxu0 0
      %3697 = vmatmul.mubr.bf16.gmra.mrb[0].mxu0 %v3524
      %v3698 = vpop.f32.mrb[0].mxu0
      %v3699 = vadd.f32 %v3534, %v3698
      %v3700 = vpop.f32.mrb[0].mxu0
      %v3701 = vpop.f32.mrb[0].mxu0
      %v3702 = vadd.f32 %v3534, %v3701
      %v3703 = vpop.f32.mrb[0].mxu0
      %3704 = vmatprep.mubr.bf16.mxu0 0
      %3705 = vmatmul.mubr.bf16.gmra.mrb[0].mxu0 %v3525
      %v3706 = vpop.f32.mrb[0].mxu0
      %v3707 = vadd.f32 %v3534, %v3706
      %v3708 = vpop.f32.mrb[0].mxu0
      %v3709 = vpop.f32.mrb[0].mxu0
      %v3710 = vadd.f32 %v3534, %v3709
      %v3711 = vpop.f32.mrb[0].mxu0
      %3712 = vmatprep.mubr.bf16.mxu0 0
      %3713 = vmatmul.mubr.bf16.gmra.mrb[0].mxu0 %v3526
      %v3714 = vpop.f32.mrb[0].mxu0
      %v3715 = vadd.f32 %v3534, %v3714
      %v3716 = vpop.f32.mrb[0].mxu0
      %v3717 = vpop.f32.mrb[0].mxu0
      %v3718 = vadd.f32 %v3534, %v3717
      %v3719 = vpop.f32.mrb[0].mxu0
      %3720 = vmatprep.mubr.bf16.mxu0 0
      %3721 = vmatmul.mubr.bf16.gmra.mrb[0].mxu0 %v3527
      %v3722 = vpop.f32.mrb[0].mxu0
      %v3723 = vadd.f32 %v3534, %v3722
      %v3724 = vpop.f32.mrb[0].mxu0
      %v3725 = vpop.f32.mrb[0].mxu0
      %v3726 = vadd.f32 %v3534, %v3725
      %v3727 = vpop.f32.mrb[0].mxu0
      %3728 = vmatprep.mubr.bf16.mxu0 0
      %3729 = vmatmul.mubr.bf16.gmra.mrb[0].mxu0 %v3528
      %v3730 = vpop.f32.mrb[0].mxu0
      %v3731 = vadd.f32 %v3534, %v3730
      %v3732 = vpop.f32.mrb[0].mxu0
      %v3733 = vpop.f32.mrb[0].mxu0
      %v3734 = vadd.f32 %v3534, %v3733
      %v3735 = vpop.f32.mrb[0].mxu0
      %3736 = vmatprep.mubr.bf16.mxu0 0
      %3737 = vmatmul.mubr.bf16.gmra.mrb[0].mxu0 %v3529
      %v3738 = vpop.f32.mrb[0].mxu0
      %v3739 = vadd.f32 %v3534, %v3738
      %v3740 = vpop.f32.mrb[0].mxu0
      %v3741 = vpop.f32.mrb[0].mxu0
      %v3742 = vadd.f32 %v3534, %v3741
      %v3743 = vpop.f32.mrb[0].mxu0
      %3744 = vdwg.mxu0
      %v3745 = vtanh.pop %v3619
      %v3746 = vtanh.pop %v3622
      %v3747 = vtanh.pop %v3627
      %v3748 = vtanh.pop %v3630
      %v3749 = vtanh.pop %v3635
      %v3750 = vtanh.pop %v3638
      %v3751 = vtanh.pop %v3643
      %v3752 = vtanh.pop %v3646
      %v3753 = vtanh.pop %v3651
      %v3754 = vtanh.pop %v3654
      %v3755 = vtanh.pop %v3659
      %v3756 = vtanh.pop %v3662
      %v3757 = vtanh.pop %v3667
      %v3758 = vtanh.pop %v3670
      %v3759 = vtanh.pop %v3675
      %v3760 = vtanh.pop %v3678
      %v3761 = vtanh.pop %v3683
      %v3762 = vtanh.pop %v3686
      %v3763 = vtanh.pop %v3691
      %v3764 = vtanh.pop %v3694
      %v3765 = vtanh.pop %v3699
      %v3766 = vtanh.pop %v3702
      %v3767 = vtanh.pop %v3707
      %v3768 = vtanh.pop %v3710
      %v3769 = vtanh.pop %v3715
      %v3770 = vtanh.pop %v3718
      %v3771 = vtanh.pop %v3723
      %v3772 = vtanh.pop %v3726
      %v3773 = vtanh.pop %v3731
      %v3774 = vtanh.pop %v3734
      %v3775 = vtanh.pop %v3739
      %v3776 = vtanh.pop %v3742
      %v3777 = vxor.u32 %v3619, 2147483648
      %v3778 = vxor.u32 %v3622, 2147483648
      %v3779 = vxor.u32 %v3627, 2147483648
      %v3780 = vxor.u32 %v3630, 2147483648
      %v3781 = vxor.u32 %v3635, 2147483648
      %v3782 = vxor.u32 %v3638, 2147483648
      %v3783 = vxor.u32 %v3643, 2147483648
      %v3784 = vxor.u32 %v3646, 2147483648
      %v3785 = vxor.u32 %v3651, 2147483648
      %v3786 = vxor.u32 %v3654, 2147483648
      %v3787 = vxor.u32 %v3659, 2147483648
      %v3788 = vxor.u32 %v3662, 2147483648
      %v3789 = vxor.u32 %v3667, 2147483648
      %v3790 = vxor.u32 %v3670, 2147483648
      %v3791 = vxor.u32 %v3675, 2147483648
      %v3792 = vxor.u32 %v3678, 2147483648
      %v3793 = vxor.u32 %v3683, 2147483648
      %v3794 = vxor.u32 %v3686, 2147483648
      %v3795 = vxor.u32 %v3691, 2147483648
      %v3796 = vxor.u32 %v3694, 2147483648
      %v3797 = vxor.u32 %v3699, 2147483648
      %v3798 = vxor.u32 %v3702, 2147483648
      %v3799 = vxor.u32 %v3707, 2147483648
      %v3800 = vxor.u32 %v3710, 2147483648
      %v3801 = vxor.u32 %v3715, 2147483648
      %v3802 = vxor.u32 %v3718, 2147483648
      %v3803 = vxor.u32 %v3723, 2147483648
      %v3804 = vxor.u32 %v3726, 2147483648
      %v3805 = vxor.u32 %v3731, 2147483648
      %v3806 = vxor.u32 %v3734, 2147483648
      %v3807 = vxor.u32 %v3739, 2147483648
      %v3808 = vxor.u32 %v3742, 2147483648
      %v3809 = vmul.f32 %v3777, 1.442695
      %v3810 = vpow.pop %v3809
      %v3811 = vmul.f32 %v3778, 1.442695
      %v3812 = vpow.pop %v3811
      %v3813 = vmul.f32 %v3779, 1.442695
      %v3814 = vpow.pop %v3813
      %v3815 = vmul.f32 %v3780, 1.442695
      %v3816 = vpow.pop %v3815
      %v3817 = vmul.f32 %v3781, 1.442695
      %v3818 = vpow.pop %v3817
      %v3819 = vmul.f32 %v3782, 1.442695
      %v3820 = vpow.pop %v3819
      %v3821 = vmul.f32 %v3783, 1.442695
      %v3822 = vpow.pop %v3821
      %v3823 = vmul.f32 %v3784, 1.442695
      %v3824 = vpow.pop %v3823
      %v3825 = vmul.f32 %v3785, 1.442695
      %v3826 = vpow.pop %v3825
      %v3827 = vmul.f32 %v3786, 1.442695
      %v3828 = vpow.pop %v3827
      %v3829 = vmul.f32 %v3787, 1.442695
      %v3830 = vpow.pop %v3829
      %v3831 = vmul.f32 %v3788, 1.442695
      %v3832 = vpow.pop %v3831
      %v3833 = vmul.f32 %v3789, 1.442695
      %v3834 = vpow.pop %v3833
      %v3835 = vmul.f32 %v3790, 1.442695
      %v3836 = vpow.pop %v3835
      %v3837 = vmul.f32 %v3791, 1.442695
      %v3838 = vpow.pop %v3837
      %v3839 = vmul.f32 %v3792, 1.442695
      %v3840 = vpow.pop %v3839
      %v3841 = vmul.f32 %v3793, 1.442695
      %v3842 = vpow.pop %v3841
      %v3843 = vmul.f32 %v3794, 1.442695
      %v3844 = vpow.pop %v3843
      %v3845 = vmul.f32 %v3795, 1.442695
      %v3846 = vpow.pop %v3845
      %v3847 = vmul.f32 %v3796, 1.442695
      %v3848 = vpow.pop %v3847
      %v3849 = vmul.f32 %v3797, 1.442695
      %v3850 = vpow.pop %v3849
      %v3851 = vmul.f32 %v3798, 1.442695
      %v3852 = vpow.pop %v3851
      %v3853 = vmul.f32 %v3799, 1.442695
      %v3854 = vpow.pop %v3853
      %v3855 = vmul.f32 %v3800, 1.442695
      %v3856 = vpow.pop %v3855
      %v3857 = vmul.f32 %v3801, 1.442695
      %v3858 = vpow.pop %v3857
      %v3859 = vmul.f32 %v3802, 1.442695
      %v3860 = vpow.pop %v3859
      %v3861 = vmul.f32 %v3803, 1.442695
      %v3862 = vpow.pop %v3861
      %v3863 = vmul.f32 %v3804, 1.442695
      %v3864 = vpow.pop %v3863
      %v3865 = vmul.f32 %v3805, 1.442695
      %v3866 = vpow.pop %v3865
      %v3867 = vmul.f32 %v3806, 1.442695
      %v3868 = vpow.pop %v3867
      %v3869 = vmul.f32 %v3807, 1.442695
      %v3870 = vpow.pop %v3869
      %v3871 = vmul.f32 %v3808, 1.442695
      %v3872 = vpow.pop %v3871
      %v3873 = vadd.f32 %v3810, 1.0
      %v3874 = vadd.f32 %v3812, 1.0
      %v3875 = vadd.f32 %v3814, 1.0
      %v3876 = vadd.f32 %v3816, 1.0
      %v3877 = vadd.f32 %v3818, 1.0
      %v3878 = vadd.f32 %v3820, 1.0
      %v3879 = vadd.f32 %v3822, 1.0
      %v3880 = vadd.f32 %v3824, 1.0
      %v3881 = vadd.f32 %v3826, 1.0
      %v3882 = vadd.f32 %v3828, 1.0
      %v3883 = vadd.f32 %v3830, 1.0
      %v3884 = vadd.f32 %v3832, 1.0
      %v3885 = vadd.f32 %v3834, 1.0
      %v3886 = vadd.f32 %v3836, 1.0
      %v3887 = vadd.f32 %v3838, 1.0
      %v3888 = vadd.f32 %v3840, 1.0
      %v3889 = vadd.f32 %v3842, 1.0
      %v3890 = vadd.f32 %v3844, 1.0
      %v3891 = vadd.f32 %v3846, 1.0
      %v3892 = vadd.f32 %v3848, 1.0
      %v3893 = vadd.f32 %v3850, 1.0
      %v3894 = vadd.f32 %v3852, 1.0
      %v3895 = vadd.f32 %v3854, 1.0
      %v3896 = vadd.f32 %v3856, 1.0
      %v3897 = vadd.f32 %v3858, 1.0
      %v3898 = vadd.f32 %v3860, 1.0
      %v3899 = vadd.f32 %v3862, 1.0
      %v3900 = vadd.f32 %v3864, 1.0
      %v3901 = vadd.f32 %v3866, 1.0
      %v3902 = vadd.f32 %v3868, 1.0
      %v3903 = vadd.f32 %v3870, 1.0
      %v3904 = vadd.f32 %v3872, 1.0
      %v3905 = vrcp.pop %v3873
      %v3906 = vmul.f32 1.0, %v3905
      %v3907 = vrcp.pop %v3874
      %v3908 = vmul.f32 1.0, %v3907
      %v3909 = vrcp.pop %v3875
      %v3910 = vmul.f32 1.0, %v3909
      %v3911 = vrcp.pop %v3876
      %v3912 = vmul.f32 1.0, %v3911
      %v3913 = vrcp.pop %v3877
      %v3914 = vmul.f32 1.0, %v3913
      %v3915 = vrcp.pop %v3878
      %v3916 = vmul.f32 1.0, %v3915
      %v3917 = vrcp.pop %v3879
      %v3918 = vmul.f32 1.0, %v3917
      %v3919 = vrcp.pop %v3880
      %v3920 = vmul.f32 1.0, %v3919
      %v3921 = vrcp.pop %v3881
      %v3922 = vmul.f32 1.0, %v3921
      %v3923 = vrcp.pop %v3882
      %v3924 = vmul.f32 1.0, %v3923
      %v3925 = vrcp.pop %v3883
      %v3926 = vmul.f32 1.0, %v3925
      %v3927 = vrcp.pop %v3884
      %v3928 = vmul.f32 1.0, %v3927
      %v3929 = vrcp.pop %v3885
      %v3930 = vmul.f32 1.0, %v3929
      %v3931 = vrcp.pop %v3886
      %v3932 = vmul.f32 1.0, %v3931
      %v3933 = vrcp.pop %v3887
      %v3934 = vmul.f32 1.0, %v3933
      %v3935 = vrcp.pop %v3888
      %v3936 = vmul.f32 1.0, %v3935
      %v3937 = vrcp.pop %v3889
      %v3938 = vmul.f32 1.0, %v3937
      %v3939 = vrcp.pop %v3890
      %v3940 = vmul.f32 1.0, %v3939
      %v3941 = vrcp.pop %v3891
      %v3942 = vmul.f32 1.0, %v3941
      %v3943 = vrcp.pop %v3892
      %v3944 = vmul.f32 1.0, %v3943
      %v3945 = vrcp.pop %v3893
      %v3946 = vmul.f32 1.0, %v3945
      %v3947 = vrcp.pop %v3894
      %v3948 = vmul.f32 1.0, %v3947
      %v3949 = vrcp.pop %v3895
      %v3950 = vmul.f32 1.0, %v3949
      %v3951 = vrcp.pop %v3896
      %v3952 = vmul.f32 1.0, %v3951
      %v3953 = vrcp.pop %v3897
      %v3954 = vmul.f32 1.0, %v3953
      %v3955 = vrcp.pop %v3898
      %v3956 = vmul.f32 1.0, %v3955
      %v3957 = vrcp.pop %v3899
      %v3958 = vmul.f32 1.0, %v3957
      %v3959 = vrcp.pop %v3900
      %v3960 = vmul.f32 1.0, %v3959
      %v3961 = vrcp.pop %v3901
      %v3962 = vmul.f32 1.0, %v3961
      %v3963 = vrcp.pop %v3902
      %v3964 = vmul.f32 1.0, %v3963
      %v3965 = vrcp.pop %v3903
      %v3966 = vmul.f32 1.0, %v3965
      %v3967 = vrcp.pop %v3904
      %v3968 = vmul.f32 1.0, %v3967
      %4001 = vrot.lane.b32.xlu0 %v3906, 96
      %v4002 = vpop.permute.xlu0 %4001
      %4003 = vrot.lane.b32.xlu0 %v3908, 96
      %v4004 = vpop.permute.xlu0 %4003
      %4005 = vrot.lane.b32.xlu0 %v3910, 96
      %v4006 = vpop.permute.xlu0 %4005
      %4007 = vrot.lane.b32.xlu0 %v3912, 96
      %v4008 = vpop.permute.xlu0 %4007
      %4009 = vrot.lane.b32.xlu0 %v3914, 96
      %v4010 = vpop.permute.xlu0 %4009
      %4011 = vrot.lane.b32.xlu0 %v3916, 96
      %v4012 = vpop.permute.xlu0 %4011
      %4013 = vrot.lane.b32.xlu0 %v3918, 96
      %v4014 = vpop.permute.xlu0 %4013
      %4015 = vrot.lane.b32.xlu0 %v3920, 96
      %v4016 = vpop.permute.xlu0 %4015
      %4017 = vrot.lane.b32.xlu0 %v3922, 96
      %v4018 = vpop.permute.xlu0 %4017
      %4019 = vrot.lane.b32.xlu0 %v3924, 96
      %v4020 = vpop.permute.xlu0 %4019
      %4021 = vrot.lane.b32.xlu0 %v3926, 96
      %v4022 = vpop.permute.xlu0 %4021
      %4023 = vrot.lane.b32.xlu0 %v3928, 96
      %v4024 = vpop.permute.xlu0 %4023
      %4025 = vrot.lane.b32.xlu0 %v3930, 96
      %v4026 = vpop.permute.xlu0 %4025
      %4027 = vrot.lane.b32.xlu0 %v3932, 96
      %v4028 = vpop.permute.xlu0 %4027
      %4029 = vrot.lane.b32.xlu0 %v3934, 96
      %v4030 = vpop.permute.xlu0 %4029
      %4031 = vrot.lane.b32.xlu0 %v3936, 96
      %v4032 = vpop.permute.xlu0 %4031
      %4033 = vrot.lane.b32.xlu0 %v3938, 96
      %v4034 = vpop.permute.xlu0 %4033
      %4035 = vrot.lane.b32.xlu0 %v3940, 96
      %v4036 = vpop.permute.xlu0 %4035
      %4037 = vrot.lane.b32.xlu0 %v3942, 96
      %v4038 = vpop.permute.xlu0 %4037
      %4039 = vrot.lane.b32.xlu0 %v3944, 96
      %v4040 = vpop.permute.xlu0 %4039
      %4041 = vrot.lane.b32.xlu0 %v3946, 96
      %v4042 = vpop.permute.xlu0 %4041
      %4043 = vrot.lane.b32.xlu0 %v3948, 96
      %v4044 = vpop.permute.xlu0 %4043
      %4045 = vrot.lane.b32.xlu0 %v3950, 96
      %v4046 = vpop.permute.xlu0 %4045
      %4047 = vrot.lane.b32.xlu0 %v3952, 96
      %v4048 = vpop.permute.xlu0 %4047
      %4049 = vrot.lane.b32.xlu0 %v3954, 96
      %v4050 = vpop.permute.xlu0 %4049
      %4051 = vrot.lane.b32.xlu0 %v3956, 96
      %v4052 = vpop.permute.xlu0 %4051
      %4053 = vrot.lane.b32.xlu0 %v3958, 96
      %v4054 = vpop.permute.xlu0 %4053
      %4055 = vrot.lane.b32.xlu0 %v3960, 96
      %v4056 = vpop.permute.xlu0 %4055
      %4057 = vrot.lane.b32.xlu0 %v3962, 96
      %v4058 = vpop.permute.xlu0 %4057
      %4059 = vrot.lane.b32.xlu0 %v3964, 96
      %v4060 = vpop.permute.xlu0 %4059
      %4061 = vrot.lane.b32.xlu0 %v3966, 96
      %v4062 = vpop.permute.xlu0 %4061
      %4063 = vrot.lane.b32.xlu0 %v3968, 96
      %v4064 = vpop.permute.xlu0 %4063
      %v4097 = vmul.f32 %v3745, %v4002
      %v4098 = vmul.f32 %v3746, %v4004
      %v4099 = vmul.f32 %v3747, %v4006
      %v4100 = vmul.f32 %v3748, %v4008
      %v4101 = vmul.f32 %v3749, %v4010
      %v4102 = vmul.f32 %v3750, %v4012
      %v4103 = vmul.f32 %v3751, %v4014
      %v4104 = vmul.f32 %v3752, %v4016
      %v4105 = vmul.f32 %v3753, %v4018
      %v4106 = vmul.f32 %v3754, %v4020
      %v4107 = vmul.f32 %v3755, %v4022
      %v4108 = vmul.f32 %v3756, %v4024
      %v4109 = vmul.f32 %v3757, %v4026
      %v4110 = vmul.f32 %v3758, %v4028
      %v4111 = vmul.f32 %v3759, %v4030
      %v4112 = vmul.f32 %v3760, %v4032
      %v4113 = vmul.f32 %v3761, %v4034
      %v4114 = vmul.f32 %v3762, %v4036
      %v4115 = vmul.f32 %v3763, %v4038
      %v4116 = vmul.f32 %v3764, %v4040
      %v4117 = vmul.f32 %v3765, %v4042
      %v4118 = vmul.f32 %v3766, %v4044
      %v4119 = vmul.f32 %v3767, %v4046
      %v4120 = vmul.f32 %v3768, %v4048
      %v4121 = vmul.f32 %v3769, %v4050
      %v4122 = vmul.f32 %v3770, %v4052
      %v4123 = vmul.f32 %v3771, %v4054
      %v4124 = vmul.f32 %v3772, %v4056
      %v4125 = vmul.f32 %v3773, %v4058
      %v4126 = vmul.f32 %v3774, %v4060
      %v4127 = vmul.f32 %v3775, %v4062
      %v4128 = vmul.f32 %v3776, %v4064
      %v4129 = vld [vmem:[%s9] sm:$0xf]
      %v4130 = vld [vmem:[%s9 + $0x4] sm:$0xf]
      %v4131 = vld [vmem:[%s9 + $0x8] sm:$0xf]
      %v4132 = vld [vmem:[%s9 + $0xc] sm:$0xf]
      %v4133 = vld [vmem:[%s10] sm:$0x1]
      %v4134 = vpack.c.bf16 %v4098, %v4097
      %v4135 = vpack.c.bf16 %v4100, %v4099
      %v4136 = vpack.c.bf16 %v4102, %v4101
      %v4137 = vpack.c.bf16 %v4104, %v4103
      %v4138 = vpack.c.bf16 %v4106, %v4105
      %v4139 = vpack.c.bf16 %v4108, %v4107
      %v4140 = vpack.c.bf16 %v4110, %v4109
      %v4141 = vpack.c.bf16 %v4112, %v4111
      %v4142 = vpack.c.bf16 %v4114, %v4113
      %v4143 = vpack.c.bf16 %v4116, %v4115
      %v4144 = vpack.c.bf16 %v4118, %v4117
      %v4145 = vpack.c.bf16 %v4120, %v4119
      %v4146 = vpack.c.bf16 %v4122, %v4121
      %v4147 = vpack.c.bf16 %v4124, %v4123
      %v4148 = vpack.c.bf16 %v4126, %v4125
      %v4149 = vpack.c.bf16 %v4128, %v4127
      %v4151 = vlaneseq
      %v4152 = vshrl.u32 %v4151, 7
      %v4153 = vsub.s32 0, %v4152
      %v4154 = vrot.slane %v4133, %v4153
      %v4160 = vunpack.c.l.b16 %v4129
      %v4161 = vunpack.c.l.b16 %v4130
      %v4162 = vunpack.c.l.b16 %v4131
      %v4163 = vunpack.c.l.b16 %v4132
      %v4164 = vpack.c.b16 %v4161, %v4160
      %v4165 = vpack.c.b16 %v4163, %v4162
      %v4169 = vsel %vm442, %v4134, 0
      %v4172 = vsel %vm442, %v4135, 0
      %v4175 = vsel %vm442, %v4136, 0
      %v4178 = vsel %vm442, %v4137, 0
      %v4181 = vsel %vm442, %v4138, 0
      %v4184 = vsel %vm442, %v4139, 0
      %v4187 = vsel %vm442, %v4140, 0
      %v4190 = vsel %vm442, %v4141, 0
      %v4193 = vsel %vm442, %v4142, 0
      %v4196 = vsel %vm442, %v4143, 0
      %v4199 = vsel %vm442, %v4144, 0
      %v4202 = vsel %vm442, %v4145, 0
      %v4205 = vsel %vm442, %v4146, 0
      %v4208 = vsel %vm442, %v4147, 0
      %v4211 = vsel %vm442, %v4148, 0
      %v4214 = vsel %vm442, %v4149, 0
      %4216 = vmatprep.subr.bf16.mxu0 0
      %4217 = vmatpush1.bf16.msra.mxu0 %v4164
      %4218 = vmatprep.subr.bf16.mxu0 0
      %4219 = vmatpush1.bf16.msra.mxu0 %v4165
      %4220 = vmatprep.subr.bf16.mxu0 0
      %4221 = vmatpush1.bf16.msra.mxu0 0
      %4222 = vmatprep.subr.bf16.mxu0 0
      %4223 = vmatpush1.bf16.msra.mxu0 0
      %4224 = vmatprep.subr.bf16.mxu0 0
      %4225 = vmatpush1.bf16.msra.mxu0 0
      %4226 = vmatprep.subr.bf16.mxu0 0
      %4227 = vmatpush1.bf16.msra.mxu0 0
      %4228 = vmatprep.subr.bf16.mxu0 0
      %4229 = vmatpush1.bf16.msra.mxu0 0
      %4230 = vmatprep.subr.bf16.mxu0 0
      %4231 = vmatpush1.bf16.msra.mxu0 0
      %4232 = vmatprep.subr.bf16.mxu0 0
      %4233 = vmatpush1.bf16.msra.mxu0 0
      %4234 = vmatprep.subr.bf16.mxu0 0
      %4235 = vmatpush1.bf16.msra.mxu0 0
      %4236 = vmatprep.subr.bf16.mxu0 0
      %4237 = vmatpush1.bf16.msra.mxu0 0
      %4238 = vmatprep.subr.bf16.mxu0 0
      %4239 = vmatpush1.bf16.msra.mxu0 0
      %4240 = vmatprep.subr.bf16.mxu0 0
      %4241 = vmatpush1.bf16.msra.mxu0 0
      %4242 = vmatprep.subr.bf16.mxu0 0
      %4243 = vmatpush1.bf16.msra.mxu0 0
      %4244 = vmatprep.subr.bf16.mxu0 0
      %4245 = vmatpush1.bf16.msra.mxu0 0
      %4246 = vmatprep.subr.bf16.mxu0 0
      %4247 = vmatpush1.bf16.msra.mxu0 0
      %4248 = vmatprep.mubr.bf16.mxu0 0
      %4249 = vmatmul.mubr.bf16.gmra.mrb[0].mxu0 %v4169
      %v4250 = vpop.f32.mrb[0].mxu0
      %v4251 = vadd.f32 %v4154, %v4250
      %v4252 = vpop.f32.mrb[0].mxu0
      %v4253 = vpop.f32.mrb[0].mxu0
      %v4254 = vadd.f32 %v4154, %v4253
      %v4255 = vpop.f32.mrb[0].mxu0
      %4256 = vmatprep.mubr.bf16.mxu0 0
      %4257 = vmatmul.mubr.bf16.gmra.mrb[0].mxu0 %v4172
      %v4258 = vpop.f32.mrb[0].mxu0
      %v4259 = vadd.f32 %v4154, %v4258
      %v4260 = vpop.f32.mrb[0].mxu0
      %v4261 = vpop.f32.mrb[0].mxu0
      %v4262 = vadd.f32 %v4154, %v4261
      %v4263 = vpop.f32.mrb[0].mxu0
      %4264 = vmatprep.mubr.bf16.mxu0 0
      %4265 = vmatmul.mubr.bf16.gmra.mrb[0].mxu0 %v4175
      %v4266 = vpop.f32.mrb[0].mxu0
      %v4267 = vadd.f32 %v4154, %v4266
      %v4268 = vpop.f32.mrb[0].mxu0
      %v4269 = vpop.f32.mrb[0].mxu0
      %v4270 = vadd.f32 %v4154, %v4269
      %v4271 = vpop.f32.mrb[0].mxu0
      %4272 = vmatprep.mubr.bf16.mxu0 0
      %4273 = vmatmul.mubr.bf16.gmra.mrb[0].mxu0 %v4178
      %v4274 = vpop.f32.mrb[0].mxu0
      %v4275 = vadd.f32 %v4154, %v4274
      %v4276 = vpop.f32.mrb[0].mxu0
      %v4277 = vpop.f32.mrb[0].mxu0
      %v4278 = vadd.f32 %v4154, %v4277
      %v4279 = vpop.f32.mrb[0].mxu0
      %4280 = vmatprep.mubr.bf16.mxu0 0
      %4281 = vmatmul.mubr.bf16.gmra.mrb[0].mxu0 %v4181
      %v4282 = vpop.f32.mrb[0].mxu0
      %v4283 = vadd.f32 %v4154, %v4282
      %v4284 = vpop.f32.mrb[0].mxu0
      %v4285 = vpop.f32.mrb[0].mxu0
      %v4286 = vadd.f32 %v4154, %v4285
      %v4287 = vpop.f32.mrb[0].mxu0
      %4288 = vmatprep.mubr.bf16.mxu0 0
      %4289 = vmatmul.mubr.bf16.gmra.mrb[0].mxu0 %v4184
      %v4290 = vpop.f32.mrb[0].mxu0
      %v4291 = vadd.f32 %v4154, %v4290
      %v4292 = vpop.f32.mrb[0].mxu0
      %v4293 = vpop.f32.mrb[0].mxu0
      %v4294 = vadd.f32 %v4154, %v4293
      %v4295 = vpop.f32.mrb[0].mxu0
      %4296 = vmatprep.mubr.bf16.mxu0 0
      %4297 = vmatmul.mubr.bf16.gmra.mrb[0].mxu0 %v4187
      %v4298 = vpop.f32.mrb[0].mxu0
      %v4299 = vadd.f32 %v4154, %v4298
      %v4300 = vpop.f32.mrb[0].mxu0
      %v4301 = vpop.f32.mrb[0].mxu0
      %v4302 = vadd.f32 %v4154, %v4301
      %v4303 = vpop.f32.mrb[0].mxu0
      %4304 = vmatprep.mubr.bf16.mxu0 0
      %4305 = vmatmul.mubr.bf16.gmra.mrb[0].mxu0 %v4190
      %v4306 = vpop.f32.mrb[0].mxu0
      %v4307 = vadd.f32 %v4154, %v4306
      %v4308 = vpop.f32.mrb[0].mxu0
      %v4309 = vpop.f32.mrb[0].mxu0
      %v4310 = vadd.f32 %v4154, %v4309
      %v4311 = vpop.f32.mrb[0].mxu0
      %4312 = vmatprep.mubr.bf16.mxu0 0
      %4313 = vmatmul.mubr.bf16.gmra.mrb[0].mxu0 %v4193
      %v4314 = vpop.f32.mrb[0].mxu0
      %v4315 = vadd.f32 %v4154, %v4314
      %v4316 = vpop.f32.mrb[0].mxu0
      %v4317 = vpop.f32.mrb[0].mxu0
      %v4318 = vadd.f32 %v4154, %v4317
      %v4319 = vpop.f32.mrb[0].mxu0
      %4320 = vmatprep.mubr.bf16.mxu0 0
      %4321 = vmatmul.mubr.bf16.gmra.mrb[0].mxu0 %v4196
      %v4322 = vpop.f32.mrb[0].mxu0
      %v4323 = vadd.f32 %v4154, %v4322
      %v4324 = vpop.f32.mrb[0].mxu0
      %v4325 = vpop.f32.mrb[0].mxu0
      %v4326 = vadd.f32 %v4154, %v4325
      %v4327 = vpop.f32.mrb[0].mxu0
      %4328 = vmatprep.mubr.bf16.mxu0 0
      %4329 = vmatmul.mubr.bf16.gmra.mrb[0].mxu0 %v4199
      %v4330 = vpop.f32.mrb[0].mxu0
      %v4331 = vadd.f32 %v4154, %v4330
      %v4332 = vpop.f32.mrb[0].mxu0
      %v4333 = vpop.f32.mrb[0].mxu0
      %v4334 = vadd.f32 %v4154, %v4333
      %v4335 = vpop.f32.mrb[0].mxu0
      %4336 = vmatprep.mubr.bf16.mxu0 0
      %4337 = vmatmul.mubr.bf16.gmra.mrb[0].mxu0 %v4202
      %v4338 = vpop.f32.mrb[0].mxu0
      %v4339 = vadd.f32 %v4154, %v4338
      %v4340 = vpop.f32.mrb[0].mxu0
      %v4341 = vpop.f32.mrb[0].mxu0
      %v4342 = vadd.f32 %v4154, %v4341
      %v4343 = vpop.f32.mrb[0].mxu0
      %4344 = vmatprep.mubr.bf16.mxu0 0
      %4345 = vmatmul.mubr.bf16.gmra.mrb[0].mxu0 %v4205
      %v4346 = vpop.f32.mrb[0].mxu0
      %v4347 = vadd.f32 %v4154, %v4346
      %v4348 = vpop.f32.mrb[0].mxu0
      %v4349 = vpop.f32.mrb[0].mxu0
      %v4350 = vadd.f32 %v4154, %v4349
      %v4351 = vpop.f32.mrb[0].mxu0
      %4352 = vmatprep.mubr.bf16.mxu0 0
      %4353 = vmatmul.mubr.bf16.gmra.mrb[0].mxu0 %v4208
      %v4354 = vpop.f32.mrb[0].mxu0
      %v4355 = vadd.f32 %v4154, %v4354
      %v4356 = vpop.f32.mrb[0].mxu0
      %v4357 = vpop.f32.mrb[0].mxu0
      %v4358 = vadd.f32 %v4154, %v4357
      %v4359 = vpop.f32.mrb[0].mxu0
      %4360 = vmatprep.mubr.bf16.mxu0 0
      %4361 = vmatmul.mubr.bf16.gmra.mrb[0].mxu0 %v4211
      %v4362 = vpop.f32.mrb[0].mxu0
      %v4363 = vadd.f32 %v4154, %v4362
      %v4364 = vpop.f32.mrb[0].mxu0
      %v4365 = vpop.f32.mrb[0].mxu0
      %v4366 = vadd.f32 %v4154, %v4365
      %v4367 = vpop.f32.mrb[0].mxu0
      %4368 = vmatprep.mubr.bf16.mxu0 0
      %4369 = vmatmul.mubr.bf16.gmra.mrb[0].mxu0 %v4214
      %v4370 = vpop.f32.mrb[0].mxu0
      %v4371 = vadd.f32 %v4154, %v4370
      %v4372 = vpop.f32.mrb[0].mxu0
      %v4373 = vpop.f32.mrb[0].mxu0
      %v4374 = vadd.f32 %v4154, %v4373
      %v4375 = vpop.f32.mrb[0].mxu0
      %4376 = vdwg.mxu0
      %v4377 = vadd.f32 %v4251, %v1361
      %v4378 = vadd.f32 %v4254, %v1364
      %v4379 = vadd.f32 %v4259, %v1369
      %v4380 = vadd.f32 %v4262, %v1372
      %v4381 = vadd.f32 %v4267, %v1377
      %v4382 = vadd.f32 %v4270, %v1380
      %v4383 = vadd.f32 %v4275, %v1385
      %v4384 = vadd.f32 %v4278, %v1388
      %v4385 = vadd.f32 %v4283, %v1393
      %v4386 = vadd.f32 %v4286, %v1396
      %v4387 = vadd.f32 %v4291, %v1401
      %v4388 = vadd.f32 %v4294, %v1404
      %v4389 = vadd.f32 %v4299, %v1409
      %v4390 = vadd.f32 %v4302, %v1412
      %v4391 = vadd.f32 %v4307, %v1417
      %v4392 = vadd.f32 %v4310, %v1420
      %v4393 = vadd.f32 %v4315, %v1425
      %v4394 = vadd.f32 %v4318, %v1428
      %v4395 = vadd.f32 %v4323, %v1433
      %v4396 = vadd.f32 %v4326, %v1436
      %v4397 = vadd.f32 %v4331, %v1441
      %v4398 = vadd.f32 %v4334, %v1444
      %v4399 = vadd.f32 %v4339, %v1449
      %v4400 = vadd.f32 %v4342, %v1452
      %v4401 = vadd.f32 %v4347, %v1457
      %v4402 = vadd.f32 %v4350, %v1460
      %v4403 = vadd.f32 %v4355, %v1465
      %v4404 = vadd.f32 %v4358, %v1468
      %v4405 = vadd.f32 %v4363, %v1473
      %v4406 = vadd.f32 %v4366, %v1476
      %v4407 = vadd.f32 %v4371, %v1481
      %v4408 = vadd.f32 %v4374, %v1484
      %4409 = vst.msk [vmem:[%s457 + $0x2] sm:$0xff] %vm442, %v3049
      %4410 = vst.msk [vmem:[%s457 + $0xa] sm:$0xff] %vm442, %v3050
      %4411 = vst.msk [vmem:[%s457 + $0x1a] sm:$0xff] %vm442, %v3051
      %4412 = vst.msk [vmem:[%s457 + $0x22] sm:$0xff] %vm442, %v3052
      %4413 = vst.msk [vmem:[%s457 + $0x32] sm:$0xff] %vm442, %v3053
      %4414 = vst.msk [vmem:[%s457 + $0x3a] sm:$0xff] %vm442, %v3054
      %4415 = vst.msk [vmem:[%s457 + $0x4a] sm:$0xff] %vm442, %v3055
      %4416 = vst.msk [vmem:[%s457 + $0x52] sm:$0xff] %vm442, %v3056
      %4417 = vst.msk [vmem:[%s457 + $0x62] sm:$0xff] %vm442, %v3057
      %4418 = vst.msk [vmem:[%s457 + $0x6a] sm:$0xff] %vm442, %v3058
      %4419 = vst.msk [vmem:[%s457 + $0x7a] sm:$0xff] %vm442, %v3059
      %4420 = vst.msk [vmem:[%s457 + $0x82] sm:$0xff] %vm442, %v3060
      %4421 = vst.msk [vmem:[%s457 + $0x92] sm:$0xff] %vm442, %v3061
      %4422 = vst.msk [vmem:[%s457 + $0x9a] sm:$0xff] %vm442, %v3062
      %4423 = vst.msk [vmem:[%s457 + $0xaa] sm:$0xff] %vm442, %v3063
      %4424 = vst.msk [vmem:[%s457 + $0xb2] sm:$0xff] %vm442, %v3064
      %4425 = vst.msk [vmem:[%s457 + $0xc2] sm:$0xff] %vm442, %v3065
      %4426 = vst.msk [vmem:[%s457 + $0xca] sm:$0xff] %vm442, %v3066
      %4427 = vst.msk [vmem:[%s457 + $0xda] sm:$0xff] %vm442, %v3067
      %4428 = vst.msk [vmem:[%s457 + $0xe2] sm:$0xff] %vm442, %v3068
      %4429 = vst.msk [vmem:[%s457 + $0xf2] sm:$0xff] %vm442, %v3069
      %4430 = vst.msk [vmem:[%s457 + $0xfa] sm:$0xff] %vm442, %v3070
      %4431 = vst.msk [vmem:[%s457 + $0x10a] sm:$0xff] %vm442, %v3071
      %4432 = vst.msk [vmem:[%s457 + $0x112] sm:$0xff] %vm442, %v3072
      %4433 = vst.msk [vmem:[%s457 + $0x122] sm:$0xff] %vm442, %v3073
      %4434 = vst.msk [vmem:[%s457 + $0x12a] sm:$0xff] %vm442, %v3074
      %4435 = vst.msk [vmem:[%s457 + $0x13a] sm:$0xff] %vm442, %v3075
      %4436 = vst.msk [vmem:[%s457 + $0x142] sm:$0xff] %vm442, %v3076
      %4437 = vst.msk [vmem:[%s457 + $0x152] sm:$0xff] %vm442, %v3077
      %4438 = vst.msk [vmem:[%s457 + $0x15a] sm:$0xff] %vm442, %v3078
      %4439 = vst.msk [vmem:[%s457 + $0x16a] sm:$0xff] %vm442, %v3079
      %4440 = vst.msk [vmem:[%s457 + $0x172] sm:$0xff] %vm442, %v3080
      %v4441 = vld [vmem:[#allocation2] sm:$0xff]
      %v4442 = vld [vmem:[#allocation2 + $0x8] sm:$0xff]
      %v4443 = vld [vmem:[#allocation2 + $0x18] sm:$0xff]
      %v4444 = vld [vmem:[#allocation2 + $0x20] sm:$0xff]
      %v4445 = vld [vmem:[#allocation2 + $0x30] sm:$0xff]
      %v4446 = vld [vmem:[#allocation2 + $0x38] sm:$0xff]
      %v4447 = vld [vmem:[#allocation2 + $0x48] sm:$0xff]
      %v4448 = vld [vmem:[#allocation2 + $0x50] sm:$0xff]
      %v4449 = vld [vmem:[#allocation2 + $0x60] sm:$0xff]
      %v4450 = vld [vmem:[#allocation2 + $0x68] sm:$0xff]
      %v4451 = vld [vmem:[#allocation2 + $0x78] sm:$0xff]
      %v4452 = vld [vmem:[#allocation2 + $0x80] sm:$0xff]
      %v4453 = vld [vmem:[#allocation2 + $0x90] sm:$0xff]
      %v4454 = vld [vmem:[#allocation2 + $0x98] sm:$0xff]
      %v4455 = vld [vmem:[#allocation2 + $0xa8] sm:$0xff]
      %v4456 = vld [vmem:[#allocation2 + $0xb0] sm:$0xff]
      %v4457 = vld [vmem:[#allocation2 + $0xc0] sm:$0xff]
      %v4458 = vld [vmem:[#allocation2 + $0xc8] sm:$0xff]
      %v4459 = vld [vmem:[#allocation2 + $0xd8] sm:$0xff]
      %v4460 = vld [vmem:[#allocation2 + $0xe0] sm:$0xff]
      %v4461 = vld [vmem:[#allocation2 + $0xf0] sm:$0xff]
      %v4462 = vld [vmem:[#allocation2 + $0xf8] sm:$0xff]
      %v4463 = vld [vmem:[#allocation2 + $0x108] sm:$0xff]
      %v4464 = vld [vmem:[#allocation2 + $0x110] sm:$0xff]
      %v4465 = vld [vmem:[#allocation2 + $0x120] sm:$0xff]
      %v4466 = vld [vmem:[#allocation2 + $0x128] sm:$0xff]
      %v4467 = vld [vmem:[#allocation2 + $0x138] sm:$0xff]
      %v4468 = vld [vmem:[#allocation2 + $0x140] sm:$0xff]
      %v4469 = vld [vmem:[#allocation2 + $0x150] sm:$0xff]
      %v4470 = vld [vmem:[#allocation2 + $0x158] sm:$0xff]
      %v4471 = vld [vmem:[#allocation2 + $0x168] sm:$0xff]
      %v4472 = vld [vmem:[#allocation2 + $0x170] sm:$0xff]
      %v4473 = vld [vmem:[#allocation2 + $0x2] sm:$0xff]
      %v4474 = vld [vmem:[#allocation2 + $0xa] sm:$0xff]
      %v4475 = vld [vmem:[#allocation2 + $0x1a] sm:$0xff]
      %v4476 = vld [vmem:[#allocation2 + $0x22] sm:$0xff]
      %v4477 = vld [vmem:[#allocation2 + $0x32] sm:$0xff]
      %v4478 = vld [vmem:[#allocation2 + $0x3a] sm:$0xff]
      %v4479 = vld [vmem:[#allocation2 + $0x4a] sm:$0xff]
      %v4480 = vld [vmem:[#allocation2 + $0x52] sm:$0xff]
      %v4481 = vld [vmem:[#allocation2 + $0x62] sm:$0xff]
      %v4482 = vld [vmem:[#allocation2 + $0x6a] sm:$0xff]
      %v4483 = vld [vmem:[#allocation2 + $0x7a] sm:$0xff]
      %v4484 = vld [vmem:[#allocation2 + $0x82] sm:$0xff]
      %v4485 = vld [vmem:[#allocation2 + $0x92] sm:$0xff]
      %v4486 = vld [vmem:[#allocation2 + $0x9a] sm:$0xff]
      %v4487 = vld [vmem:[#allocation2 + $0xaa] sm:$0xff]
      %v4488 = vld [vmem:[#allocation2 + $0xb2] sm:$0xff]
      %v4489 = vld [vmem:[#allocation2 + $0xc2] sm:$0xff]
      %v4490 = vld [vmem:[#allocation2 + $0xca] sm:$0xff]
      %v4491 = vld [vmem:[#allocation2 + $0xda] sm:$0xff]
      %v4492 = vld [vmem:[#allocation2 + $0xe2] sm:$0xff]
      %v4493 = vld [vmem:[#allocation2 + $0xf2] sm:$0xff]
      %v4494 = vld [vmem:[#allocation2 + $0xfa] sm:$0xff]
      %v4495 = vld [vmem:[#allocation2 + $0x10a] sm:$0xff]
      %v4496 = vld [vmem:[#allocation2 + $0x112] sm:$0xff]
      %v4497 = vld [vmem:[#allocation2 + $0x122] sm:$0xff]
      %v4498 = vld [vmem:[#allocation2 + $0x12a] sm:$0xff]
      %v4499 = vld [vmem:[#allocation2 + $0x13a] sm:$0xff]
      %v4500 = vld [vmem:[#allocation2 + $0x142] sm:$0xff]
      %v4501 = vld [vmem:[#allocation2 + $0x152] sm:$0xff]
      %v4502 = vld [vmem:[#allocation2 + $0x15a] sm:$0xff]
      %v4503 = vld [vmem:[#allocation2 + $0x16a] sm:$0xff]
      %v4504 = vld [vmem:[#allocation2 + $0x172] sm:$0xff]
      %v4505 = vld [vmem:[#allocation2 + $0x4] sm:$0xff]
      %v4506 = vld [vmem:[#allocation2 + $0xc] sm:$0xff]
      %v4507 = vld [vmem:[#allocation2 + $0x1c] sm:$0xff]
      %v4508 = vld [vmem:[#allocation2 + $0x24] sm:$0xff]
      %v4509 = vld [vmem:[#allocation2 + $0x34] sm:$0xff]
      %v4510 = vld [vmem:[#allocation2 + $0x3c] sm:$0xff]
      %v4511 = vld [vmem:[#allocation2 + $0x4c] sm:$0xff]
      %v4512 = vld [vmem:[#allocation2 + $0x54] sm:$0xff]
      %v4513 = vld [vmem:[#allocation2 + $0x64] sm:$0xff]
      %v4514 = vld [vmem:[#allocation2 + $0x6c] sm:$0xff]
      %v4515 = vld [vmem:[#allocation2 + $0x7c] sm:$0xff]
      %v4516 = vld [vmem:[#allocation2 + $0x84] sm:$0xff]
      %v4517 = vld [vmem:[#allocation2 + $0x94] sm:$0xff]
      %v4518 = vld [vmem:[#allocation2 + $0x9c] sm:$0xff]
      %v4519 = vld [vmem:[#allocation2 + $0xac] sm:$0xff]
      %v4520 = vld [vmem:[#allocation2 + $0xb4] sm:$0xff]
      %v4521 = vld [vmem:[#allocation2 + $0xc4] sm:$0xff]
      %v4522 = vld [vmem:[#allocation2 + $0xcc] sm:$0xff]
      %v4523 = vld [vmem:[#allocation2 + $0xdc] sm:$0xff]
      %v4524 = vld [vmem:[#allocation2 + $0xe4] sm:$0xff]
      %v4525 = vld [vmem:[#allocation2 + $0xf4] sm:$0xff]
      %v4526 = vld [vmem:[#allocation2 + $0xfc] sm:$0xff]
      %v4527 = vld [vmem:[#allocation2 + $0x10c] sm:$0xff]
      %v4528 = vld [vmem:[#allocation2 + $0x114] sm:$0xff]
      %v4529 = vld [vmem:[#allocation2 + $0x124] sm:$0xff]
      %v4530 = vld [vmem:[#allocation2 + $0x12c] sm:$0xff]
      %v4531 = vld [vmem:[#allocation2 + $0x13c] sm:$0xff]
      %v4532 = vld [vmem:[#allocation2 + $0x144] sm:$0xff]
      %v4533 = vld [vmem:[#allocation2 + $0x154] sm:$0xff]
      %v4534 = vld [vmem:[#allocation2 + $0x15c] sm:$0xff]
      %v4535 = vld [vmem:[#allocation2 + $0x16c] sm:$0xff]
      %v4536 = vld [vmem:[#allocation2 + $0x174] sm:$0xff]
      %v4537 = vld [vmem:[%s457] sm:$0xff]
      %v4538 = vld [vmem:[%s457 + $0x8] sm:$0xff]
      %v4539 = vld [vmem:[%s457 + $0x18] sm:$0xff]
      %v4540 = vld [vmem:[%s457 + $0x20] sm:$0xff]
      %v4541 = vld [vmem:[%s457 + $0x30] sm:$0xff]
      %v4542 = vld [vmem:[%s457 + $0x38] sm:$0xff]
      %v4543 = vld [vmem:[%s457 + $0x48] sm:$0xff]
      %v4544 = vld [vmem:[%s457 + $0x50] sm:$0xff]
      %v4545 = vld [vmem:[%s457 + $0x60] sm:$0xff]
      %v4546 = vld [vmem:[%s457 + $0x68] sm:$0xff]
      %v4547 = vld [vmem:[%s457 + $0x78] sm:$0xff]
      %v4548 = vld [vmem:[%s457 + $0x80] sm:$0xff]
      %v4549 = vld [vmem:[%s457 + $0x90] sm:$0xff]
      %v4550 = vld [vmem:[%s457 + $0x98] sm:$0xff]
      %v4551 = vld [vmem:[%s457 + $0xa8] sm:$0xff]
      %v4552 = vld [vmem:[%s457 + $0xb0] sm:$0xff]
      %v4553 = vld [vmem:[%s457 + $0xc0] sm:$0xff]
      %v4554 = vld [vmem:[%s457 + $0xc8] sm:$0xff]
      %v4555 = vld [vmem:[%s457 + $0xd8] sm:$0xff]
      %v4556 = vld [vmem:[%s457 + $0xe0] sm:$0xff]
      %v4557 = vld [vmem:[%s457 + $0xf0] sm:$0xff]
      %v4558 = vld [vmem:[%s457 + $0xf8] sm:$0xff]
      %v4559 = vld [vmem:[%s457 + $0x108] sm:$0xff]
      %v4560 = vld [vmem:[%s457 + $0x110] sm:$0xff]
      %v4561 = vld [vmem:[%s457 + $0x120] sm:$0xff]
      %v4562 = vld [vmem:[%s457 + $0x128] sm:$0xff]
      %v4563 = vld [vmem:[%s457 + $0x138] sm:$0xff]
      %v4564 = vld [vmem:[%s457 + $0x140] sm:$0xff]
      %v4565 = vld [vmem:[%s457 + $0x150] sm:$0xff]
      %v4566 = vld [vmem:[%s457 + $0x158] sm:$0xff]
      %v4567 = vld [vmem:[%s457 + $0x168] sm:$0xff]
      %v4568 = vld [vmem:[%s457 + $0x170] sm:$0xff]
      %v4569 = vld [vmem:[%s457 + $0x2] sm:$0xff]
      %v4570 = vld [vmem:[%s457 + $0xa] sm:$0xff]
      %v4571 = vld [vmem:[%s457 + $0x1a] sm:$0xff]
      %v4572 = vld [vmem:[%s457 + $0x22] sm:$0xff]
      %v4573 = vld [vmem:[%s457 + $0x32] sm:$0xff]
      %v4574 = vld [vmem:[%s457 + $0x3a] sm:$0xff]
      %v4575 = vld [vmem:[%s457 + $0x4a] sm:$0xff]
      %v4576 = vld [vmem:[%s457 + $0x52] sm:$0xff]
      %v4577 = vld [vmem:[%s457 + $0x62] sm:$0xff]
      %v4578 = vld [vmem:[%s457 + $0x6a] sm:$0xff]
      %v4579 = vld [vmem:[%s457 + $0x7a] sm:$0xff]
      %v4580 = vld [vmem:[%s457 + $0x82] sm:$0xff]
      %v4581 = vld [vmem:[%s457 + $0x92] sm:$0xff]
      %v4582 = vld [vmem:[%s457 + $0x9a] sm:$0xff]
      %v4583 = vld [vmem:[%s457 + $0xaa] sm:$0xff]
      %v4584 = vld [vmem:[%s457 + $0xb2] sm:$0xff]
      %v4585 = vld [vmem:[%s457 + $0xc2] sm:$0xff]
      %v4586 = vld [vmem:[%s457 + $0xca] sm:$0xff]
      %v4587 = vld [vmem:[%s457 + $0xda] sm:$0xff]
      %v4588 = vld [vmem:[%s457 + $0xe2] sm:$0xff]
      %v4589 = vld [vmem:[%s457 + $0xf2] sm:$0xff]
      %v4590 = vld [vmem:[%s457 + $0xfa] sm:$0xff]
      %v4591 = vld [vmem:[%s457 + $0x10a] sm:$0xff]
      %v4592 = vld [vmem:[%s457 + $0x112] sm:$0xff]
      %v4593 = vld [vmem:[%s457 + $0x122] sm:$0xff]
      %v4594 = vld [vmem:[%s457 + $0x12a] sm:$0xff]
      %v4595 = vld [vmem:[%s457 + $0x13a] sm:$0xff]
      %v4596 = vld [vmem:[%s457 + $0x142] sm:$0xff]
      %v4597 = vld [vmem:[%s457 + $0x152] sm:$0xff]
      %v4598 = vld [vmem:[%s457 + $0x15a] sm:$0xff]
      %v4599 = vld [vmem:[%s457 + $0x16a] sm:$0xff]
      %v4600 = vld [vmem:[%s457 + $0x172] sm:$0xff]
      %v4601 = vld [vmem:[%s457 + $0x4] sm:$0xff]
      %v4602 = vld [vmem:[%s457 + $0xc] sm:$0xff]
      %v4603 = vld [vmem:[%s457 + $0x1c] sm:$0xff]
      %v4604 = vld [vmem:[%s457 + $0x24] sm:$0xff]
      %v4605 = vld [vmem:[%s457 + $0x34] sm:$0xff]
      %v4606 = vld [vmem:[%s457 + $0x3c] sm:$0xff]
      %v4607 = vld [vmem:[%s457 + $0x4c] sm:$0xff]
      %v4608 = vld [vmem:[%s457 + $0x54] sm:$0xff]
      %v4609 = vld [vmem:[%s457 + $0x64] sm:$0xff]
      %v4610 = vld [vmem:[%s457 + $0x6c] sm:$0xff]
      %v4611 = vld [vmem:[%s457 + $0x7c] sm:$0xff]
      %v4612 = vld [vmem:[%s457 + $0x84] sm:$0xff]
      %v4613 = vld [vmem:[%s457 + $0x94] sm:$0xff]
      %v4614 = vld [vmem:[%s457 + $0x9c] sm:$0xff]
      %v4615 = vld [vmem:[%s457 + $0xac] sm:$0xff]
      %v4616 = vld [vmem:[%s457 + $0xb4] sm:$0xff]
      %v4617 = vld [vmem:[%s457 + $0xc4] sm:$0xff]
      %v4618 = vld [vmem:[%s457 + $0xcc] sm:$0xff]
      %v4619 = vld [vmem:[%s457 + $0xdc] sm:$0xff]
      %v4620 = vld [vmem:[%s457 + $0xe4] sm:$0xff]
      %v4621 = vld [vmem:[%s457 + $0xf4] sm:$0xff]
      %v4622 = vld [vmem:[%s457 + $0xfc] sm:$0xff]
      %v4623 = vld [vmem:[%s457 + $0x10c] sm:$0xff]
      %v4624 = vld [vmem:[%s457 + $0x114] sm:$0xff]
      %v4625 = vld [vmem:[%s457 + $0x124] sm:$0xff]
      %v4626 = vld [vmem:[%s457 + $0x12c] sm:$0xff]
      %v4627 = vld [vmem:[%s457 + $0x13c] sm:$0xff]
      %v4628 = vld [vmem:[%s457 + $0x144] sm:$0xff]
      %v4629 = vld [vmem:[%s457 + $0x154] sm:$0xff]
      %v4630 = vld [vmem:[%s457 + $0x15c] sm:$0xff]
      %v4631 = vld [vmem:[%s457 + $0x16c] sm:$0xff]
      %v4632 = vld [vmem:[%s457 + $0x174] sm:$0xff]
      %4665 = vrot.lane.b32.xlu0 %v4473, 32
      %v4666 = vpop.permute.xlu0 %4665
      %4667 = vrot.lane.b32.xlu0 %v4474, 32
      %v4668 = vpop.permute.xlu0 %4667
      %4669 = vrot.lane.b32.xlu0 %v4475, 32
      %v4670 = vpop.permute.xlu0 %4669
      %4671 = vrot.lane.b32.xlu0 %v4476, 32
      %v4672 = vpop.permute.xlu0 %4671
      %4673 = vrot.lane.b32.xlu0 %v4477, 32
      %v4674 = vpop.permute.xlu0 %4673
      %4675 = vrot.lane.b32.xlu0 %v4478, 32
      %v4676 = vpop.permute.xlu0 %4675
      %4677 = vrot.lane.b32.xlu0 %v4479, 32
      %v4678 = vpop.permute.xlu0 %4677
      %4679 = vrot.lane.b32.xlu0 %v4480, 32
      %v4680 = vpop.permute.xlu0 %4679
      %4681 = vrot.lane.b32.xlu0 %v4481, 32
      %v4682 = vpop.permute.xlu0 %4681
      %4683 = vrot.lane.b32.xlu0 %v4482, 32
      %v4684 = vpop.permute.xlu0 %4683
      %4685 = vrot.lane.b32.xlu0 %v4483, 32
      %v4686 = vpop.permute.xlu0 %4685
      %4687 = vrot.lane.b32.xlu0 %v4484, 32
      %v4688 = vpop.permute.xlu0 %4687
      %4689 = vrot.lane.b32.xlu0 %v4485, 32
      %v4690 = vpop.permute.xlu0 %4689
      %4691 = vrot.lane.b32.xlu0 %v4486, 32
      %v4692 = vpop.permute.xlu0 %4691
      %4693 = vrot.lane.b32.xlu0 %v4487, 32
      %v4694 = vpop.permute.xlu0 %4693
      %4695 = vrot.lane.b32.xlu0 %v4488, 32
      %v4696 = vpop.permute.xlu0 %4695
      %4697 = vrot.lane.b32.xlu0 %v4489, 32
      %v4698 = vpop.permute.xlu0 %4697
      %4699 = vrot.lane.b32.xlu0 %v4490, 32
      %v4700 = vpop.permute.xlu0 %4699
      %4701 = vrot.lane.b32.xlu0 %v4491, 32
      %v4702 = vpop.permute.xlu0 %4701
      %4703 = vrot.lane.b32.xlu0 %v4492, 32
      %v4704 = vpop.permute.xlu0 %4703
      %4705 = vrot.lane.b32.xlu0 %v4493, 32
      %v4706 = vpop.permute.xlu0 %4705
      %4707 = vrot.lane.b32.xlu0 %v4494, 32
      %v4708 = vpop.permute.xlu0 %4707
      %4709 = vrot.lane.b32.xlu0 %v4495, 32
      %v4710 = vpop.permute.xlu0 %4709
      %4711 = vrot.lane.b32.xlu0 %v4496, 32
      %v4712 = vpop.permute.xlu0 %4711
      %4713 = vrot.lane.b32.xlu0 %v4497, 32
      %v4714 = vpop.permute.xlu0 %4713
      %4715 = vrot.lane.b32.xlu0 %v4498, 32
      %v4716 = vpop.permute.xlu0 %4715
      %4717 = vrot.lane.b32.xlu0 %v4499, 32
      %v4718 = vpop.permute.xlu0 %4717
      %4719 = vrot.lane.b32.xlu0 %v4500, 32
      %v4720 = vpop.permute.xlu0 %4719
      %4721 = vrot.lane.b32.xlu0 %v4501, 32
      %v4722 = vpop.permute.xlu0 %4721
      %4723 = vrot.lane.b32.xlu0 %v4502, 32
      %v4724 = vpop.permute.xlu0 %4723
      %4725 = vrot.lane.b32.xlu0 %v4503, 32
      %v4726 = vpop.permute.xlu0 %4725
      %4727 = vrot.lane.b32.xlu0 %v4504, 32
      %v4728 = vpop.permute.xlu0 %4727
      %4793 = vrot.lane.b32.xlu0 %v4505, 64
      %v4794 = vpop.permute.xlu0 %4793
      %4795 = vrot.lane.b32.xlu0 %v4506, 64
      %v4796 = vpop.permute.xlu0 %4795
      %4797 = vrot.lane.b32.xlu0 %v4507, 64
      %v4798 = vpop.permute.xlu0 %4797
      %4799 = vrot.lane.b32.xlu0 %v4508, 64
      %v4800 = vpop.permute.xlu0 %4799
      %4801 = vrot.lane.b32.xlu0 %v4509, 64
      %v4802 = vpop.permute.xlu0 %4801
      %4803 = vrot.lane.b32.xlu0 %v4510, 64
      %v4804 = vpop.permute.xlu0 %4803
      %4805 = vrot.lane.b32.xlu0 %v4511, 64
      %v4806 = vpop.permute.xlu0 %4805
      %4807 = vrot.lane.b32.xlu0 %v4512, 64
      %v4808 = vpop.permute.xlu0 %4807
      %4809 = vrot.lane.b32.xlu0 %v4513, 64
      %v4810 = vpop.permute.xlu0 %4809
      %4811 = vrot.lane.b32.xlu0 %v4514, 64
      %v4812 = vpop.permute.xlu0 %4811
      %4813 = vrot.lane.b32.xlu0 %v4515, 64
      %v4814 = vpop.permute.xlu0 %4813
      %4815 = vrot.lane.b32.xlu0 %v4516, 64
      %v4816 = vpop.permute.xlu0 %4815
      %4817 = vrot.lane.b32.xlu0 %v4517, 64
      %v4818 = vpop.permute.xlu0 %4817
      %4819 = vrot.lane.b32.xlu0 %v4518, 64
      %v4820 = vpop.permute.xlu0 %4819
      %4821 = vrot.lane.b32.xlu0 %v4519, 64
      %v4822 = vpop.permute.xlu0 %4821
      %4823 = vrot.lane.b32.xlu0 %v4520, 64
      %v4824 = vpop.permute.xlu0 %4823
      %4825 = vrot.lane.b32.xlu0 %v4521, 64
      %v4826 = vpop.permute.xlu0 %4825
      %4827 = vrot.lane.b32.xlu0 %v4522, 64
      %v4828 = vpop.permute.xlu0 %4827
      %4829 = vrot.lane.b32.xlu0 %v4523, 64
      %v4830 = vpop.permute.xlu0 %4829
      %4831 = vrot.lane.b32.xlu0 %v4524, 64
      %v4832 = vpop.permute.xlu0 %4831
      %4833 = vrot.lane.b32.xlu0 %v4525, 64
      %v4834 = vpop.permute.xlu0 %4833
      %4835 = vrot.lane.b32.xlu0 %v4526, 64
      %v4836 = vpop.permute.xlu0 %4835
      %4837 = vrot.lane.b32.xlu0 %v4527, 64
      %v4838 = vpop.permute.xlu0 %4837
      %4839 = vrot.lane.b32.xlu0 %v4528, 64
      %v4840 = vpop.permute.xlu0 %4839
      %4841 = vrot.lane.b32.xlu0 %v4529, 64
      %v4842 = vpop.permute.xlu0 %4841
      %4843 = vrot.lane.b32.xlu0 %v4530, 64
      %v4844 = vpop.permute.xlu0 %4843
      %4845 = vrot.lane.b32.xlu0 %v4531, 64
      %v4846 = vpop.permute.xlu0 %4845
      %4847 = vrot.lane.b32.xlu0 %v4532, 64
      %v4848 = vpop.permute.xlu0 %4847
      %4849 = vrot.lane.b32.xlu0 %v4533, 64
      %v4850 = vpop.permute.xlu0 %4849
      %4851 = vrot.lane.b32.xlu0 %v4534, 64
      %v4852 = vpop.permute.xlu0 %4851
      %4853 = vrot.lane.b32.xlu0 %v4535, 64
      %v4854 = vpop.permute.xlu0 %4853
      %4855 = vrot.lane.b32.xlu0 %v4536, 64
      %v4856 = vpop.permute.xlu0 %4855
      %4921 = vrot.lane.b32.xlu0 %v4537, 96
      %v4922 = vpop.permute.xlu0 %4921
      %4923 = vrot.lane.b32.xlu0 %v4538, 96
      %v4924 = vpop.permute.xlu0 %4923
      %4925 = vrot.lane.b32.xlu0 %v4539, 96
      %v4926 = vpop.permute.xlu0 %4925
      %4927 = vrot.lane.b32.xlu0 %v4540, 96
      %v4928 = vpop.permute.xlu0 %4927
      %4929 = vrot.lane.b32.xlu0 %v4541, 96
      %v4930 = vpop.permute.xlu0 %4929
      %4931 = vrot.lane.b32.xlu0 %v4542, 96
      %v4932 = vpop.permute.xlu0 %4931
      %4933 = vrot.lane.b32.xlu0 %v4543, 96
      %v4934 = vpop.permute.xlu0 %4933
      %4935 = vrot.lane.b32.xlu0 %v4544, 96
      %v4936 = vpop.permute.xlu0 %4935
      %4937 = vrot.lane.b32.xlu0 %v4545, 96
      %v4938 = vpop.permute.xlu0 %4937
      %4939 = vrot.lane.b32.xlu0 %v4546, 96
      %v4940 = vpop.permute.xlu0 %4939
      %4941 = vrot.lane.b32.xlu0 %v4547, 96
      %v4942 = vpop.permute.xlu0 %4941
      %4943 = vrot.lane.b32.xlu0 %v4548, 96
      %v4944 = vpop.permute.xlu0 %4943
      %4945 = vrot.lane.b32.xlu0 %v4549, 96
      %v4946 = vpop.permute.xlu0 %4945
      %4947 = vrot.lane.b32.xlu0 %v4550, 96
      %v4948 = vpop.permute.xlu0 %4947
      %4949 = vrot.lane.b32.xlu0 %v4551, 96
      %v4950 = vpop.permute.xlu0 %4949
      %4951 = vrot.lane.b32.xlu0 %v4552, 96
      %v4952 = vpop.permute.xlu0 %4951
      %4953 = vrot.lane.b32.xlu0 %v4553, 96
      %v4954 = vpop.permute.xlu0 %4953
      %4955 = vrot.lane.b32.xlu0 %v4554, 96
      %v4956 = vpop.permute.xlu0 %4955
      %4957 = vrot.lane.b32.xlu0 %v4555, 96
      %v4958 = vpop.permute.xlu0 %4957
      %4959 = vrot.lane.b32.xlu0 %v4556, 96
      %v4960 = vpop.permute.xlu0 %4959
      %4961 = vrot.lane.b32.xlu0 %v4557, 96
      %v4962 = vpop.permute.xlu0 %4961
      %4963 = vrot.lane.b32.xlu0 %v4558, 96
      %v4964 = vpop.permute.xlu0 %4963
      %4965 = vrot.lane.b32.xlu0 %v4559, 96
      %v4966 = vpop.permute.xlu0 %4965
      %4967 = vrot.lane.b32.xlu0 %v4560, 96
      %v4968 = vpop.permute.xlu0 %4967
      %4969 = vrot.lane.b32.xlu0 %v4561, 96
      %v4970 = vpop.permute.xlu0 %4969
      %4971 = vrot.lane.b32.xlu0 %v4562, 96
      %v4972 = vpop.permute.xlu0 %4971
      %4973 = vrot.lane.b32.xlu0 %v4563, 96
      %v4974 = vpop.permute.xlu0 %4973
      %4975 = vrot.lane.b32.xlu0 %v4564, 96
      %v4976 = vpop.permute.xlu0 %4975
      %4977 = vrot.lane.b32.xlu0 %v4565, 96
      %v4978 = vpop.permute.xlu0 %4977
      %4979 = vrot.lane.b32.xlu0 %v4566, 96
      %v4980 = vpop.permute.xlu0 %4979
      %4981 = vrot.lane.b32.xlu0 %v4567, 96
      %v4982 = vpop.permute.xlu0 %4981
      %4983 = vrot.lane.b32.xlu0 %v4568, 96
      %v4984 = vpop.permute.xlu0 %4983
      %5049 = vrot.lane.b32.xlu0 %v4601, 32
      %v5050 = vpop.permute.xlu0 %5049
      %5051 = vrot.lane.b32.xlu0 %v4602, 32
      %v5052 = vpop.permute.xlu0 %5051
      %5053 = vrot.lane.b32.xlu0 %v4603, 32
      %v5054 = vpop.permute.xlu0 %5053
      %5055 = vrot.lane.b32.xlu0 %v4604, 32
      %v5056 = vpop.permute.xlu0 %5055
      %5057 = vrot.lane.b32.xlu0 %v4605, 32
      %v5058 = vpop.permute.xlu0 %5057
      %5059 = vrot.lane.b32.xlu0 %v4606, 32
      %v5060 = vpop.permute.xlu0 %5059
      %5061 = vrot.lane.b32.xlu0 %v4607, 32
      %v5062 = vpop.permute.xlu0 %5061
      %5063 = vrot.lane.b32.xlu0 %v4608, 32
      %v5064 = vpop.permute.xlu0 %5063
      %5065 = vrot.lane.b32.xlu0 %v4609, 32
      %v5066 = vpop.permute.xlu0 %5065
      %5067 = vrot.lane.b32.xlu0 %v4610, 32
      %v5068 = vpop.permute.xlu0 %5067
      %5069 = vrot.lane.b32.xlu0 %v4611, 32
      %v5070 = vpop.permute.xlu0 %5069
      %5071 = vrot.lane.b32.xlu0 %v4612, 32
      %v5072 = vpop.permute.xlu0 %5071
      %5073 = vrot.lane.b32.xlu0 %v4613, 32
      %v5074 = vpop.permute.xlu0 %5073
      %5075 = vrot.lane.b32.xlu0 %v4614, 32
      %v5076 = vpop.permute.xlu0 %5075
      %5077 = vrot.lane.b32.xlu0 %v4615, 32
      %v5078 = vpop.permute.xlu0 %5077
      %5079 = vrot.lane.b32.xlu0 %v4616, 32
      %v5080 = vpop.permute.xlu0 %5079
      %5081 = vrot.lane.b32.xlu0 %v4617, 32
      %v5082 = vpop.permute.xlu0 %5081
      %5083 = vrot.lane.b32.xlu0 %v4618, 32
      %v5084 = vpop.permute.xlu0 %5083
      %5085 = vrot.lane.b32.xlu0 %v4619, 32
      %v5086 = vpop.permute.xlu0 %5085
      %5087 = vrot.lane.b32.xlu0 %v4620, 32
      %v5088 = vpop.permute.xlu0 %5087
      %5089 = vrot.lane.b32.xlu0 %v4621, 32
      %v5090 = vpop.permute.xlu0 %5089
      %5091 = vrot.lane.b32.xlu0 %v4622, 32
      %v5092 = vpop.permute.xlu0 %5091
      %5093 = vrot.lane.b32.xlu0 %v4623, 32
      %v5094 = vpop.permute.xlu0 %5093
      %5095 = vrot.lane.b32.xlu0 %v4624, 32
      %v5096 = vpop.permute.xlu0 %5095
      %5097 = vrot.lane.b32.xlu0 %v4625, 32
      %v5098 = vpop.permute.xlu0 %5097
      %5099 = vrot.lane.b32.xlu0 %v4626, 32
      %v5100 = vpop.permute.xlu0 %5099
      %5101 = vrot.lane.b32.xlu0 %v4627, 32
      %v5102 = vpop.permute.xlu0 %5101
      %5103 = vrot.lane.b32.xlu0 %v4628, 32
      %v5104 = vpop.permute.xlu0 %5103
      %5105 = vrot.lane.b32.xlu0 %v4629, 32
      %v5106 = vpop.permute.xlu0 %5105
      %5107 = vrot.lane.b32.xlu0 %v4630, 32
      %v5108 = vpop.permute.xlu0 %5107
      %5109 = vrot.lane.b32.xlu0 %v4631, 32
      %v5110 = vpop.permute.xlu0 %5109
      %5111 = vrot.lane.b32.xlu0 %v4632, 32
      %v5112 = vpop.permute.xlu0 %5111
      %v5145 = vsel %vm442, %v4441, %v4666
      %v5146 = vsel %vm442, %v4442, %v4668
      %v5147 = vsel %vm442, %v4443, %v4670
      %v5148 = vsel %vm442, %v4444, %v4672
      %v5149 = vsel %vm442, %v4445, %v4674
      %v5150 = vsel %vm442, %v4446, %v4676
      %v5151 = vsel %vm442, %v4447, %v4678
      %v5152 = vsel %vm442, %v4448, %v4680
      %v5153 = vsel %vm442, %v4449, %v4682
      %v5154 = vsel %vm442, %v4450, %v4684
      %v5155 = vsel %vm442, %v4451, %v4686
      %v5156 = vsel %vm442, %v4452, %v4688
      %v5157 = vsel %vm442, %v4453, %v4690
      %v5158 = vsel %vm442, %v4454, %v4692
      %v5159 = vsel %vm442, %v4455, %v4694
      %v5160 = vsel %vm442, %v4456, %v4696
      %v5161 = vsel %vm442, %v4457, %v4698
      %v5162 = vsel %vm442, %v4458, %v4700
      %v5163 = vsel %vm442, %v4459, %v4702
      %v5164 = vsel %vm442, %v4460, %v4704
      %v5165 = vsel %vm442, %v4461, %v4706
      %v5166 = vsel %vm442, %v4462, %v4708
      %v5167 = vsel %vm442, %v4463, %v4710
      %v5168 = vsel %vm442, %v4464, %v4712
      %v5169 = vsel %vm442, %v4465, %v4714
      %v5170 = vsel %vm442, %v4466, %v4716
      %v5171 = vsel %vm442, %v4467, %v4718
      %v5172 = vsel %vm442, %v4468, %v4720
      %v5173 = vsel %vm442, %v4469, %v4722
      %v5174 = vsel %vm442, %v4470, %v4724
      %v5175 = vsel %vm442, %v4471, %v4726
      %v5176 = vsel %vm442, %v4472, %v4728
      %v5177 = vsel %vm2255, %v5145, %v4794
      %v5178 = vsel %vm2255, %v5146, %v4796
      %v5179 = vsel %vm2255, %v5147, %v4798
      %v5180 = vsel %vm2255, %v5148, %v4800
      %v5181 = vsel %vm2255, %v5149, %v4802
      %v5182 = vsel %vm2255, %v5150, %v4804
      %v5183 = vsel %vm2255, %v5151, %v4806
      %v5184 = vsel %vm2255, %v5152, %v4808
      %v5185 = vsel %vm2255, %v5153, %v4810
      %v5186 = vsel %vm2255, %v5154, %v4812
      %v5187 = vsel %vm2255, %v5155, %v4814
      %v5188 = vsel %vm2255, %v5156, %v4816
      %v5189 = vsel %vm2255, %v5157, %v4818
      %v5190 = vsel %vm2255, %v5158, %v4820
      %v5191 = vsel %vm2255, %v5159, %v4822
      %v5192 = vsel %vm2255, %v5160, %v4824
      %v5193 = vsel %vm2255, %v5161, %v4826
      %v5194 = vsel %vm2255, %v5162, %v4828
      %v5195 = vsel %vm2255, %v5163, %v4830
      %v5196 = vsel %vm2255, %v5164, %v4832
      %v5197 = vsel %vm2255, %v5165, %v4834
      %v5198 = vsel %vm2255, %v5166, %v4836
      %v5199 = vsel %vm2255, %v5167, %v4838
      %v5200 = vsel %vm2255, %v5168, %v4840
      %v5201 = vsel %vm2255, %v5169, %v4842
      %v5202 = vsel %vm2255, %v5170, %v4844
      %v5203 = vsel %vm2255, %v5171, %v4846
      %v5204 = vsel %vm2255, %v5172, %v4848
      %v5205 = vsel %vm2255, %v5173, %v4850
      %v5206 = vsel %vm2255, %v5174, %v4852
      %v5207 = vsel %vm2255, %v5175, %v4854
      %v5208 = vsel %vm2255, %v5176, %v4856
      %v5209 = vsel %vm2288, %v5177, %v4922
      %v5210 = vsel %vm2288, %v5178, %v4924
      %v5211 = vsel %vm2288, %v5179, %v4926
      %v5212 = vsel %vm2288, %v5180, %v4928
      %v5213 = vsel %vm2288, %v5181, %v4930
      %v5214 = vsel %vm2288, %v5182, %v4932
      %v5215 = vsel %vm2288, %v5183, %v4934
      %v5216 = vsel %vm2288, %v5184, %v4936
      %v5217 = vsel %vm2288, %v5185, %v4938
      %v5218 = vsel %vm2288, %v5186, %v4940
      %v5219 = vsel %vm2288, %v5187, %v4942
      %v5220 = vsel %vm2288, %v5188, %v4944
      %v5221 = vsel %vm2288, %v5189, %v4946
      %v5222 = vsel %vm2288, %v5190, %v4948
      %v5223 = vsel %vm2288, %v5191, %v4950
      %v5224 = vsel %vm2288, %v5192, %v4952
      %v5225 = vsel %vm2288, %v5193, %v4954
      %v5226 = vsel %vm2288, %v5194, %v4956
      %v5227 = vsel %vm2288, %v5195, %v4958
      %v5228 = vsel %vm2288, %v5196, %v4960
      %v5229 = vsel %vm2288, %v5197, %v4962
      %v5230 = vsel %vm2288, %v5198, %v4964
      %v5231 = vsel %vm2288, %v5199, %v4966
      %v5232 = vsel %vm2288, %v5200, %v4968
      %v5233 = vsel %vm2288, %v5201, %v4970
      %v5234 = vsel %vm2288, %v5202, %v4972
      %v5235 = vsel %vm2288, %v5203, %v4974
      %v5236 = vsel %vm2288, %v5204, %v4976
      %v5237 = vsel %vm2288, %v5205, %v4978
      %v5238 = vsel %vm2288, %v5206, %v4980
      %v5239 = vsel %vm2288, %v5207, %v4982
      %v5240 = vsel %vm2288, %v5208, %v4984
      %v5241 = vsel %vm442, %v4569, %v5050
      %v5242 = vsel %vm442, %v4570, %v5052
      %v5243 = vsel %vm442, %v4571, %v5054
      %v5244 = vsel %vm442, %v4572, %v5056
      %v5245 = vsel %vm442, %v4573, %v5058
      %v5246 = vsel %vm442, %v4574, %v5060
      %v5247 = vsel %vm442, %v4575, %v5062
      %v5248 = vsel %vm442, %v4576, %v5064
      %v5249 = vsel %vm442, %v4577, %v5066
      %v5250 = vsel %vm442, %v4578, %v5068
      %v5251 = vsel %vm442, %v4579, %v5070
      %v5252 = vsel %vm442, %v4580, %v5072
      %v5253 = vsel %vm442, %v4581, %v5074
      %v5254 = vsel %vm442, %v4582, %v5076
      %v5255 = vsel %vm442, %v4583, %v5078
      %v5256 = vsel %vm442, %v4584, %v5080
      %v5257 = vsel %vm442, %v4585, %v5082
      %v5258 = vsel %vm442, %v4586, %v5084
      %v5259 = vsel %vm442, %v4587, %v5086
      %v5260 = vsel %vm442, %v4588, %v5088
      %v5261 = vsel %vm442, %v4589, %v5090
      %v5262 = vsel %vm442, %v4590, %v5092
      %v5263 = vsel %vm442, %v4591, %v5094
      %v5264 = vsel %vm442, %v4592, %v5096
      %v5265 = vsel %vm442, %v4593, %v5098
      %v5266 = vsel %vm442, %v4594, %v5100
      %v5267 = vsel %vm442, %v4595, %v5102
      %v5268 = vsel %vm442, %v4596, %v5104
      %v5269 = vsel %vm442, %v4597, %v5106
      %v5270 = vsel %vm442, %v4598, %v5108
      %v5271 = vsel %vm442, %v4599, %v5110
      %v5272 = vsel %vm442, %v4600, %v5112
      %s5273 = scalar_lea.vmem %s5, 96
      %v5274 = vld [vmem:[%s5273] sm:$0xf]
      %v5275 = vld [vmem:[%s5273 + $0x4] sm:$0xf]
      %v5276 = vld [vmem:[%s5273 + $0x8] sm:$0xf]
      %v5277 = vld [vmem:[%s5273 + $0xc] sm:$0xf]
      %v5278 = vld [vmem:[%s5273 + $0x10] sm:$0xf]
      %v5279 = vld [vmem:[%s5273 + $0x14] sm:$0xf]
      %v5280 = vld [vmem:[%s5273 + $0x18] sm:$0xf]
      %v5281 = vld [vmem:[%s5273 + $0x1c] sm:$0xf]
      %v5282 = vld [vmem:[%s5273 + $0x20] sm:$0xf]
      %v5283 = vld [vmem:[%s5273 + $0x24] sm:$0xf]
      %v5284 = vld [vmem:[%s5273 + $0x28] sm:$0xf]
      %v5285 = vld [vmem:[%s5273 + $0x2c] sm:$0xf]
      %v5286 = vld [vmem:[%s5273 + $0x30] sm:$0xf]
      %v5287 = vld [vmem:[%s5273 + $0x34] sm:$0xf]
      %v5288 = vld [vmem:[%s5273 + $0x38] sm:$0xf]
      %v5289 = vld [vmem:[%s5273 + $0x3c] sm:$0xf]
      %v5290 = vld [vmem:[%s5273 + $0x40] sm:$0xf]
      %v5291 = vld [vmem:[%s5273 + $0x44] sm:$0xf]
      %v5292 = vld [vmem:[%s5273 + $0x48] sm:$0xf]
      %v5293 = vld [vmem:[%s5273 + $0x4c] sm:$0xf]
      %v5294 = vld [vmem:[%s5273 + $0x50] sm:$0xf]
      %v5295 = vld [vmem:[%s5273 + $0x54] sm:$0xf]
      %v5296 = vld [vmem:[%s5273 + $0x58] sm:$0xf]
      %v5297 = vld [vmem:[%s5273 + $0x5c] sm:$0xf]
      %s5298 = scalar_lea.vmem %s6, 1
      %v5299 = vld [vmem:[%s5298] sm:$0x1]
      %v5300 = vpack.c.bf16 %v5210, %v5209
      %v5301 = vpack.c.bf16 %v5242, %v5241
      %v5302 = vpack.c.bf16 %v5212, %v5211
      %v5303 = vpack.c.bf16 %v5244, %v5243
      %v5304 = vpack.c.bf16 %v5214, %v5213
      %v5305 = vpack.c.bf16 %v5246, %v5245
      %v5306 = vpack.c.bf16 %v5216, %v5215
      %v5307 = vpack.c.bf16 %v5248, %v5247
      %v5308 = vpack.c.bf16 %v5218, %v5217
      %v5309 = vpack.c.bf16 %v5250, %v5249
      %v5310 = vpack.c.bf16 %v5220, %v5219
      %v5311 = vpack.c.bf16 %v5252, %v5251
      %v5312 = vpack.c.bf16 %v5222, %v5221
      %v5313 = vpack.c.bf16 %v5254, %v5253
      %v5314 = vpack.c.bf16 %v5224, %v5223
      %v5315 = vpack.c.bf16 %v5256, %v5255
      %v5316 = vpack.c.bf16 %v5226, %v5225
      %v5317 = vpack.c.bf16 %v5258, %v5257
      %v5318 = vpack.c.bf16 %v5228, %v5227
      %v5319 = vpack.c.bf16 %v5260, %v5259
      %v5320 = vpack.c.bf16 %v5230, %v5229
      %v5321 = vpack.c.bf16 %v5262, %v5261
      %v5322 = vpack.c.bf16 %v5232, %v5231
      %v5323 = vpack.c.bf16 %v5264, %v5263
      %v5324 = vpack.c.bf16 %v5234, %v5233
      %v5325 = vpack.c.bf16 %v5266, %v5265
      %v5326 = vpack.c.bf16 %v5236, %v5235
      %v5327 = vpack.c.bf16 %v5268, %v5267
      %v5328 = vpack.c.bf16 %v5238, %v5237
      %v5329 = vpack.c.bf16 %v5270, %v5269
      %v5330 = vpack.c.bf16 %v5240, %v5239
      %v5331 = vpack.c.bf16 %v5272, %v5271
      %v5333 = vlaneseq
      %v5334 = vshrl.u32 %v5333, 7
      %v5335 = vsub.s32 0, %v5334
      %v5336 = vrot.slane %v5299, %v5335
      %v5362 = vunpack.c.l.b16 %v5274
      %v5363 = vunpack.c.l.b16 %v5275
      %v5364 = vunpack.c.l.b16 %v5276
      %v5365 = vunpack.c.l.b16 %v5277
      %v5366 = vunpack.c.l.b16 %v5278
      %v5367 = vunpack.c.l.b16 %v5279
      %v5368 = vunpack.c.l.b16 %v5280
      %v5369 = vunpack.c.l.b16 %v5281
      %v5370 = vunpack.c.l.b16 %v5282
      %v5371 = vunpack.c.l.b16 %v5283
      %v5372 = vunpack.c.l.b16 %v5284
      %v5373 = vunpack.c.l.b16 %v5285
      %v5374 = vunpack.c.l.b16 %v5286
      %v5375 = vunpack.c.l.b16 %v5287
      %v5376 = vunpack.c.l.b16 %v5288
      %v5377 = vunpack.c.l.b16 %v5289
      %v5378 = vunpack.c.l.b16 %v5290
      %v5379 = vunpack.c.l.b16 %v5291
      %v5380 = vunpack.c.l.b16 %v5292
      %v5381 = vunpack.c.l.b16 %v5293
      %v5382 = vunpack.c.l.b16 %v5294
      %v5383 = vunpack.c.l.b16 %v5295
      %v5384 = vunpack.c.l.b16 %v5296
      %v5385 = vunpack.c.l.b16 %v5297
      %v5386 = vpack.c.b16 %v5363, %v5362
      %v5387 = vpack.c.b16 %v5365, %v5364
      %v5388 = vpack.c.b16 %v5367, %v5366
      %v5389 = vpack.c.b16 %v5369, %v5368
      %v5390 = vpack.c.b16 %v5371, %v5370
      %v5391 = vpack.c.b16 %v5373, %v5372
      %v5392 = vpack.c.b16 %v5375, %v5374
      %v5393 = vpack.c.b16 %v5377, %v5376
      %v5394 = vpack.c.b16 %v5379, %v5378
      %v5395 = vpack.c.b16 %v5381, %v5380
      %v5396 = vpack.c.b16 %v5383, %v5382
      %v5397 = vpack.c.b16 %v5385, %v5384
      %v5411 = vsel %vm2255, %v5301, 0
      %v5414 = vsel %vm2255, %v5303, 0
      %v5417 = vsel %vm2255, %v5305, 0
      %v5420 = vsel %vm2255, %v5307, 0
      %v5423 = vsel %vm2255, %v5309, 0
      %v5426 = vsel %vm2255, %v5311, 0
      %v5429 = vsel %vm2255, %v5313, 0
      %v5432 = vsel %vm2255, %v5315, 0
      %v5435 = vsel %vm2255, %v5317, 0
      %v5438 = vsel %vm2255, %v5319, 0
      %v5441 = vsel %vm2255, %v5321, 0
      %v5444 = vsel %vm2255, %v5323, 0
      %v5447 = vsel %vm2255, %v5325, 0
      %v5450 = vsel %vm2255, %v5327, 0
      %v5453 = vsel %vm2255, %v5329, 0
      %v5456 = vsel %vm2255, %v5331, 0
      %5458 = vmatprep.subr.bf16.mxu0 0
      %5459 = vmatpush1.bf16.msra.mxu0 %v5386
      %5460 = vmatprep.subr.bf16.mxu0 0
      %5461 = vmatpush1.bf16.msra.mxu0 %v5387
      %5462 = vmatprep.subr.bf16.mxu0 0
      %5463 = vmatpush1.bf16.msra.mxu0 %v5388
      %5464 = vmatprep.subr.bf16.mxu0 0
      %5465 = vmatpush1.bf16.msra.mxu0 %v5389
      %5466 = vmatprep.subr.bf16.mxu0 0
      %5467 = vmatpush1.bf16.msra.mxu0 %v5390
      %5468 = vmatprep.subr.bf16.mxu0 0
      %5469 = vmatpush1.bf16.msra.mxu0 %v5391
      %5470 = vmatprep.subr.bf16.mxu0 0
      %5471 = vmatpush1.bf16.msra.mxu0 %v5392
      %5472 = vmatprep.subr.bf16.mxu0 0
      %5473 = vmatpush1.bf16.msra.mxu0 %v5393
      %5474 = vmatprep.subr.bf16.mxu0 0
      %5475 = vmatpush1.bf16.msra.mxu0 %v5394
      %5476 = vmatprep.subr.bf16.mxu0 0
      %5477 = vmatpush1.bf16.msra.mxu0 %v5395
      %5478 = vmatprep.subr.bf16.mxu0 0
      %5479 = vmatpush1.bf16.msra.mxu0 %v5396
      %5480 = vmatprep.subr.bf16.mxu0 0
      %5481 = vmatpush1.bf16.msra.mxu0 %v5397
      %5482 = vmatprep.subr.bf16.mxu0 0
      %5483 = vmatpush1.bf16.msra.mxu0 0
      %5484 = vmatprep.subr.bf16.mxu0 0
      %5485 = vmatpush1.bf16.msra.mxu0 0
      %5486 = vmatprep.subr.bf16.mxu0 0
      %5487 = vmatpush1.bf16.msra.mxu0 0
      %5488 = vmatprep.subr.bf16.mxu0 0
      %5489 = vmatpush1.bf16.msra.mxu0 0
      %5490 = vmatprep.mubr.bf16.mxu0 %v5411
      %5491 = vmatmul.mubr.bf16.gmra.mrb[0].mxu0 %v5300
      %v5492 = vpop.f32.mrb[0].mxu0
      %v5493 = vadd.f32 %v5336, %v5492
      %v5494 = vpop.f32.mrb[0].mxu0
      %v5495 = vpop.f32.mrb[0].mxu0
      %v5496 = vadd.f32 %v5336, %v5495
      %v5497 = vpop.f32.mrb[0].mxu0
      %5498 = vmatprep.mubr.bf16.mxu0 %v5414
      %5499 = vmatmul.mubr.bf16.gmra.mrb[0].mxu0 %v5302
      %v5500 = vpop.f32.mrb[0].mxu0
      %v5501 = vadd.f32 %v5336, %v5500
      %v5502 = vpop.f32.mrb[0].mxu0
      %v5503 = vpop.f32.mrb[0].mxu0
      %v5504 = vadd.f32 %v5336, %v5503
      %v5505 = vpop.f32.mrb[0].mxu0
      %5506 = vmatprep.mubr.bf16.mxu0 %v5417
      %5507 = vmatmul.mubr.bf16.gmra.mrb[0].mxu0 %v5304
      %v5508 = vpop.f32.mrb[0].mxu0
      %v5509 = vadd.f32 %v5336, %v5508
      %v5510 = vpop.f32.mrb[0].mxu0
      %v5511 = vpop.f32.mrb[0].mxu0
      %v5512 = vadd.f32 %v5336, %v5511
      %v5513 = vpop.f32.mrb[0].mxu0
      %5514 = vmatprep.mubr.bf16.mxu0 %v5420
      %5515 = vmatmul.mubr.bf16.gmra.mrb[0].mxu0 %v5306
      %v5516 = vpop.f32.mrb[0].mxu0
      %v5517 = vadd.f32 %v5336, %v5516
      %v5518 = vpop.f32.mrb[0].mxu0
      %v5519 = vpop.f32.mrb[0].mxu0
      %v5520 = vadd.f32 %v5336, %v5519
      %v5521 = vpop.f32.mrb[0].mxu0
      %5522 = vmatprep.mubr.bf16.mxu0 %v5423
      %5523 = vmatmul.mubr.bf16.gmra.mrb[0].mxu0 %v5308
      %v5524 = vpop.f32.mrb[0].mxu0
      %v5525 = vadd.f32 %v5336, %v5524
      %v5526 = vpop.f32.mrb[0].mxu0
      %v5527 = vpop.f32.mrb[0].mxu0
      %v5528 = vadd.f32 %v5336, %v5527
      %v5529 = vpop.f32.mrb[0].mxu0
      %5530 = vmatprep.mubr.bf16.mxu0 %v5426
      %5531 = vmatmul.mubr.bf16.gmra.mrb[0].mxu0 %v5310
      %v5532 = vpop.f32.mrb[0].mxu0
      %v5533 = vadd.f32 %v5336, %v5532
      %v5534 = vpop.f32.mrb[0].mxu0
      %v5535 = vpop.f32.mrb[0].mxu0
      %v5536 = vadd.f32 %v5336, %v5535
      %v5537 = vpop.f32.mrb[0].mxu0
      %5538 = vmatprep.mubr.bf16.mxu0 %v5429
      %5539 = vmatmul.mubr.bf16.gmra.mrb[0].mxu0 %v5312
      %v5540 = vpop.f32.mrb[0].mxu0
      %v5541 = vadd.f32 %v5336, %v5540
      %v5542 = vpop.f32.mrb[0].mxu0
      %v5543 = vpop.f32.mrb[0].mxu0
      %v5544 = vadd.f32 %v5336, %v5543
      %v5545 = vpop.f32.mrb[0].mxu0
      %5546 = vmatprep.mubr.bf16.mxu0 %v5432
      %5547 = vmatmul.mubr.bf16.gmra.mrb[0].mxu0 %v5314
      %v5548 = vpop.f32.mrb[0].mxu0
      %v5549 = vadd.f32 %v5336, %v5548
      %v5550 = vpop.f32.mrb[0].mxu0
      %v5551 = vpop.f32.mrb[0].mxu0
      %v5552 = vadd.f32 %v5336, %v5551
      %v5553 = vpop.f32.mrb[0].mxu0
      %5554 = vmatprep.mubr.bf16.mxu0 %v5435
      %5555 = vmatmul.mubr.bf16.gmra.mrb[0].mxu0 %v5316
      %v5556 = vpop.f32.mrb[0].mxu0
      %v5557 = vadd.f32 %v5336, %v5556
      %v5558 = vpop.f32.mrb[0].mxu0
      %v5559 = vpop.f32.mrb[0].mxu0
      %v5560 = vadd.f32 %v5336, %v5559
      %v5561 = vpop.f32.mrb[0].mxu0
      %5562 = vmatprep.mubr.bf16.mxu0 %v5438
      %5563 = vmatmul.mubr.bf16.gmra.mrb[0].mxu0 %v5318
      %v5564 = vpop.f32.mrb[0].mxu0
      %v5565 = vadd.f32 %v5336, %v5564
      %v5566 = vpop.f32.mrb[0].mxu0
      %v5567 = vpop.f32.mrb[0].mxu0
      %v5568 = vadd.f32 %v5336, %v5567
      %v5569 = vpop.f32.mrb[0].mxu0
      %5570 = vmatprep.mubr.bf16.mxu0 %v5441
      %5571 = vmatmul.mubr.bf16.gmra.mrb[0].mxu0 %v5320
      %v5572 = vpop.f32.mrb[0].mxu0
      %v5573 = vadd.f32 %v5336, %v5572
      %v5574 = vpop.f32.mrb[0].mxu0
      %v5575 = vpop.f32.mrb[0].mxu0
      %v5576 = vadd.f32 %v5336, %v5575
      %v5577 = vpop.f32.mrb[0].mxu0
      %5578 = vmatprep.mubr.bf16.mxu0 %v5444
      %5579 = vmatmul.mubr.bf16.gmra.mrb[0].mxu0 %v5322
      %v5580 = vpop.f32.mrb[0].mxu0
      %v5581 = vadd.f32 %v5336, %v5580
      %v5582 = vpop.f32.mrb[0].mxu0
      %v5583 = vpop.f32.mrb[0].mxu0
      %v5584 = vadd.f32 %v5336, %v5583
      %v5585 = vpop.f32.mrb[0].mxu0
      %5586 = vmatprep.mubr.bf16.mxu0 %v5447
      %5587 = vmatmul.mubr.bf16.gmra.mrb[0].mxu0 %v5324
      %v5588 = vpop.f32.mrb[0].mxu0
      %v5589 = vadd.f32 %v5336, %v5588
      %v5590 = vpop.f32.mrb[0].mxu0
      %v5591 = vpop.f32.mrb[0].mxu0
      %v5592 = vadd.f32 %v5336, %v5591
      %v5593 = vpop.f32.mrb[0].mxu0
      %5594 = vmatprep.mubr.bf16.mxu0 %v5450
      %5595 = vmatmul.mubr.bf16.gmra.mrb[0].mxu0 %v5326
      %v5596 = vpop.f32.mrb[0].mxu0
      %v5597 = vadd.f32 %v5336, %v5596
      %v5598 = vpop.f32.mrb[0].mxu0
      %v5599 = vpop.f32.mrb[0].mxu0
      %v5600 = vadd.f32 %v5336, %v5599
      %v5601 = vpop.f32.mrb[0].mxu0
      %5602 = vmatprep.mubr.bf16.mxu0 %v5453
      %5603 = vmatmul.mubr.bf16.gmra.mrb[0].mxu0 %v5328
      %v5604 = vpop.f32.mrb[0].mxu0
      %v5605 = vadd.f32 %v5336, %v5604
      %v5606 = vpop.f32.mrb[0].mxu0
      %v5607 = vpop.f32.mrb[0].mxu0
      %v5608 = vadd.f32 %v5336, %v5607
      %v5609 = vpop.f32.mrb[0].mxu0
      %5610 = vmatprep.mubr.bf16.mxu0 %v5456
      %5611 = vmatmul.mubr.bf16.gmra.mrb[0].mxu0 %v5330
      %v5612 = vpop.f32.mrb[0].mxu0
      %v5613 = vadd.f32 %v5336, %v5612
      %v5614 = vpop.f32.mrb[0].mxu0
      %v5615 = vpop.f32.mrb[0].mxu0
      %v5616 = vadd.f32 %v5336, %v5615
      %v5617 = vpop.f32.mrb[0].mxu0
      %5618 = vdwg.mxu0
      %v5619 = vtanh.pop %v5493
      %v5620 = vtanh.pop %v5496
      %v5621 = vtanh.pop %v5501
      %v5622 = vtanh.pop %v5504
      %v5623 = vtanh.pop %v5509
      %v5624 = vtanh.pop %v5512
      %v5625 = vtanh.pop %v5517
      %v5626 = vtanh.pop %v5520
      %v5627 = vtanh.pop %v5525
      %v5628 = vtanh.pop %v5528
      %v5629 = vtanh.pop %v5533
      %v5630 = vtanh.pop %v5536
      %v5631 = vtanh.pop %v5541
      %v5632 = vtanh.pop %v5544
      %v5633 = vtanh.pop %v5549
      %v5634 = vtanh.pop %v5552
      %v5635 = vtanh.pop %v5557
      %v5636 = vtanh.pop %v5560
      %v5637 = vtanh.pop %v5565
      %v5638 = vtanh.pop %v5568
      %v5639 = vtanh.pop %v5573
      %v5640 = vtanh.pop %v5576
      %v5641 = vtanh.pop %v5581
      %v5642 = vtanh.pop %v5584
      %v5643 = vtanh.pop %v5589
      %v5644 = vtanh.pop %v5592
      %v5645 = vtanh.pop %v5597
      %v5646 = vtanh.pop %v5600
      %v5647 = vtanh.pop %v5605
      %v5648 = vtanh.pop %v5608
      %v5649 = vtanh.pop %v5613
      %v5650 = vtanh.pop %v5616
      %v5651 = vxor.u32 %v5493, 2147483648
      %v5652 = vxor.u32 %v5496, 2147483648
      %v5653 = vxor.u32 %v5501, 2147483648
      %v5654 = vxor.u32 %v5504, 2147483648
      %v5655 = vxor.u32 %v5509, 2147483648
      %v5656 = vxor.u32 %v5512, 2147483648
      %v5657 = vxor.u32 %v5517, 2147483648
      %v5658 = vxor.u32 %v5520, 2147483648
      %v5659 = vxor.u32 %v5525, 2147483648
      %v5660 = vxor.u32 %v5528, 2147483648
      %v5661 = vxor.u32 %v5533, 2147483648
      %v5662 = vxor.u32 %v5536, 2147483648
      %v5663 = vxor.u32 %v5541, 2147483648
      %v5664 = vxor.u32 %v5544, 2147483648
      %v5665 = vxor.u32 %v5549, 2147483648
      %v5666 = vxor.u32 %v5552, 2147483648
      %v5667 = vxor.u32 %v5557, 2147483648
      %v5668 = vxor.u32 %v5560, 2147483648
      %v5669 = vxor.u32 %v5565, 2147483648
      %v5670 = vxor.u32 %v5568, 2147483648
      %v5671 = vxor.u32 %v5573, 2147483648
      %v5672 = vxor.u32 %v5576, 2147483648
      %v5673 = vxor.u32 %v5581, 2147483648
      %v5674 = vxor.u32 %v5584, 2147483648
      %v5675 = vxor.u32 %v5589, 2147483648
      %v5676 = vxor.u32 %v5592, 2147483648
      %v5677 = vxor.u32 %v5597, 2147483648
      %v5678 = vxor.u32 %v5600, 2147483648
      %v5679 = vxor.u32 %v5605, 2147483648
      %v5680 = vxor.u32 %v5608, 2147483648
      %v5681 = vxor.u32 %v5613, 2147483648
      %v5682 = vxor.u32 %v5616, 2147483648
      %v5683 = vmul.f32 %v5651, 1.442695
      %v5684 = vpow.pop %v5683
      %v5685 = vmul.f32 %v5652, 1.442695
      %v5686 = vpow.pop %v5685
      %v5687 = vmul.f32 %v5653, 1.442695
      %v5688 = vpow.pop %v5687
      %v5689 = vmul.f32 %v5654, 1.442695
      %v5690 = vpow.pop %v5689
      %v5691 = vmul.f32 %v5655, 1.442695
      %v5692 = vpow.pop %v5691
      %v5693 = vmul.f32 %v5656, 1.442695
      %v5694 = vpow.pop %v5693
      %v5695 = vmul.f32 %v5657, 1.442695
      %v5696 = vpow.pop %v5695
      %v5697 = vmul.f32 %v5658, 1.442695
      %v5698 = vpow.pop %v5697
      %v5699 = vmul.f32 %v5659, 1.442695
      %v5700 = vpow.pop %v5699
      %v5701 = vmul.f32 %v5660, 1.442695
      %v5702 = vpow.pop %v5701
      %v5703 = vmul.f32 %v5661, 1.442695
      %v5704 = vpow.pop %v5703
      %v5705 = vmul.f32 %v5662, 1.442695
      %v5706 = vpow.pop %v5705
      %v5707 = vmul.f32 %v5663, 1.442695
      %v5708 = vpow.pop %v5707
      %v5709 = vmul.f32 %v5664, 1.442695
      %v5710 = vpow.pop %v5709
      %v5711 = vmul.f32 %v5665, 1.442695
      %v5712 = vpow.pop %v5711
      %v5713 = vmul.f32 %v5666, 1.442695
      %v5714 = vpow.pop %v5713
      %v5715 = vmul.f32 %v5667, 1.442695
      %v5716 = vpow.pop %v5715
      %v5717 = vmul.f32 %v5668, 1.442695
      %v5718 = vpow.pop %v5717
      %v5719 = vmul.f32 %v5669, 1.442695
      %v5720 = vpow.pop %v5719
      %v5721 = vmul.f32 %v5670, 1.442695
      %v5722 = vpow.pop %v5721
      %v5723 = vmul.f32 %v5671, 1.442695
      %v5724 = vpow.pop %v5723
      %v5725 = vmul.f32 %v5672, 1.442695
      %v5726 = vpow.pop %v5725
      %v5727 = vmul.f32 %v5673, 1.442695
      %v5728 = vpow.pop %v5727
      %v5729 = vmul.f32 %v5674, 1.442695
      %v5730 = vpow.pop %v5729
      %v5731 = vmul.f32 %v5675, 1.442695
      %v5732 = vpow.pop %v5731
      %v5733 = vmul.f32 %v5676, 1.442695
      %v5734 = vpow.pop %v5733
      %v5735 = vmul.f32 %v5677, 1.442695
      %v5736 = vpow.pop %v5735
      %v5737 = vmul.f32 %v5678, 1.442695
      %v5738 = vpow.pop %v5737
      %v5739 = vmul.f32 %v5679, 1.442695
      %v5740 = vpow.pop %v5739
      %v5741 = vmul.f32 %v5680, 1.442695
      %v5742 = vpow.pop %v5741
      %v5743 = vmul.f32 %v5681, 1.442695
      %v5744 = vpow.pop %v5743
      %v5745 = vmul.f32 %v5682, 1.442695
      %v5746 = vpow.pop %v5745
      %v5747 = vadd.f32 %v5684, 1.0
      %v5748 = vadd.f32 %v5686, 1.0
      %v5749 = vadd.f32 %v5688, 1.0
      %v5750 = vadd.f32 %v5690, 1.0
      %v5751 = vadd.f32 %v5692, 1.0
      %v5752 = vadd.f32 %v5694, 1.0
      %v5753 = vadd.f32 %v5696, 1.0
      %v5754 = vadd.f32 %v5698, 1.0
      %v5755 = vadd.f32 %v5700, 1.0
      %v5756 = vadd.f32 %v5702, 1.0
      %v5757 = vadd.f32 %v5704, 1.0
      %v5758 = vadd.f32 %v5706, 1.0
      %v5759 = vadd.f32 %v5708, 1.0
      %v5760 = vadd.f32 %v5710, 1.0
      %v5761 = vadd.f32 %v5712, 1.0
      %v5762 = vadd.f32 %v5714, 1.0
      %v5763 = vadd.f32 %v5716, 1.0
      %v5764 = vadd.f32 %v5718, 1.0
      %v5765 = vadd.f32 %v5720, 1.0
      %v5766 = vadd.f32 %v5722, 1.0
      %v5767 = vadd.f32 %v5724, 1.0
      %v5768 = vadd.f32 %v5726, 1.0
      %v5769 = vadd.f32 %v5728, 1.0
      %v5770 = vadd.f32 %v5730, 1.0
      %v5771 = vadd.f32 %v5732, 1.0
      %v5772 = vadd.f32 %v5734, 1.0
      %v5773 = vadd.f32 %v5736, 1.0
      %v5774 = vadd.f32 %v5738, 1.0
      %v5775 = vadd.f32 %v5740, 1.0
      %v5776 = vadd.f32 %v5742, 1.0
      %v5777 = vadd.f32 %v5744, 1.0
      %v5778 = vadd.f32 %v5746, 1.0
      %v5779 = vrcp.pop %v5747
      %v5780 = vmul.f32 1.0, %v5779
      %v5781 = vrcp.pop %v5748
      %v5782 = vmul.f32 1.0, %v5781
      %v5783 = vrcp.pop %v5749
      %v5784 = vmul.f32 1.0, %v5783
      %v5785 = vrcp.pop %v5750
      %v5786 = vmul.f32 1.0, %v5785
      %v5787 = vrcp.pop %v5751
      %v5788 = vmul.f32 1.0, %v5787
      %v5789 = vrcp.pop %v5752
      %v5790 = vmul.f32 1.0, %v5789
      %v5791 = vrcp.pop %v5753
      %v5792 = vmul.f32 1.0, %v5791
      %v5793 = vrcp.pop %v5754
      %v5794 = vmul.f32 1.0, %v5793
      %v5795 = vrcp.pop %v5755
      %v5796 = vmul.f32 1.0, %v5795
      %v5797 = vrcp.pop %v5756
      %v5798 = vmul.f32 1.0, %v5797
      %v5799 = vrcp.pop %v5757
      %v5800 = vmul.f32 1.0, %v5799
      %v5801 = vrcp.pop %v5758
      %v5802 = vmul.f32 1.0, %v5801
      %v5803 = vrcp.pop %v5759
      %v5804 = vmul.f32 1.0, %v5803
      %v5805 = vrcp.pop %v5760
      %v5806 = vmul.f32 1.0, %v5805
      %v5807 = vrcp.pop %v5761
      %v5808 = vmul.f32 1.0, %v5807
      %v5809 = vrcp.pop %v5762
      %v5810 = vmul.f32 1.0, %v5809
      %v5811 = vrcp.pop %v5763
      %v5812 = vmul.f32 1.0, %v5811
      %v5813 = vrcp.pop %v5764
      %v5814 = vmul.f32 1.0, %v5813
      %v5815 = vrcp.pop %v5765
      %v5816 = vmul.f32 1.0, %v5815
      %v5817 = vrcp.pop %v5766
      %v5818 = vmul.f32 1.0, %v5817
      %v5819 = vrcp.pop %v5767
      %v5820 = vmul.f32 1.0, %v5819
      %v5821 = vrcp.pop %v5768
      %v5822 = vmul.f32 1.0, %v5821
      %v5823 = vrcp.pop %v5769
      %v5824 = vmul.f32 1.0, %v5823
      %v5825 = vrcp.pop %v5770
      %v5826 = vmul.f32 1.0, %v5825
      %v5827 = vrcp.pop %v5771
      %v5828 = vmul.f32 1.0, %v5827
      %v5829 = vrcp.pop %v5772
      %v5830 = vmul.f32 1.0, %v5829
      %v5831 = vrcp.pop %v5773
      %v5832 = vmul.f32 1.0, %v5831
      %v5833 = vrcp.pop %v5774
      %v5834 = vmul.f32 1.0, %v5833
      %v5835 = vrcp.pop %v5775
      %v5836 = vmul.f32 1.0, %v5835
      %v5837 = vrcp.pop %v5776
      %v5838 = vmul.f32 1.0, %v5837
      %v5839 = vrcp.pop %v5777
      %v5840 = vmul.f32 1.0, %v5839
      %v5841 = vrcp.pop %v5778
      %v5842 = vmul.f32 1.0, %v5841
      %5875 = vrot.lane.b32.xlu0 %v5780, 96
      %v5876 = vpop.permute.xlu0 %5875
      %5877 = vrot.lane.b32.xlu0 %v5782, 96
      %v5878 = vpop.permute.xlu0 %5877
      %5879 = vrot.lane.b32.xlu0 %v5784, 96
      %v5880 = vpop.permute.xlu0 %5879
      %5881 = vrot.lane.b32.xlu0 %v5786, 96
      %v5882 = vpop.permute.xlu0 %5881
      %5883 = vrot.lane.b32.xlu0 %v5788, 96
      %v5884 = vpop.permute.xlu0 %5883
      %5885 = vrot.lane.b32.xlu0 %v5790, 96
      %v5886 = vpop.permute.xlu0 %5885
      %5887 = vrot.lane.b32.xlu0 %v5792, 96
      %v5888 = vpop.permute.xlu0 %5887
      %5889 = vrot.lane.b32.xlu0 %v5794, 96
      %v5890 = vpop.permute.xlu0 %5889
      %5891 = vrot.lane.b32.xlu0 %v5796, 96
      %v5892 = vpop.permute.xlu0 %5891
      %5893 = vrot.lane.b32.xlu0 %v5798, 96
      %v5894 = vpop.permute.xlu0 %5893
      %5895 = vrot.lane.b32.xlu0 %v5800, 96
      %v5896 = vpop.permute.xlu0 %5895
      %5897 = vrot.lane.b32.xlu0 %v5802, 96
      %v5898 = vpop.permute.xlu0 %5897
      %5899 = vrot.lane.b32.xlu0 %v5804, 96
      %v5900 = vpop.permute.xlu0 %5899
      %5901 = vrot.lane.b32.xlu0 %v5806, 96
      %v5902 = vpop.permute.xlu0 %5901
      %5903 = vrot.lane.b32.xlu0 %v5808, 96
      %v5904 = vpop.permute.xlu0 %5903
      %5905 = vrot.lane.b32.xlu0 %v5810, 96
      %v5906 = vpop.permute.xlu0 %5905
      %5907 = vrot.lane.b32.xlu0 %v5812, 96
      %v5908 = vpop.permute.xlu0 %5907
      %5909 = vrot.lane.b32.xlu0 %v5814, 96
      %v5910 = vpop.permute.xlu0 %5909
      %5911 = vrot.lane.b32.xlu0 %v5816, 96
      %v5912 = vpop.permute.xlu0 %5911
      %5913 = vrot.lane.b32.xlu0 %v5818, 96
      %v5914 = vpop.permute.xlu0 %5913
      %5915 = vrot.lane.b32.xlu0 %v5820, 96
      %v5916 = vpop.permute.xlu0 %5915
      %5917 = vrot.lane.b32.xlu0 %v5822, 96
      %v5918 = vpop.permute.xlu0 %5917
      %5919 = vrot.lane.b32.xlu0 %v5824, 96
      %v5920 = vpop.permute.xlu0 %5919
      %5921 = vrot.lane.b32.xlu0 %v5826, 96
      %v5922 = vpop.permute.xlu0 %5921
      %5923 = vrot.lane.b32.xlu0 %v5828, 96
      %v5924 = vpop.permute.xlu0 %5923
      %5925 = vrot.lane.b32.xlu0 %v5830, 96
      %v5926 = vpop.permute.xlu0 %5925
      %5927 = vrot.lane.b32.xlu0 %v5832, 96
      %v5928 = vpop.permute.xlu0 %5927
      %5929 = vrot.lane.b32.xlu0 %v5834, 96
      %v5930 = vpop.permute.xlu0 %5929
      %5931 = vrot.lane.b32.xlu0 %v5836, 96
      %v5932 = vpop.permute.xlu0 %5931
      %5933 = vrot.lane.b32.xlu0 %v5838, 96
      %v5934 = vpop.permute.xlu0 %5933
      %5935 = vrot.lane.b32.xlu0 %v5840, 96
      %v5936 = vpop.permute.xlu0 %5935
      %5937 = vrot.lane.b32.xlu0 %v5842, 96
      %v5938 = vpop.permute.xlu0 %5937
      %v5971 = vmul.f32 %v5619, %v5876
      %v5972 = vmul.f32 %v5620, %v5878
      %v5973 = vmul.f32 %v5621, %v5880
      %v5974 = vmul.f32 %v5622, %v5882
      %v5975 = vmul.f32 %v5623, %v5884
      %v5976 = vmul.f32 %v5624, %v5886
      %v5977 = vmul.f32 %v5625, %v5888
      %v5978 = vmul.f32 %v5626, %v5890
      %v5979 = vmul.f32 %v5627, %v5892
      %v5980 = vmul.f32 %v5628, %v5894
      %v5981 = vmul.f32 %v5629, %v5896
      %v5982 = vmul.f32 %v5630, %v5898
      %v5983 = vmul.f32 %v5631, %v5900
      %v5984 = vmul.f32 %v5632, %v5902
      %v5985 = vmul.f32 %v5633, %v5904
      %v5986 = vmul.f32 %v5634, %v5906
      %v5987 = vmul.f32 %v5635, %v5908
      %v5988 = vmul.f32 %v5636, %v5910
      %v5989 = vmul.f32 %v5637, %v5912
      %v5990 = vmul.f32 %v5638, %v5914
      %v5991 = vmul.f32 %v5639, %v5916
      %v5992 = vmul.f32 %v5640, %v5918
      %v5993 = vmul.f32 %v5641, %v5920
      %v5994 = vmul.f32 %v5642, %v5922
      %v5995 = vmul.f32 %v5643, %v5924
      %v5996 = vmul.f32 %v5644, %v5926
      %v5997 = vmul.f32 %v5645, %v5928
      %v5998 = vmul.f32 %v5646, %v5930
      %v5999 = vmul.f32 %v5647, %v5932
      %v6000 = vmul.f32 %v5648, %v5934
      %v6001 = vmul.f32 %v5649, %v5936
      %v6002 = vmul.f32 %v5650, %v5938
      %6003 = vst.msk [vmem:[%s457 + $0x2] sm:$0xff] %vm442, %v4377
      %6004 = vst.msk [vmem:[%s457 + $0xa] sm:$0xff] %vm442, %v4378
      %6005 = vst.msk [vmem:[%s457 + $0x1a] sm:$0xff] %vm442, %v4379
      %6006 = vst.msk [vmem:[%s457 + $0x22] sm:$0xff] %vm442, %v4380
      %6007 = vst.msk [vmem:[%s457 + $0x32] sm:$0xff] %vm442, %v4381
      %6008 = vst.msk [vmem:[%s457 + $0x3a] sm:$0xff] %vm442, %v4382
      %6009 = vst.msk [vmem:[%s457 + $0x4a] sm:$0xff] %vm442, %v4383
      %6010 = vst.msk [vmem:[%s457 + $0x52] sm:$0xff] %vm442, %v4384
      %6011 = vst.msk [vmem:[%s457 + $0x62] sm:$0xff] %vm442, %v4385
      %6012 = vst.msk [vmem:[%s457 + $0x6a] sm:$0xff] %vm442, %v4386
      %6013 = vst.msk [vmem:[%s457 + $0x7a] sm:$0xff] %vm442, %v4387
      %6014 = vst.msk [vmem:[%s457 + $0x82] sm:$0xff] %vm442, %v4388
      %6015 = vst.msk [vmem:[%s457 + $0x92] sm:$0xff] %vm442, %v4389
      %6016 = vst.msk [vmem:[%s457 + $0x9a] sm:$0xff] %vm442, %v4390
      %6017 = vst.msk [vmem:[%s457 + $0xaa] sm:$0xff] %vm442, %v4391
      %6018 = vst.msk [vmem:[%s457 + $0xb2] sm:$0xff] %vm442, %v4392
      %6019 = vst.msk [vmem:[%s457 + $0xc2] sm:$0xff] %vm442, %v4393
      %6020 = vst.msk [vmem:[%s457 + $0xca] sm:$0xff] %vm442, %v4394
      %6021 = vst.msk [vmem:[%s457 + $0xda] sm:$0xff] %vm442, %v4395
      %6022 = vst.msk [vmem:[%s457 + $0xe2] sm:$0xff] %vm442, %v4396
      %6023 = vst.msk [vmem:[%s457 + $0xf2] sm:$0xff] %vm442, %v4397
      %6024 = vst.msk [vmem:[%s457 + $0xfa] sm:$0xff] %vm442, %v4398
      %6025 = vst.msk [vmem:[%s457 + $0x10a] sm:$0xff] %vm442, %v4399
      %6026 = vst.msk [vmem:[%s457 + $0x112] sm:$0xff] %vm442, %v4400
      %6027 = vst.msk [vmem:[%s457 + $0x122] sm:$0xff] %vm442, %v4401
      %6028 = vst.msk [vmem:[%s457 + $0x12a] sm:$0xff] %vm442, %v4402
      %6029 = vst.msk [vmem:[%s457 + $0x13a] sm:$0xff] %vm442, %v4403
      %6030 = vst.msk [vmem:[%s457 + $0x142] sm:$0xff] %vm442, %v4404
      %6031 = vst.msk [vmem:[%s457 + $0x152] sm:$0xff] %vm442, %v4405
      %6032 = vst.msk [vmem:[%s457 + $0x15a] sm:$0xff] %vm442, %v4406
      %6033 = vst.msk [vmem:[%s457 + $0x16a] sm:$0xff] %vm442, %v4407
      %6034 = vst.msk [vmem:[%s457 + $0x172] sm:$0xff] %vm442, %v4408
      %v6035 = vld [vmem:[%s457] sm:$0xff]
      %v6036 = vld [vmem:[%s457 + $0x8] sm:$0xff]
      %v6037 = vld [vmem:[%s457 + $0x18] sm:$0xff]
      %v6038 = vld [vmem:[%s457 + $0x20] sm:$0xff]
      %v6039 = vld [vmem:[%s457 + $0x30] sm:$0xff]
      %v6040 = vld [vmem:[%s457 + $0x38] sm:$0xff]
      %v6041 = vld [vmem:[%s457 + $0x48] sm:$0xff]
      %v6042 = vld [vmem:[%s457 + $0x50] sm:$0xff]
      %v6043 = vld [vmem:[%s457 + $0x60] sm:$0xff]
      %v6044 = vld [vmem:[%s457 + $0x68] sm:$0xff]
      %v6045 = vld [vmem:[%s457 + $0x78] sm:$0xff]
      %v6046 = vld [vmem:[%s457 + $0x80] sm:$0xff]
      %v6047 = vld [vmem:[%s457 + $0x90] sm:$0xff]
      %v6048 = vld [vmem:[%s457 + $0x98] sm:$0xff]
      %v6049 = vld [vmem:[%s457 + $0xa8] sm:$0xff]
      %v6050 = vld [vmem:[%s457 + $0xb0] sm:$0xff]
      %v6051 = vld [vmem:[%s457 + $0xc0] sm:$0xff]
      %v6052 = vld [vmem:[%s457 + $0xc8] sm:$0xff]
      %v6053 = vld [vmem:[%s457 + $0xd8] sm:$0xff]
      %v6054 = vld [vmem:[%s457 + $0xe0] sm:$0xff]
      %v6055 = vld [vmem:[%s457 + $0xf0] sm:$0xff]
      %v6056 = vld [vmem:[%s457 + $0xf8] sm:$0xff]
      %v6057 = vld [vmem:[%s457 + $0x108] sm:$0xff]
      %v6058 = vld [vmem:[%s457 + $0x110] sm:$0xff]
      %v6059 = vld [vmem:[%s457 + $0x120] sm:$0xff]
      %v6060 = vld [vmem:[%s457 + $0x128] sm:$0xff]
      %v6061 = vld [vmem:[%s457 + $0x138] sm:$0xff]
      %v6062 = vld [vmem:[%s457 + $0x140] sm:$0xff]
      %v6063 = vld [vmem:[%s457 + $0x150] sm:$0xff]
      %v6064 = vld [vmem:[%s457 + $0x158] sm:$0xff]
      %v6065 = vld [vmem:[%s457 + $0x168] sm:$0xff]
      %v6066 = vld [vmem:[%s457 + $0x170] sm:$0xff]
      %v6067 = vld [vmem:[%s457 + $0x2] sm:$0xff]
      %v6068 = vld [vmem:[%s457 + $0xa] sm:$0xff]
      %v6069 = vld [vmem:[%s457 + $0x1a] sm:$0xff]
      %v6070 = vld [vmem:[%s457 + $0x22] sm:$0xff]
      %v6071 = vld [vmem:[%s457 + $0x32] sm:$0xff]
      %v6072 = vld [vmem:[%s457 + $0x3a] sm:$0xff]
      %v6073 = vld [vmem:[%s457 + $0x4a] sm:$0xff]
      %v6074 = vld [vmem:[%s457 + $0x52] sm:$0xff]
      %v6075 = vld [vmem:[%s457 + $0x62] sm:$0xff]
      %v6076 = vld [vmem:[%s457 + $0x6a] sm:$0xff]
      %v6077 = vld [vmem:[%s457 + $0x7a] sm:$0xff]
      %v6078 = vld [vmem:[%s457 + $0x82] sm:$0xff]
      %v6079 = vld [vmem:[%s457 + $0x92] sm:$0xff]
      %v6080 = vld [vmem:[%s457 + $0x9a] sm:$0xff]
      %v6081 = vld [vmem:[%s457 + $0xaa] sm:$0xff]
      %v6082 = vld [vmem:[%s457 + $0xb2] sm:$0xff]
      %v6083 = vld [vmem:[%s457 + $0xc2] sm:$0xff]
      %v6084 = vld [vmem:[%s457 + $0xca] sm:$0xff]
      %v6085 = vld [vmem:[%s457 + $0xda] sm:$0xff]
      %v6086 = vld [vmem:[%s457 + $0xe2] sm:$0xff]
      %v6087 = vld [vmem:[%s457 + $0xf2] sm:$0xff]
      %v6088 = vld [vmem:[%s457 + $0xfa] sm:$0xff]
      %v6089 = vld [vmem:[%s457 + $0x10a] sm:$0xff]
      %v6090 = vld [vmem:[%s457 + $0x112] sm:$0xff]
      %v6091 = vld [vmem:[%s457 + $0x122] sm:$0xff]
      %v6092 = vld [vmem:[%s457 + $0x12a] sm:$0xff]
      %v6093 = vld [vmem:[%s457 + $0x13a] sm:$0xff]
      %v6094 = vld [vmem:[%s457 + $0x142] sm:$0xff]
      %v6095 = vld [vmem:[%s457 + $0x152] sm:$0xff]
      %v6096 = vld [vmem:[%s457 + $0x15a] sm:$0xff]
      %v6097 = vld [vmem:[%s457 + $0x16a] sm:$0xff]
      %v6098 = vld [vmem:[%s457 + $0x172] sm:$0xff]
      %6131 = vrot.lane.b32.xlu0 %v6067, 32
      %v6132 = vpop.permute.xlu0 %6131
      %6133 = vrot.lane.b32.xlu0 %v6068, 32
      %v6134 = vpop.permute.xlu0 %6133
      %6135 = vrot.lane.b32.xlu0 %v6069, 32
      %v6136 = vpop.permute.xlu0 %6135
      %6137 = vrot.lane.b32.xlu0 %v6070, 32
      %v6138 = vpop.permute.xlu0 %6137
      %6139 = vrot.lane.b32.xlu0 %v6071, 32
      %v6140 = vpop.permute.xlu0 %6139
      %6141 = vrot.lane.b32.xlu0 %v6072, 32
      %v6142 = vpop.permute.xlu0 %6141
      %6143 = vrot.lane.b32.xlu0 %v6073, 32
      %v6144 = vpop.permute.xlu0 %6143
      %6145 = vrot.lane.b32.xlu0 %v6074, 32
      %v6146 = vpop.permute.xlu0 %6145
      %6147 = vrot.lane.b32.xlu0 %v6075, 32
      %v6148 = vpop.permute.xlu0 %6147
      %6149 = vrot.lane.b32.xlu0 %v6076, 32
      %v6150 = vpop.permute.xlu0 %6149
      %6151 = vrot.lane.b32.xlu0 %v6077, 32
      %v6152 = vpop.permute.xlu0 %6151
      %6153 = vrot.lane.b32.xlu0 %v6078, 32
      %v6154 = vpop.permute.xlu0 %6153
      %6155 = vrot.lane.b32.xlu0 %v6079, 32
      %v6156 = vpop.permute.xlu0 %6155
      %6157 = vrot.lane.b32.xlu0 %v6080, 32
      %v6158 = vpop.permute.xlu0 %6157
      %6159 = vrot.lane.b32.xlu0 %v6081, 32
      %v6160 = vpop.permute.xlu0 %6159
      %6161 = vrot.lane.b32.xlu0 %v6082, 32
      %v6162 = vpop.permute.xlu0 %6161
      %6163 = vrot.lane.b32.xlu0 %v6083, 32
      %v6164 = vpop.permute.xlu0 %6163
      %6165 = vrot.lane.b32.xlu0 %v6084, 32
      %v6166 = vpop.permute.xlu0 %6165
      %6167 = vrot.lane.b32.xlu0 %v6085, 32
      %v6168 = vpop.permute.xlu0 %6167
      %6169 = vrot.lane.b32.xlu0 %v6086, 32
      %v6170 = vpop.permute.xlu0 %6169
      %6171 = vrot.lane.b32.xlu0 %v6087, 32
      %v6172 = vpop.permute.xlu0 %6171
      %6173 = vrot.lane.b32.xlu0 %v6088, 32
      %v6174 = vpop.permute.xlu0 %6173
      %6175 = vrot.lane.b32.xlu0 %v6089, 32
      %v6176 = vpop.permute.xlu0 %6175
      %6177 = vrot.lane.b32.xlu0 %v6090, 32
      %v6178 = vpop.permute.xlu0 %6177
      %6179 = vrot.lane.b32.xlu0 %v6091, 32
      %v6180 = vpop.permute.xlu0 %6179
      %6181 = vrot.lane.b32.xlu0 %v6092, 32
      %v6182 = vpop.permute.xlu0 %6181
      %6183 = vrot.lane.b32.xlu0 %v6093, 32
      %v6184 = vpop.permute.xlu0 %6183
      %6185 = vrot.lane.b32.xlu0 %v6094, 32
      %v6186 = vpop.permute.xlu0 %6185
      %6187 = vrot.lane.b32.xlu0 %v6095, 32
      %v6188 = vpop.permute.xlu0 %6187
      %6189 = vrot.lane.b32.xlu0 %v6096, 32
      %v6190 = vpop.permute.xlu0 %6189
      %6191 = vrot.lane.b32.xlu0 %v6097, 32
      %v6192 = vpop.permute.xlu0 %6191
      %6193 = vrot.lane.b32.xlu0 %v6098, 32
      %v6194 = vpop.permute.xlu0 %6193
      %6259 = vrot.lane.b32.xlu0 %v5493, 64
      %v6260 = vpop.permute.xlu0 %6259
      %6261 = vrot.lane.b32.xlu0 %v5496, 64
      %v6262 = vpop.permute.xlu0 %6261
      %6263 = vrot.lane.b32.xlu0 %v5501, 64
      %v6264 = vpop.permute.xlu0 %6263
      %6265 = vrot.lane.b32.xlu0 %v5504, 64
      %v6266 = vpop.permute.xlu0 %6265
      %6267 = vrot.lane.b32.xlu0 %v5509, 64
      %v6268 = vpop.permute.xlu0 %6267
      %6269 = vrot.lane.b32.xlu0 %v5512, 64
      %v6270 = vpop.permute.xlu0 %6269
      %6271 = vrot.lane.b32.xlu0 %v5517, 64
      %v6272 = vpop.permute.xlu0 %6271
      %6273 = vrot.lane.b32.xlu0 %v5520, 64
      %v6274 = vpop.permute.xlu0 %6273
      %6275 = vrot.lane.b32.xlu0 %v5525, 64
      %v6276 = vpop.permute.xlu0 %6275
      %6277 = vrot.lane.b32.xlu0 %v5528, 64
      %v6278 = vpop.permute.xlu0 %6277
      %6279 = vrot.lane.b32.xlu0 %v5533, 64
      %v6280 = vpop.permute.xlu0 %6279
      %6281 = vrot.lane.b32.xlu0 %v5536, 64
      %v6282 = vpop.permute.xlu0 %6281
      %6283 = vrot.lane.b32.xlu0 %v5541, 64
      %v6284 = vpop.permute.xlu0 %6283
      %6285 = vrot.lane.b32.xlu0 %v5544, 64
      %v6286 = vpop.permute.xlu0 %6285
      %6287 = vrot.lane.b32.xlu0 %v5549, 64
      %v6288 = vpop.permute.xlu0 %6287
      %6289 = vrot.lane.b32.xlu0 %v5552, 64
      %v6290 = vpop.permute.xlu0 %6289
      %6291 = vrot.lane.b32.xlu0 %v5557, 64
      %v6292 = vpop.permute.xlu0 %6291
      %6293 = vrot.lane.b32.xlu0 %v5560, 64
      %v6294 = vpop.permute.xlu0 %6293
      %6295 = vrot.lane.b32.xlu0 %v5565, 64
      %v6296 = vpop.permute.xlu0 %6295
      %6297 = vrot.lane.b32.xlu0 %v5568, 64
      %v6298 = vpop.permute.xlu0 %6297
      %6299 = vrot.lane.b32.xlu0 %v5573, 64
      %v6300 = vpop.permute.xlu0 %6299
      %6301 = vrot.lane.b32.xlu0 %v5576, 64
      %v6302 = vpop.permute.xlu0 %6301
      %6303 = vrot.lane.b32.xlu0 %v5581, 64
      %v6304 = vpop.permute.xlu0 %6303
      %6305 = vrot.lane.b32.xlu0 %v5584, 64
      %v6306 = vpop.permute.xlu0 %6305
      %6307 = vrot.lane.b32.xlu0 %v5589, 64
      %v6308 = vpop.permute.xlu0 %6307
      %6309 = vrot.lane.b32.xlu0 %v5592, 64
      %v6310 = vpop.permute.xlu0 %6309
      %6311 = vrot.lane.b32.xlu0 %v5597, 64
      %v6312 = vpop.permute.xlu0 %6311
      %6313 = vrot.lane.b32.xlu0 %v5600, 64
      %v6314 = vpop.permute.xlu0 %6313
      %6315 = vrot.lane.b32.xlu0 %v5605, 64
      %v6316 = vpop.permute.xlu0 %6315
      %6317 = vrot.lane.b32.xlu0 %v5608, 64
      %v6318 = vpop.permute.xlu0 %6317
      %6319 = vrot.lane.b32.xlu0 %v5613, 64
      %v6320 = vpop.permute.xlu0 %6319
      %6321 = vrot.lane.b32.xlu0 %v5616, 64
      %v6322 = vpop.permute.xlu0 %6321
      %v6355 = vsel %vm442, %v6035, %v6132
      %v6356 = vsel %vm442, %v6036, %v6134
      %v6357 = vsel %vm442, %v6037, %v6136
      %v6358 = vsel %vm442, %v6038, %v6138
      %v6359 = vsel %vm442, %v6039, %v6140
      %v6360 = vsel %vm442, %v6040, %v6142
      %v6361 = vsel %vm442, %v6041, %v6144
      %v6362 = vsel %vm442, %v6042, %v6146
      %v6363 = vsel %vm442, %v6043, %v6148
      %v6364 = vsel %vm442, %v6044, %v6150
      %v6365 = vsel %vm442, %v6045, %v6152
      %v6366 = vsel %vm442, %v6046, %v6154
      %v6367 = vsel %vm442, %v6047, %v6156
      %v6368 = vsel %vm442, %v6048, %v6158
      %v6369 = vsel %vm442, %v6049, %v6160
      %v6370 = vsel %vm442, %v6050, %v6162
      %v6371 = vsel %vm442, %v6051, %v6164
      %v6372 = vsel %vm442, %v6052, %v6166
      %v6373 = vsel %vm442, %v6053, %v6168
      %v6374 = vsel %vm442, %v6054, %v6170
      %v6375 = vsel %vm442, %v6055, %v6172
      %v6376 = vsel %vm442, %v6056, %v6174
      %v6377 = vsel %vm442, %v6057, %v6176
      %v6378 = vsel %vm442, %v6058, %v6178
      %v6379 = vsel %vm442, %v6059, %v6180
      %v6380 = vsel %vm442, %v6060, %v6182
      %v6381 = vsel %vm442, %v6061, %v6184
      %v6382 = vsel %vm442, %v6062, %v6186
      %v6383 = vsel %vm442, %v6063, %v6188
      %v6384 = vsel %vm442, %v6064, %v6190
      %v6385 = vsel %vm442, %v6065, %v6192
      %v6386 = vsel %vm442, %v6066, %v6194
      %v6387 = vsel %vm2255, %v6355, %v6260
      %v6388 = vsel %vm2255, %v6356, %v6262
      %v6389 = vsel %vm2255, %v6357, %v6264
      %v6390 = vsel %vm2255, %v6358, %v6266
      %v6391 = vsel %vm2255, %v6359, %v6268
      %v6392 = vsel %vm2255, %v6360, %v6270
      %v6393 = vsel %vm2255, %v6361, %v6272
      %v6394 = vsel %vm2255, %v6362, %v6274
      %v6395 = vsel %vm2255, %v6363, %v6276
      %v6396 = vsel %vm2255, %v6364, %v6278
      %v6397 = vsel %vm2255, %v6365, %v6280
      %v6398 = vsel %vm2255, %v6366, %v6282
      %v6399 = vsel %vm2255, %v6367, %v6284
      %v6400 = vsel %vm2255, %v6368, %v6286
      %v6401 = vsel %vm2255, %v6369, %v6288
      %v6402 = vsel %vm2255, %v6370, %v6290
      %v6403 = vsel %vm2255, %v6371, %v6292
      %v6404 = vsel %vm2255, %v6372, %v6294
      %v6405 = vsel %vm2255, %v6373, %v6296
      %v6406 = vsel %vm2255, %v6374, %v6298
      %v6407 = vsel %vm2255, %v6375, %v6300
      %v6408 = vsel %vm2255, %v6376, %v6302
      %v6409 = vsel %vm2255, %v6377, %v6304
      %v6410 = vsel %vm2255, %v6378, %v6306
      %v6411 = vsel %vm2255, %v6379, %v6308
      %v6412 = vsel %vm2255, %v6380, %v6310
      %v6413 = vsel %vm2255, %v6381, %v6312
      %v6414 = vsel %vm2255, %v6382, %v6314
      %v6415 = vsel %vm2255, %v6383, %v6316
      %v6416 = vsel %vm2255, %v6384, %v6318
      %v6417 = vsel %vm2255, %v6385, %v6320
      %v6418 = vsel %vm2255, %v6386, %v6322
      %s6419 = scalar_lea.vmem %s7, 64
      %v6420 = vld [vmem:[%s6419] sm:$0xf]
      %v6421 = vld [vmem:[%s6419 + $0x4] sm:$0xf]
      %v6422 = vld [vmem:[%s6419 + $0x8] sm:$0xf]
      %v6423 = vld [vmem:[%s6419 + $0xc] sm:$0xf]
      %v6424 = vld [vmem:[%s6419 + $0x10] sm:$0xf]
      %v6425 = vld [vmem:[%s6419 + $0x14] sm:$0xf]
      %v6426 = vld [vmem:[%s6419 + $0x18] sm:$0xf]
      %v6427 = vld [vmem:[%s6419 + $0x1c] sm:$0xf]
      %v6428 = vld [vmem:[%s6419 + $0x20] sm:$0xf]
      %v6429 = vld [vmem:[%s6419 + $0x24] sm:$0xf]
      %v6430 = vld [vmem:[%s6419 + $0x28] sm:$0xf]
      %v6431 = vld [vmem:[%s6419 + $0x2c] sm:$0xf]
      %v6432 = vld [vmem:[%s6419 + $0x30] sm:$0xf]
      %v6433 = vld [vmem:[%s6419 + $0x34] sm:$0xf]
      %v6434 = vld [vmem:[%s6419 + $0x38] sm:$0xf]
      %v6435 = vld [vmem:[%s6419 + $0x3c] sm:$0xf]
      %s6436 = scalar_lea.vmem %s8, 1
      %v6437 = vld [vmem:[%s6436] sm:$0x1]
      %v6438 = vpack.c.bf16 %v6388, %v6387
      %v6439 = vpack.c.bf16 %v6390, %v6389
      %v6440 = vpack.c.bf16 %v6392, %v6391
      %v6441 = vpack.c.bf16 %v6394, %v6393
      %v6442 = vpack.c.bf16 %v6396, %v6395
      %v6443 = vpack.c.bf16 %v6398, %v6397
      %v6444 = vpack.c.bf16 %v6400, %v6399
      %v6445 = vpack.c.bf16 %v6402, %v6401
      %v6446 = vpack.c.bf16 %v6404, %v6403
      %v6447 = vpack.c.bf16 %v6406, %v6405
      %v6448 = vpack.c.bf16 %v6408, %v6407
      %v6449 = vpack.c.bf16 %v6410, %v6409
      %v6450 = vpack.c.bf16 %v6412, %v6411
      %v6451 = vpack.c.bf16 %v6414, %v6413
      %v6452 = vpack.c.bf16 %v6416, %v6415
      %v6453 = vpack.c.bf16 %v6418, %v6417
      %v6455 = vlaneseq
      %v6456 = vshrl.u32 %v6455, 7
      %v6457 = vsub.s32 0, %v6456
      %v6458 = vrot.slane %v6437, %v6457
      %v6476 = vunpack.c.l.b16 %v6420
      %v6477 = vunpack.c.l.b16 %v6421
      %v6478 = vunpack.c.l.b16 %v6422
      %v6479 = vunpack.c.l.b16 %v6423
      %v6480 = vunpack.c.l.b16 %v6424
      %v6481 = vunpack.c.l.b16 %v6425
      %v6482 = vunpack.c.l.b16 %v6426
      %v6483 = vunpack.c.l.b16 %v6427
      %v6484 = vunpack.c.l.b16 %v6428
      %v6485 = vunpack.c.l.b16 %v6429
      %v6486 = vunpack.c.l.b16 %v6430
      %v6487 = vunpack.c.l.b16 %v6431
      %v6488 = vunpack.c.l.b16 %v6432
      %v6489 = vunpack.c.l.b16 %v6433
      %v6490 = vunpack.c.l.b16 %v6434
      %v6491 = vunpack.c.l.b16 %v6435
      %v6492 = vpack.c.b16 %v6477, %v6476
      %v6493 = vpack.c.b16 %v6479, %v6478
      %v6494 = vpack.c.b16 %v6481, %v6480
      %v6495 = vpack.c.b16 %v6483, %v6482
      %v6496 = vpack.c.b16 %v6485, %v6484
      %v6497 = vpack.c.b16 %v6487, %v6486
      %v6498 = vpack.c.b16 %v6489, %v6488
      %v6499 = vpack.c.b16 %v6491, %v6490
      %6508 = vmatprep.subr.bf16.mxu0 0
      %6509 = vmatpush1.bf16.msra.mxu0 %v6492
      %6510 = vmatprep.subr.bf16.mxu0 0
      %6511 = vmatpush1.bf16.msra.mxu0 %v6493
      %6512 = vmatprep.subr.bf16.mxu0 0
      %6513 = vmatpush1.bf16.msra.mxu0 %v6494
      %6514 = vmatprep.subr.bf16.mxu0 0
      %6515 = vmatpush1.bf16.msra.mxu0 %v6495
      %6516 = vmatprep.subr.bf16.mxu0 0
      %6517 = vmatpush1.bf16.msra.mxu0 %v6496
      %6518 = vmatprep.subr.bf16.mxu0 0
      %6519 = vmatpush1.bf16.msra.mxu0 %v6497
      %6520 = vmatprep.subr.bf16.mxu0 0
      %6521 = vmatpush1.bf16.msra.mxu0 %v6498
      %6522 = vmatprep.subr.bf16.mxu0 0
      %6523 = vmatpush1.bf16.msra.mxu0 %v6499
      %6524 = vmatprep.subr.bf16.mxu0 0
      %6525 = vmatpush1.bf16.msra.mxu0 0
      %6526 = vmatprep.subr.bf16.mxu0 0
      %6527 = vmatpush1.bf16.msra.mxu0 0
      %6528 = vmatprep.subr.bf16.mxu0 0
      %6529 = vmatpush1.bf16.msra.mxu0 0
      %6530 = vmatprep.subr.bf16.mxu0 0
      %6531 = vmatpush1.bf16.msra.mxu0 0
      %6532 = vmatprep.subr.bf16.mxu0 0
      %6533 = vmatpush1.bf16.msra.mxu0 0
      %6534 = vmatprep.subr.bf16.mxu0 0
      %6535 = vmatpush1.bf16.msra.mxu0 0
      %6536 = vmatprep.subr.bf16.mxu0 0
      %6537 = vmatpush1.bf16.msra.mxu0 0
      %6538 = vmatprep.subr.bf16.mxu0 0
      %6539 = vmatpush1.bf16.msra.mxu0 0
      %6540 = vmatprep.mubr.bf16.mxu0 0
      %6541 = vmatmul.mubr.bf16.gmra.mrb[0].mxu0 %v6438
      %v6542 = vpop.f32.mrb[0].mxu0
      %v6543 = vadd.f32 %v6458, %v6542
      %v6544 = vpop.f32.mrb[0].mxu0
      %v6545 = vpop.f32.mrb[0].mxu0
      %v6546 = vadd.f32 %v6458, %v6545
      %v6547 = vpop.f32.mrb[0].mxu0
      %6548 = vmatprep.mubr.bf16.mxu0 0
      %6549 = vmatmul.mubr.bf16.gmra.mrb[0].mxu0 %v6439
      %v6550 = vpop.f32.mrb[0].mxu0
      %v6551 = vadd.f32 %v6458, %v6550
      %v6552 = vpop.f32.mrb[0].mxu0
      %v6553 = vpop.f32.mrb[0].mxu0
      %v6554 = vadd.f32 %v6458, %v6553
      %v6555 = vpop.f32.mrb[0].mxu0
      %6556 = vmatprep.mubr.bf16.mxu0 0
      %6557 = vmatmul.mubr.bf16.gmra.mrb[0].mxu0 %v6440
      %v6558 = vpop.f32.mrb[0].mxu0
      %v6559 = vadd.f32 %v6458, %v6558
      %v6560 = vpop.f32.mrb[0].mxu0
      %v6561 = vpop.f32.mrb[0].mxu0
      %v6562 = vadd.f32 %v6458, %v6561
      %v6563 = vpop.f32.mrb[0].mxu0
      %6564 = vmatprep.mubr.bf16.mxu0 0
      %6565 = vmatmul.mubr.bf16.gmra.mrb[0].mxu0 %v6441
      %v6566 = vpop.f32.mrb[0].mxu0
      %v6567 = vadd.f32 %v6458, %v6566
      %v6568 = vpop.f32.mrb[0].mxu0
      %v6569 = vpop.f32.mrb[0].mxu0
      %v6570 = vadd.f32 %v6458, %v6569
      %v6571 = vpop.f32.mrb[0].mxu0
      %6572 = vmatprep.mubr.bf16.mxu0 0
      %6573 = vmatmul.mubr.bf16.gmra.mrb[0].mxu0 %v6442
      %v6574 = vpop.f32.mrb[0].mxu0
      %v6575 = vadd.f32 %v6458, %v6574
      %v6576 = vpop.f32.mrb[0].mxu0
      %v6577 = vpop.f32.mrb[0].mxu0
      %v6578 = vadd.f32 %v6458, %v6577
      %v6579 = vpop.f32.mrb[0].mxu0
      %6580 = vmatprep.mubr.bf16.mxu0 0
      %6581 = vmatmul.mubr.bf16.gmra.mrb[0].mxu0 %v6443
      %v6582 = vpop.f32.mrb[0].mxu0
      %v6583 = vadd.f32 %v6458, %v6582
      %v6584 = vpop.f32.mrb[0].mxu0
      %v6585 = vpop.f32.mrb[0].mxu0
      %v6586 = vadd.f32 %v6458, %v6585
      %v6587 = vpop.f32.mrb[0].mxu0
      %6588 = vmatprep.mubr.bf16.mxu0 0
      %6589 = vmatmul.mubr.bf16.gmra.mrb[0].mxu0 %v6444
      %v6590 = vpop.f32.mrb[0].mxu0
      %v6591 = vadd.f32 %v6458, %v6590
      %v6592 = vpop.f32.mrb[0].mxu0
      %v6593 = vpop.f32.mrb[0].mxu0
      %v6594 = vadd.f32 %v6458, %v6593
      %v6595 = vpop.f32.mrb[0].mxu0
      %6596 = vmatprep.mubr.bf16.mxu0 0
      %6597 = vmatmul.mubr.bf16.gmra.mrb[0].mxu0 %v6445
      %v6598 = vpop.f32.mrb[0].mxu0
      %v6599 = vadd.f32 %v6458, %v6598
      %v6600 = vpop.f32.mrb[0].mxu0
      %v6601 = vpop.f32.mrb[0].mxu0
      %v6602 = vadd.f32 %v6458, %v6601
      %v6603 = vpop.f32.mrb[0].mxu0
      %6604 = vmatprep.mubr.bf16.mxu0 0
      %6605 = vmatmul.mubr.bf16.gmra.mrb[0].mxu0 %v6446
      %v6606 = vpop.f32.mrb[0].mxu0
      %v6607 = vadd.f32 %v6458, %v6606
      %v6608 = vpop.f32.mrb[0].mxu0
      %v6609 = vpop.f32.mrb[0].mxu0
      %v6610 = vadd.f32 %v6458, %v6609
      %v6611 = vpop.f32.mrb[0].mxu0
      %6612 = vmatprep.mubr.bf16.mxu0 0
      %6613 = vmatmul.mubr.bf16.gmra.mrb[0].mxu0 %v6447
      %v6614 = vpop.f32.mrb[0].mxu0
      %v6615 = vadd.f32 %v6458, %v6614
      %v6616 = vpop.f32.mrb[0].mxu0
      %v6617 = vpop.f32.mrb[0].mxu0
      %v6618 = vadd.f32 %v6458, %v6617
      %v6619 = vpop.f32.mrb[0].mxu0
      %6620 = vmatprep.mubr.bf16.mxu0 0
      %6621 = vmatmul.mubr.bf16.gmra.mrb[0].mxu0 %v6448
      %v6622 = vpop.f32.mrb[0].mxu0
      %v6623 = vadd.f32 %v6458, %v6622
      %v6624 = vpop.f32.mrb[0].mxu0
      %v6625 = vpop.f32.mrb[0].mxu0
      %v6626 = vadd.f32 %v6458, %v6625
      %v6627 = vpop.f32.mrb[0].mxu0
      %6628 = vmatprep.mubr.bf16.mxu0 0
      %6629 = vmatmul.mubr.bf16.gmra.mrb[0].mxu0 %v6449
      %v6630 = vpop.f32.mrb[0].mxu0
      %v6631 = vadd.f32 %v6458, %v6630
      %v6632 = vpop.f32.mrb[0].mxu0
      %v6633 = vpop.f32.mrb[0].mxu0
      %v6634 = vadd.f32 %v6458, %v6633
      %v6635 = vpop.f32.mrb[0].mxu0
      %6636 = vmatprep.mubr.bf16.mxu0 0
      %6637 = vmatmul.mubr.bf16.gmra.mrb[0].mxu0 %v6450
      %v6638 = vpop.f32.mrb[0].mxu0
      %v6639 = vadd.f32 %v6458, %v6638
      %v6640 = vpop.f32.mrb[0].mxu0
      %v6641 = vpop.f32.mrb[0].mxu0
      %v6642 = vadd.f32 %v6458, %v6641
      %v6643 = vpop.f32.mrb[0].mxu0
      %6644 = vmatprep.mubr.bf16.mxu0 0
      %6645 = vmatmul.mubr.bf16.gmra.mrb[0].mxu0 %v6451
      %v6646 = vpop.f32.mrb[0].mxu0
      %v6647 = vadd.f32 %v6458, %v6646
      %v6648 = vpop.f32.mrb[0].mxu0
      %v6649 = vpop.f32.mrb[0].mxu0
      %v6650 = vadd.f32 %v6458, %v6649
      %v6651 = vpop.f32.mrb[0].mxu0
      %6652 = vmatprep.mubr.bf16.mxu0 0
      %6653 = vmatmul.mubr.bf16.gmra.mrb[0].mxu0 %v6452
      %v6654 = vpop.f32.mrb[0].mxu0
      %v6655 = vadd.f32 %v6458, %v6654
      %v6656 = vpop.f32.mrb[0].mxu0
      %v6657 = vpop.f32.mrb[0].mxu0
      %v6658 = vadd.f32 %v6458, %v6657
      %v6659 = vpop.f32.mrb[0].mxu0
      %6660 = vmatprep.mubr.bf16.mxu0 0
      %6661 = vmatmul.mubr.bf16.gmra.mrb[0].mxu0 %v6453
      %v6662 = vpop.f32.mrb[0].mxu0
      %v6663 = vadd.f32 %v6458, %v6662
      %v6664 = vpop.f32.mrb[0].mxu0
      %v6665 = vpop.f32.mrb[0].mxu0
      %v6666 = vadd.f32 %v6458, %v6665
      %v6667 = vpop.f32.mrb[0].mxu0
      %6668 = vdwg.mxu0
      %v6669 = vtanh.pop %v6543
      %v6670 = vtanh.pop %v6546
      %v6671 = vtanh.pop %v6551
      %v6672 = vtanh.pop %v6554
      %v6673 = vtanh.pop %v6559
      %v6674 = vtanh.pop %v6562
      %v6675 = vtanh.pop %v6567
      %v6676 = vtanh.pop %v6570
      %v6677 = vtanh.pop %v6575
      %v6678 = vtanh.pop %v6578
      %v6679 = vtanh.pop %v6583
      %v6680 = vtanh.pop %v6586
      %v6681 = vtanh.pop %v6591
      %v6682 = vtanh.pop %v6594
      %v6683 = vtanh.pop %v6599
      %v6684 = vtanh.pop %v6602
      %v6685 = vtanh.pop %v6607
      %v6686 = vtanh.pop %v6610
      %v6687 = vtanh.pop %v6615
      %v6688 = vtanh.pop %v6618
      %v6689 = vtanh.pop %v6623
      %v6690 = vtanh.pop %v6626
      %v6691 = vtanh.pop %v6631
      %v6692 = vtanh.pop %v6634
      %v6693 = vtanh.pop %v6639
      %v6694 = vtanh.pop %v6642
      %v6695 = vtanh.pop %v6647
      %v6696 = vtanh.pop %v6650
      %v6697 = vtanh.pop %v6655
      %v6698 = vtanh.pop %v6658
      %v6699 = vtanh.pop %v6663
      %v6700 = vtanh.pop %v6666
      %v6701 = vxor.u32 %v6543, 2147483648
      %v6702 = vxor.u32 %v6546, 2147483648
      %v6703 = vxor.u32 %v6551, 2147483648
      %v6704 = vxor.u32 %v6554, 2147483648
      %v6705 = vxor.u32 %v6559, 2147483648
      %v6706 = vxor.u32 %v6562, 2147483648
      %v6707 = vxor.u32 %v6567, 2147483648
      %v6708 = vxor.u32 %v6570, 2147483648
      %v6709 = vxor.u32 %v6575, 2147483648
      %v6710 = vxor.u32 %v6578, 2147483648
      %v6711 = vxor.u32 %v6583, 2147483648
      %v6712 = vxor.u32 %v6586, 2147483648
      %v6713 = vxor.u32 %v6591, 2147483648
      %v6714 = vxor.u32 %v6594, 2147483648
      %v6715 = vxor.u32 %v6599, 2147483648
      %v6716 = vxor.u32 %v6602, 2147483648
      %v6717 = vxor.u32 %v6607, 2147483648
      %v6718 = vxor.u32 %v6610, 2147483648
      %v6719 = vxor.u32 %v6615, 2147483648
      %v6720 = vxor.u32 %v6618, 2147483648
      %v6721 = vxor.u32 %v6623, 2147483648
      %v6722 = vxor.u32 %v6626, 2147483648
      %v6723 = vxor.u32 %v6631, 2147483648
      %v6724 = vxor.u32 %v6634, 2147483648
      %v6725 = vxor.u32 %v6639, 2147483648
      %v6726 = vxor.u32 %v6642, 2147483648
      %v6727 = vxor.u32 %v6647, 2147483648
      %v6728 = vxor.u32 %v6650, 2147483648
      %v6729 = vxor.u32 %v6655, 2147483648
      %v6730 = vxor.u32 %v6658, 2147483648
      %v6731 = vxor.u32 %v6663, 2147483648
      %v6732 = vxor.u32 %v6666, 2147483648
      %v6733 = vmul.f32 %v6701, 1.442695
      %v6734 = vpow.pop %v6733
      %v6735 = vmul.f32 %v6702, 1.442695
      %v6736 = vpow.pop %v6735
      %v6737 = vmul.f32 %v6703, 1.442695
      %v6738 = vpow.pop %v6737
      %v6739 = vmul.f32 %v6704, 1.442695
      %v6740 = vpow.pop %v6739
      %v6741 = vmul.f32 %v6705, 1.442695
      %v6742 = vpow.pop %v6741
      %v6743 = vmul.f32 %v6706, 1.442695
      %v6744 = vpow.pop %v6743
      %v6745 = vmul.f32 %v6707, 1.442695
      %v6746 = vpow.pop %v6745
      %v6747 = vmul.f32 %v6708, 1.442695
      %v6748 = vpow.pop %v6747
      %v6749 = vmul.f32 %v6709, 1.442695
      %v6750 = vpow.pop %v6749
      %v6751 = vmul.f32 %v6710, 1.442695
      %v6752 = vpow.pop %v6751
      %v6753 = vmul.f32 %v6711, 1.442695
      %v6754 = vpow.pop %v6753
      %v6755 = vmul.f32 %v6712, 1.442695
      %v6756 = vpow.pop %v6755
      %v6757 = vmul.f32 %v6713, 1.442695
      %v6758 = vpow.pop %v6757
      %v6759 = vmul.f32 %v6714, 1.442695
      %v6760 = vpow.pop %v6759
      %v6761 = vmul.f32 %v6715, 1.442695
      %v6762 = vpow.pop %v6761
      %v6763 = vmul.f32 %v6716, 1.442695
      %v6764 = vpow.pop %v6763
      %v6765 = vmul.f32 %v6717, 1.442695
      %v6766 = vpow.pop %v6765
      %v6767 = vmul.f32 %v6718, 1.442695
      %v6768 = vpow.pop %v6767
      %v6769 = vmul.f32 %v6719, 1.442695
      %v6770 = vpow.pop %v6769
      %v6771 = vmul.f32 %v6720, 1.442695
      %v6772 = vpow.pop %v6771
      %v6773 = vmul.f32 %v6721, 1.442695
      %v6774 = vpow.pop %v6773
      %v6775 = vmul.f32 %v6722, 1.442695
      %v6776 = vpow.pop %v6775
      %v6777 = vmul.f32 %v6723, 1.442695
      %v6778 = vpow.pop %v6777
      %v6779 = vmul.f32 %v6724, 1.442695
      %v6780 = vpow.pop %v6779
      %v6781 = vmul.f32 %v6725, 1.442695
      %v6782 = vpow.pop %v6781
      %v6783 = vmul.f32 %v6726, 1.442695
      %v6784 = vpow.pop %v6783
      %v6785 = vmul.f32 %v6727, 1.442695
      %v6786 = vpow.pop %v6785
      %v6787 = vmul.f32 %v6728, 1.442695
      %v6788 = vpow.pop %v6787
      %v6789 = vmul.f32 %v6729, 1.442695
      %v6790 = vpow.pop %v6789
      %v6791 = vmul.f32 %v6730, 1.442695
      %v6792 = vpow.pop %v6791
      %v6793 = vmul.f32 %v6731, 1.442695
      %v6794 = vpow.pop %v6793
      %v6795 = vmul.f32 %v6732, 1.442695
      %v6796 = vpow.pop %v6795
      %v6797 = vadd.f32 %v6734, 1.0
      %v6798 = vadd.f32 %v6736, 1.0
      %v6799 = vadd.f32 %v6738, 1.0
      %v6800 = vadd.f32 %v6740, 1.0
      %v6801 = vadd.f32 %v6742, 1.0
      %v6802 = vadd.f32 %v6744, 1.0
      %v6803 = vadd.f32 %v6746, 1.0
      %v6804 = vadd.f32 %v6748, 1.0
      %v6805 = vadd.f32 %v6750, 1.0
      %v6806 = vadd.f32 %v6752, 1.0
      %v6807 = vadd.f32 %v6754, 1.0
      %v6808 = vadd.f32 %v6756, 1.0
      %v6809 = vadd.f32 %v6758, 1.0
      %v6810 = vadd.f32 %v6760, 1.0
      %v6811 = vadd.f32 %v6762, 1.0
      %v6812 = vadd.f32 %v6764, 1.0
      %v6813 = vadd.f32 %v6766, 1.0
      %v6814 = vadd.f32 %v6768, 1.0
      %v6815 = vadd.f32 %v6770, 1.0
      %v6816 = vadd.f32 %v6772, 1.0
      %v6817 = vadd.f32 %v6774, 1.0
      %v6818 = vadd.f32 %v6776, 1.0
      %v6819 = vadd.f32 %v6778, 1.0
      %v6820 = vadd.f32 %v6780, 1.0
      %v6821 = vadd.f32 %v6782, 1.0
      %v6822 = vadd.f32 %v6784, 1.0
      %v6823 = vadd.f32 %v6786, 1.0
      %v6824 = vadd.f32 %v6788, 1.0
      %v6825 = vadd.f32 %v6790, 1.0
      %v6826 = vadd.f32 %v6792, 1.0
      %v6827 = vadd.f32 %v6794, 1.0
      %v6828 = vadd.f32 %v6796, 1.0
      %v6829 = vrcp.pop %v6797
      %v6830 = vmul.f32 1.0, %v6829
      %v6831 = vrcp.pop %v6798
      %v6832 = vmul.f32 1.0, %v6831
      %v6833 = vrcp.pop %v6799
      %v6834 = vmul.f32 1.0, %v6833
      %v6835 = vrcp.pop %v6800
      %v6836 = vmul.f32 1.0, %v6835
      %v6837 = vrcp.pop %v6801
      %v6838 = vmul.f32 1.0, %v6837
      %v6839 = vrcp.pop %v6802
      %v6840 = vmul.f32 1.0, %v6839
      %v6841 = vrcp.pop %v6803
      %v6842 = vmul.f32 1.0, %v6841
      %v6843 = vrcp.pop %v6804
      %v6844 = vmul.f32 1.0, %v6843
      %v6845 = vrcp.pop %v6805
      %v6846 = vmul.f32 1.0, %v6845
      %v6847 = vrcp.pop %v6806
      %v6848 = vmul.f32 1.0, %v6847
      %v6849 = vrcp.pop %v6807
      %v6850 = vmul.f32 1.0, %v6849
      %v6851 = vrcp.pop %v6808
      %v6852 = vmul.f32 1.0, %v6851
      %v6853 = vrcp.pop %v6809
      %v6854 = vmul.f32 1.0, %v6853
      %v6855 = vrcp.pop %v6810
      %v6856 = vmul.f32 1.0, %v6855
      %v6857 = vrcp.pop %v6811
      %v6858 = vmul.f32 1.0, %v6857
      %v6859 = vrcp.pop %v6812
      %v6860 = vmul.f32 1.0, %v6859
      %v6861 = vrcp.pop %v6813
      %v6862 = vmul.f32 1.0, %v6861
      %v6863 = vrcp.pop %v6814
      %v6864 = vmul.f32 1.0, %v6863
      %v6865 = vrcp.pop %v6815
      %v6866 = vmul.f32 1.0, %v6865
      %v6867 = vrcp.pop %v6816
      %v6868 = vmul.f32 1.0, %v6867
      %v6869 = vrcp.pop %v6817
      %v6870 = vmul.f32 1.0, %v6869
      %v6871 = vrcp.pop %v6818
      %v6872 = vmul.f32 1.0, %v6871
      %v6873 = vrcp.pop %v6819
      %v6874 = vmul.f32 1.0, %v6873
      %v6875 = vrcp.pop %v6820
      %v6876 = vmul.f32 1.0, %v6875
      %v6877 = vrcp.pop %v6821
      %v6878 = vmul.f32 1.0, %v6877
      %v6879 = vrcp.pop %v6822
      %v6880 = vmul.f32 1.0, %v6879
      %v6881 = vrcp.pop %v6823
      %v6882 = vmul.f32 1.0, %v6881
      %v6883 = vrcp.pop %v6824
      %v6884 = vmul.f32 1.0, %v6883
      %v6885 = vrcp.pop %v6825
      %v6886 = vmul.f32 1.0, %v6885
      %v6887 = vrcp.pop %v6826
      %v6888 = vmul.f32 1.0, %v6887
      %v6889 = vrcp.pop %v6827
      %v6890 = vmul.f32 1.0, %v6889
      %v6891 = vrcp.pop %v6828
      %v6892 = vmul.f32 1.0, %v6891
      %6925 = vrot.lane.b32.xlu0 %v6830, 96
      %v6926 = vpop.permute.xlu0 %6925
      %6927 = vrot.lane.b32.xlu0 %v6832, 96
      %v6928 = vpop.permute.xlu0 %6927
      %6929 = vrot.lane.b32.xlu0 %v6834, 96
      %v6930 = vpop.permute.xlu0 %6929
      %6931 = vrot.lane.b32.xlu0 %v6836, 96
      %v6932 = vpop.permute.xlu0 %6931
      %6933 = vrot.lane.b32.xlu0 %v6838, 96
      %v6934 = vpop.permute.xlu0 %6933
      %6935 = vrot.lane.b32.xlu0 %v6840, 96
      %v6936 = vpop.permute.xlu0 %6935
      %6937 = vrot.lane.b32.xlu0 %v6842, 96
      %v6938 = vpop.permute.xlu0 %6937
      %6939 = vrot.lane.b32.xlu0 %v6844, 96
      %v6940 = vpop.permute.xlu0 %6939
      %6941 = vrot.lane.b32.xlu0 %v6846, 96
      %v6942 = vpop.permute.xlu0 %6941
      %6943 = vrot.lane.b32.xlu0 %v6848, 96
      %v6944 = vpop.permute.xlu0 %6943
      %6945 = vrot.lane.b32.xlu0 %v6850, 96
      %v6946 = vpop.permute.xlu0 %6945
      %6947 = vrot.lane.b32.xlu0 %v6852, 96
      %v6948 = vpop.permute.xlu0 %6947
      %6949 = vrot.lane.b32.xlu0 %v6854, 96
      %v6950 = vpop.permute.xlu0 %6949
      %6951 = vrot.lane.b32.xlu0 %v6856, 96
      %v6952 = vpop.permute.xlu0 %6951
      %6953 = vrot.lane.b32.xlu0 %v6858, 96
      %v6954 = vpop.permute.xlu0 %6953
      %6955 = vrot.lane.b32.xlu0 %v6860, 96
      %v6956 = vpop.permute.xlu0 %6955
      %6957 = vrot.lane.b32.xlu0 %v6862, 96
      %v6958 = vpop.permute.xlu0 %6957
      %6959 = vrot.lane.b32.xlu0 %v6864, 96
      %v6960 = vpop.permute.xlu0 %6959
      %6961 = vrot.lane.b32.xlu0 %v6866, 96
      %v6962 = vpop.permute.xlu0 %6961
      %6963 = vrot.lane.b32.xlu0 %v6868, 96
      %v6964 = vpop.permute.xlu0 %6963
      %6965 = vrot.lane.b32.xlu0 %v6870, 96
      %v6966 = vpop.permute.xlu0 %6965
      %6967 = vrot.lane.b32.xlu0 %v6872, 96
      %v6968 = vpop.permute.xlu0 %6967
      %6969 = vrot.lane.b32.xlu0 %v6874, 96
      %v6970 = vpop.permute.xlu0 %6969
      %6971 = vrot.lane.b32.xlu0 %v6876, 96
      %v6972 = vpop.permute.xlu0 %6971
      %6973 = vrot.lane.b32.xlu0 %v6878, 96
      %v6974 = vpop.permute.xlu0 %6973
      %6975 = vrot.lane.b32.xlu0 %v6880, 96
      %v6976 = vpop.permute.xlu0 %6975
      %6977 = vrot.lane.b32.xlu0 %v6882, 96
      %v6978 = vpop.permute.xlu0 %6977
      %6979 = vrot.lane.b32.xlu0 %v6884, 96
      %v6980 = vpop.permute.xlu0 %6979
      %6981 = vrot.lane.b32.xlu0 %v6886, 96
      %v6982 = vpop.permute.xlu0 %6981
      %6983 = vrot.lane.b32.xlu0 %v6888, 96
      %v6984 = vpop.permute.xlu0 %6983
      %6985 = vrot.lane.b32.xlu0 %v6890, 96
      %v6986 = vpop.permute.xlu0 %6985
      %6987 = vrot.lane.b32.xlu0 %v6892, 96
      %v6988 = vpop.permute.xlu0 %6987
      %v7021 = vmul.f32 %v6669, %v6926
      %v7022 = vmul.f32 %v6670, %v6928
      %v7023 = vmul.f32 %v6671, %v6930
      %v7024 = vmul.f32 %v6672, %v6932
      %v7025 = vmul.f32 %v6673, %v6934
      %v7026 = vmul.f32 %v6674, %v6936
      %v7027 = vmul.f32 %v6675, %v6938
      %v7028 = vmul.f32 %v6676, %v6940
      %v7029 = vmul.f32 %v6677, %v6942
      %v7030 = vmul.f32 %v6678, %v6944
      %v7031 = vmul.f32 %v6679, %v6946
      %v7032 = vmul.f32 %v6680, %v6948
      %v7033 = vmul.f32 %v6681, %v6950
      %v7034 = vmul.f32 %v6682, %v6952
      %v7035 = vmul.f32 %v6683, %v6954
      %v7036 = vmul.f32 %v6684, %v6956
      %v7037 = vmul.f32 %v6685, %v6958
      %v7038 = vmul.f32 %v6686, %v6960
      %v7039 = vmul.f32 %v6687, %v6962
      %v7040 = vmul.f32 %v6688, %v6964
      %v7041 = vmul.f32 %v6689, %v6966
      %v7042 = vmul.f32 %v6690, %v6968
      %v7043 = vmul.f32 %v6691, %v6970
      %v7044 = vmul.f32 %v6692, %v6972
      %v7045 = vmul.f32 %v6693, %v6974
      %v7046 = vmul.f32 %v6694, %v6976
      %v7047 = vmul.f32 %v6695, %v6978
      %v7048 = vmul.f32 %v6696, %v6980
      %v7049 = vmul.f32 %v6697, %v6982
      %v7050 = vmul.f32 %v6698, %v6984
      %v7051 = vmul.f32 %v6699, %v6986
      %v7052 = vmul.f32 %v6700, %v6988
      %s7053 = scalar_lea.vmem %s9, 16
      %v7054 = vld [vmem:[%s7053] sm:$0xf]
      %v7055 = vld [vmem:[%s7053 + $0x4] sm:$0xf]
      %v7056 = vld [vmem:[%s7053 + $0x8] sm:$0xf]
      %v7057 = vld [vmem:[%s7053 + $0xc] sm:$0xf]
      %s7058 = scalar_lea.vmem %s10, 1
      %v7059 = vld [vmem:[%s7058] sm:$0x1]
      %v7060 = vpack.c.bf16 %v7022, %v7021
      %v7061 = vpack.c.bf16 %v7024, %v7023
      %v7062 = vpack.c.bf16 %v7026, %v7025
      %v7063 = vpack.c.bf16 %v7028, %v7027
      %v7064 = vpack.c.bf16 %v7030, %v7029
      %v7065 = vpack.c.bf16 %v7032, %v7031
      %v7066 = vpack.c.bf16 %v7034, %v7033
      %v7067 = vpack.c.bf16 %v7036, %v7035
      %v7068 = vpack.c.bf16 %v7038, %v7037
      %v7069 = vpack.c.bf16 %v7040, %v7039
      %v7070 = vpack.c.bf16 %v7042, %v7041
      %v7071 = vpack.c.bf16 %v7044, %v7043
      %v7072 = vpack.c.bf16 %v7046, %v7045
      %v7073 = vpack.c.bf16 %v7048, %v7047
      %v7074 = vpack.c.bf16 %v7050, %v7049
      %v7075 = vpack.c.bf16 %v7052, %v7051
      %v7077 = vlaneseq
      %v7078 = vshrl.u32 %v7077, 7
      %v7079 = vsub.s32 0, %v7078
      %v7080 = vrot.slane %v7059, %v7079
      %v7086 = vunpack.c.l.b16 %v7054
      %v7087 = vunpack.c.l.b16 %v7055
      %v7088 = vunpack.c.l.b16 %v7056
      %v7089 = vunpack.c.l.b16 %v7057
      %v7090 = vpack.c.b16 %v7087, %v7086
      %v7091 = vpack.c.b16 %v7089, %v7088
      %v7095 = vsel %vm442, %v7060, 0
      %v7098 = vsel %vm442, %v7061, 0
      %v7101 = vsel %vm442, %v7062, 0
      %v7104 = vsel %vm442, %v7063, 0
      %v7107 = vsel %vm442, %v7064, 0
      %v7110 = vsel %vm442, %v7065, 0
      %v7113 = vsel %vm442, %v7066, 0
      %v7116 = vsel %vm442, %v7067, 0
      %v7119 = vsel %vm442, %v7068, 0
      %v7122 = vsel %vm442, %v7069, 0
      %v7125 = vsel %vm442, %v7070, 0
      %v7128 = vsel %vm442, %v7071, 0
      %v7131 = vsel %vm442, %v7072, 0
      %v7134 = vsel %vm442, %v7073, 0
      %v7137 = vsel %vm442, %v7074, 0
      %v7140 = vsel %vm442, %v7075, 0
      %7142 = vmatprep.subr.bf16.mxu0 0
      %7143 = vmatpush1.bf16.msra.mxu0 %v7090
      %7144 = vmatprep.subr.bf16.mxu0 0
      %7145 = vmatpush1.bf16.msra.mxu0 %v7091
      %7146 = vmatprep.subr.bf16.mxu0 0
      %7147 = vmatpush1.bf16.msra.mxu0 0
      %7148 = vmatprep.subr.bf16.mxu0 0
      %7149 = vmatpush1.bf16.msra.mxu0 0
      %7150 = vmatprep.subr.bf16.mxu0 0
      %7151 = vmatpush1.bf16.msra.mxu0 0
      %7152 = vmatprep.subr.bf16.mxu0 0
      %7153 = vmatpush1.bf16.msra.mxu0 0
      %7154 = vmatprep.subr.bf16.mxu0 0
      %7155 = vmatpush1.bf16.msra.mxu0 0
      %7156 = vmatprep.subr.bf16.mxu0 0
      %7157 = vmatpush1.bf16.msra.mxu0 0
      %7158 = vmatprep.subr.bf16.mxu0 0
      %7159 = vmatpush1.bf16.msra.mxu0 0
      %7160 = vmatprep.subr.bf16.mxu0 0
      %7161 = vmatpush1.bf16.msra.mxu0 0
      %7162 = vmatprep.subr.bf16.mxu0 0
      %7163 = vmatpush1.bf16.msra.mxu0 0
      %7164 = vmatprep.subr.bf16.mxu0 0
      %7165 = vmatpush1.bf16.msra.mxu0 0
      %7166 = vmatprep.subr.bf16.mxu0 0
      %7167 = vmatpush1.bf16.msra.mxu0 0
      %7168 = vmatprep.subr.bf16.mxu0 0
      %7169 = vmatpush1.bf16.msra.mxu0 0
      %7170 = vmatprep.subr.bf16.mxu0 0
      %7171 = vmatpush1.bf16.msra.mxu0 0
      %7172 = vmatprep.subr.bf16.mxu0 0
      %7173 = vmatpush1.bf16.msra.mxu0 0
      %7174 = vmatprep.mubr.bf16.mxu0 0
      %7175 = vmatmul.mubr.bf16.gmra.mrb[0].mxu0 %v7095
      %v7176 = vpop.f32.mrb[0].mxu0
      %v7177 = vadd.f32 %v7080, %v7176
      %v7178 = vpop.f32.mrb[0].mxu0
      %v7179 = vpop.f32.mrb[0].mxu0
      %v7180 = vadd.f32 %v7080, %v7179
      %v7181 = vpop.f32.mrb[0].mxu0
      %7182 = vmatprep.mubr.bf16.mxu0 0
      %7183 = vmatmul.mubr.bf16.gmra.mrb[0].mxu0 %v7098
      %v7184 = vpop.f32.mrb[0].mxu0
      %v7185 = vadd.f32 %v7080, %v7184
      %v7186 = vpop.f32.mrb[0].mxu0
      %v7187 = vpop.f32.mrb[0].mxu0
      %v7188 = vadd.f32 %v7080, %v7187
      %v7189 = vpop.f32.mrb[0].mxu0
      %7190 = vmatprep.mubr.bf16.mxu0 0
      %7191 = vmatmul.mubr.bf16.gmra.mrb[0].mxu0 %v7101
      %v7192 = vpop.f32.mrb[0].mxu0
      %v7193 = vadd.f32 %v7080, %v7192
      %v7194 = vpop.f32.mrb[0].mxu0
      %v7195 = vpop.f32.mrb[0].mxu0
      %v7196 = vadd.f32 %v7080, %v7195
      %v7197 = vpop.f32.mrb[0].mxu0
      %7198 = vmatprep.mubr.bf16.mxu0 0
      %7199 = vmatmul.mubr.bf16.gmra.mrb[0].mxu0 %v7104
      %v7200 = vpop.f32.mrb[0].mxu0
      %v7201 = vadd.f32 %v7080, %v7200
      %v7202 = vpop.f32.mrb[0].mxu0
      %v7203 = vpop.f32.mrb[0].mxu0
      %v7204 = vadd.f32 %v7080, %v7203
      %v7205 = vpop.f32.mrb[0].mxu0
      %7206 = vmatprep.mubr.bf16.mxu0 0
      %7207 = vmatmul.mubr.bf16.gmra.mrb[0].mxu0 %v7107
      %v7208 = vpop.f32.mrb[0].mxu0
      %v7209 = vadd.f32 %v7080, %v7208
      %v7210 = vpop.f32.mrb[0].mxu0
      %v7211 = vpop.f32.mrb[0].mxu0
      %v7212 = vadd.f32 %v7080, %v7211
      %v7213 = vpop.f32.mrb[0].mxu0
      %7214 = vmatprep.mubr.bf16.mxu0 0
      %7215 = vmatmul.mubr.bf16.gmra.mrb[0].mxu0 %v7110
      %v7216 = vpop.f32.mrb[0].mxu0
      %v7217 = vadd.f32 %v7080, %v7216
      %v7218 = vpop.f32.mrb[0].mxu0
      %v7219 = vpop.f32.mrb[0].mxu0
      %v7220 = vadd.f32 %v7080, %v7219
      %v7221 = vpop.f32.mrb[0].mxu0
      %7222 = vmatprep.mubr.bf16.mxu0 0
      %7223 = vmatmul.mubr.bf16.gmra.mrb[0].mxu0 %v7113
      %v7224 = vpop.f32.mrb[0].mxu0
      %v7225 = vadd.f32 %v7080, %v7224
      %v7226 = vpop.f32.mrb[0].mxu0
      %v7227 = vpop.f32.mrb[0].mxu0
      %v7228 = vadd.f32 %v7080, %v7227
      %v7229 = vpop.f32.mrb[0].mxu0
      %7230 = vmatprep.mubr.bf16.mxu0 0
      %7231 = vmatmul.mubr.bf16.gmra.mrb[0].mxu0 %v7116
      %v7232 = vpop.f32.mrb[0].mxu0
      %v7233 = vadd.f32 %v7080, %v7232
      %v7234 = vpop.f32.mrb[0].mxu0
      %v7235 = vpop.f32.mrb[0].mxu0
      %v7236 = vadd.f32 %v7080, %v7235
      %v7237 = vpop.f32.mrb[0].mxu0
      %7238 = vmatprep.mubr.bf16.mxu0 0
      %7239 = vmatmul.mubr.bf16.gmra.mrb[0].mxu0 %v7119
      %v7240 = vpop.f32.mrb[0].mxu0
      %v7241 = vadd.f32 %v7080, %v7240
      %v7242 = vpop.f32.mrb[0].mxu0
      %v7243 = vpop.f32.mrb[0].mxu0
      %v7244 = vadd.f32 %v7080, %v7243
      %v7245 = vpop.f32.mrb[0].mxu0
      %7246 = vmatprep.mubr.bf16.mxu0 0
      %7247 = vmatmul.mubr.bf16.gmra.mrb[0].mxu0 %v7122
      %v7248 = vpop.f32.mrb[0].mxu0
      %v7249 = vadd.f32 %v7080, %v7248
      %v7250 = vpop.f32.mrb[0].mxu0
      %v7251 = vpop.f32.mrb[0].mxu0
      %v7252 = vadd.f32 %v7080, %v7251
      %v7253 = vpop.f32.mrb[0].mxu0
      %7254 = vmatprep.mubr.bf16.mxu0 0
      %7255 = vmatmul.mubr.bf16.gmra.mrb[0].mxu0 %v7125
      %v7256 = vpop.f32.mrb[0].mxu0
      %v7257 = vadd.f32 %v7080, %v7256
      %v7258 = vpop.f32.mrb[0].mxu0
      %v7259 = vpop.f32.mrb[0].mxu0
      %v7260 = vadd.f32 %v7080, %v7259
      %v7261 = vpop.f32.mrb[0].mxu0
      %7262 = vmatprep.mubr.bf16.mxu0 0
      %7263 = vmatmul.mubr.bf16.gmra.mrb[0].mxu0 %v7128
      %v7264 = vpop.f32.mrb[0].mxu0
      %v7265 = vadd.f32 %v7080, %v7264
      %v7266 = vpop.f32.mrb[0].mxu0
      %v7267 = vpop.f32.mrb[0].mxu0
      %v7268 = vadd.f32 %v7080, %v7267
      %v7269 = vpop.f32.mrb[0].mxu0
      %7270 = vmatprep.mubr.bf16.mxu0 0
      %7271 = vmatmul.mubr.bf16.gmra.mrb[0].mxu0 %v7131
      %v7272 = vpop.f32.mrb[0].mxu0
      %v7273 = vadd.f32 %v7080, %v7272
      %v7274 = vpop.f32.mrb[0].mxu0
      %v7275 = vpop.f32.mrb[0].mxu0
      %v7276 = vadd.f32 %v7080, %v7275
      %v7277 = vpop.f32.mrb[0].mxu0
      %7278 = vmatprep.mubr.bf16.mxu0 0
      %7279 = vmatmul.mubr.bf16.gmra.mrb[0].mxu0 %v7134
      %v7280 = vpop.f32.mrb[0].mxu0
      %v7281 = vadd.f32 %v7080, %v7280
      %v7282 = vpop.f32.mrb[0].mxu0
      %v7283 = vpop.f32.mrb[0].mxu0
      %v7284 = vadd.f32 %v7080, %v7283
      %v7285 = vpop.f32.mrb[0].mxu0
      %7286 = vmatprep.mubr.bf16.mxu0 0
      %7287 = vmatmul.mubr.bf16.gmra.mrb[0].mxu0 %v7137
      %v7288 = vpop.f32.mrb[0].mxu0
      %v7289 = vadd.f32 %v7080, %v7288
      %v7290 = vpop.f32.mrb[0].mxu0
      %v7291 = vpop.f32.mrb[0].mxu0
      %v7292 = vadd.f32 %v7080, %v7291
      %v7293 = vpop.f32.mrb[0].mxu0
      %7294 = vmatprep.mubr.bf16.mxu0 0
      %7295 = vmatmul.mubr.bf16.gmra.mrb[0].mxu0 %v7140
      %v7296 = vpop.f32.mrb[0].mxu0
      %v7297 = vadd.f32 %v7080, %v7296
      %v7298 = vpop.f32.mrb[0].mxu0
      %v7299 = vpop.f32.mrb[0].mxu0
      %v7300 = vadd.f32 %v7080, %v7299
      %v7301 = vpop.f32.mrb[0].mxu0
      %7302 = vdwg.mxu0
      %v7303 = vadd.f32 %v7177, %v4377
      %v7304 = vadd.f32 %v7180, %v4378
      %v7305 = vadd.f32 %v7185, %v4379
      %v7306 = vadd.f32 %v7188, %v4380
      %v7307 = vadd.f32 %v7193, %v4381
      %v7308 = vadd.f32 %v7196, %v4382
      %v7309 = vadd.f32 %v7201, %v4383
      %v7310 = vadd.f32 %v7204, %v4384
      %v7311 = vadd.f32 %v7209, %v4385
      %v7312 = vadd.f32 %v7212, %v4386
      %v7313 = vadd.f32 %v7217, %v4387
      %v7314 = vadd.f32 %v7220, %v4388
      %v7315 = vadd.f32 %v7225, %v4389
      %v7316 = vadd.f32 %v7228, %v4390
      %v7317 = vadd.f32 %v7233, %v4391
      %v7318 = vadd.f32 %v7236, %v4392
      %v7319 = vadd.f32 %v7241, %v4393
      %v7320 = vadd.f32 %v7244, %v4394
      %v7321 = vadd.f32 %v7249, %v4395
      %v7322 = vadd.f32 %v7252, %v4396
      %v7323 = vadd.f32 %v7257, %v4397
      %v7324 = vadd.f32 %v7260, %v4398
      %v7325 = vadd.f32 %v7265, %v4399
      %v7326 = vadd.f32 %v7268, %v4400
      %v7327 = vadd.f32 %v7273, %v4401
      %v7328 = vadd.f32 %v7276, %v4402
      %v7329 = vadd.f32 %v7281, %v4403
      %v7330 = vadd.f32 %v7284, %v4404
      %v7331 = vadd.f32 %v7289, %v4405
      %v7332 = vadd.f32 %v7292, %v4406
      %v7333 = vadd.f32 %v7297, %v4407
      %v7334 = vadd.f32 %v7300, %v4408
      %7335 = vst.msk [vmem:[%s457 + $0x2] sm:$0xff] %vm442, %v5971
      %7336 = vst.msk [vmem:[%s457 + $0xa] sm:$0xff] %vm442, %v5972
      %7337 = vst.msk [vmem:[%s457 + $0x1a] sm:$0xff] %vm442, %v5973
      %7338 = vst.msk [vmem:[%s457 + $0x22] sm:$0xff] %vm442, %v5974
      %7339 = vst.msk [vmem:[%s457 + $0x32] sm:$0xff] %vm442, %v5975
      %7340 = vst.msk [vmem:[%s457 + $0x3a] sm:$0xff] %vm442, %v5976
      %7341 = vst.msk [vmem:[%s457 + $0x4a] sm:$0xff] %vm442, %v5977
      %7342 = vst.msk [vmem:[%s457 + $0x52] sm:$0xff] %vm442, %v5978
      %7343 = vst.msk [vmem:[%s457 + $0x62] sm:$0xff] %vm442, %v5979
      %7344 = vst.msk [vmem:[%s457 + $0x6a] sm:$0xff] %vm442, %v5980
      %7345 = vst.msk [vmem:[%s457 + $0x7a] sm:$0xff] %vm442, %v5981
      %7346 = vst.msk [vmem:[%s457 + $0x82] sm:$0xff] %vm442, %v5982
      %7347 = vst.msk [vmem:[%s457 + $0x92] sm:$0xff] %vm442, %v5983
      %7348 = vst.msk [vmem:[%s457 + $0x9a] sm:$0xff] %vm442, %v5984
      %7349 = vst.msk [vmem:[%s457 + $0xaa] sm:$0xff] %vm442, %v5985
      %7350 = vst.msk [vmem:[%s457 + $0xb2] sm:$0xff] %vm442, %v5986
      %7351 = vst.msk [vmem:[%s457 + $0xc2] sm:$0xff] %vm442, %v5987
      %7352 = vst.msk [vmem:[%s457 + $0xca] sm:$0xff] %vm442, %v5988
      %7353 = vst.msk [vmem:[%s457 + $0xda] sm:$0xff] %vm442, %v5989
      %7354 = vst.msk [vmem:[%s457 + $0xe2] sm:$0xff] %vm442, %v5990
      %7355 = vst.msk [vmem:[%s457 + $0xf2] sm:$0xff] %vm442, %v5991
      %7356 = vst.msk [vmem:[%s457 + $0xfa] sm:$0xff] %vm442, %v5992
      %7357 = vst.msk [vmem:[%s457 + $0x10a] sm:$0xff] %vm442, %v5993
      %7358 = vst.msk [vmem:[%s457 + $0x112] sm:$0xff] %vm442, %v5994
      %7359 = vst.msk [vmem:[%s457 + $0x122] sm:$0xff] %vm442, %v5995
      %7360 = vst.msk [vmem:[%s457 + $0x12a] sm:$0xff] %vm442, %v5996
      %7361 = vst.msk [vmem:[%s457 + $0x13a] sm:$0xff] %vm442, %v5997
      %7362 = vst.msk [vmem:[%s457 + $0x142] sm:$0xff] %vm442, %v5998
      %7363 = vst.msk [vmem:[%s457 + $0x152] sm:$0xff] %vm442, %v5999
      %7364 = vst.msk [vmem:[%s457 + $0x15a] sm:$0xff] %vm442, %v6000
      %7365 = vst.msk [vmem:[%s457 + $0x16a] sm:$0xff] %vm442, %v6001
      %7366 = vst.msk [vmem:[%s457 + $0x172] sm:$0xff] %vm442, %v6002
      %v7367 = vld [vmem:[%s556 + $0x1] sm:$0xff]
      %v7368 = vld [vmem:[%s556 + $0x9] sm:$0xff]
      %v7369 = vld [vmem:[%s556 + $0x19] sm:$0xff]
      %v7370 = vld [vmem:[%s556 + $0x21] sm:$0xff]
      %v7371 = vld [vmem:[%s556 + $0x31] sm:$0xff]
      %v7372 = vld [vmem:[%s556 + $0x39] sm:$0xff]
      %v7373 = vld [vmem:[%s556 + $0x49] sm:$0xff]
      %v7374 = vld [vmem:[%s556 + $0x51] sm:$0xff]
      %v7375 = vld [vmem:[%s556 + $0x61] sm:$0xff]
      %v7376 = vld [vmem:[%s556 + $0x69] sm:$0xff]
      %v7377 = vld [vmem:[%s556 + $0x79] sm:$0xff]
      %v7378 = vld [vmem:[%s556 + $0x81] sm:$0xff]
      %v7379 = vld [vmem:[%s556 + $0x91] sm:$0xff]
      %v7380 = vld [vmem:[%s556 + $0x99] sm:$0xff]
      %v7381 = vld [vmem:[%s556 + $0xa9] sm:$0xff]
      %v7382 = vld [vmem:[%s556 + $0xb1] sm:$0xff]
      %v7383 = vld [vmem:[%s556 + $0xc1] sm:$0xff]
      %v7384 = vld [vmem:[%s556 + $0xc9] sm:$0xff]
      %v7385 = vld [vmem:[%s556 + $0xd9] sm:$0xff]
      %v7386 = vld [vmem:[%s556 + $0xe1] sm:$0xff]
      %v7387 = vld [vmem:[%s556 + $0xf1] sm:$0xff]
      %v7388 = vld [vmem:[%s556 + $0xf9] sm:$0xff]
      %v7389 = vld [vmem:[%s556 + $0x109] sm:$0xff]
      %v7390 = vld [vmem:[%s556 + $0x111] sm:$0xff]
      %v7391 = vld [vmem:[%s556 + $0x121] sm:$0xff]
      %v7392 = vld [vmem:[%s556 + $0x129] sm:$0xff]
      %v7393 = vld [vmem:[%s556 + $0x139] sm:$0xff]
      %v7394 = vld [vmem:[%s556 + $0x141] sm:$0xff]
      %v7395 = vld [vmem:[%s556 + $0x151] sm:$0xff]
      %v7396 = vld [vmem:[%s556 + $0x159] sm:$0xff]
      %v7397 = vld [vmem:[%s556 + $0x169] sm:$0xff]
      %v7398 = vld [vmem:[%s556 + $0x171] sm:$0xff]
      %v7399 = vld [vmem:[%s556 + $0x2] sm:$0xff]
      %v7400 = vld [vmem:[%s556 + $0xa] sm:$0xff]
      %v7401 = vld [vmem:[%s556 + $0x1a] sm:$0xff]
      %v7402 = vld [vmem:[%s556 + $0x22] sm:$0xff]
      %v7403 = vld [vmem:[%s556 + $0x32] sm:$0xff]
      %v7404 = vld [vmem:[%s556 + $0x3a] sm:$0xff]
      %v7405 = vld [vmem:[%s556 + $0x4a] sm:$0xff]
      %v7406 = vld [vmem:[%s556 + $0x52] sm:$0xff]
      %v7407 = vld [vmem:[%s556 + $0x62] sm:$0xff]
      %v7408 = vld [vmem:[%s556 + $0x6a] sm:$0xff]
      %v7409 = vld [vmem:[%s556 + $0x7a] sm:$0xff]
      %v7410 = vld [vmem:[%s556 + $0x82] sm:$0xff]
      %v7411 = vld [vmem:[%s556 + $0x92] sm:$0xff]
      %v7412 = vld [vmem:[%s556 + $0x9a] sm:$0xff]
      %v7413 = vld [vmem:[%s556 + $0xaa] sm:$0xff]
      %v7414 = vld [vmem:[%s556 + $0xb2] sm:$0xff]
      %v7415 = vld [vmem:[%s556 + $0xc2] sm:$0xff]
      %v7416 = vld [vmem:[%s556 + $0xca] sm:$0xff]
      %v7417 = vld [vmem:[%s556 + $0xda] sm:$0xff]
      %v7418 = vld [vmem:[%s556 + $0xe2] sm:$0xff]
      %v7419 = vld [vmem:[%s556 + $0xf2] sm:$0xff]
      %v7420 = vld [vmem:[%s556 + $0xfa] sm:$0xff]
      %v7421 = vld [vmem:[%s556 + $0x10a] sm:$0xff]
      %v7422 = vld [vmem:[%s556 + $0x112] sm:$0xff]
      %v7423 = vld [vmem:[%s556 + $0x122] sm:$0xff]
      %v7424 = vld [vmem:[%s556 + $0x12a] sm:$0xff]
      %v7425 = vld [vmem:[%s556 + $0x13a] sm:$0xff]
      %v7426 = vld [vmem:[%s556 + $0x142] sm:$0xff]
      %v7427 = vld [vmem:[%s556 + $0x152] sm:$0xff]
      %v7428 = vld [vmem:[%s556 + $0x15a] sm:$0xff]
      %v7429 = vld [vmem:[%s556 + $0x16a] sm:$0xff]
      %v7430 = vld [vmem:[%s556 + $0x172] sm:$0xff]
      %v7431 = vld [vmem:[%s556 + $0x3] sm:$0xff]
      %v7432 = vld [vmem:[%s556 + $0xb] sm:$0xff]
      %v7433 = vld [vmem:[%s556 + $0x1b] sm:$0xff]
      %v7434 = vld [vmem:[%s556 + $0x23] sm:$0xff]
      %v7435 = vld [vmem:[%s556 + $0x33] sm:$0xff]
      %v7436 = vld [vmem:[%s556 + $0x3b] sm:$0xff]
      %v7437 = vld [vmem:[%s556 + $0x4b] sm:$0xff]
      %v7438 = vld [vmem:[%s556 + $0x53] sm:$0xff]
      %v7439 = vld [vmem:[%s556 + $0x63] sm:$0xff]
      %v7440 = vld [vmem:[%s556 + $0x6b] sm:$0xff]
      %v7441 = vld [vmem:[%s556 + $0x7b] sm:$0xff]
      %v7442 = vld [vmem:[%s556 + $0x83] sm:$0xff]
      %v7443 = vld [vmem:[%s556 + $0x93] sm:$0xff]
      %v7444 = vld [vmem:[%s556 + $0x9b] sm:$0xff]
      %v7445 = vld [vmem:[%s556 + $0xab] sm:$0xff]
      %v7446 = vld [vmem:[%s556 + $0xb3] sm:$0xff]
      %v7447 = vld [vmem:[%s556 + $0xc3] sm:$0xff]
      %v7448 = vld [vmem:[%s556 + $0xcb] sm:$0xff]
      %v7449 = vld [vmem:[%s556 + $0xdb] sm:$0xff]
      %v7450 = vld [vmem:[%s556 + $0xe3] sm:$0xff]
      %v7451 = vld [vmem:[%s556 + $0xf3] sm:$0xff]
      %v7452 = vld [vmem:[%s556 + $0xfb] sm:$0xff]
      %v7453 = vld [vmem:[%s556 + $0x10b] sm:$0xff]
      %v7454 = vld [vmem:[%s556 + $0x113] sm:$0xff]
      %v7455 = vld [vmem:[%s556 + $0x123] sm:$0xff]
      %v7456 = vld [vmem:[%s556 + $0x12b] sm:$0xff]
      %v7457 = vld [vmem:[%s556 + $0x13b] sm:$0xff]
      %v7458 = vld [vmem:[%s556 + $0x143] sm:$0xff]
      %v7459 = vld [vmem:[%s556 + $0x153] sm:$0xff]
      %v7460 = vld [vmem:[%s556 + $0x15b] sm:$0xff]
      %v7461 = vld [vmem:[%s556 + $0x16b] sm:$0xff]
      %v7462 = vld [vmem:[%s556 + $0x173] sm:$0xff]
      %v7463 = vld [vmem:[%s457 + $0x1] sm:$0xff]
      %v7464 = vld [vmem:[%s457 + $0x9] sm:$0xff]
      %v7465 = vld [vmem:[%s457 + $0x19] sm:$0xff]
      %v7466 = vld [vmem:[%s457 + $0x21] sm:$0xff]
      %v7467 = vld [vmem:[%s457 + $0x31] sm:$0xff]
      %v7468 = vld [vmem:[%s457 + $0x39] sm:$0xff]
      %v7469 = vld [vmem:[%s457 + $0x49] sm:$0xff]
      %v7470 = vld [vmem:[%s457 + $0x51] sm:$0xff]
      %v7471 = vld [vmem:[%s457 + $0x61] sm:$0xff]
      %v7472 = vld [vmem:[%s457 + $0x69] sm:$0xff]
      %v7473 = vld [vmem:[%s457 + $0x79] sm:$0xff]
      %v7474 = vld [vmem:[%s457 + $0x81] sm:$0xff]
      %v7475 = vld [vmem:[%s457 + $0x91] sm:$0xff]
      %v7476 = vld [vmem:[%s457 + $0x99] sm:$0xff]
      %v7477 = vld [vmem:[%s457 + $0xa9] sm:$0xff]
      %v7478 = vld [vmem:[%s457 + $0xb1] sm:$0xff]
      %v7479 = vld [vmem:[%s457 + $0xc1] sm:$0xff]
      %v7480 = vld [vmem:[%s457 + $0xc9] sm:$0xff]
      %v7481 = vld [vmem:[%s457 + $0xd9] sm:$0xff]
      %v7482 = vld [vmem:[%s457 + $0xe1] sm:$0xff]
      %v7483 = vld [vmem:[%s457 + $0xf1] sm:$0xff]
      %v7484 = vld [vmem:[%s457 + $0xf9] sm:$0xff]
      %v7485 = vld [vmem:[%s457 + $0x109] sm:$0xff]
      %v7486 = vld [vmem:[%s457 + $0x111] sm:$0xff]
      %v7487 = vld [vmem:[%s457 + $0x121] sm:$0xff]
      %v7488 = vld [vmem:[%s457 + $0x129] sm:$0xff]
      %v7489 = vld [vmem:[%s457 + $0x139] sm:$0xff]
      %v7490 = vld [vmem:[%s457 + $0x141] sm:$0xff]
      %v7491 = vld [vmem:[%s457 + $0x151] sm:$0xff]
      %v7492 = vld [vmem:[%s457 + $0x159] sm:$0xff]
      %v7493 = vld [vmem:[%s457 + $0x169] sm:$0xff]
      %v7494 = vld [vmem:[%s457 + $0x171] sm:$0xff]
      %v7495 = vld [vmem:[%s457 + $0x2] sm:$0xff]
      %v7496 = vld [vmem:[%s457 + $0xa] sm:$0xff]
      %v7497 = vld [vmem:[%s457 + $0x1a] sm:$0xff]
      %v7498 = vld [vmem:[%s457 + $0x22] sm:$0xff]
      %v7499 = vld [vmem:[%s457 + $0x32] sm:$0xff]
      %v7500 = vld [vmem:[%s457 + $0x3a] sm:$0xff]
      %v7501 = vld [vmem:[%s457 + $0x4a] sm:$0xff]
      %v7502 = vld [vmem:[%s457 + $0x52] sm:$0xff]
      %v7503 = vld [vmem:[%s457 + $0x62] sm:$0xff]
      %v7504 = vld [vmem:[%s457 + $0x6a] sm:$0xff]
      %v7505 = vld [vmem:[%s457 + $0x7a] sm:$0xff]
      %v7506 = vld [vmem:[%s457 + $0x82] sm:$0xff]
      %v7507 = vld [vmem:[%s457 + $0x92] sm:$0xff]
      %v7508 = vld [vmem:[%s457 + $0x9a] sm:$0xff]
      %v7509 = vld [vmem:[%s457 + $0xaa] sm:$0xff]
      %v7510 = vld [vmem:[%s457 + $0xb2] sm:$0xff]
      %v7511 = vld [vmem:[%s457 + $0xc2] sm:$0xff]
      %v7512 = vld [vmem:[%s457 + $0xca] sm:$0xff]
      %v7513 = vld [vmem:[%s457 + $0xda] sm:$0xff]
      %v7514 = vld [vmem:[%s457 + $0xe2] sm:$0xff]
      %v7515 = vld [vmem:[%s457 + $0xf2] sm:$0xff]
      %v7516 = vld [vmem:[%s457 + $0xfa] sm:$0xff]
      %v7517 = vld [vmem:[%s457 + $0x10a] sm:$0xff]
      %v7518 = vld [vmem:[%s457 + $0x112] sm:$0xff]
      %v7519 = vld [vmem:[%s457 + $0x122] sm:$0xff]
      %v7520 = vld [vmem:[%s457 + $0x12a] sm:$0xff]
      %v7521 = vld [vmem:[%s457 + $0x13a] sm:$0xff]
      %v7522 = vld [vmem:[%s457 + $0x142] sm:$0xff]
      %v7523 = vld [vmem:[%s457 + $0x152] sm:$0xff]
      %v7524 = vld [vmem:[%s457 + $0x15a] sm:$0xff]
      %v7525 = vld [vmem:[%s457 + $0x16a] sm:$0xff]
      %v7526 = vld [vmem:[%s457 + $0x172] sm:$0xff]
      %v7527 = vld [vmem:[%s457 + $0x3] sm:$0xff]
      %v7528 = vld [vmem:[%s457 + $0xb] sm:$0xff]
      %v7529 = vld [vmem:[%s457 + $0x1b] sm:$0xff]
      %v7530 = vld [vmem:[%s457 + $0x23] sm:$0xff]
      %v7531 = vld [vmem:[%s457 + $0x33] sm:$0xff]
      %v7532 = vld [vmem:[%s457 + $0x3b] sm:$0xff]
      %v7533 = vld [vmem:[%s457 + $0x4b] sm:$0xff]
      %v7534 = vld [vmem:[%s457 + $0x53] sm:$0xff]
      %v7535 = vld [vmem:[%s457 + $0x63] sm:$0xff]
      %v7536 = vld [vmem:[%s457 + $0x6b] sm:$0xff]
      %v7537 = vld [vmem:[%s457 + $0x7b] sm:$0xff]
      %v7538 = vld [vmem:[%s457 + $0x83] sm:$0xff]
      %v7539 = vld [vmem:[%s457 + $0x93] sm:$0xff]
      %v7540 = vld [vmem:[%s457 + $0x9b] sm:$0xff]
      %v7541 = vld [vmem:[%s457 + $0xab] sm:$0xff]
      %v7542 = vld [vmem:[%s457 + $0xb3] sm:$0xff]
      %v7543 = vld [vmem:[%s457 + $0xc3] sm:$0xff]
      %v7544 = vld [vmem:[%s457 + $0xcb] sm:$0xff]
      %v7545 = vld [vmem:[%s457 + $0xdb] sm:$0xff]
      %v7546 = vld [vmem:[%s457 + $0xe3] sm:$0xff]
      %v7547 = vld [vmem:[%s457 + $0xf3] sm:$0xff]
      %v7548 = vld [vmem:[%s457 + $0xfb] sm:$0xff]
      %v7549 = vld [vmem:[%s457 + $0x10b] sm:$0xff]
      %v7550 = vld [vmem:[%s457 + $0x113] sm:$0xff]
      %v7551 = vld [vmem:[%s457 + $0x123] sm:$0xff]
      %v7552 = vld [vmem:[%s457 + $0x12b] sm:$0xff]
      %v7553 = vld [vmem:[%s457 + $0x13b] sm:$0xff]
      %v7554 = vld [vmem:[%s457 + $0x143] sm:$0xff]
      %v7555 = vld [vmem:[%s457 + $0x153] sm:$0xff]
      %v7556 = vld [vmem:[%s457 + $0x15b] sm:$0xff]
      %v7557 = vld [vmem:[%s457 + $0x16b] sm:$0xff]
      %v7558 = vld [vmem:[%s457 + $0x173] sm:$0xff]
      %7591 = vrot.lane.b32.xlu0 %v7399, 32
      %v7592 = vpop.permute.xlu0 %7591
      %7593 = vrot.lane.b32.xlu0 %v7400, 32
      %v7594 = vpop.permute.xlu0 %7593
      %7595 = vrot.lane.b32.xlu0 %v7401, 32
      %v7596 = vpop.permute.xlu0 %7595
      %7597 = vrot.lane.b32.xlu0 %v7402, 32
      %v7598 = vpop.permute.xlu0 %7597
      %7599 = vrot.lane.b32.xlu0 %v7403, 32
      %v7600 = vpop.permute.xlu0 %7599
      %7601 = vrot.lane.b32.xlu0 %v7404, 32
      %v7602 = vpop.permute.xlu0 %7601
      %7603 = vrot.lane.b32.xlu0 %v7405, 32
      %v7604 = vpop.permute.xlu0 %7603
      %7605 = vrot.lane.b32.xlu0 %v7406, 32
      %v7606 = vpop.permute.xlu0 %7605
      %7607 = vrot.lane.b32.xlu0 %v7407, 32
      %v7608 = vpop.permute.xlu0 %7607
      %7609 = vrot.lane.b32.xlu0 %v7408, 32
      %v7610 = vpop.permute.xlu0 %7609
      %7611 = vrot.lane.b32.xlu0 %v7409, 32
      %v7612 = vpop.permute.xlu0 %7611
      %7613 = vrot.lane.b32.xlu0 %v7410, 32
      %v7614 = vpop.permute.xlu0 %7613
      %7615 = vrot.lane.b32.xlu0 %v7411, 32
      %v7616 = vpop.permute.xlu0 %7615
      %7617 = vrot.lane.b32.xlu0 %v7412, 32
      %v7618 = vpop.permute.xlu0 %7617
      %7619 = vrot.lane.b32.xlu0 %v7413, 32
      %v7620 = vpop.permute.xlu0 %7619
      %7621 = vrot.lane.b32.xlu0 %v7414, 32
      %v7622 = vpop.permute.xlu0 %7621
      %7623 = vrot.lane.b32.xlu0 %v7415, 32
      %v7624 = vpop.permute.xlu0 %7623
      %7625 = vrot.lane.b32.xlu0 %v7416, 32
      %v7626 = vpop.permute.xlu0 %7625
      %7627 = vrot.lane.b32.xlu0 %v7417, 32
      %v7628 = vpop.permute.xlu0 %7627
      %7629 = vrot.lane.b32.xlu0 %v7418, 32
      %v7630 = vpop.permute.xlu0 %7629
      %7631 = vrot.lane.b32.xlu0 %v7419, 32
      %v7632 = vpop.permute.xlu0 %7631
      %7633 = vrot.lane.b32.xlu0 %v7420, 32
      %v7634 = vpop.permute.xlu0 %7633
      %7635 = vrot.lane.b32.xlu0 %v7421, 32
      %v7636 = vpop.permute.xlu0 %7635
      %7637 = vrot.lane.b32.xlu0 %v7422, 32
      %v7638 = vpop.permute.xlu0 %7637
      %7639 = vrot.lane.b32.xlu0 %v7423, 32
      %v7640 = vpop.permute.xlu0 %7639
      %7641 = vrot.lane.b32.xlu0 %v7424, 32
      %v7642 = vpop.permute.xlu0 %7641
      %7643 = vrot.lane.b32.xlu0 %v7425, 32
      %v7644 = vpop.permute.xlu0 %7643
      %7645 = vrot.lane.b32.xlu0 %v7426, 32
      %v7646 = vpop.permute.xlu0 %7645
      %7647 = vrot.lane.b32.xlu0 %v7427, 32
      %v7648 = vpop.permute.xlu0 %7647
      %7649 = vrot.lane.b32.xlu0 %v7428, 32
      %v7650 = vpop.permute.xlu0 %7649
      %7651 = vrot.lane.b32.xlu0 %v7429, 32
      %v7652 = vpop.permute.xlu0 %7651
      %7653 = vrot.lane.b32.xlu0 %v7430, 32
      %v7654 = vpop.permute.xlu0 %7653
      %7719 = vrot.lane.b32.xlu0 %v7431, 64
      %v7720 = vpop.permute.xlu0 %7719
      %7721 = vrot.lane.b32.xlu0 %v7432, 64
      %v7722 = vpop.permute.xlu0 %7721
      %7723 = vrot.lane.b32.xlu0 %v7433, 64
      %v7724 = vpop.permute.xlu0 %7723
      %7725 = vrot.lane.b32.xlu0 %v7434, 64
      %v7726 = vpop.permute.xlu0 %7725
      %7727 = vrot.lane.b32.xlu0 %v7435, 64
      %v7728 = vpop.permute.xlu0 %7727
      %7729 = vrot.lane.b32.xlu0 %v7436, 64
      %v7730 = vpop.permute.xlu0 %7729
      %7731 = vrot.lane.b32.xlu0 %v7437, 64
      %v7732 = vpop.permute.xlu0 %7731
      %7733 = vrot.lane.b32.xlu0 %v7438, 64
      %v7734 = vpop.permute.xlu0 %7733
      %7735 = vrot.lane.b32.xlu0 %v7439, 64
      %v7736 = vpop.permute.xlu0 %7735
      %7737 = vrot.lane.b32.xlu0 %v7440, 64
      %v7738 = vpop.permute.xlu0 %7737
      %7739 = vrot.lane.b32.xlu0 %v7441, 64
      %v7740 = vpop.permute.xlu0 %7739
      %7741 = vrot.lane.b32.xlu0 %v7442, 64
      %v7742 = vpop.permute.xlu0 %7741
      %7743 = vrot.lane.b32.xlu0 %v7443, 64
      %v7744 = vpop.permute.xlu0 %7743
      %7745 = vrot.lane.b32.xlu0 %v7444, 64
      %v7746 = vpop.permute.xlu0 %7745
      %7747 = vrot.lane.b32.xlu0 %v7445, 64
      %v7748 = vpop.permute.xlu0 %7747
      %7749 = vrot.lane.b32.xlu0 %v7446, 64
      %v7750 = vpop.permute.xlu0 %7749
      %7751 = vrot.lane.b32.xlu0 %v7447, 64
      %v7752 = vpop.permute.xlu0 %7751
      %7753 = vrot.lane.b32.xlu0 %v7448, 64
      %v7754 = vpop.permute.xlu0 %7753
      %7755 = vrot.lane.b32.xlu0 %v7449, 64
      %v7756 = vpop.permute.xlu0 %7755
      %7757 = vrot.lane.b32.xlu0 %v7450, 64
      %v7758 = vpop.permute.xlu0 %7757
      %7759 = vrot.lane.b32.xlu0 %v7451, 64
      %v7760 = vpop.permute.xlu0 %7759
      %7761 = vrot.lane.b32.xlu0 %v7452, 64
      %v7762 = vpop.permute.xlu0 %7761
      %7763 = vrot.lane.b32.xlu0 %v7453, 64
      %v7764 = vpop.permute.xlu0 %7763
      %7765 = vrot.lane.b32.xlu0 %v7454, 64
      %v7766 = vpop.permute.xlu0 %7765
      %7767 = vrot.lane.b32.xlu0 %v7455, 64
      %v7768 = vpop.permute.xlu0 %7767
      %7769 = vrot.lane.b32.xlu0 %v7456, 64
      %v7770 = vpop.permute.xlu0 %7769
      %7771 = vrot.lane.b32.xlu0 %v7457, 64
      %v7772 = vpop.permute.xlu0 %7771
      %7773 = vrot.lane.b32.xlu0 %v7458, 64
      %v7774 = vpop.permute.xlu0 %7773
      %7775 = vrot.lane.b32.xlu0 %v7459, 64
      %v7776 = vpop.permute.xlu0 %7775
      %7777 = vrot.lane.b32.xlu0 %v7460, 64
      %v7778 = vpop.permute.xlu0 %7777
      %7779 = vrot.lane.b32.xlu0 %v7461, 64
      %v7780 = vpop.permute.xlu0 %7779
      %7781 = vrot.lane.b32.xlu0 %v7462, 64
      %v7782 = vpop.permute.xlu0 %7781
      %7847 = vrot.lane.b32.xlu0 %v7463, 96
      %v7848 = vpop.permute.xlu0 %7847
      %7849 = vrot.lane.b32.xlu0 %v7464, 96
      %v7850 = vpop.permute.xlu0 %7849
      %7851 = vrot.lane.b32.xlu0 %v7465, 96
      %v7852 = vpop.permute.xlu0 %7851
      %7853 = vrot.lane.b32.xlu0 %v7466, 96
      %v7854 = vpop.permute.xlu0 %7853
      %7855 = vrot.lane.b32.xlu0 %v7467, 96
      %v7856 = vpop.permute.xlu0 %7855
      %7857 = vrot.lane.b32.xlu0 %v7468, 96
      %v7858 = vpop.permute.xlu0 %7857
      %7859 = vrot.lane.b32.xlu0 %v7469, 96
      %v7860 = vpop.permute.xlu0 %7859
      %7861 = vrot.lane.b32.xlu0 %v7470, 96
      %v7862 = vpop.permute.xlu0 %7861
      %7863 = vrot.lane.b32.xlu0 %v7471, 96
      %v7864 = vpop.permute.xlu0 %7863
      %7865 = vrot.lane.b32.xlu0 %v7472, 96
      %v7866 = vpop.permute.xlu0 %7865
      %7867 = vrot.lane.b32.xlu0 %v7473, 96
      %v7868 = vpop.permute.xlu0 %7867
      %7869 = vrot.lane.b32.xlu0 %v7474, 96
      %v7870 = vpop.permute.xlu0 %7869
      %7871 = vrot.lane.b32.xlu0 %v7475, 96
      %v7872 = vpop.permute.xlu0 %7871
      %7873 = vrot.lane.b32.xlu0 %v7476, 96
      %v7874 = vpop.permute.xlu0 %7873
      %7875 = vrot.lane.b32.xlu0 %v7477, 96
      %v7876 = vpop.permute.xlu0 %7875
      %7877 = vrot.lane.b32.xlu0 %v7478, 96
      %v7878 = vpop.permute.xlu0 %7877
      %7879 = vrot.lane.b32.xlu0 %v7479, 96
      %v7880 = vpop.permute.xlu0 %7879
      %7881 = vrot.lane.b32.xlu0 %v7480, 96
      %v7882 = vpop.permute.xlu0 %7881
      %7883 = vrot.lane.b32.xlu0 %v7481, 96
      %v7884 = vpop.permute.xlu0 %7883
      %7885 = vrot.lane.b32.xlu0 %v7482, 96
      %v7886 = vpop.permute.xlu0 %7885
      %7887 = vrot.lane.b32.xlu0 %v7483, 96
      %v7888 = vpop.permute.xlu0 %7887
      %7889 = vrot.lane.b32.xlu0 %v7484, 96
      %v7890 = vpop.permute.xlu0 %7889
      %7891 = vrot.lane.b32.xlu0 %v7485, 96
      %v7892 = vpop.permute.xlu0 %7891
      %7893 = vrot.lane.b32.xlu0 %v7486, 96
      %v7894 = vpop.permute.xlu0 %7893
      %7895 = vrot.lane.b32.xlu0 %v7487, 96
      %v7896 = vpop.permute.xlu0 %7895
      %7897 = vrot.lane.b32.xlu0 %v7488, 96
      %v7898 = vpop.permute.xlu0 %7897
      %7899 = vrot.lane.b32.xlu0 %v7489, 96
      %v7900 = vpop.permute.xlu0 %7899
      %7901 = vrot.lane.b32.xlu0 %v7490, 96
      %v7902 = vpop.permute.xlu0 %7901
      %7903 = vrot.lane.b32.xlu0 %v7491, 96
      %v7904 = vpop.permute.xlu0 %7903
      %7905 = vrot.lane.b32.xlu0 %v7492, 96
      %v7906 = vpop.permute.xlu0 %7905
      %7907 = vrot.lane.b32.xlu0 %v7493, 96
      %v7908 = vpop.permute.xlu0 %7907
      %7909 = vrot.lane.b32.xlu0 %v7494, 96
      %v7910 = vpop.permute.xlu0 %7909
      %7975 = vrot.lane.b32.xlu0 %v7527, 32
      %v7976 = vpop.permute.xlu0 %7975
      %7977 = vrot.lane.b32.xlu0 %v7528, 32
      %v7978 = vpop.permute.xlu0 %7977
      %7979 = vrot.lane.b32.xlu0 %v7529, 32
      %v7980 = vpop.permute.xlu0 %7979
      %7981 = vrot.lane.b32.xlu0 %v7530, 32
      %v7982 = vpop.permute.xlu0 %7981
      %7983 = vrot.lane.b32.xlu0 %v7531, 32
      %v7984 = vpop.permute.xlu0 %7983
      %7985 = vrot.lane.b32.xlu0 %v7532, 32
      %v7986 = vpop.permute.xlu0 %7985
      %7987 = vrot.lane.b32.xlu0 %v7533, 32
      %v7988 = vpop.permute.xlu0 %7987
      %7989 = vrot.lane.b32.xlu0 %v7534, 32
      %v7990 = vpop.permute.xlu0 %7989
      %7991 = vrot.lane.b32.xlu0 %v7535, 32
      %v7992 = vpop.permute.xlu0 %7991
      %7993 = vrot.lane.b32.xlu0 %v7536, 32
      %v7994 = vpop.permute.xlu0 %7993
      %7995 = vrot.lane.b32.xlu0 %v7537, 32
      %v7996 = vpop.permute.xlu0 %7995
      %7997 = vrot.lane.b32.xlu0 %v7538, 32
      %v7998 = vpop.permute.xlu0 %7997
      %7999 = vrot.lane.b32.xlu0 %v7539, 32
      %v8000 = vpop.permute.xlu0 %7999
      %8001 = vrot.lane.b32.xlu0 %v7540, 32
      %v8002 = vpop.permute.xlu0 %8001
      %8003 = vrot.lane.b32.xlu0 %v7541, 32
      %v8004 = vpop.permute.xlu0 %8003
      %8005 = vrot.lane.b32.xlu0 %v7542, 32
      %v8006 = vpop.permute.xlu0 %8005
      %8007 = vrot.lane.b32.xlu0 %v7543, 32
      %v8008 = vpop.permute.xlu0 %8007
      %8009 = vrot.lane.b32.xlu0 %v7544, 32
      %v8010 = vpop.permute.xlu0 %8009
      %8011 = vrot.lane.b32.xlu0 %v7545, 32
      %v8012 = vpop.permute.xlu0 %8011
      %8013 = vrot.lane.b32.xlu0 %v7546, 32
      %v8014 = vpop.permute.xlu0 %8013
      %8015 = vrot.lane.b32.xlu0 %v7547, 32
      %v8016 = vpop.permute.xlu0 %8015
      %8017 = vrot.lane.b32.xlu0 %v7548, 32
      %v8018 = vpop.permute.xlu0 %8017
      %8019 = vrot.lane.b32.xlu0 %v7549, 32
      %v8020 = vpop.permute.xlu0 %8019
      %8021 = vrot.lane.b32.xlu0 %v7550, 32
      %v8022 = vpop.permute.xlu0 %8021
      %8023 = vrot.lane.b32.xlu0 %v7551, 32
      %v8024 = vpop.permute.xlu0 %8023
      %8025 = vrot.lane.b32.xlu0 %v7552, 32
      %v8026 = vpop.permute.xlu0 %8025
      %8027 = vrot.lane.b32.xlu0 %v7553, 32
      %v8028 = vpop.permute.xlu0 %8027
      %8029 = vrot.lane.b32.xlu0 %v7554, 32
      %v8030 = vpop.permute.xlu0 %8029
      %8031 = vrot.lane.b32.xlu0 %v7555, 32
      %v8032 = vpop.permute.xlu0 %8031
      %8033 = vrot.lane.b32.xlu0 %v7556, 32
      %v8034 = vpop.permute.xlu0 %8033
      %8035 = vrot.lane.b32.xlu0 %v7557, 32
      %v8036 = vpop.permute.xlu0 %8035
      %8037 = vrot.lane.b32.xlu0 %v7558, 32
      %v8038 = vpop.permute.xlu0 %8037
      %v8071 = vsel %vm442, %v7367, %v7592
      %v8072 = vsel %vm442, %v7368, %v7594
      %v8073 = vsel %vm442, %v7369, %v7596
      %v8074 = vsel %vm442, %v7370, %v7598
      %v8075 = vsel %vm442, %v7371, %v7600
      %v8076 = vsel %vm442, %v7372, %v7602
      %v8077 = vsel %vm442, %v7373, %v7604
      %v8078 = vsel %vm442, %v7374, %v7606
      %v8079 = vsel %vm442, %v7375, %v7608
      %v8080 = vsel %vm442, %v7376, %v7610
      %v8081 = vsel %vm442, %v7377, %v7612
      %v8082 = vsel %vm442, %v7378, %v7614
      %v8083 = vsel %vm442, %v7379, %v7616
      %v8084 = vsel %vm442, %v7380, %v7618
      %v8085 = vsel %vm442, %v7381, %v7620
      %v8086 = vsel %vm442, %v7382, %v7622
      %v8087 = vsel %vm442, %v7383, %v7624
      %v8088 = vsel %vm442, %v7384, %v7626
      %v8089 = vsel %vm442, %v7385, %v7628
      %v8090 = vsel %vm442, %v7386, %v7630
      %v8091 = vsel %vm442, %v7387, %v7632
      %v8092 = vsel %vm442, %v7388, %v7634
      %v8093 = vsel %vm442, %v7389, %v7636
      %v8094 = vsel %vm442, %v7390, %v7638
      %v8095 = vsel %vm442, %v7391, %v7640
      %v8096 = vsel %vm442, %v7392, %v7642
      %v8097 = vsel %vm442, %v7393, %v7644
      %v8098 = vsel %vm442, %v7394, %v7646
      %v8099 = vsel %vm442, %v7395, %v7648
      %v8100 = vsel %vm442, %v7396, %v7650
      %v8101 = vsel %vm442, %v7397, %v7652
      %v8102 = vsel %vm442, %v7398, %v7654
      %v8103 = vsel %vm2255, %v8071, %v7720
      %v8104 = vsel %vm2255, %v8072, %v7722
      %v8105 = vsel %vm2255, %v8073, %v7724
      %v8106 = vsel %vm2255, %v8074, %v7726
      %v8107 = vsel %vm2255, %v8075, %v7728
      %v8108 = vsel %vm2255, %v8076, %v7730
      %v8109 = vsel %vm2255, %v8077, %v7732
      %v8110 = vsel %vm2255, %v8078, %v7734
      %v8111 = vsel %vm2255, %v8079, %v7736
      %v8112 = vsel %vm2255, %v8080, %v7738
      %v8113 = vsel %vm2255, %v8081, %v7740
      %v8114 = vsel %vm2255, %v8082, %v7742
      %v8115 = vsel %vm2255, %v8083, %v7744
      %v8116 = vsel %vm2255, %v8084, %v7746
      %v8117 = vsel %vm2255, %v8085, %v7748
      %v8118 = vsel %vm2255, %v8086, %v7750
      %v8119 = vsel %vm2255, %v8087, %v7752
      %v8120 = vsel %vm2255, %v8088, %v7754
      %v8121 = vsel %vm2255, %v8089, %v7756
      %v8122 = vsel %vm2255, %v8090, %v7758
      %v8123 = vsel %vm2255, %v8091, %v7760
      %v8124 = vsel %vm2255, %v8092, %v7762
      %v8125 = vsel %vm2255, %v8093, %v7764
      %v8126 = vsel %vm2255, %v8094, %v7766
      %v8127 = vsel %vm2255, %v8095, %v7768
      %v8128 = vsel %vm2255, %v8096, %v7770
      %v8129 = vsel %vm2255, %v8097, %v7772
      %v8130 = vsel %vm2255, %v8098, %v7774
      %v8131 = vsel %vm2255, %v8099, %v7776
      %v8132 = vsel %vm2255, %v8100, %v7778
      %v8133 = vsel %vm2255, %v8101, %v7780
      %v8134 = vsel %vm2255, %v8102, %v7782
      %v8135 = vsel %vm2288, %v8103, %v7848
      %v8136 = vsel %vm2288, %v8104, %v7850
      %v8137 = vsel %vm2288, %v8105, %v7852
      %v8138 = vsel %vm2288, %v8106, %v7854
      %v8139 = vsel %vm2288, %v8107, %v7856
      %v8140 = vsel %vm2288, %v8108, %v7858
      %v8141 = vsel %vm2288, %v8109, %v7860
      %v8142 = vsel %vm2288, %v8110, %v7862
      %v8143 = vsel %vm2288, %v8111, %v7864
      %v8144 = vsel %vm2288, %v8112, %v7866
      %v8145 = vsel %vm2288, %v8113, %v7868
      %v8146 = vsel %vm2288, %v8114, %v7870
      %v8147 = vsel %vm2288, %v8115, %v7872
      %v8148 = vsel %vm2288, %v8116, %v7874
      %v8149 = vsel %vm2288, %v8117, %v7876
      %v8150 = vsel %vm2288, %v8118, %v7878
      %v8151 = vsel %vm2288, %v8119, %v7880
      %v8152 = vsel %vm2288, %v8120, %v7882
      %v8153 = vsel %vm2288, %v8121, %v7884
      %v8154 = vsel %vm2288, %v8122, %v7886
      %v8155 = vsel %vm2288, %v8123, %v7888
      %v8156 = vsel %vm2288, %v8124, %v7890
      %v8157 = vsel %vm2288, %v8125, %v7892
      %v8158 = vsel %vm2288, %v8126, %v7894
      %v8159 = vsel %vm2288, %v8127, %v7896
      %v8160 = vsel %vm2288, %v8128, %v7898
      %v8161 = vsel %vm2288, %v8129, %v7900
      %v8162 = vsel %vm2288, %v8130, %v7902
      %v8163 = vsel %vm2288, %v8131, %v7904
      %v8164 = vsel %vm2288, %v8132, %v7906
      %v8165 = vsel %vm2288, %v8133, %v7908
      %v8166 = vsel %vm2288, %v8134, %v7910
      %v8167 = vsel %vm442, %v7495, %v7976
      %v8168 = vsel %vm442, %v7496, %v7978
      %v8169 = vsel %vm442, %v7497, %v7980
      %v8170 = vsel %vm442, %v7498, %v7982
      %v8171 = vsel %vm442, %v7499, %v7984
      %v8172 = vsel %vm442, %v7500, %v7986
      %v8173 = vsel %vm442, %v7501, %v7988
      %v8174 = vsel %vm442, %v7502, %v7990
      %v8175 = vsel %vm442, %v7503, %v7992
      %v8176 = vsel %vm442, %v7504, %v7994
      %v8177 = vsel %vm442, %v7505, %v7996
      %v8178 = vsel %vm442, %v7506, %v7998
      %v8179 = vsel %vm442, %v7507, %v8000
      %v8180 = vsel %vm442, %v7508, %v8002
      %v8181 = vsel %vm442, %v7509, %v8004
      %v8182 = vsel %vm442, %v7510, %v8006
      %v8183 = vsel %vm442, %v7511, %v8008
      %v8184 = vsel %vm442, %v7512, %v8010
      %v8185 = vsel %vm442, %v7513, %v8012
      %v8186 = vsel %vm442, %v7514, %v8014
      %v8187 = vsel %vm442, %v7515, %v8016
      %v8188 = vsel %vm442, %v7516, %v8018
      %v8189 = vsel %vm442, %v7517, %v8020
      %v8190 = vsel %vm442, %v7518, %v8022
      %v8191 = vsel %vm442, %v7519, %v8024
      %v8192 = vsel %vm442, %v7520, %v8026
      %v8193 = vsel %vm442, %v7521, %v8028
      %v8194 = vsel %vm442, %v7522, %v8030
      %v8195 = vsel %vm442, %v7523, %v8032
      %v8196 = vsel %vm442, %v7524, %v8034
      %v8197 = vsel %vm442, %v7525, %v8036
      %v8198 = vsel %vm442, %v7526, %v8038
      %s8199 = scalar_lea.vmem %s5, 192
      %v8200 = vld [vmem:[%s8199] sm:$0xf]
      %v8201 = vld [vmem:[%s8199 + $0x4] sm:$0xf]
      %v8202 = vld [vmem:[%s8199 + $0x8] sm:$0xf]
      %v8203 = vld [vmem:[%s8199 + $0xc] sm:$0xf]
      %v8204 = vld [vmem:[%s8199 + $0x10] sm:$0xf]
      %v8205 = vld [vmem:[%s8199 + $0x14] sm:$0xf]
      %v8206 = vld [vmem:[%s8199 + $0x18] sm:$0xf]
      %v8207 = vld [vmem:[%s8199 + $0x1c] sm:$0xf]
      %v8208 = vld [vmem:[%s8199 + $0x20] sm:$0xf]
      %v8209 = vld [vmem:[%s8199 + $0x24] sm:$0xf]
      %v8210 = vld [vmem:[%s8199 + $0x28] sm:$0xf]
      %v8211 = vld [vmem:[%s8199 + $0x2c] sm:$0xf]
      %v8212 = vld [vmem:[%s8199 + $0x30] sm:$0xf]
      %v8213 = vld [vmem:[%s8199 + $0x34] sm:$0xf]
      %v8214 = vld [vmem:[%s8199 + $0x38] sm:$0xf]
      %v8215 = vld [vmem:[%s8199 + $0x3c] sm:$0xf]
      %v8216 = vld [vmem:[%s8199 + $0x40] sm:$0xf]
      %v8217 = vld [vmem:[%s8199 + $0x44] sm:$0xf]
      %v8218 = vld [vmem:[%s8199 + $0x48] sm:$0xf]
      %v8219 = vld [vmem:[%s8199 + $0x4c] sm:$0xf]
      %v8220 = vld [vmem:[%s8199 + $0x50] sm:$0xf]
      %v8221 = vld [vmem:[%s8199 + $0x54] sm:$0xf]
      %v8222 = vld [vmem:[%s8199 + $0x58] sm:$0xf]
      %v8223 = vld [vmem:[%s8199 + $0x5c] sm:$0xf]
      %s8224 = scalar_lea.vmem %s6, 2
      %v8225 = vld [vmem:[%s8224] sm:$0x1]
      %v8226 = vpack.c.bf16 %v8136, %v8135
      %v8227 = vpack.c.bf16 %v8168, %v8167
      %v8228 = vpack.c.bf16 %v8138, %v8137
      %v8229 = vpack.c.bf16 %v8170, %v8169
      %v8230 = vpack.c.bf16 %v8140, %v8139
      %v8231 = vpack.c.bf16 %v8172, %v8171
      %v8232 = vpack.c.bf16 %v8142, %v8141
      %v8233 = vpack.c.bf16 %v8174, %v8173
      %v8234 = vpack.c.bf16 %v8144, %v8143
      %v8235 = vpack.c.bf16 %v8176, %v8175
      %v8236 = vpack.c.bf16 %v8146, %v8145
      %v8237 = vpack.c.bf16 %v8178, %v8177
      %v8238 = vpack.c.bf16 %v8148, %v8147
      %v8239 = vpack.c.bf16 %v8180, %v8179
      %v8240 = vpack.c.bf16 %v8150, %v8149
      %v8241 = vpack.c.bf16 %v8182, %v8181
      %v8242 = vpack.c.bf16 %v8152, %v8151
      %v8243 = vpack.c.bf16 %v8184, %v8183
      %v8244 = vpack.c.bf16 %v8154, %v8153
      %v8245 = vpack.c.bf16 %v8186, %v8185
      %v8246 = vpack.c.bf16 %v8156, %v8155
      %v8247 = vpack.c.bf16 %v8188, %v8187
      %v8248 = vpack.c.bf16 %v8158, %v8157
      %v8249 = vpack.c.bf16 %v8190, %v8189
      %v8250 = vpack.c.bf16 %v8160, %v8159
      %v8251 = vpack.c.bf16 %v8192, %v8191
      %v8252 = vpack.c.bf16 %v8162, %v8161
      %v8253 = vpack.c.bf16 %v8194, %v8193
      %v8254 = vpack.c.bf16 %v8164, %v8163
      %v8255 = vpack.c.bf16 %v8196, %v8195
      %v8256 = vpack.c.bf16 %v8166, %v8165
      %v8257 = vpack.c.bf16 %v8198, %v8197
      %v8259 = vlaneseq
      %v8260 = vshrl.u32 %v8259, 7
      %v8261 = vsub.s32 0, %v8260
      %v8262 = vrot.slane %v8225, %v8261
      %v8288 = vunpack.c.l.b16 %v8200
      %v8289 = vunpack.c.l.b16 %v8201
      %v8290 = vunpack.c.l.b16 %v8202
      %v8291 = vunpack.c.l.b16 %v8203
      %v8292 = vunpack.c.l.b16 %v8204
      %v8293 = vunpack.c.l.b16 %v8205
      %v8294 = vunpack.c.l.b16 %v8206
      %v8295 = vunpack.c.l.b16 %v8207
      %v8296 = vunpack.c.l.b16 %v8208
      %v8297 = vunpack.c.l.b16 %v8209
      %v8298 = vunpack.c.l.b16 %v8210
      %v8299 = vunpack.c.l.b16 %v8211
      %v8300 = vunpack.c.l.b16 %v8212
      %v8301 = vunpack.c.l.b16 %v8213
      %v8302 = vunpack.c.l.b16 %v8214
      %v8303 = vunpack.c.l.b16 %v8215
      %v8304 = vunpack.c.l.b16 %v8216
      %v8305 = vunpack.c.l.b16 %v8217
      %v8306 = vunpack.c.l.b16 %v8218
      %v8307 = vunpack.c.l.b16 %v8219
      %v8308 = vunpack.c.l.b16 %v8220
      %v8309 = vunpack.c.l.b16 %v8221
      %v8310 = vunpack.c.l.b16 %v8222
      %v8311 = vunpack.c.l.b16 %v8223
      %v8312 = vpack.c.b16 %v8289, %v8288
      %v8313 = vpack.c.b16 %v8291, %v8290
      %v8314 = vpack.c.b16 %v8293, %v8292
      %v8315 = vpack.c.b16 %v8295, %v8294
      %v8316 = vpack.c.b16 %v8297, %v8296
      %v8317 = vpack.c.b16 %v8299, %v8298
      %v8318 = vpack.c.b16 %v8301, %v8300
      %v8319 = vpack.c.b16 %v8303, %v8302
      %v8320 = vpack.c.b16 %v8305, %v8304
      %v8321 = vpack.c.b16 %v8307, %v8306
      %v8322 = vpack.c.b16 %v8309, %v8308
      %v8323 = vpack.c.b16 %v8311, %v8310
      %v8337 = vsel %vm2255, %v8227, 0
      %v8340 = vsel %vm2255, %v8229, 0
      %v8343 = vsel %vm2255, %v8231, 0
      %v8346 = vsel %vm2255, %v8233, 0
      %v8349 = vsel %vm2255, %v8235, 0
      %v8352 = vsel %vm2255, %v8237, 0
      %v8355 = vsel %vm2255, %v8239, 0
      %v8358 = vsel %vm2255, %v8241, 0
      %v8361 = vsel %vm2255, %v8243, 0
      %v8364 = vsel %vm2255, %v8245, 0
      %v8367 = vsel %vm2255, %v8247, 0
      %v8370 = vsel %vm2255, %v8249, 0
      %v8373 = vsel %vm2255, %v8251, 0
      %v8376 = vsel %vm2255, %v8253, 0
      %v8379 = vsel %vm2255, %v8255, 0
      %v8382 = vsel %vm2255, %v8257, 0
      %8384 = vmatprep.subr.bf16.mxu0 0
      %8385 = vmatpush1.bf16.msra.mxu0 %v8312
      %8386 = vmatprep.subr.bf16.mxu0 0
      %8387 = vmatpush1.bf16.msra.mxu0 %v8313
      %8388 = vmatprep.subr.bf16.mxu0 0
      %8389 = vmatpush1.bf16.msra.mxu0 %v8314
      %8390 = vmatprep.subr.bf16.mxu0 0
      %8391 = vmatpush1.bf16.msra.mxu0 %v8315
      %8392 = vmatprep.subr.bf16.mxu0 0
      %8393 = vmatpush1.bf16.msra.mxu0 %v8316
      %8394 = vmatprep.subr.bf16.mxu0 0
      %8395 = vmatpush1.bf16.msra.mxu0 %v8317
      %8396 = vmatprep.subr.bf16.mxu0 0
      %8397 = vmatpush1.bf16.msra.mxu0 %v8318
      %8398 = vmatprep.subr.bf16.mxu0 0
      %8399 = vmatpush1.bf16.msra.mxu0 %v8319
      %8400 = vmatprep.subr.bf16.mxu0 0
      %8401 = vmatpush1.bf16.msra.mxu0 %v8320
      %8402 = vmatprep.subr.bf16.mxu0 0
      %8403 = vmatpush1.bf16.msra.mxu0 %v8321
      %8404 = vmatprep.subr.bf16.mxu0 0
      %8405 = vmatpush1.bf16.msra.mxu0 %v8322
      %8406 = vmatprep.subr.bf16.mxu0 0
      %8407 = vmatpush1.bf16.msra.mxu0 %v8323
      %8408 = vmatprep.subr.bf16.mxu0 0
      %8409 = vmatpush1.bf16.msra.mxu0 0
      %8410 = vmatprep.subr.bf16.mxu0 0
      %8411 = vmatpush1.bf16.msra.mxu0 0
      %8412 = vmatprep.subr.bf16.mxu0 0
      %8413 = vmatpush1.bf16.msra.mxu0 0
      %8414 = vmatprep.subr.bf16.mxu0 0
      %8415 = vmatpush1.bf16.msra.mxu0 0
      %8416 = vmatprep.mubr.bf16.mxu0 %v8337
      %8417 = vmatmul.mubr.bf16.gmra.mrb[0].mxu0 %v8226
      %v8418 = vpop.f32.mrb[0].mxu0
      %v8419 = vadd.f32 %v8262, %v8418
      %v8420 = vpop.f32.mrb[0].mxu0
      %v8421 = vpop.f32.mrb[0].mxu0
      %v8422 = vadd.f32 %v8262, %v8421
      %v8423 = vpop.f32.mrb[0].mxu0
      %8424 = vmatprep.mubr.bf16.mxu0 %v8340
      %8425 = vmatmul.mubr.bf16.gmra.mrb[0].mxu0 %v8228
      %v8426 = vpop.f32.mrb[0].mxu0
      %v8427 = vadd.f32 %v8262, %v8426
      %v8428 = vpop.f32.mrb[0].mxu0
      %v8429 = vpop.f32.mrb[0].mxu0
      %v8430 = vadd.f32 %v8262, %v8429
      %v8431 = vpop.f32.mrb[0].mxu0
      %8432 = vmatprep.mubr.bf16.mxu0 %v8343
      %8433 = vmatmul.mubr.bf16.gmra.mrb[0].mxu0 %v8230
      %v8434 = vpop.f32.mrb[0].mxu0
      %v8435 = vadd.f32 %v8262, %v8434
      %v8436 = vpop.f32.mrb[0].mxu0
      %v8437 = vpop.f32.mrb[0].mxu0
      %v8438 = vadd.f32 %v8262, %v8437
      %v8439 = vpop.f32.mrb[0].mxu0
      %8440 = vmatprep.mubr.bf16.mxu0 %v8346
      %8441 = vmatmul.mubr.bf16.gmra.mrb[0].mxu0 %v8232
      %v8442 = vpop.f32.mrb[0].mxu0
      %v8443 = vadd.f32 %v8262, %v8442
      %v8444 = vpop.f32.mrb[0].mxu0
      %v8445 = vpop.f32.mrb[0].mxu0
      %v8446 = vadd.f32 %v8262, %v8445
      %v8447 = vpop.f32.mrb[0].mxu0
      %8448 = vmatprep.mubr.bf16.mxu0 %v8349
      %8449 = vmatmul.mubr.bf16.gmra.mrb[0].mxu0 %v8234
      %v8450 = vpop.f32.mrb[0].mxu0
      %v8451 = vadd.f32 %v8262, %v8450
      %v8452 = vpop.f32.mrb[0].mxu0
      %v8453 = vpop.f32.mrb[0].mxu0
      %v8454 = vadd.f32 %v8262, %v8453
      %v8455 = vpop.f32.mrb[0].mxu0
      %8456 = vmatprep.mubr.bf16.mxu0 %v8352
      %8457 = vmatmul.mubr.bf16.gmra.mrb[0].mxu0 %v8236
      %v8458 = vpop.f32.mrb[0].mxu0
      %v8459 = vadd.f32 %v8262, %v8458
      %v8460 = vpop.f32.mrb[0].mxu0
      %v8461 = vpop.f32.mrb[0].mxu0
      %v8462 = vadd.f32 %v8262, %v8461
      %v8463 = vpop.f32.mrb[0].mxu0
      %8464 = vmatprep.mubr.bf16.mxu0 %v8355
      %8465 = vmatmul.mubr.bf16.gmra.mrb[0].mxu0 %v8238
      %v8466 = vpop.f32.mrb[0].mxu0
      %v8467 = vadd.f32 %v8262, %v8466
      %v8468 = vpop.f32.mrb[0].mxu0
      %v8469 = vpop.f32.mrb[0].mxu0
      %v8470 = vadd.f32 %v8262, %v8469
      %v8471 = vpop.f32.mrb[0].mxu0
      %8472 = vmatprep.mubr.bf16.mxu0 %v8358
      %8473 = vmatmul.mubr.bf16.gmra.mrb[0].mxu0 %v8240
      %v8474 = vpop.f32.mrb[0].mxu0
      %v8475 = vadd.f32 %v8262, %v8474
      %v8476 = vpop.f32.mrb[0].mxu0
      %v8477 = vpop.f32.mrb[0].mxu0
      %v8478 = vadd.f32 %v8262, %v8477
      %v8479 = vpop.f32.mrb[0].mxu0
      %8480 = vmatprep.mubr.bf16.mxu0 %v8361
      %8481 = vmatmul.mubr.bf16.gmra.mrb[0].mxu0 %v8242
      %v8482 = vpop.f32.mrb[0].mxu0
      %v8483 = vadd.f32 %v8262, %v8482
      %v8484 = vpop.f32.mrb[0].mxu0
      %v8485 = vpop.f32.mrb[0].mxu0
      %v8486 = vadd.f32 %v8262, %v8485
      %v8487 = vpop.f32.mrb[0].mxu0
      %8488 = vmatprep.mubr.bf16.mxu0 %v8364
      %8489 = vmatmul.mubr.bf16.gmra.mrb[0].mxu0 %v8244
      %v8490 = vpop.f32.mrb[0].mxu0
      %v8491 = vadd.f32 %v8262, %v8490
      %v8492 = vpop.f32.mrb[0].mxu0
      %v8493 = vpop.f32.mrb[0].mxu0
      %v8494 = vadd.f32 %v8262, %v8493
      %v8495 = vpop.f32.mrb[0].mxu0
      %8496 = vmatprep.mubr.bf16.mxu0 %v8367
      %8497 = vmatmul.mubr.bf16.gmra.mrb[0].mxu0 %v8246
      %v8498 = vpop.f32.mrb[0].mxu0
      %v8499 = vadd.f32 %v8262, %v8498
      %v8500 = vpop.f32.mrb[0].mxu0
      %v8501 = vpop.f32.mrb[0].mxu0
      %v8502 = vadd.f32 %v8262, %v8501
      %v8503 = vpop.f32.mrb[0].mxu0
      %8504 = vmatprep.mubr.bf16.mxu0 %v8370
      %8505 = vmatmul.mubr.bf16.gmra.mrb[0].mxu0 %v8248
      %v8506 = vpop.f32.mrb[0].mxu0
      %v8507 = vadd.f32 %v8262, %v8506
      %v8508 = vpop.f32.mrb[0].mxu0
      %v8509 = vpop.f32.mrb[0].mxu0
      %v8510 = vadd.f32 %v8262, %v8509
      %v8511 = vpop.f32.mrb[0].mxu0
      %8512 = vmatprep.mubr.bf16.mxu0 %v8373
      %8513 = vmatmul.mubr.bf16.gmra.mrb[0].mxu0 %v8250
      %v8514 = vpop.f32.mrb[0].mxu0
      %v8515 = vadd.f32 %v8262, %v8514
      %v8516 = vpop.f32.mrb[0].mxu0
      %v8517 = vpop.f32.mrb[0].mxu0
      %v8518 = vadd.f32 %v8262, %v8517
      %v8519 = vpop.f32.mrb[0].mxu0
      %8520 = vmatprep.mubr.bf16.mxu0 %v8376
      %8521 = vmatmul.mubr.bf16.gmra.mrb[0].mxu0 %v8252
      %v8522 = vpop.f32.mrb[0].mxu0
      %v8523 = vadd.f32 %v8262, %v8522
      %v8524 = vpop.f32.mrb[0].mxu0
      %v8525 = vpop.f32.mrb[0].mxu0
      %v8526 = vadd.f32 %v8262, %v8525
      %v8527 = vpop.f32.mrb[0].mxu0
      %8528 = vmatprep.mubr.bf16.mxu0 %v8379
      %8529 = vmatmul.mubr.bf16.gmra.mrb[0].mxu0 %v8254
      %v8530 = vpop.f32.mrb[0].mxu0
      %v8531 = vadd.f32 %v8262, %v8530
      %v8532 = vpop.f32.mrb[0].mxu0
      %v8533 = vpop.f32.mrb[0].mxu0
      %v8534 = vadd.f32 %v8262, %v8533
      %v8535 = vpop.f32.mrb[0].mxu0
      %8536 = vmatprep.mubr.bf16.mxu0 %v8382
      %8537 = vmatmul.mubr.bf16.gmra.mrb[0].mxu0 %v8256
      %v8538 = vpop.f32.mrb[0].mxu0
      %v8539 = vadd.f32 %v8262, %v8538
      %v8540 = vpop.f32.mrb[0].mxu0
      %v8541 = vpop.f32.mrb[0].mxu0
      %v8542 = vadd.f32 %v8262, %v8541
      %v8543 = vpop.f32.mrb[0].mxu0
      %8544 = vdwg.mxu0
      %8545 = vst.msk [vmem:[%s457 + $0x2] sm:$0xff] %vm442, %v7303
      %8546 = vst.msk [vmem:[%s457 + $0xa] sm:$0xff] %vm442, %v7304
      %8547 = vst.msk [vmem:[%s457 + $0x1a] sm:$0xff] %vm442, %v7305
      %8548 = vst.msk [vmem:[%s457 + $0x22] sm:$0xff] %vm442, %v7306
      %8549 = vst.msk [vmem:[%s457 + $0x32] sm:$0xff] %vm442, %v7307
      %8550 = vst.msk [vmem:[%s457 + $0x3a] sm:$0xff] %vm442, %v7308
      %8551 = vst.msk [vmem:[%s457 + $0x4a] sm:$0xff] %vm442, %v7309
      %8552 = vst.msk [vmem:[%s457 + $0x52] sm:$0xff] %vm442, %v7310
      %8553 = vst.msk [vmem:[%s457 + $0x62] sm:$0xff] %vm442, %v7311
      %8554 = vst.msk [vmem:[%s457 + $0x6a] sm:$0xff] %vm442, %v7312
      %8555 = vst.msk [vmem:[%s457 + $0x7a] sm:$0xff] %vm442, %v7313
      %8556 = vst.msk [vmem:[%s457 + $0x82] sm:$0xff] %vm442, %v7314
      %8557 = vst.msk [vmem:[%s457 + $0x92] sm:$0xff] %vm442, %v7315
      %8558 = vst.msk [vmem:[%s457 + $0x9a] sm:$0xff] %vm442, %v7316
      %8559 = vst.msk [vmem:[%s457 + $0xaa] sm:$0xff] %vm442, %v7317
      %8560 = vst.msk [vmem:[%s457 + $0xb2] sm:$0xff] %vm442, %v7318
      %8561 = vst.msk [vmem:[%s457 + $0xc2] sm:$0xff] %vm442, %v7319
      %8562 = vst.msk [vmem:[%s457 + $0xca] sm:$0xff] %vm442, %v7320
      %8563 = vst.msk [vmem:[%s457 + $0xda] sm:$0xff] %vm442, %v7321
      %8564 = vst.msk [vmem:[%s457 + $0xe2] sm:$0xff] %vm442, %v7322
      %8565 = vst.msk [vmem:[%s457 + $0xf2] sm:$0xff] %vm442, %v7323
      %8566 = vst.msk [vmem:[%s457 + $0xfa] sm:$0xff] %vm442, %v7324
      %8567 = vst.msk [vmem:[%s457 + $0x10a] sm:$0xff] %vm442, %v7325
      %8568 = vst.msk [vmem:[%s457 + $0x112] sm:$0xff] %vm442, %v7326
      %8569 = vst.msk [vmem:[%s457 + $0x122] sm:$0xff] %vm442, %v7327
      %8570 = vst.msk [vmem:[%s457 + $0x12a] sm:$0xff] %vm442, %v7328
      %8571 = vst.msk [vmem:[%s457 + $0x13a] sm:$0xff] %vm442, %v7329
      %8572 = vst.msk [vmem:[%s457 + $0x142] sm:$0xff] %vm442, %v7330
      %8573 = vst.msk [vmem:[%s457 + $0x152] sm:$0xff] %vm442, %v7331
      %8574 = vst.msk [vmem:[%s457 + $0x15a] sm:$0xff] %vm442, %v7332
      %8575 = vst.msk [vmem:[%s457 + $0x16a] sm:$0xff] %vm442, %v7333
      %8576 = vst.msk [vmem:[%s457 + $0x172] sm:$0xff] %vm442, %v7334
      %v8577 = vld [vmem:[%s457 + $0x1] sm:$0xff]
      %v8578 = vld [vmem:[%s457 + $0x9] sm:$0xff]
      %v8579 = vld [vmem:[%s457 + $0x19] sm:$0xff]
      %v8580 = vld [vmem:[%s457 + $0x21] sm:$0xff]
      %v8581 = vld [vmem:[%s457 + $0x31] sm:$0xff]
      %v8582 = vld [vmem:[%s457 + $0x39] sm:$0xff]
      %v8583 = vld [vmem:[%s457 + $0x49] sm:$0xff]
      %v8584 = vld [vmem:[%s457 + $0x51] sm:$0xff]
      %v8585 = vld [vmem:[%s457 + $0x61] sm:$0xff]
      %v8586 = vld [vmem:[%s457 + $0x69] sm:$0xff]
      %v8587 = vld [vmem:[%s457 + $0x79] sm:$0xff]
      %v8588 = vld [vmem:[%s457 + $0x81] sm:$0xff]
      %v8589 = vld [vmem:[%s457 + $0x91] sm:$0xff]
      %v8590 = vld [vmem:[%s457 + $0x99] sm:$0xff]
      %v8591 = vld [vmem:[%s457 + $0xa9] sm:$0xff]
      %v8592 = vld [vmem:[%s457 + $0xb1] sm:$0xff]
      %v8593 = vld [vmem:[%s457 + $0xc1] sm:$0xff]
      %v8594 = vld [vmem:[%s457 + $0xc9] sm:$0xff]
      %v8595 = vld [vmem:[%s457 + $0xd9] sm:$0xff]
      %v8596 = vld [vmem:[%s457 + $0xe1] sm:$0xff]
      %v8597 = vld [vmem:[%s457 + $0xf1] sm:$0xff]
      %v8598 = vld [vmem:[%s457 + $0xf9] sm:$0xff]
      %v8599 = vld [vmem:[%s457 + $0x109] sm:$0xff]
      %v8600 = vld [vmem:[%s457 + $0x111] sm:$0xff]
      %v8601 = vld [vmem:[%s457 + $0x121] sm:$0xff]
      %v8602 = vld [vmem:[%s457 + $0x129] sm:$0xff]
      %v8603 = vld [vmem:[%s457 + $0x139] sm:$0xff]
      %v8604 = vld [vmem:[%s457 + $0x141] sm:$0xff]
      %v8605 = vld [vmem:[%s457 + $0x151] sm:$0xff]
      %v8606 = vld [vmem:[%s457 + $0x159] sm:$0xff]
      %v8607 = vld [vmem:[%s457 + $0x169] sm:$0xff]
      %v8608 = vld [vmem:[%s457 + $0x171] sm:$0xff]
      %v8609 = vld [vmem:[%s457 + $0x2] sm:$0xff]
      %v8610 = vld [vmem:[%s457 + $0xa] sm:$0xff]
      %v8611 = vld [vmem:[%s457 + $0x1a] sm:$0xff]
      %v8612 = vld [vmem:[%s457 + $0x22] sm:$0xff]
      %v8613 = vld [vmem:[%s457 + $0x32] sm:$0xff]
      %v8614 = vld [vmem:[%s457 + $0x3a] sm:$0xff]
      %v8615 = vld [vmem:[%s457 + $0x4a] sm:$0xff]
      %v8616 = vld [vmem:[%s457 + $0x52] sm:$0xff]
      %v8617 = vld [vmem:[%s457 + $0x62] sm:$0xff]
      %v8618 = vld [vmem:[%s457 + $0x6a] sm:$0xff]
      %v8619 = vld [vmem:[%s457 + $0x7a] sm:$0xff]
      %v8620 = vld [vmem:[%s457 + $0x82] sm:$0xff]
      %v8621 = vld [vmem:[%s457 + $0x92] sm:$0xff]
      %v8622 = vld [vmem:[%s457 + $0x9a] sm:$0xff]
      %v8623 = vld [vmem:[%s457 + $0xaa] sm:$0xff]
      %v8624 = vld [vmem:[%s457 + $0xb2] sm:$0xff]
      %v8625 = vld [vmem:[%s457 + $0xc2] sm:$0xff]
      %v8626 = vld [vmem:[%s457 + $0xca] sm:$0xff]
      %v8627 = vld [vmem:[%s457 + $0xda] sm:$0xff]
      %v8628 = vld [vmem:[%s457 + $0xe2] sm:$0xff]
      %v8629 = vld [vmem:[%s457 + $0xf2] sm:$0xff]
      %v8630 = vld [vmem:[%s457 + $0xfa] sm:$0xff]
      %v8631 = vld [vmem:[%s457 + $0x10a] sm:$0xff]
      %v8632 = vld [vmem:[%s457 + $0x112] sm:$0xff]
      %v8633 = vld [vmem:[%s457 + $0x122] sm:$0xff]
      %v8634 = vld [vmem:[%s457 + $0x12a] sm:$0xff]
      %v8635 = vld [vmem:[%s457 + $0x13a] sm:$0xff]
      %v8636 = vld [vmem:[%s457 + $0x142] sm:$0xff]
      %v8637 = vld [vmem:[%s457 + $0x152] sm:$0xff]
      %v8638 = vld [vmem:[%s457 + $0x15a] sm:$0xff]
      %v8639 = vld [vmem:[%s457 + $0x16a] sm:$0xff]
      %v8640 = vld [vmem:[%s457 + $0x172] sm:$0xff]
      %8673 = vrot.lane.b32.xlu0 %v8609, 32
      %v8674 = vpop.permute.xlu0 %8673
      %8675 = vrot.lane.b32.xlu0 %v8610, 32
      %v8676 = vpop.permute.xlu0 %8675
      %8677 = vrot.lane.b32.xlu0 %v8611, 32
      %v8678 = vpop.permute.xlu0 %8677
      %8679 = vrot.lane.b32.xlu0 %v8612, 32
      %v8680 = vpop.permute.xlu0 %8679
      %8681 = vrot.lane.b32.xlu0 %v8613, 32
      %v8682 = vpop.permute.xlu0 %8681
      %8683 = vrot.lane.b32.xlu0 %v8614, 32
      %v8684 = vpop.permute.xlu0 %8683
      %8685 = vrot.lane.b32.xlu0 %v8615, 32
      %v8686 = vpop.permute.xlu0 %8685
      %8687 = vrot.lane.b32.xlu0 %v8616, 32
      %v8688 = vpop.permute.xlu0 %8687
      %8689 = vrot.lane.b32.xlu0 %v8617, 32
      %v8690 = vpop.permute.xlu0 %8689
      %8691 = vrot.lane.b32.xlu0 %v8618, 32
      %v8692 = vpop.permute.xlu0 %8691
      %8693 = vrot.lane.b32.xlu0 %v8619, 32
      %v8694 = vpop.permute.xlu0 %8693
      %8695 = vrot.lane.b32.xlu0 %v8620, 32
      %v8696 = vpop.permute.xlu0 %8695
      %8697 = vrot.lane.b32.xlu0 %v8621, 32
      %v8698 = vpop.permute.xlu0 %8697
      %8699 = vrot.lane.b32.xlu0 %v8622, 32
      %v8700 = vpop.permute.xlu0 %8699
      %8701 = vrot.lane.b32.xlu0 %v8623, 32
      %v8702 = vpop.permute.xlu0 %8701
      %8703 = vrot.lane.b32.xlu0 %v8624, 32
      %v8704 = vpop.permute.xlu0 %8703
      %8705 = vrot.lane.b32.xlu0 %v8625, 32
      %v8706 = vpop.permute.xlu0 %8705
      %8707 = vrot.lane.b32.xlu0 %v8626, 32
      %v8708 = vpop.permute.xlu0 %8707
      %8709 = vrot.lane.b32.xlu0 %v8627, 32
      %v8710 = vpop.permute.xlu0 %8709
      %8711 = vrot.lane.b32.xlu0 %v8628, 32
      %v8712 = vpop.permute.xlu0 %8711
      %8713 = vrot.lane.b32.xlu0 %v8629, 32
      %v8714 = vpop.permute.xlu0 %8713
      %8715 = vrot.lane.b32.xlu0 %v8630, 32
      %v8716 = vpop.permute.xlu0 %8715
      %8717 = vrot.lane.b32.xlu0 %v8631, 32
      %v8718 = vpop.permute.xlu0 %8717
      %8719 = vrot.lane.b32.xlu0 %v8632, 32
      %v8720 = vpop.permute.xlu0 %8719
      %8721 = vrot.lane.b32.xlu0 %v8633, 32
      %v8722 = vpop.permute.xlu0 %8721
      %8723 = vrot.lane.b32.xlu0 %v8634, 32
      %v8724 = vpop.permute.xlu0 %8723
      %8725 = vrot.lane.b32.xlu0 %v8635, 32
      %v8726 = vpop.permute.xlu0 %8725
      %8727 = vrot.lane.b32.xlu0 %v8636, 32
      %v8728 = vpop.permute.xlu0 %8727
      %8729 = vrot.lane.b32.xlu0 %v8637, 32
      %v8730 = vpop.permute.xlu0 %8729
      %8731 = vrot.lane.b32.xlu0 %v8638, 32
      %v8732 = vpop.permute.xlu0 %8731
      %8733 = vrot.lane.b32.xlu0 %v8639, 32
      %v8734 = vpop.permute.xlu0 %8733
      %8735 = vrot.lane.b32.xlu0 %v8640, 32
      %v8736 = vpop.permute.xlu0 %8735
      %8801 = vrot.lane.b32.xlu0 %v8419, 64
      %v8802 = vpop.permute.xlu0 %8801
      %8803 = vrot.lane.b32.xlu0 %v8422, 64
      %v8804 = vpop.permute.xlu0 %8803
      %8805 = vrot.lane.b32.xlu0 %v8427, 64
      %v8806 = vpop.permute.xlu0 %8805
      %8807 = vrot.lane.b32.xlu0 %v8430, 64
      %v8808 = vpop.permute.xlu0 %8807
      %8809 = vrot.lane.b32.xlu0 %v8435, 64
      %v8810 = vpop.permute.xlu0 %8809
      %8811 = vrot.lane.b32.xlu0 %v8438, 64
      %v8812 = vpop.permute.xlu0 %8811
      %8813 = vrot.lane.b32.xlu0 %v8443, 64
      %v8814 = vpop.permute.xlu0 %8813
      %8815 = vrot.lane.b32.xlu0 %v8446, 64
      %v8816 = vpop.permute.xlu0 %8815
      %8817 = vrot.lane.b32.xlu0 %v8451, 64
      %v8818 = vpop.permute.xlu0 %8817
      %8819 = vrot.lane.b32.xlu0 %v8454, 64
      %v8820 = vpop.permute.xlu0 %8819
      %8821 = vrot.lane.b32.xlu0 %v8459, 64
      %v8822 = vpop.permute.xlu0 %8821
      %8823 = vrot.lane.b32.xlu0 %v8462, 64
      %v8824 = vpop.permute.xlu0 %8823
      %8825 = vrot.lane.b32.xlu0 %v8467, 64
      %v8826 = vpop.permute.xlu0 %8825
      %8827 = vrot.lane.b32.xlu0 %v8470, 64
      %v8828 = vpop.permute.xlu0 %8827
      %8829 = vrot.lane.b32.xlu0 %v8475, 64
      %v8830 = vpop.permute.xlu0 %8829
      %8831 = vrot.lane.b32.xlu0 %v8478, 64
      %v8832 = vpop.permute.xlu0 %8831
      %8833 = vrot.lane.b32.xlu0 %v8483, 64
      %v8834 = vpop.permute.xlu0 %8833
      %8835 = vrot.lane.b32.xlu0 %v8486, 64
      %v8836 = vpop.permute.xlu0 %8835
      %8837 = vrot.lane.b32.xlu0 %v8491, 64
      %v8838 = vpop.permute.xlu0 %8837
      %8839 = vrot.lane.b32.xlu0 %v8494, 64
      %v8840 = vpop.permute.xlu0 %8839
      %8841 = vrot.lane.b32.xlu0 %v8499, 64
      %v8842 = vpop.permute.xlu0 %8841
      %8843 = vrot.lane.b32.xlu0 %v8502, 64
      %v8844 = vpop.permute.xlu0 %8843
      %8845 = vrot.lane.b32.xlu0 %v8507, 64
      %v8846 = vpop.permute.xlu0 %8845
      %8847 = vrot.lane.b32.xlu0 %v8510, 64
      %v8848 = vpop.permute.xlu0 %8847
      %8849 = vrot.lane.b32.xlu0 %v8515, 64
      %v8850 = vpop.permute.xlu0 %8849
      %8851 = vrot.lane.b32.xlu0 %v8518, 64
      %v8852 = vpop.permute.xlu0 %8851
      %8853 = vrot.lane.b32.xlu0 %v8523, 64
      %v8854 = vpop.permute.xlu0 %8853
      %8855 = vrot.lane.b32.xlu0 %v8526, 64
      %v8856 = vpop.permute.xlu0 %8855
      %8857 = vrot.lane.b32.xlu0 %v8531, 64
      %v8858 = vpop.permute.xlu0 %8857
      %8859 = vrot.lane.b32.xlu0 %v8534, 64
      %v8860 = vpop.permute.xlu0 %8859
      %8861 = vrot.lane.b32.xlu0 %v8539, 64
      %v8862 = vpop.permute.xlu0 %8861
      %8863 = vrot.lane.b32.xlu0 %v8542, 64
      %v8864 = vpop.permute.xlu0 %8863
      %v8897 = vsel %vm442, %v8577, %v8674
      %v8898 = vsel %vm442, %v8578, %v8676
      %v8899 = vsel %vm442, %v8579, %v8678
      %v8900 = vsel %vm442, %v8580, %v8680
      %v8901 = vsel %vm442, %v8581, %v8682
      %v8902 = vsel %vm442, %v8582, %v8684
      %v8903 = vsel %vm442, %v8583, %v8686
      %v8904 = vsel %vm442, %v8584, %v8688
      %v8905 = vsel %vm442, %v8585, %v8690
      %v8906 = vsel %vm442, %v8586, %v8692
      %v8907 = vsel %vm442, %v8587, %v8694
      %v8908 = vsel %vm442, %v8588, %v8696
      %v8909 = vsel %vm442, %v8589, %v8698
      %v8910 = vsel %vm442, %v8590, %v8700
      %v8911 = vsel %vm442, %v8591, %v8702
      %v8912 = vsel %vm442, %v8592, %v8704
      %v8913 = vsel %vm442, %v8593, %v8706
      %v8914 = vsel %vm442, %v8594, %v8708
      %v8915 = vsel %vm442, %v8595, %v8710
      %v8916 = vsel %vm442, %v8596, %v8712
      %v8917 = vsel %vm442, %v8597, %v8714
      %v8918 = vsel %vm442, %v8598, %v8716
      %v8919 = vsel %vm442, %v8599, %v8718
      %v8920 = vsel %vm442, %v8600, %v8720
      %v8921 = vsel %vm442, %v8601, %v8722
      %v8922 = vsel %vm442, %v8602, %v8724
      %v8923 = vsel %vm442, %v8603, %v8726
      %v8924 = vsel %vm442, %v8604, %v8728
      %v8925 = vsel %vm442, %v8605, %v8730
      %v8926 = vsel %vm442, %v8606, %v8732
      %v8927 = vsel %vm442, %v8607, %v8734
      %v8928 = vsel %vm442, %v8608, %v8736
      %v8929 = vsel %vm2255, %v8897, %v8802
      %v8930 = vsel %vm2255, %v8898, %v8804
      %v8931 = vsel %vm2255, %v8899, %v8806
      %v8932 = vsel %vm2255, %v8900, %v8808
      %v8933 = vsel %vm2255, %v8901, %v8810
      %v8934 = vsel %vm2255, %v8902, %v8812
      %v8935 = vsel %vm2255, %v8903, %v8814
      %v8936 = vsel %vm2255, %v8904, %v8816
      %v8937 = vsel %vm2255, %v8905, %v8818
      %v8938 = vsel %vm2255, %v8906, %v8820
      %v8939 = vsel %vm2255, %v8907, %v8822
      %v8940 = vsel %vm2255, %v8908, %v8824
      %v8941 = vsel %vm2255, %v8909, %v8826
      %v8942 = vsel %vm2255, %v8910, %v8828
      %v8943 = vsel %vm2255, %v8911, %v8830
      %v8944 = vsel %vm2255, %v8912, %v8832
      %v8945 = vsel %vm2255, %v8913, %v8834
      %v8946 = vsel %vm2255, %v8914, %v8836
      %v8947 = vsel %vm2255, %v8915, %v8838
      %v8948 = vsel %vm2255, %v8916, %v8840
      %v8949 = vsel %vm2255, %v8917, %v8842
      %v8950 = vsel %vm2255, %v8918, %v8844
      %v8951 = vsel %vm2255, %v8919, %v8846
      %v8952 = vsel %vm2255, %v8920, %v8848
      %v8953 = vsel %vm2255, %v8921, %v8850
      %v8954 = vsel %vm2255, %v8922, %v8852
      %v8955 = vsel %vm2255, %v8923, %v8854
      %v8956 = vsel %vm2255, %v8924, %v8856
      %v8957 = vsel %vm2255, %v8925, %v8858
      %v8958 = vsel %vm2255, %v8926, %v8860
      %v8959 = vsel %vm2255, %v8927, %v8862
      %v8960 = vsel %vm2255, %v8928, %v8864
      %s8961 = scalar_lea.vmem %s7, 128
      %v8962 = vld [vmem:[%s8961] sm:$0xf]
      %v8963 = vld [vmem:[%s8961 + $0x4] sm:$0xf]
      %v8964 = vld [vmem:[%s8961 + $0x8] sm:$0xf]
      %v8965 = vld [vmem:[%s8961 + $0xc] sm:$0xf]
      %v8966 = vld [vmem:[%s8961 + $0x10] sm:$0xf]
      %v8967 = vld [vmem:[%s8961 + $0x14] sm:$0xf]
      %v8968 = vld [vmem:[%s8961 + $0x18] sm:$0xf]
      %v8969 = vld [vmem:[%s8961 + $0x1c] sm:$0xf]
      %v8970 = vld [vmem:[%s8961 + $0x20] sm:$0xf]
      %v8971 = vld [vmem:[%s8961 + $0x24] sm:$0xf]
      %v8972 = vld [vmem:[%s8961 + $0x28] sm:$0xf]
      %v8973 = vld [vmem:[%s8961 + $0x2c] sm:$0xf]
      %v8974 = vld [vmem:[%s8961 + $0x30] sm:$0xf]
      %v8975 = vld [vmem:[%s8961 + $0x34] sm:$0xf]
      %v8976 = vld [vmem:[%s8961 + $0x38] sm:$0xf]
      %v8977 = vld [vmem:[%s8961 + $0x3c] sm:$0xf]
      %s8978 = scalar_lea.vmem %s8, 2
      %v8979 = vld [vmem:[%s8978] sm:$0x1]
      %v8980 = vpack.c.bf16 %v8930, %v8929
      %v8981 = vpack.c.bf16 %v8932, %v8931
      %v8982 = vpack.c.bf16 %v8934, %v8933
      %v8983 = vpack.c.bf16 %v8936, %v8935
      %v8984 = vpack.c.bf16 %v8938, %v8937
      %v8985 = vpack.c.bf16 %v8940, %v8939
      %v8986 = vpack.c.bf16 %v8942, %v8941
      %v8987 = vpack.c.bf16 %v8944, %v8943
      %v8988 = vpack.c.bf16 %v8946, %v8945
      %v8989 = vpack.c.bf16 %v8948, %v8947
      %v8990 = vpack.c.bf16 %v8950, %v8949
      %v8991 = vpack.c.bf16 %v8952, %v8951
      %v8992 = vpack.c.bf16 %v8954, %v8953
      %v8993 = vpack.c.bf16 %v8956, %v8955
      %v8994 = vpack.c.bf16 %v8958, %v8957
      %v8995 = vpack.c.bf16 %v8960, %v8959
      %v8997 = vlaneseq
      %v8998 = vshrl.u32 %v8997, 7
      %v8999 = vsub.s32 0, %v8998
      %v9000 = vrot.slane %v8979, %v8999
      %v9018 = vunpack.c.l.b16 %v8962
      %v9019 = vunpack.c.l.b16 %v8963
      %v9020 = vunpack.c.l.b16 %v8964
      %v9021 = vunpack.c.l.b16 %v8965
      %v9022 = vunpack.c.l.b16 %v8966
      %v9023 = vunpack.c.l.b16 %v8967
      %v9024 = vunpack.c.l.b16 %v8968
      %v9025 = vunpack.c.l.b16 %v8969
      %v9026 = vunpack.c.l.b16 %v8970
      %v9027 = vunpack.c.l.b16 %v8971
      %v9028 = vunpack.c.l.b16 %v8972
      %v9029 = vunpack.c.l.b16 %v8973
      %v9030 = vunpack.c.l.b16 %v8974
      %v9031 = vunpack.c.l.b16 %v8975
      %v9032 = vunpack.c.l.b16 %v8976
      %v9033 = vunpack.c.l.b16 %v8977
      %v9034 = vpack.c.b16 %v9019, %v9018
      %v9035 = vpack.c.b16 %v9021, %v9020
      %v9036 = vpack.c.b16 %v9023, %v9022
      %v9037 = vpack.c.b16 %v9025, %v9024
      %v9038 = vpack.c.b16 %v9027, %v9026
      %v9039 = vpack.c.b16 %v9029, %v9028
      %v9040 = vpack.c.b16 %v9031, %v9030
      %v9041 = vpack.c.b16 %v9033, %v9032
      %9050 = vmatprep.subr.bf16.mxu0 0
      %9051 = vmatpush1.bf16.msra.mxu0 %v9034
      %9052 = vmatprep.subr.bf16.mxu0 0
      %9053 = vmatpush1.bf16.msra.mxu0 %v9035
      %9054 = vmatprep.subr.bf16.mxu0 0
      %9055 = vmatpush1.bf16.msra.mxu0 %v9036
      %9056 = vmatprep.subr.bf16.mxu0 0
      %9057 = vmatpush1.bf16.msra.mxu0 %v9037
      %9058 = vmatprep.subr.bf16.mxu0 0
      %9059 = vmatpush1.bf16.msra.mxu0 %v9038
      %9060 = vmatprep.subr.bf16.mxu0 0
      %9061 = vmatpush1.bf16.msra.mxu0 %v9039
      %9062 = vmatprep.subr.bf16.mxu0 0
      %9063 = vmatpush1.bf16.msra.mxu0 %v9040
      %9064 = vmatprep.subr.bf16.mxu0 0
      %9065 = vmatpush1.bf16.msra.mxu0 %v9041
      %9066 = vmatprep.subr.bf16.mxu0 0
      %9067 = vmatpush1.bf16.msra.mxu0 0
      %9068 = vmatprep.subr.bf16.mxu0 0
      %9069 = vmatpush1.bf16.msra.mxu0 0
      %9070 = vmatprep.subr.bf16.mxu0 0
      %9071 = vmatpush1.bf16.msra.mxu0 0
      %9072 = vmatprep.subr.bf16.mxu0 0
      %9073 = vmatpush1.bf16.msra.mxu0 0
      %9074 = vmatprep.subr.bf16.mxu0 0
      %9075 = vmatpush1.bf16.msra.mxu0 0
      %9076 = vmatprep.subr.bf16.mxu0 0
      %9077 = vmatpush1.bf16.msra.mxu0 0
      %9078 = vmatprep.subr.bf16.mxu0 0
      %9079 = vmatpush1.bf16.msra.mxu0 0
      %9080 = vmatprep.subr.bf16.mxu0 0
      %9081 = vmatpush1.bf16.msra.mxu0 0
      %9082 = vmatprep.mubr.bf16.mxu0 0
      %9083 = vmatmul.mubr.bf16.gmra.mrb[0].mxu0 %v8980
      %v9084 = vpop.f32.mrb[0].mxu0
      %v9085 = vadd.f32 %v9000, %v9084
      %v9086 = vpop.f32.mrb[0].mxu0
      %v9087 = vpop.f32.mrb[0].mxu0
      %v9088 = vadd.f32 %v9000, %v9087
      %v9089 = vpop.f32.mrb[0].mxu0
      %9090 = vmatprep.mubr.bf16.mxu0 0
      %9091 = vmatmul.mubr.bf16.gmra.mrb[0].mxu0 %v8981
      %v9092 = vpop.f32.mrb[0].mxu0
      %v9093 = vadd.f32 %v9000, %v9092
      %v9094 = vpop.f32.mrb[0].mxu0
      %v9095 = vpop.f32.mrb[0].mxu0
      %v9096 = vadd.f32 %v9000, %v9095
      %v9097 = vpop.f32.mrb[0].mxu0
      %9098 = vmatprep.mubr.bf16.mxu0 0
      %9099 = vmatmul.mubr.bf16.gmra.mrb[0].mxu0 %v8982
      %v9100 = vpop.f32.mrb[0].mxu0
      %v9101 = vadd.f32 %v9000, %v9100
      %v9102 = vpop.f32.mrb[0].mxu0
      %v9103 = vpop.f32.mrb[0].mxu0
      %v9104 = vadd.f32 %v9000, %v9103
      %v9105 = vpop.f32.mrb[0].mxu0
      %9106 = vmatprep.mubr.bf16.mxu0 0
      %9107 = vmatmul.mubr.bf16.gmra.mrb[0].mxu0 %v8983
      %v9108 = vpop.f32.mrb[0].mxu0
      %v9109 = vadd.f32 %v9000, %v9108
      %v9110 = vpop.f32.mrb[0].mxu0
      %v9111 = vpop.f32.mrb[0].mxu0
      %v9112 = vadd.f32 %v9000, %v9111
      %v9113 = vpop.f32.mrb[0].mxu0
      %9114 = vmatprep.mubr.bf16.mxu0 0
      %9115 = vmatmul.mubr.bf16.gmra.mrb[0].mxu0 %v8984
      %v9116 = vpop.f32.mrb[0].mxu0
      %v9117 = vadd.f32 %v9000, %v9116
      %v9118 = vpop.f32.mrb[0].mxu0
      %v9119 = vpop.f32.mrb[0].mxu0
      %v9120 = vadd.f32 %v9000, %v9119
      %v9121 = vpop.f32.mrb[0].mxu0
      %9122 = vmatprep.mubr.bf16.mxu0 0
      %9123 = vmatmul.mubr.bf16.gmra.mrb[0].mxu0 %v8985
      %v9124 = vpop.f32.mrb[0].mxu0
      %v9125 = vadd.f32 %v9000, %v9124
      %v9126 = vpop.f32.mrb[0].mxu0
      %v9127 = vpop.f32.mrb[0].mxu0
      %v9128 = vadd.f32 %v9000, %v9127
      %v9129 = vpop.f32.mrb[0].mxu0
      %9130 = vmatprep.mubr.bf16.mxu0 0
      %9131 = vmatmul.mubr.bf16.gmra.mrb[0].mxu0 %v8986
      %v9132 = vpop.f32.mrb[0].mxu0
      %v9133 = vadd.f32 %v9000, %v9132
      %v9134 = vpop.f32.mrb[0].mxu0
      %v9135 = vpop.f32.mrb[0].mxu0
      %v9136 = vadd.f32 %v9000, %v9135
      %v9137 = vpop.f32.mrb[0].mxu0
      %9138 = vmatprep.mubr.bf16.mxu0 0
      %9139 = vmatmul.mubr.bf16.gmra.mrb[0].mxu0 %v8987
      %v9140 = vpop.f32.mrb[0].mxu0
      %v9141 = vadd.f32 %v9000, %v9140
      %v9142 = vpop.f32.mrb[0].mxu0
      %v9143 = vpop.f32.mrb[0].mxu0
      %v9144 = vadd.f32 %v9000, %v9143
      %v9145 = vpop.f32.mrb[0].mxu0
      %9146 = vmatprep.mubr.bf16.mxu0 0
      %9147 = vmatmul.mubr.bf16.gmra.mrb[0].mxu0 %v8988
      %v9148 = vpop.f32.mrb[0].mxu0
      %v9149 = vadd.f32 %v9000, %v9148
      %v9150 = vpop.f32.mrb[0].mxu0
      %v9151 = vpop.f32.mrb[0].mxu0
      %v9152 = vadd.f32 %v9000, %v9151
      %v9153 = vpop.f32.mrb[0].mxu0
      %9154 = vmatprep.mubr.bf16.mxu0 0
      %9155 = vmatmul.mubr.bf16.gmra.mrb[0].mxu0 %v8989
      %v9156 = vpop.f32.mrb[0].mxu0
      %v9157 = vadd.f32 %v9000, %v9156
      %v9158 = vpop.f32.mrb[0].mxu0
      %v9159 = vpop.f32.mrb[0].mxu0
      %v9160 = vadd.f32 %v9000, %v9159
      %v9161 = vpop.f32.mrb[0].mxu0
      %9162 = vmatprep.mubr.bf16.mxu0 0
      %9163 = vmatmul.mubr.bf16.gmra.mrb[0].mxu0 %v8990
      %v9164 = vpop.f32.mrb[0].mxu0
      %v9165 = vadd.f32 %v9000, %v9164
      %v9166 = vpop.f32.mrb[0].mxu0
      %v9167 = vpop.f32.mrb[0].mxu0
      %v9168 = vadd.f32 %v9000, %v9167
      %v9169 = vpop.f32.mrb[0].mxu0
      %9170 = vmatprep.mubr.bf16.mxu0 0
      %9171 = vmatmul.mubr.bf16.gmra.mrb[0].mxu0 %v8991
      %v9172 = vpop.f32.mrb[0].mxu0
      %v9173 = vadd.f32 %v9000, %v9172
      %v9174 = vpop.f32.mrb[0].mxu0
      %v9175 = vpop.f32.mrb[0].mxu0
      %v9176 = vadd.f32 %v9000, %v9175
      %v9177 = vpop.f32.mrb[0].mxu0
      %9178 = vmatprep.mubr.bf16.mxu0 0
      %9179 = vmatmul.mubr.bf16.gmra.mrb[0].mxu0 %v8992
      %v9180 = vpop.f32.mrb[0].mxu0
      %v9181 = vadd.f32 %v9000, %v9180
      %v9182 = vpop.f32.mrb[0].mxu0
      %v9183 = vpop.f32.mrb[0].mxu0
      %v9184 = vadd.f32 %v9000, %v9183
      %v9185 = vpop.f32.mrb[0].mxu0
      %9186 = vmatprep.mubr.bf16.mxu0 0
      %9187 = vmatmul.mubr.bf16.gmra.mrb[0].mxu0 %v8993
      %v9188 = vpop.f32.mrb[0].mxu0
      %v9189 = vadd.f32 %v9000, %v9188
      %v9190 = vpop.f32.mrb[0].mxu0
      %v9191 = vpop.f32.mrb[0].mxu0
      %v9192 = vadd.f32 %v9000, %v9191
      %v9193 = vpop.f32.mrb[0].mxu0
      %9194 = vmatprep.mubr.bf16.mxu0 0
      %9195 = vmatmul.mubr.bf16.gmra.mrb[0].mxu0 %v8994
      %v9196 = vpop.f32.mrb[0].mxu0
      %v9197 = vadd.f32 %v9000, %v9196
      %v9198 = vpop.f32.mrb[0].mxu0
      %v9199 = vpop.f32.mrb[0].mxu0
      %v9200 = vadd.f32 %v9000, %v9199
      %v9201 = vpop.f32.mrb[0].mxu0
      %9202 = vmatprep.mubr.bf16.mxu0 0
      %9203 = vmatmul.mubr.bf16.gmra.mrb[0].mxu0 %v8995
      %v9204 = vpop.f32.mrb[0].mxu0
      %v9205 = vadd.f32 %v9000, %v9204
      %v9206 = vpop.f32.mrb[0].mxu0
      %v9207 = vpop.f32.mrb[0].mxu0
      %v9208 = vadd.f32 %v9000, %v9207
      %v9209 = vpop.f32.mrb[0].mxu0
      %9210 = vdwg.mxu0
      %v9211 = vtanh.pop %v9085
      %v9212 = vtanh.pop %v9088
      %v9213 = vtanh.pop %v9093
      %v9214 = vtanh.pop %v9096
      %v9215 = vtanh.pop %v9101
      %v9216 = vtanh.pop %v9104
      %v9217 = vtanh.pop %v9109
      %v9218 = vtanh.pop %v9112
      %v9219 = vtanh.pop %v9117
      %v9220 = vtanh.pop %v9120
      %v9221 = vtanh.pop %v9125
      %v9222 = vtanh.pop %v9128
      %v9223 = vtanh.pop %v9133
      %v9224 = vtanh.pop %v9136
      %v9225 = vtanh.pop %v9141
      %v9226 = vtanh.pop %v9144
      %v9227 = vtanh.pop %v9149
      %v9228 = vtanh.pop %v9152
      %v9229 = vtanh.pop %v9157
      %v9230 = vtanh.pop %v9160
      %v9231 = vtanh.pop %v9165
      %v9232 = vtanh.pop %v9168
      %v9233 = vtanh.pop %v9173
      %v9234 = vtanh.pop %v9176
      %v9235 = vtanh.pop %v9181
      %v9236 = vtanh.pop %v9184
      %v9237 = vtanh.pop %v9189
      %v9238 = vtanh.pop %v9192
      %v9239 = vtanh.pop %v9197
      %v9240 = vtanh.pop %v9200
      %v9241 = vtanh.pop %v9205
      %v9242 = vtanh.pop %v9208
      %v9243 = vxor.u32 %v9085, 2147483648
      %v9244 = vxor.u32 %v9088, 2147483648
      %v9245 = vxor.u32 %v9093, 2147483648
      %v9246 = vxor.u32 %v9096, 2147483648
      %v9247 = vxor.u32 %v9101, 2147483648
      %v9248 = vxor.u32 %v9104, 2147483648
      %v9249 = vxor.u32 %v9109, 2147483648
      %v9250 = vxor.u32 %v9112, 2147483648
      %v9251 = vxor.u32 %v9117, 2147483648
      %v9252 = vxor.u32 %v9120, 2147483648
      %v9253 = vxor.u32 %v9125, 2147483648
      %v9254 = vxor.u32 %v9128, 2147483648
      %v9255 = vxor.u32 %v9133, 2147483648
      %v9256 = vxor.u32 %v9136, 2147483648
      %v9257 = vxor.u32 %v9141, 2147483648
      %v9258 = vxor.u32 %v9144, 2147483648
      %v9259 = vxor.u32 %v9149, 2147483648
      %v9260 = vxor.u32 %v9152, 2147483648
      %v9261 = vxor.u32 %v9157, 2147483648
      %v9262 = vxor.u32 %v9160, 2147483648
      %v9263 = vxor.u32 %v9165, 2147483648
      %v9264 = vxor.u32 %v9168, 2147483648
      %v9265 = vxor.u32 %v9173, 2147483648
      %v9266 = vxor.u32 %v9176, 2147483648
      %v9267 = vxor.u32 %v9181, 2147483648
      %v9268 = vxor.u32 %v9184, 2147483648
      %v9269 = vxor.u32 %v9189, 2147483648
      %v9270 = vxor.u32 %v9192, 2147483648
      %v9271 = vxor.u32 %v9197, 2147483648
      %v9272 = vxor.u32 %v9200, 2147483648
      %v9273 = vxor.u32 %v9205, 2147483648
      %v9274 = vxor.u32 %v9208, 2147483648
      %v9275 = vmul.f32 %v9243, 1.442695
      %v9276 = vpow.pop %v9275
      %v9277 = vmul.f32 %v9244, 1.442695
      %v9278 = vpow.pop %v9277
      %v9279 = vmul.f32 %v9245, 1.442695
      %v9280 = vpow.pop %v9279
      %v9281 = vmul.f32 %v9246, 1.442695
      %v9282 = vpow.pop %v9281
      %v9283 = vmul.f32 %v9247, 1.442695
      %v9284 = vpow.pop %v9283
      %v9285 = vmul.f32 %v9248, 1.442695
      %v9286 = vpow.pop %v9285
      %v9287 = vmul.f32 %v9249, 1.442695
      %v9288 = vpow.pop %v9287
      %v9289 = vmul.f32 %v9250, 1.442695
      %v9290 = vpow.pop %v9289
      %v9291 = vmul.f32 %v9251, 1.442695
      %v9292 = vpow.pop %v9291
      %v9293 = vmul.f32 %v9252, 1.442695
      %v9294 = vpow.pop %v9293
      %v9295 = vmul.f32 %v9253, 1.442695
      %v9296 = vpow.pop %v9295
      %v9297 = vmul.f32 %v9254, 1.442695
      %v9298 = vpow.pop %v9297
      %v9299 = vmul.f32 %v9255, 1.442695
      %v9300 = vpow.pop %v9299
      %v9301 = vmul.f32 %v9256, 1.442695
      %v9302 = vpow.pop %v9301
      %v9303 = vmul.f32 %v9257, 1.442695
      %v9304 = vpow.pop %v9303
      %v9305 = vmul.f32 %v9258, 1.442695
      %v9306 = vpow.pop %v9305
      %v9307 = vmul.f32 %v9259, 1.442695
      %v9308 = vpow.pop %v9307
      %v9309 = vmul.f32 %v9260, 1.442695
      %v9310 = vpow.pop %v9309
      %v9311 = vmul.f32 %v9261, 1.442695
      %v9312 = vpow.pop %v9311
      %v9313 = vmul.f32 %v9262, 1.442695
      %v9314 = vpow.pop %v9313
      %v9315 = vmul.f32 %v9263, 1.442695
      %v9316 = vpow.pop %v9315
      %v9317 = vmul.f32 %v9264, 1.442695
      %v9318 = vpow.pop %v9317
      %v9319 = vmul.f32 %v9265, 1.442695
      %v9320 = vpow.pop %v9319
      %v9321 = vmul.f32 %v9266, 1.442695
      %v9322 = vpow.pop %v9321
      %v9323 = vmul.f32 %v9267, 1.442695
      %v9324 = vpow.pop %v9323
      %v9325 = vmul.f32 %v9268, 1.442695
      %v9326 = vpow.pop %v9325
      %v9327 = vmul.f32 %v9269, 1.442695
      %v9328 = vpow.pop %v9327
      %v9329 = vmul.f32 %v9270, 1.442695
      %v9330 = vpow.pop %v9329
      %v9331 = vmul.f32 %v9271, 1.442695
      %v9332 = vpow.pop %v9331
      %v9333 = vmul.f32 %v9272, 1.442695
      %v9334 = vpow.pop %v9333
      %v9335 = vmul.f32 %v9273, 1.442695
      %v9336 = vpow.pop %v9335
      %v9337 = vmul.f32 %v9274, 1.442695
      %v9338 = vpow.pop %v9337
      %v9339 = vadd.f32 %v9276, 1.0
      %v9340 = vadd.f32 %v9278, 1.0
      %v9341 = vadd.f32 %v9280, 1.0
      %v9342 = vadd.f32 %v9282, 1.0
      %v9343 = vadd.f32 %v9284, 1.0
      %v9344 = vadd.f32 %v9286, 1.0
      %v9345 = vadd.f32 %v9288, 1.0
      %v9346 = vadd.f32 %v9290, 1.0
      %v9347 = vadd.f32 %v9292, 1.0
      %v9348 = vadd.f32 %v9294, 1.0
      %v9349 = vadd.f32 %v9296, 1.0
      %v9350 = vadd.f32 %v9298, 1.0
      %v9351 = vadd.f32 %v9300, 1.0
      %v9352 = vadd.f32 %v9302, 1.0
      %v9353 = vadd.f32 %v9304, 1.0
      %v9354 = vadd.f32 %v9306, 1.0
      %v9355 = vadd.f32 %v9308, 1.0
      %v9356 = vadd.f32 %v9310, 1.0
      %v9357 = vadd.f32 %v9312, 1.0
      %v9358 = vadd.f32 %v9314, 1.0
      %v9359 = vadd.f32 %v9316, 1.0
      %v9360 = vadd.f32 %v9318, 1.0
      %v9361 = vadd.f32 %v9320, 1.0
      %v9362 = vadd.f32 %v9322, 1.0
      %v9363 = vadd.f32 %v9324, 1.0
      %v9364 = vadd.f32 %v9326, 1.0
      %v9365 = vadd.f32 %v9328, 1.0
      %v9366 = vadd.f32 %v9330, 1.0
      %v9367 = vadd.f32 %v9332, 1.0
      %v9368 = vadd.f32 %v9334, 1.0
      %v9369 = vadd.f32 %v9336, 1.0
      %v9370 = vadd.f32 %v9338, 1.0
      %v9371 = vrcp.pop %v9339
      %v9372 = vmul.f32 1.0, %v9371
      %v9373 = vrcp.pop %v9340
      %v9374 = vmul.f32 1.0, %v9373
      %v9375 = vrcp.pop %v9341
      %v9376 = vmul.f32 1.0, %v9375
      %v9377 = vrcp.pop %v9342
      %v9378 = vmul.f32 1.0, %v9377
      %v9379 = vrcp.pop %v9343
      %v9380 = vmul.f32 1.0, %v9379
      %v9381 = vrcp.pop %v9344
      %v9382 = vmul.f32 1.0, %v9381
      %v9383 = vrcp.pop %v9345
      %v9384 = vmul.f32 1.0, %v9383
      %v9385 = vrcp.pop %v9346
      %v9386 = vmul.f32 1.0, %v9385
      %v9387 = vrcp.pop %v9347
      %v9388 = vmul.f32 1.0, %v9387
      %v9389 = vrcp.pop %v9348
      %v9390 = vmul.f32 1.0, %v9389
      %v9391 = vrcp.pop %v9349
      %v9392 = vmul.f32 1.0, %v9391
      %v9393 = vrcp.pop %v9350
      %v9394 = vmul.f32 1.0, %v9393
      %v9395 = vrcp.pop %v9351
      %v9396 = vmul.f32 1.0, %v9395
      %v9397 = vrcp.pop %v9352
      %v9398 = vmul.f32 1.0, %v9397
      %v9399 = vrcp.pop %v9353
      %v9400 = vmul.f32 1.0, %v9399
      %v9401 = vrcp.pop %v9354
      %v9402 = vmul.f32 1.0, %v9401
      %v9403 = vrcp.pop %v9355
      %v9404 = vmul.f32 1.0, %v9403
      %v9405 = vrcp.pop %v9356
      %v9406 = vmul.f32 1.0, %v9405
      %v9407 = vrcp.pop %v9357
      %v9408 = vmul.f32 1.0, %v9407
      %v9409 = vrcp.pop %v9358
      %v9410 = vmul.f32 1.0, %v9409
      %v9411 = vrcp.pop %v9359
      %v9412 = vmul.f32 1.0, %v9411
      %v9413 = vrcp.pop %v9360
      %v9414 = vmul.f32 1.0, %v9413
      %v9415 = vrcp.pop %v9361
      %v9416 = vmul.f32 1.0, %v9415
      %v9417 = vrcp.pop %v9362
      %v9418 = vmul.f32 1.0, %v9417
      %v9419 = vrcp.pop %v9363
      %v9420 = vmul.f32 1.0, %v9419
      %v9421 = vrcp.pop %v9364
      %v9422 = vmul.f32 1.0, %v9421
      %v9423 = vrcp.pop %v9365
      %v9424 = vmul.f32 1.0, %v9423
      %v9425 = vrcp.pop %v9366
      %v9426 = vmul.f32 1.0, %v9425
      %v9427 = vrcp.pop %v9367
      %v9428 = vmul.f32 1.0, %v9427
      %v9429 = vrcp.pop %v9368
      %v9430 = vmul.f32 1.0, %v9429
      %v9431 = vrcp.pop %v9369
      %v9432 = vmul.f32 1.0, %v9431
      %v9433 = vrcp.pop %v9370
      %v9434 = vmul.f32 1.0, %v9433
      %9467 = vrot.lane.b32.xlu0 %v9372, 96
      %v9468 = vpop.permute.xlu0 %9467
      %9469 = vrot.lane.b32.xlu0 %v9374, 96
      %v9470 = vpop.permute.xlu0 %9469
      %9471 = vrot.lane.b32.xlu0 %v9376, 96
      %v9472 = vpop.permute.xlu0 %9471
      %9473 = vrot.lane.b32.xlu0 %v9378, 96
      %v9474 = vpop.permute.xlu0 %9473
      %9475 = vrot.lane.b32.xlu0 %v9380, 96
      %v9476 = vpop.permute.xlu0 %9475
      %9477 = vrot.lane.b32.xlu0 %v9382, 96
      %v9478 = vpop.permute.xlu0 %9477
      %9479 = vrot.lane.b32.xlu0 %v9384, 96
      %v9480 = vpop.permute.xlu0 %9479
      %9481 = vrot.lane.b32.xlu0 %v9386, 96
      %v9482 = vpop.permute.xlu0 %9481
      %9483 = vrot.lane.b32.xlu0 %v9388, 96
      %v9484 = vpop.permute.xlu0 %9483
      %9485 = vrot.lane.b32.xlu0 %v9390, 96
      %v9486 = vpop.permute.xlu0 %9485
      %9487 = vrot.lane.b32.xlu0 %v9392, 96
      %v9488 = vpop.permute.xlu0 %9487
      %9489 = vrot.lane.b32.xlu0 %v9394, 96
      %v9490 = vpop.permute.xlu0 %9489
      %9491 = vrot.lane.b32.xlu0 %v9396, 96
      %v9492 = vpop.permute.xlu0 %9491
      %9493 = vrot.lane.b32.xlu0 %v9398, 96
      %v9494 = vpop.permute.xlu0 %9493
      %9495 = vrot.lane.b32.xlu0 %v9400, 96
      %v9496 = vpop.permute.xlu0 %9495
      %9497 = vrot.lane.b32.xlu0 %v9402, 96
      %v9498 = vpop.permute.xlu0 %9497
      %9499 = vrot.lane.b32.xlu0 %v9404, 96
      %v9500 = vpop.permute.xlu0 %9499
      %9501 = vrot.lane.b32.xlu0 %v9406, 96
      %v9502 = vpop.permute.xlu0 %9501
      %9503 = vrot.lane.b32.xlu0 %v9408, 96
      %v9504 = vpop.permute.xlu0 %9503
      %9505 = vrot.lane.b32.xlu0 %v9410, 96
      %v9506 = vpop.permute.xlu0 %9505
      %9507 = vrot.lane.b32.xlu0 %v9412, 96
      %v9508 = vpop.permute.xlu0 %9507
      %9509 = vrot.lane.b32.xlu0 %v9414, 96
      %v9510 = vpop.permute.xlu0 %9509
      %9511 = vrot.lane.b32.xlu0 %v9416, 96
      %v9512 = vpop.permute.xlu0 %9511
      %9513 = vrot.lane.b32.xlu0 %v9418, 96
      %v9514 = vpop.permute.xlu0 %9513
      %9515 = vrot.lane.b32.xlu0 %v9420, 96
      %v9516 = vpop.permute.xlu0 %9515
      %9517 = vrot.lane.b32.xlu0 %v9422, 96
      %v9518 = vpop.permute.xlu0 %9517
      %9519 = vrot.lane.b32.xlu0 %v9424, 96
      %v9520 = vpop.permute.xlu0 %9519
      %9521 = vrot.lane.b32.xlu0 %v9426, 96
      %v9522 = vpop.permute.xlu0 %9521
      %9523 = vrot.lane.b32.xlu0 %v9428, 96
      %v9524 = vpop.permute.xlu0 %9523
      %9525 = vrot.lane.b32.xlu0 %v9430, 96
      %v9526 = vpop.permute.xlu0 %9525
      %9527 = vrot.lane.b32.xlu0 %v9432, 96
      %v9528 = vpop.permute.xlu0 %9527
      %9529 = vrot.lane.b32.xlu0 %v9434, 96
      %v9530 = vpop.permute.xlu0 %9529
      %v9563 = vmul.f32 %v9211, %v9468
      %v9564 = vmul.f32 %v9212, %v9470
      %v9565 = vmul.f32 %v9213, %v9472
      %v9566 = vmul.f32 %v9214, %v9474
      %v9567 = vmul.f32 %v9215, %v9476
      %v9568 = vmul.f32 %v9216, %v9478
      %v9569 = vmul.f32 %v9217, %v9480
      %v9570 = vmul.f32 %v9218, %v9482
      %v9571 = vmul.f32 %v9219, %v9484
      %v9572 = vmul.f32 %v9220, %v9486
      %v9573 = vmul.f32 %v9221, %v9488
      %v9574 = vmul.f32 %v9222, %v9490
      %v9575 = vmul.f32 %v9223, %v9492
      %v9576 = vmul.f32 %v9224, %v9494
      %v9577 = vmul.f32 %v9225, %v9496
      %v9578 = vmul.f32 %v9226, %v9498
      %v9579 = vmul.f32 %v9227, %v9500
      %v9580 = vmul.f32 %v9228, %v9502
      %v9581 = vmul.f32 %v9229, %v9504
      %v9582 = vmul.f32 %v9230, %v9506
      %v9583 = vmul.f32 %v9231, %v9508
      %v9584 = vmul.f32 %v9232, %v9510
      %v9585 = vmul.f32 %v9233, %v9512
      %v9586 = vmul.f32 %v9234, %v9514
      %v9587 = vmul.f32 %v9235, %v9516
      %v9588 = vmul.f32 %v9236, %v9518
      %v9589 = vmul.f32 %v9237, %v9520
      %v9590 = vmul.f32 %v9238, %v9522
      %v9591 = vmul.f32 %v9239, %v9524
      %v9592 = vmul.f32 %v9240, %v9526
      %v9593 = vmul.f32 %v9241, %v9528
      %v9594 = vmul.f32 %v9242, %v9530
      %s9595 = scalar_lea.vmem %s9, 32
      %v9596 = vld [vmem:[%s9595] sm:$0xf]
      %v9597 = vld [vmem:[%s9595 + $0x4] sm:$0xf]
      %v9598 = vld [vmem:[%s9595 + $0x8] sm:$0xf]
      %v9599 = vld [vmem:[%s9595 + $0xc] sm:$0xf]
      %s9600 = scalar_lea.vmem %s10, 2
      %v9601 = vld [vmem:[%s9600] sm:$0x1]
      %v9602 = vpack.c.bf16 %v9564, %v9563
      %v9603 = vpack.c.bf16 %v9566, %v9565
      %v9604 = vpack.c.bf16 %v9568, %v9567
      %v9605 = vpack.c.bf16 %v9570, %v9569
      %v9606 = vpack.c.bf16 %v9572, %v9571
      %v9607 = vpack.c.bf16 %v9574, %v9573
      %v9608 = vpack.c.bf16 %v9576, %v9575
      %v9609 = vpack.c.bf16 %v9578, %v9577
      %v9610 = vpack.c.bf16 %v9580, %v9579
      %v9611 = vpack.c.bf16 %v9582, %v9581
      %v9612 = vpack.c.bf16 %v9584, %v9583
      %v9613 = vpack.c.bf16 %v9586, %v9585
      %v9614 = vpack.c.bf16 %v9588, %v9587
      %v9615 = vpack.c.bf16 %v9590, %v9589
      %v9616 = vpack.c.bf16 %v9592, %v9591
      %v9617 = vpack.c.bf16 %v9594, %v9593
      %v9619 = vlaneseq
      %v9620 = vshrl.u32 %v9619, 7
      %v9621 = vsub.s32 0, %v9620
      %v9622 = vrot.slane %v9601, %v9621
      %v9628 = vunpack.c.l.b16 %v9596
      %v9629 = vunpack.c.l.b16 %v9597
      %v9630 = vunpack.c.l.b16 %v9598
      %v9631 = vunpack.c.l.b16 %v9599
      %v9632 = vpack.c.b16 %v9629, %v9628
      %v9633 = vpack.c.b16 %v9631, %v9630
      %v9637 = vsel %vm442, %v9602, 0
      %v9640 = vsel %vm442, %v9603, 0
      %v9643 = vsel %vm442, %v9604, 0
      %v9646 = vsel %vm442, %v9605, 0
      %v9649 = vsel %vm442, %v9606, 0
      %v9652 = vsel %vm442, %v9607, 0
      %v9655 = vsel %vm442, %v9608, 0
      %v9658 = vsel %vm442, %v9609, 0
      %v9661 = vsel %vm442, %v9610, 0
      %v9664 = vsel %vm442, %v9611, 0
      %v9667 = vsel %vm442, %v9612, 0
      %v9670 = vsel %vm442, %v9613, 0
      %v9673 = vsel %vm442, %v9614, 0
      %v9676 = vsel %vm442, %v9615, 0
      %v9679 = vsel %vm442, %v9616, 0
      %v9682 = vsel %vm442, %v9617, 0
      %9684 = vmatprep.subr.bf16.mxu0 0
      %9685 = vmatpush1.bf16.msra.mxu0 %v9632
      %9686 = vmatprep.subr.bf16.mxu0 0
      %9687 = vmatpush1.bf16.msra.mxu0 %v9633
      %9688 = vmatprep.subr.bf16.mxu0 0
      %9689 = vmatpush1.bf16.msra.mxu0 0
      %9690 = vmatprep.subr.bf16.mxu0 0
      %9691 = vmatpush1.bf16.msra.mxu0 0
      %9692 = vmatprep.subr.bf16.mxu0 0
      %9693 = vmatpush1.bf16.msra.mxu0 0
      %9694 = vmatprep.subr.bf16.mxu0 0
      %9695 = vmatpush1.bf16.msra.mxu0 0
      %9696 = vmatprep.subr.bf16.mxu0 0
      %9697 = vmatpush1.bf16.msra.mxu0 0
      %9698 = vmatprep.subr.bf16.mxu0 0
      %9699 = vmatpush1.bf16.msra.mxu0 0
      %9700 = vmatprep.subr.bf16.mxu0 0
      %9701 = vmatpush1.bf16.msra.mxu0 0
      %9702 = vmatprep.subr.bf16.mxu0 0
      %9703 = vmatpush1.bf16.msra.mxu0 0
      %9704 = vmatprep.subr.bf16.mxu0 0
      %9705 = vmatpush1.bf16.msra.mxu0 0
      %9706 = vmatprep.subr.bf16.mxu0 0
      %9707 = vmatpush1.bf16.msra.mxu0 0
      %9708 = vmatprep.subr.bf16.mxu0 0
      %9709 = vmatpush1.bf16.msra.mxu0 0
      %9710 = vmatprep.subr.bf16.mxu0 0
      %9711 = vmatpush1.bf16.msra.mxu0 0
      %9712 = vmatprep.subr.bf16.mxu0 0
      %9713 = vmatpush1.bf16.msra.mxu0 0
      %9714 = vmatprep.subr.bf16.mxu0 0
      %9715 = vmatpush1.bf16.msra.mxu0 0
      %9716 = vmatprep.mubr.bf16.mxu0 0
      %9717 = vmatmul.mubr.bf16.gmra.mrb[0].mxu0 %v9637
      %v9718 = vpop.f32.mrb[0].mxu0
      %v9719 = vadd.f32 %v9622, %v9718
      %v9720 = vpop.f32.mrb[0].mxu0
      %v9721 = vpop.f32.mrb[0].mxu0
      %v9722 = vadd.f32 %v9622, %v9721
      %v9723 = vpop.f32.mrb[0].mxu0
      %9724 = vmatprep.mubr.bf16.mxu0 0
      %9725 = vmatmul.mubr.bf16.gmra.mrb[0].mxu0 %v9640
      %v9726 = vpop.f32.mrb[0].mxu0
      %v9727 = vadd.f32 %v9622, %v9726
      %v9728 = vpop.f32.mrb[0].mxu0
      %v9729 = vpop.f32.mrb[0].mxu0
      %v9730 = vadd.f32 %v9622, %v9729
      %v9731 = vpop.f32.mrb[0].mxu0
      %9732 = vmatprep.mubr.bf16.mxu0 0
      %9733 = vmatmul.mubr.bf16.gmra.mrb[0].mxu0 %v9643
      %v9734 = vpop.f32.mrb[0].mxu0
      %v9735 = vadd.f32 %v9622, %v9734
      %v9736 = vpop.f32.mrb[0].mxu0
      %v9737 = vpop.f32.mrb[0].mxu0
      %v9738 = vadd.f32 %v9622, %v9737
      %v9739 = vpop.f32.mrb[0].mxu0
      %9740 = vmatprep.mubr.bf16.mxu0 0
      %9741 = vmatmul.mubr.bf16.gmra.mrb[0].mxu0 %v9646
      %v9742 = vpop.f32.mrb[0].mxu0
      %v9743 = vadd.f32 %v9622, %v9742
      %v9744 = vpop.f32.mrb[0].mxu0
      %v9745 = vpop.f32.mrb[0].mxu0
      %v9746 = vadd.f32 %v9622, %v9745
      %v9747 = vpop.f32.mrb[0].mxu0
      %9748 = vmatprep.mubr.bf16.mxu0 0
      %9749 = vmatmul.mubr.bf16.gmra.mrb[0].mxu0 %v9649
      %v9750 = vpop.f32.mrb[0].mxu0
      %v9751 = vadd.f32 %v9622, %v9750
      %v9752 = vpop.f32.mrb[0].mxu0
      %v9753 = vpop.f32.mrb[0].mxu0
      %v9754 = vadd.f32 %v9622, %v9753
      %v9755 = vpop.f32.mrb[0].mxu0
      %9756 = vmatprep.mubr.bf16.mxu0 0
      %9757 = vmatmul.mubr.bf16.gmra.mrb[0].mxu0 %v9652
      %v9758 = vpop.f32.mrb[0].mxu0
      %v9759 = vadd.f32 %v9622, %v9758
      %v9760 = vpop.f32.mrb[0].mxu0
      %v9761 = vpop.f32.mrb[0].mxu0
      %v9762 = vadd.f32 %v9622, %v9761
      %v9763 = vpop.f32.mrb[0].mxu0
      %9764 = vmatprep.mubr.bf16.mxu0 0
      %9765 = vmatmul.mubr.bf16.gmra.mrb[0].mxu0 %v9655
      %v9766 = vpop.f32.mrb[0].mxu0
      %v9767 = vadd.f32 %v9622, %v9766
      %v9768 = vpop.f32.mrb[0].mxu0
      %v9769 = vpop.f32.mrb[0].mxu0
      %v9770 = vadd.f32 %v9622, %v9769
      %v9771 = vpop.f32.mrb[0].mxu0
      %9772 = vmatprep.mubr.bf16.mxu0 0
      %9773 = vmatmul.mubr.bf16.gmra.mrb[0].mxu0 %v9658
      %v9774 = vpop.f32.mrb[0].mxu0
      %v9775 = vadd.f32 %v9622, %v9774
      %v9776 = vpop.f32.mrb[0].mxu0
      %v9777 = vpop.f32.mrb[0].mxu0
      %v9778 = vadd.f32 %v9622, %v9777
      %v9779 = vpop.f32.mrb[0].mxu0
      %9780 = vmatprep.mubr.bf16.mxu0 0
      %9781 = vmatmul.mubr.bf16.gmra.mrb[0].mxu0 %v9661
      %v9782 = vpop.f32.mrb[0].mxu0
      %v9783 = vadd.f32 %v9622, %v9782
      %v9784 = vpop.f32.mrb[0].mxu0
      %v9785 = vpop.f32.mrb[0].mxu0
      %v9786 = vadd.f32 %v9622, %v9785
      %v9787 = vpop.f32.mrb[0].mxu0
      %9788 = vmatprep.mubr.bf16.mxu0 0
      %9789 = vmatmul.mubr.bf16.gmra.mrb[0].mxu0 %v9664
      %v9790 = vpop.f32.mrb[0].mxu0
      %v9791 = vadd.f32 %v9622, %v9790
      %v9792 = vpop.f32.mrb[0].mxu0
      %v9793 = vpop.f32.mrb[0].mxu0
      %v9794 = vadd.f32 %v9622, %v9793
      %v9795 = vpop.f32.mrb[0].mxu0
      %9796 = vmatprep.mubr.bf16.mxu0 0
      %9797 = vmatmul.mubr.bf16.gmra.mrb[0].mxu0 %v9667
      %v9798 = vpop.f32.mrb[0].mxu0
      %v9799 = vadd.f32 %v9622, %v9798
      %v9800 = vpop.f32.mrb[0].mxu0
      %v9801 = vpop.f32.mrb[0].mxu0
      %v9802 = vadd.f32 %v9622, %v9801
      %v9803 = vpop.f32.mrb[0].mxu0
      %9804 = vmatprep.mubr.bf16.mxu0 0
      %9805 = vmatmul.mubr.bf16.gmra.mrb[0].mxu0 %v9670
      %v9806 = vpop.f32.mrb[0].mxu0
      %v9807 = vadd.f32 %v9622, %v9806
      %v9808 = vpop.f32.mrb[0].mxu0
      %v9809 = vpop.f32.mrb[0].mxu0
      %v9810 = vadd.f32 %v9622, %v9809
      %v9811 = vpop.f32.mrb[0].mxu0
      %9812 = vmatprep.mubr.bf16.mxu0 0
      %9813 = vmatmul.mubr.bf16.gmra.mrb[0].mxu0 %v9673
      %v9814 = vpop.f32.mrb[0].mxu0
      %v9815 = vadd.f32 %v9622, %v9814
      %v9816 = vpop.f32.mrb[0].mxu0
      %v9817 = vpop.f32.mrb[0].mxu0
      %v9818 = vadd.f32 %v9622, %v9817
      %v9819 = vpop.f32.mrb[0].mxu0
      %9820 = vmatprep.mubr.bf16.mxu0 0
      %9821 = vmatmul.mubr.bf16.gmra.mrb[0].mxu0 %v9676
      %v9822 = vpop.f32.mrb[0].mxu0
      %v9823 = vadd.f32 %v9622, %v9822
      %v9824 = vpop.f32.mrb[0].mxu0
      %v9825 = vpop.f32.mrb[0].mxu0
      %v9826 = vadd.f32 %v9622, %v9825
      %v9827 = vpop.f32.mrb[0].mxu0
      %9828 = vmatprep.mubr.bf16.mxu0 0
      %9829 = vmatmul.mubr.bf16.gmra.mrb[0].mxu0 %v9679
      %v9830 = vpop.f32.mrb[0].mxu0
      %v9831 = vadd.f32 %v9622, %v9830
      %v9832 = vpop.f32.mrb[0].mxu0
      %v9833 = vpop.f32.mrb[0].mxu0
      %v9834 = vadd.f32 %v9622, %v9833
      %v9835 = vpop.f32.mrb[0].mxu0
      %9836 = vmatprep.mubr.bf16.mxu0 0
      %9837 = vmatmul.mubr.bf16.gmra.mrb[0].mxu0 %v9682
      %v9838 = vpop.f32.mrb[0].mxu0
      %v9839 = vadd.f32 %v9622, %v9838
      %v9840 = vpop.f32.mrb[0].mxu0
      %v9841 = vpop.f32.mrb[0].mxu0
      %v9842 = vadd.f32 %v9622, %v9841
      %v9843 = vpop.f32.mrb[0].mxu0
      %9844 = vdwg.mxu0
      %v9845 = vadd.f32 %v9719, %v7303
      %v9846 = vadd.f32 %v9722, %v7304
      %v9847 = vadd.f32 %v9727, %v7305
      %v9848 = vadd.f32 %v9730, %v7306
      %v9849 = vadd.f32 %v9735, %v7307
      %v9850 = vadd.f32 %v9738, %v7308
      %v9851 = vadd.f32 %v9743, %v7309
      %v9852 = vadd.f32 %v9746, %v7310
      %v9853 = vadd.f32 %v9751, %v7311
      %v9854 = vadd.f32 %v9754, %v7312
      %v9855 = vadd.f32 %v9759, %v7313
      %v9856 = vadd.f32 %v9762, %v7314
      %v9857 = vadd.f32 %v9767, %v7315
      %v9858 = vadd.f32 %v9770, %v7316
      %v9859 = vadd.f32 %v9775, %v7317
      %v9860 = vadd.f32 %v9778, %v7318
      %v9861 = vadd.f32 %v9783, %v7319
      %v9862 = vadd.f32 %v9786, %v7320
      %v9863 = vadd.f32 %v9791, %v7321
      %v9864 = vadd.f32 %v9794, %v7322
      %v9865 = vadd.f32 %v9799, %v7323
      %v9866 = vadd.f32 %v9802, %v7324
      %v9867 = vadd.f32 %v9807, %v7325
      %v9868 = vadd.f32 %v9810, %v7326
      %v9869 = vadd.f32 %v9815, %v7327
      %v9870 = vadd.f32 %v9818, %v7328
      %v9871 = vadd.f32 %v9823, %v7329
      %v9872 = vadd.f32 %v9826, %v7330
      %v9873 = vadd.f32 %v9831, %v7331
      %v9874 = vadd.f32 %v9834, %v7332
      %v9875 = vadd.f32 %v9839, %v7333
      %v9876 = vadd.f32 %v9842, %v7334
      %vm9877 = vcmp.gt.f32.partialorder %v9845, 0.0
      %vm9878 = vcmp.gt.f32.partialorder %v9846, 0.0
      %vm9879 = vcmp.gt.f32.partialorder %v9847, 0.0
      %vm9880 = vcmp.gt.f32.partialorder %v9848, 0.0
      %vm9881 = vcmp.gt.f32.partialorder %v9849, 0.0
      %vm9882 = vcmp.gt.f32.partialorder %v9850, 0.0
      %vm9883 = vcmp.gt.f32.partialorder %v9851, 0.0
      %vm9884 = vcmp.gt.f32.partialorder %v9852, 0.0
      %vm9885 = vcmp.gt.f32.partialorder %v9853, 0.0
      %vm9886 = vcmp.gt.f32.partialorder %v9854, 0.0
      %vm9887 = vcmp.gt.f32.partialorder %v9855, 0.0
      %vm9888 = vcmp.gt.f32.partialorder %v9856, 0.0
      %vm9889 = vcmp.gt.f32.partialorder %v9857, 0.0
      %vm9890 = vcmp.gt.f32.partialorder %v9858, 0.0
      %vm9891 = vcmp.gt.f32.partialorder %v9859, 0.0
      %vm9892 = vcmp.gt.f32.partialorder %v9860, 0.0
      %vm9893 = vcmp.gt.f32.partialorder %v9861, 0.0
      %vm9894 = vcmp.gt.f32.partialorder %v9862, 0.0
      %vm9895 = vcmp.gt.f32.partialorder %v9863, 0.0
      %vm9896 = vcmp.gt.f32.partialorder %v9864, 0.0
      %vm9897 = vcmp.gt.f32.partialorder %v9865, 0.0
      %vm9898 = vcmp.gt.f32.partialorder %v9866, 0.0
      %vm9899 = vcmp.gt.f32.partialorder %v9867, 0.0
      %vm9900 = vcmp.gt.f32.partialorder %v9868, 0.0
      %vm9901 = vcmp.gt.f32.partialorder %v9869, 0.0
      %vm9902 = vcmp.gt.f32.partialorder %v9870, 0.0
      %vm9903 = vcmp.gt.f32.partialorder %v9871, 0.0
      %vm9904 = vcmp.gt.f32.partialorder %v9872, 0.0
      %vm9905 = vcmp.gt.f32.partialorder %v9873, 0.0
      %vm9906 = vcmp.gt.f32.partialorder %v9874, 0.0
      %vm9907 = vcmp.gt.f32.partialorder %v9875, 0.0
      %vm9908 = vcmp.gt.f32.partialorder %v9876, 0.0
      %v9909 = vmin.f32 %v9845, 0.0
      %v9910 = vmin.f32 %v9846, 0.0
      %v9911 = vmin.f32 %v9847, 0.0
      %v9912 = vmin.f32 %v9848, 0.0
      %v9913 = vmin.f32 %v9849, 0.0
      %v9914 = vmin.f32 %v9850, 0.0
      %v9915 = vmin.f32 %v9851, 0.0
      %v9916 = vmin.f32 %v9852, 0.0
      %v9917 = vmin.f32 %v9853, 0.0
      %v9918 = vmin.f32 %v9854, 0.0
      %v9919 = vmin.f32 %v9855, 0.0
      %v9920 = vmin.f32 %v9856, 0.0
      %v9921 = vmin.f32 %v9857, 0.0
      %v9922 = vmin.f32 %v9858, 0.0
      %v9923 = vmin.f32 %v9859, 0.0
      %v9924 = vmin.f32 %v9860, 0.0
      %v9925 = vmin.f32 %v9861, 0.0
      %v9926 = vmin.f32 %v9862, 0.0
      %v9927 = vmin.f32 %v9863, 0.0
      %v9928 = vmin.f32 %v9864, 0.0
      %v9929 = vmin.f32 %v9865, 0.0
      %v9930 = vmin.f32 %v9866, 0.0
      %v9931 = vmin.f32 %v9867, 0.0
      %v9932 = vmin.f32 %v9868, 0.0
      %v9933 = vmin.f32 %v9869, 0.0
      %v9934 = vmin.f32 %v9870, 0.0
      %v9935 = vmin.f32 %v9871, 0.0
      %v9936 = vmin.f32 %v9872, 0.0
      %v9937 = vmin.f32 %v9873, 0.0
      %v9938 = vmin.f32 %v9874, 0.0
      %v9939 = vmin.f32 %v9875, 0.0
      %v9940 = vmin.f32 %v9876, 0.0
      %v9941 = vmul.f32 %v9909, 1.442695
      %v9942 = vpow.pop %v9941
      %v9943 = vmul.f32 %v9910, 1.442695
      %v9944 = vpow.pop %v9943
      %v9945 = vmul.f32 %v9911, 1.442695
      %v9946 = vpow.pop %v9945
      %v9947 = vmul.f32 %v9912, 1.442695
      %v9948 = vpow.pop %v9947
      %v9949 = vmul.f32 %v9913, 1.442695
      %v9950 = vpow.pop %v9949
      %v9951 = vmul.f32 %v9914, 1.442695
      %v9952 = vpow.pop %v9951
      %v9953 = vmul.f32 %v9915, 1.442695
      %v9954 = vpow.pop %v9953
      %v9955 = vmul.f32 %v9916, 1.442695
      %v9956 = vpow.pop %v9955
      %v9957 = vmul.f32 %v9917, 1.442695
      %v9958 = vpow.pop %v9957
      %v9959 = vmul.f32 %v9918, 1.442695
      %v9960 = vpow.pop %v9959
      %v9961 = vmul.f32 %v9919, 1.442695
      %v9962 = vpow.pop %v9961
      %v9963 = vmul.f32 %v9920, 1.442695
      %v9964 = vpow.pop %v9963
      %v9965 = vmul.f32 %v9921, 1.442695
      %v9966 = vpow.pop %v9965
      %v9967 = vmul.f32 %v9922, 1.442695
      %v9968 = vpow.pop %v9967
      %v9969 = vmul.f32 %v9923, 1.442695
      %v9970 = vpow.pop %v9969
      %v9971 = vmul.f32 %v9924, 1.442695
      %v9972 = vpow.pop %v9971
      %v9973 = vmul.f32 %v9925, 1.442695
      %v9974 = vpow.pop %v9973
      %v9975 = vmul.f32 %v9926, 1.442695
      %v9976 = vpow.pop %v9975
      %v9977 = vmul.f32 %v9927, 1.442695
      %v9978 = vpow.pop %v9977
      %v9979 = vmul.f32 %v9928, 1.442695
      %v9980 = vpow.pop %v9979
      %v9981 = vmul.f32 %v9929, 1.442695
      %v9982 = vpow.pop %v9981
      %v9983 = vmul.f32 %v9930, 1.442695
      %v9984 = vpow.pop %v9983
      %v9985 = vmul.f32 %v9931, 1.442695
      %v9986 = vpow.pop %v9985
      %v9987 = vmul.f32 %v9932, 1.442695
      %v9988 = vpow.pop %v9987
      %v9989 = vmul.f32 %v9933, 1.442695
      %v9990 = vpow.pop %v9989
      %v9991 = vmul.f32 %v9934, 1.442695
      %v9992 = vpow.pop %v9991
      %v9993 = vmul.f32 %v9935, 1.442695
      %v9994 = vpow.pop %v9993
      %v9995 = vmul.f32 %v9936, 1.442695
      %v9996 = vpow.pop %v9995
      %v9997 = vmul.f32 %v9937, 1.442695
      %v9998 = vpow.pop %v9997
      %v9999 = vmul.f32 %v9938, 1.442695
      %v10000 = vpow.pop %v9999
      %v10001 = vmul.f32 %v9939, 1.442695
      %v10002 = vpow.pop %v10001
      %v10003 = vmul.f32 %v9940, 1.442695
      %v10004 = vpow.pop %v10003
      %v10005 = vsub.f32 %v9942, 1.0
      %v10006 = vsub.f32 %v9944, 1.0
      %v10007 = vsub.f32 %v9946, 1.0
      %v10008 = vsub.f32 %v9948, 1.0
      %v10009 = vsub.f32 %v9950, 1.0
      %v10010 = vsub.f32 %v9952, 1.0
      %v10011 = vsub.f32 %v9954, 1.0
      %v10012 = vsub.f32 %v9956, 1.0
      %v10013 = vsub.f32 %v9958, 1.0
      %v10014 = vsub.f32 %v9960, 1.0
      %v10015 = vsub.f32 %v9962, 1.0
      %v10016 = vsub.f32 %v9964, 1.0
      %v10017 = vsub.f32 %v9966, 1.0
      %v10018 = vsub.f32 %v9968, 1.0
      %v10019 = vsub.f32 %v9970, 1.0
      %v10020 = vsub.f32 %v9972, 1.0
      %v10021 = vsub.f32 %v9974, 1.0
      %v10022 = vsub.f32 %v9976, 1.0
      %v10023 = vsub.f32 %v9978, 1.0
      %v10024 = vsub.f32 %v9980, 1.0
      %v10025 = vsub.f32 %v9982, 1.0
      %v10026 = vsub.f32 %v9984, 1.0
      %v10027 = vsub.f32 %v9986, 1.0
      %v10028 = vsub.f32 %v9988, 1.0
      %v10029 = vsub.f32 %v9990, 1.0
      %v10030 = vsub.f32 %v9992, 1.0
      %v10031 = vsub.f32 %v9994, 1.0
      %v10032 = vsub.f32 %v9996, 1.0
      %v10033 = vsub.f32 %v9998, 1.0
      %v10034 = vsub.f32 %v10000, 1.0
      %v10035 = vsub.f32 %v10002, 1.0
      %v10036 = vsub.f32 %v10004, 1.0
      %v10037 = vsel %vm9877, %v9845, %v10005
      %v10038 = vsel %vm9878, %v9846, %v10006
      %v10039 = vsel %vm9879, %v9847, %v10007
      %v10040 = vsel %vm9880, %v9848, %v10008
      %v10041 = vsel %vm9881, %v9849, %v10009
      %v10042 = vsel %vm9882, %v9850, %v10010
      %v10043 = vsel %vm9883, %v9851, %v10011
      %v10044 = vsel %vm9884, %v9852, %v10012
      %v10045 = vsel %vm9885, %v9853, %v10013
      %v10046 = vsel %vm9886, %v9854, %v10014
      %v10047 = vsel %vm9887, %v9855, %v10015
      %v10048 = vsel %vm9888, %v9856, %v10016
      %v10049 = vsel %vm9889, %v9857, %v10017
      %v10050 = vsel %vm9890, %v9858, %v10018
      %v10051 = vsel %vm9891, %v9859, %v10019
      %v10052 = vsel %vm9892, %v9860, %v10020
      %v10053 = vsel %vm9893, %v9861, %v10021
      %v10054 = vsel %vm9894, %v9862, %v10022
      %v10055 = vsel %vm9895, %v9863, %v10023
      %v10056 = vsel %vm9896, %v9864, %v10024
      %v10057 = vsel %vm9897, %v9865, %v10025
      %v10058 = vsel %vm9898, %v9866, %v10026
      %v10059 = vsel %vm9899, %v9867, %v10027
      %v10060 = vsel %vm9900, %v9868, %v10028
      %v10061 = vsel %vm9901, %v9869, %v10029
      %v10062 = vsel %vm9902, %v9870, %v10030
      %v10063 = vsel %vm9903, %v9871, %v10031
      %v10064 = vsel %vm9904, %v9872, %v10032
      %v10065 = vsel %vm9905, %v9873, %v10033
      %v10066 = vsel %vm9906, %v9874, %v10034
      %v10067 = vsel %vm9907, %v9875, %v10035
      %v10068 = vsel %vm9908, %v9876, %v10036
      %v10069 = vld [vmem:[%s11] sm:$0xf]
      %v10070 = vld [vmem:[%s11 + $0x4] sm:$0xf]
      %v10071 = vld [vmem:[%s11 + $0x8] sm:$0xf]
      %v10072 = vld [vmem:[%s11 + $0xc] sm:$0xf]
      %v10073 = vld [vmem:[%s12] sm:$0x1]
      %v10074 = vpack.c.bf16 %v10038, %v10037
      %v10075 = vpack.c.bf16 %v10040, %v10039
      %v10076 = vpack.c.bf16 %v10042, %v10041
      %v10077 = vpack.c.bf16 %v10044, %v10043
      %v10078 = vpack.c.bf16 %v10046, %v10045
      %v10079 = vpack.c.bf16 %v10048, %v10047
      %v10080 = vpack.c.bf16 %v10050, %v10049
      %v10081 = vpack.c.bf16 %v10052, %v10051
      %v10082 = vpack.c.bf16 %v10054, %v10053
      %v10083 = vpack.c.bf16 %v10056, %v10055
      %v10084 = vpack.c.bf16 %v10058, %v10057
      %v10085 = vpack.c.bf16 %v10060, %v10059
      %v10086 = vpack.c.bf16 %v10062, %v10061
      %v10087 = vpack.c.bf16 %v10064, %v10063
      %v10088 = vpack.c.bf16 %v10066, %v10065
      %v10089 = vpack.c.bf16 %v10068, %v10067
      %v10091 = vlaneseq
      %v10092 = vshrl.u32 %v10091, 7
      %v10093 = vsub.s32 0, %v10092
      %v10094 = vrot.slane %v10073, %v10093
      %v10100 = vunpack.c.l.b16 %v10069
      %v10101 = vunpack.c.l.b16 %v10070
      %v10102 = vunpack.c.l.b16 %v10071
      %v10103 = vunpack.c.l.b16 %v10072
      %v10104 = vpack.c.b16 %v10101, %v10100
      %v10105 = vpack.c.b16 %v10103, %v10102
      %v10109 = vsel %vm442, %v10074, 0
      %v10112 = vsel %vm442, %v10075, 0
      %v10115 = vsel %vm442, %v10076, 0
      %v10118 = vsel %vm442, %v10077, 0
      %v10121 = vsel %vm442, %v10078, 0
      %v10124 = vsel %vm442, %v10079, 0
      %v10127 = vsel %vm442, %v10080, 0
      %v10130 = vsel %vm442, %v10081, 0
      %v10133 = vsel %vm442, %v10082, 0
      %v10136 = vsel %vm442, %v10083, 0
      %v10139 = vsel %vm442, %v10084, 0
      %v10142 = vsel %vm442, %v10085, 0
      %v10145 = vsel %vm442, %v10086, 0
      %v10148 = vsel %vm442, %v10087, 0
      %v10151 = vsel %vm442, %v10088, 0
      %v10154 = vsel %vm442, %v10089, 0
      %10156 = vmatprep.subr.bf16.mxu0 0
      %10157 = vmatpush1.bf16.msra.mxu0 %v10104
      %10158 = vmatprep.subr.bf16.mxu0 0
      %10159 = vmatpush1.bf16.msra.mxu0 %v10105
      %10160 = vmatprep.subr.bf16.mxu0 0
      %10161 = vmatpush1.bf16.msra.mxu0 0
      %10162 = vmatprep.subr.bf16.mxu0 0
      %10163 = vmatpush1.bf16.msra.mxu0 0
      %10164 = vmatprep.subr.bf16.mxu0 0
      %10165 = vmatpush1.bf16.msra.mxu0 0
      %10166 = vmatprep.subr.bf16.mxu0 0
      %10167 = vmatpush1.bf16.msra.mxu0 0
      %10168 = vmatprep.subr.bf16.mxu0 0
      %10169 = vmatpush1.bf16.msra.mxu0 0
      %10170 = vmatprep.subr.bf16.mxu0 0
      %10171 = vmatpush1.bf16.msra.mxu0 0
      %10172 = vmatprep.subr.bf16.mxu0 0
      %10173 = vmatpush1.bf16.msra.mxu0 0
      %10174 = vmatprep.subr.bf16.mxu0 0
      %10175 = vmatpush1.bf16.msra.mxu0 0
      %10176 = vmatprep.subr.bf16.mxu0 0
      %10177 = vmatpush1.bf16.msra.mxu0 0
      %10178 = vmatprep.subr.bf16.mxu0 0
      %10179 = vmatpush1.bf16.msra.mxu0 0
      %10180 = vmatprep.subr.bf16.mxu0 0
      %10181 = vmatpush1.bf16.msra.mxu0 0
      %10182 = vmatprep.subr.bf16.mxu0 0
      %10183 = vmatpush1.bf16.msra.mxu0 0
      %10184 = vmatprep.subr.bf16.mxu0 0
      %10185 = vmatpush1.bf16.msra.mxu0 0
      %10186 = vmatprep.subr.bf16.mxu0 0
      %10187 = vmatpush1.bf16.msra.mxu0 0
      %10188 = vmatprep.mubr.bf16.mxu0 0
      %10189 = vmatmul.mubr.bf16.gmra.mrb[0].mxu0 %v10109
      %v10190 = vpop.f32.mrb[0].mxu0
      %v10191 = vadd.f32 %v10094, %v10190
      %v10192 = vpop.f32.mrb[0].mxu0
      %v10193 = vpop.f32.mrb[0].mxu0
      %v10194 = vadd.f32 %v10094, %v10193
      %v10195 = vpop.f32.mrb[0].mxu0
      %10196 = vmatprep.mubr.bf16.mxu0 0
      %10197 = vmatmul.mubr.bf16.gmra.mrb[0].mxu0 %v10112
      %v10198 = vpop.f32.mrb[0].mxu0
      %v10199 = vadd.f32 %v10094, %v10198
      %v10200 = vpop.f32.mrb[0].mxu0
      %v10201 = vpop.f32.mrb[0].mxu0
      %v10202 = vadd.f32 %v10094, %v10201
      %v10203 = vpop.f32.mrb[0].mxu0
      %10204 = vmatprep.mubr.bf16.mxu0 0
      %10205 = vmatmul.mubr.bf16.gmra.mrb[0].mxu0 %v10115
      %v10206 = vpop.f32.mrb[0].mxu0
      %v10207 = vadd.f32 %v10094, %v10206
      %v10208 = vpop.f32.mrb[0].mxu0
      %v10209 = vpop.f32.mrb[0].mxu0
      %v10210 = vadd.f32 %v10094, %v10209
      %v10211 = vpop.f32.mrb[0].mxu0
      %10212 = vmatprep.mubr.bf16.mxu0 0
      %10213 = vmatmul.mubr.bf16.gmra.mrb[0].mxu0 %v10118
      %v10214 = vpop.f32.mrb[0].mxu0
      %v10215 = vadd.f32 %v10094, %v10214
      %v10216 = vpop.f32.mrb[0].mxu0
      %v10217 = vpop.f32.mrb[0].mxu0
      %v10218 = vadd.f32 %v10094, %v10217
      %v10219 = vpop.f32.mrb[0].mxu0
      %10220 = vmatprep.mubr.bf16.mxu0 0
      %10221 = vmatmul.mubr.bf16.gmra.mrb[0].mxu0 %v10121
      %v10222 = vpop.f32.mrb[0].mxu0
      %v10223 = vadd.f32 %v10094, %v10222
      %v10224 = vpop.f32.mrb[0].mxu0
      %v10225 = vpop.f32.mrb[0].mxu0
      %v10226 = vadd.f32 %v10094, %v10225
      %v10227 = vpop.f32.mrb[0].mxu0
      %10228 = vmatprep.mubr.bf16.mxu0 0
      %10229 = vmatmul.mubr.bf16.gmra.mrb[0].mxu0 %v10124
      %v10230 = vpop.f32.mrb[0].mxu0
      %v10231 = vadd.f32 %v10094, %v10230
      %v10232 = vpop.f32.mrb[0].mxu0
      %v10233 = vpop.f32.mrb[0].mxu0
      %v10234 = vadd.f32 %v10094, %v10233
      %v10235 = vpop.f32.mrb[0].mxu0
      %10236 = vmatprep.mubr.bf16.mxu0 0
      %10237 = vmatmul.mubr.bf16.gmra.mrb[0].mxu0 %v10127
      %v10238 = vpop.f32.mrb[0].mxu0
      %v10239 = vadd.f32 %v10094, %v10238
      %v10240 = vpop.f32.mrb[0].mxu0
      %v10241 = vpop.f32.mrb[0].mxu0
      %v10242 = vadd.f32 %v10094, %v10241
      %v10243 = vpop.f32.mrb[0].mxu0
      %10244 = vmatprep.mubr.bf16.mxu0 0
      %10245 = vmatmul.mubr.bf16.gmra.mrb[0].mxu0 %v10130
      %v10246 = vpop.f32.mrb[0].mxu0
      %v10247 = vadd.f32 %v10094, %v10246
      %v10248 = vpop.f32.mrb[0].mxu0
      %v10249 = vpop.f32.mrb[0].mxu0
      %v10250 = vadd.f32 %v10094, %v10249
      %v10251 = vpop.f32.mrb[0].mxu0
      %10252 = vmatprep.mubr.bf16.mxu0 0
      %10253 = vmatmul.mubr.bf16.gmra.mrb[0].mxu0 %v10133
      %v10254 = vpop.f32.mrb[0].mxu0
      %v10255 = vadd.f32 %v10094, %v10254
      %v10256 = vpop.f32.mrb[0].mxu0
      %v10257 = vpop.f32.mrb[0].mxu0
      %v10258 = vadd.f32 %v10094, %v10257
      %v10259 = vpop.f32.mrb[0].mxu0
      %10260 = vmatprep.mubr.bf16.mxu0 0
      %10261 = vmatmul.mubr.bf16.gmra.mrb[0].mxu0 %v10136
      %v10262 = vpop.f32.mrb[0].mxu0
      %v10263 = vadd.f32 %v10094, %v10262
      %v10264 = vpop.f32.mrb[0].mxu0
      %v10265 = vpop.f32.mrb[0].mxu0
      %v10266 = vadd.f32 %v10094, %v10265
      %v10267 = vpop.f32.mrb[0].mxu0
      %10268 = vmatprep.mubr.bf16.mxu0 0
      %10269 = vmatmul.mubr.bf16.gmra.mrb[0].mxu0 %v10139
      %v10270 = vpop.f32.mrb[0].mxu0
      %v10271 = vadd.f32 %v10094, %v10270
      %v10272 = vpop.f32.mrb[0].mxu0
      %v10273 = vpop.f32.mrb[0].mxu0
      %v10274 = vadd.f32 %v10094, %v10273
      %v10275 = vpop.f32.mrb[0].mxu0
      %10276 = vmatprep.mubr.bf16.mxu0 0
      %10277 = vmatmul.mubr.bf16.gmra.mrb[0].mxu0 %v10142
      %v10278 = vpop.f32.mrb[0].mxu0
      %v10279 = vadd.f32 %v10094, %v10278
      %v10280 = vpop.f32.mrb[0].mxu0
      %v10281 = vpop.f32.mrb[0].mxu0
      %v10282 = vadd.f32 %v10094, %v10281
      %v10283 = vpop.f32.mrb[0].mxu0
      %10284 = vmatprep.mubr.bf16.mxu0 0
      %10285 = vmatmul.mubr.bf16.gmra.mrb[0].mxu0 %v10145
      %v10286 = vpop.f32.mrb[0].mxu0
      %v10287 = vadd.f32 %v10094, %v10286
      %v10288 = vpop.f32.mrb[0].mxu0
      %v10289 = vpop.f32.mrb[0].mxu0
      %v10290 = vadd.f32 %v10094, %v10289
      %v10291 = vpop.f32.mrb[0].mxu0
      %10292 = vmatprep.mubr.bf16.mxu0 0
      %10293 = vmatmul.mubr.bf16.gmra.mrb[0].mxu0 %v10148
      %v10294 = vpop.f32.mrb[0].mxu0
      %v10295 = vadd.f32 %v10094, %v10294
      %v10296 = vpop.f32.mrb[0].mxu0
      %v10297 = vpop.f32.mrb[0].mxu0
      %v10298 = vadd.f32 %v10094, %v10297
      %v10299 = vpop.f32.mrb[0].mxu0
      %10300 = vmatprep.mubr.bf16.mxu0 0
      %10301 = vmatmul.mubr.bf16.gmra.mrb[0].mxu0 %v10151
      %v10302 = vpop.f32.mrb[0].mxu0
      %v10303 = vadd.f32 %v10094, %v10302
      %v10304 = vpop.f32.mrb[0].mxu0
      %v10305 = vpop.f32.mrb[0].mxu0
      %v10306 = vadd.f32 %v10094, %v10305
      %v10307 = vpop.f32.mrb[0].mxu0
      %10308 = vmatprep.mubr.bf16.mxu0 0
      %10309 = vmatmul.mubr.bf16.gmra.mrb[0].mxu0 %v10154
      %v10310 = vpop.f32.mrb[0].mxu0
      %v10311 = vadd.f32 %v10094, %v10310
      %v10312 = vpop.f32.mrb[0].mxu0
      %v10313 = vpop.f32.mrb[0].mxu0
      %v10314 = vadd.f32 %v10094, %v10313
      %v10315 = vpop.f32.mrb[0].mxu0
      %10316 = vdwg.mxu0
      %vm10317 = vcmask 130048
      %10318 = vst.msk [vmem:[%s440] sm:$0xff] %vm10317, %v10191
      %10319 = vst.msk [vmem:[%s440 + $0x8] sm:$0xff] %vm10317, %v10194
      %10320 = vst.msk [vmem:[%s440 + $0x10] sm:$0xff] %vm10317, %v10199
      %10321 = vst.msk [vmem:[%s440 + $0x18] sm:$0xff] %vm10317, %v10202
      %10322 = vst.msk [vmem:[%s440 + $0x20] sm:$0xff] %vm10317, %v10207
      %10323 = vst.msk [vmem:[%s440 + $0x28] sm:$0xff] %vm10317, %v10210
      %10324 = vst.msk [vmem:[%s440 + $0x30] sm:$0xff] %vm10317, %v10215
      %10325 = vst.msk [vmem:[%s440 + $0x38] sm:$0xff] %vm10317, %v10218
      %10326 = vst.msk [vmem:[%s440 + $0x40] sm:$0xff] %vm10317, %v10223
      %10327 = vst.msk [vmem:[%s440 + $0x48] sm:$0xff] %vm10317, %v10226
      %10328 = vst.msk [vmem:[%s440 + $0x50] sm:$0xff] %vm10317, %v10231
      %10329 = vst.msk [vmem:[%s440 + $0x58] sm:$0xff] %vm10317, %v10234
      %10330 = vst.msk [vmem:[%s440 + $0x60] sm:$0xff] %vm10317, %v10239
      %10331 = vst.msk [vmem:[%s440 + $0x68] sm:$0xff] %vm10317, %v10242
      %10332 = vst.msk [vmem:[%s440 + $0x70] sm:$0xff] %vm10317, %v10247
      %10333 = vst.msk [vmem:[%s440 + $0x78] sm:$0xff] %vm10317, %v10250
      %10334 = vst.msk [vmem:[%s440 + $0x80] sm:$0xff] %vm10317, %v10255
      %10335 = vst.msk [vmem:[%s440 + $0x88] sm:$0xff] %vm10317, %v10258
      %10336 = vst.msk [vmem:[%s440 + $0x90] sm:$0xff] %vm10317, %v10263
      %10337 = vst.msk [vmem:[%s440 + $0x98] sm:$0xff] %vm10317, %v10266
      %10338 = vst.msk [vmem:[%s440 + $0xa0] sm:$0xff] %vm10317, %v10271
      %10339 = vst.msk [vmem:[%s440 + $0xa8] sm:$0xff] %vm10317, %v10274
      %10340 = vst.msk [vmem:[%s440 + $0xb0] sm:$0xff] %vm10317, %v10279
      %10341 = vst.msk [vmem:[%s440 + $0xb8] sm:$0xff] %vm10317, %v10282
      %10342 = vst.msk [vmem:[%s440 + $0xc0] sm:$0xff] %vm10317, %v10287
      %10343 = vst.msk [vmem:[%s440 + $0xc8] sm:$0xff] %vm10317, %v10290
      %10344 = vst.msk [vmem:[%s440 + $0xd0] sm:$0xff] %vm10317, %v10295
      %10345 = vst.msk [vmem:[%s440 + $0xd8] sm:$0xff] %vm10317, %v10298
      %10346 = vst.msk [vmem:[%s440 + $0xe0] sm:$0xff] %vm10317, %v10303
      %10347 = vst.msk [vmem:[%s440 + $0xe8] sm:$0xff] %vm10317, %v10306
      %10348 = vst.msk [vmem:[%s440 + $0xf0] sm:$0xff] %vm10317, %v10311
      %10349 = vst.msk [vmem:[%s440 + $0xf8] sm:$0xff] %vm10317, %v10314
      %p10350 = scmp.lt.s32.totalorder %s24, 1
      %s10351 = scalar_select %p10350, %s24, 1
      %s10352 = smul.addr %s10351, 32
      %s10353 = smul.addr %s10352, 8
      %s10354 = scalar_lea.vmem %s13, %s10353
      // Predicated region
      $region73: #{gated_pixelcnn_forward.1} parent=71 // pred_check
        %p10355 = pneg %p320
      $region74: #{gated_pixelcnn_forward.1} parent=71 // pred_check_branch
        %10357 = sbr.rel (%p10355) target = $region76
      $region75: #{gated_pixelcnn_forward.1} parent=71 // pred_region
        _
      $region76: #{gated_pixelcnn_forward.1} parent=71 // pred_fallthru
        _
    $region72: #{gated_pixelcnn_forward.1} parent=5 // pred_fallthru
      _
    %p10358 = scmp.le.s32.totalorder 2, %s19
    // Predicated region
    $region77: #{gated_pixelcnn_forward.1} parent=5 // pred_check
      %p10359 = pneg %p10358
    $region78: #{gated_pixelcnn_forward.1} parent=5 // pred_check_branch
      %10361 = sbr.rel (%p10359) target = $region80
    $region79: #{gated_pixelcnn_forward.1} parent=5 // pred_region
      %s10362 = ssub.s32 %s19, 2
      // Predicated region
      $region81: #{gated_pixelcnn_forward.1} parent=79 // pred_check
        %p10363 = pneg %p326
      $region82: #{gated_pixelcnn_forward.1} parent=79 // pred_check_branch
        %10365 = sbr.rel (%p10363) target = $region84
      $region83: #{gated_pixelcnn_forward.1} parent=79 // pred_region
        %p10366 = scmp.lt.s32.totalorder %s25, 1
        %s10367 = scalar_select %p10366, %s25, 1
        %s10368 = smul.addr %s10367, 32
        %s10369 = smul.addr %s10368, 8
        %s10370 = scalar_lea.vmem %s13, %s10369
      $region84: #{gated_pixelcnn_forward.1} parent=79 // pred_fallthru
        _
    $region80: #{gated_pixelcnn_forward.1} parent=5 // pred_fallthru
      _
  $region6: #{gated_pixelcnn_forward.1} parent=0 // loop_footer
    %s23 = sadd.s32 1, %s19
  $region7: #{gated_pixelcnn_forward.1} parent=0 // loop_footer_branch
    %18 = sbr.rel target = $region3
  $region8: #{gated_pixelcnn_forward.1} parent=0 // loop_exit
    _

</llo_original>
